<compile_context>
chip_gen: v5e
topology: v5e:2x2
jax: 0.10.0
libtpu: 0.0.40
codegen_flags: <defaults>
</compile_context>

<pallas_src>
from functools import partial

import jax
import jax.numpy as jnp
from jax.experimental import pallas as pl
from jax.experimental.pallas import tpu as pltpu


# ---------------------------------------------------------------------------
# Consolidated-parameter layout helpers (shared by host prep and the kernel)
# ---------------------------------------------------------------------------

def _vec_layout(n_enc, n_dec):
    """Row indices into the (R, d_model) f32 slab holding all small vectors."""
    idx = {}
    r = 0

    def take(name):
        nonlocal r
        idx[name] = r
        r += 1

    take("emb_b")
    for i in range(n_enc):
        for nm in ("b_attn", "bf2", "g1", "bn1", "g2", "bn2"):
            take(f"enc{i}_{nm}")
    for i in range(n_dec):
        for nm in ("b_sattn", "b_cattn", "bf2", "g1", "bn1", "g2", "bn2", "g3", "bn3"):
            take(f"dec{i}_{nm}")
    return idx, r


# ---------------------------------------------------------------------------
# Kernel
# ---------------------------------------------------------------------------

def fused_tft_kernel(n_enc, n_dec, d_ff_chunk,
                     x_ref, sqw_ref, crossw_ref, w1_ref, w2_ref,
                     vec_ref, bf1_ref, fcw_ref, fcb_ref, o_ref):
    """One fused forward pass.  All refs are full-array VMEM blocks.

    sqw_ref   : (1 + n_enc + n_dec, d_model, d_model) bf16
                [embedding, enc attn (W+I folded), dec self-attn (W+I folded)]
    crossw_ref: (d_model, n_dec*d_model) bf16   hoisted decoder cross-attn weights
    w1_ref    : (n_enc+n_dec, d_model, d_ff)   bf16
    w2_ref    : (n_enc+n_dec, d_ff, d_model)   bf16 (natural MXU layout)
    vec_ref   : (R, d_model) f32  — all biases / LN gains / LN betas
    bf1_ref   : (n_enc+n_dec, d_ff) f32
    fcw_ref   : (d_model, out_pad) bf16,  fcb_ref: (1, out_pad) f32
    """
    vidx, _ = _vec_layout(n_enc, n_dec)
    d_ff = w1_ref.shape[2]
    d_model = sqw_ref.shape[2]
    n_chunks = d_ff // d_ff_chunk

    def vrow(name):
        return vec_ref[pl.ds(vidx[name], 1), :]            # (1, d_model) f32

    def mm(h_f32, w_bf16, b_f32):
        # bf16 operands on the MXU, f32 accumulation, f32 bias add.
        y = jnp.dot(h_f32.astype(jnp.bfloat16), w_bf16,
                    preferred_element_type=jnp.float32)
        return y + b_f32

    def layernorm(v, g, b, eps=1e-5):
        # f32 math, biased variance, eps=1e-5 (PyTorch defaults)
        mu = jnp.mean(v, axis=-1, keepdims=True)
        vc = v - mu
        var = jnp.mean(vc * vc, axis=-1, keepdims=True)
        return vc * jax.lax.rsqrt(var + eps) * g + b

    def ffn(h, li, bf2_row):
        # Chunked over d_ff: caps live vregs (no full (B, d_ff) f32 intermediate).
        h_bf = h.astype(jnp.bfloat16)
        acc = jnp.zeros((h.shape[0], d_model), jnp.float32)
        for c in range(n_chunks):
            s = c * d_ff_chunk
            w1c = w1_ref[li, :, pl.ds(s, d_ff_chunk)]              # (d_model, chunk)
            b1c = bf1_ref[pl.ds(li, 1), pl.ds(s, d_ff_chunk)]      # (1, chunk)
            ff = jnp.maximum(
                jnp.dot(h_bf, w1c, preferred_element_type=jnp.float32) + b1c, 0.0)
            w2c = w2_ref[li, pl.ds(s, d_ff_chunk), :]              # (chunk, d_model)
            acc = acc + jnp.dot(ff.astype(jnp.bfloat16), w2c,
                                preferred_element_type=jnp.float32)
        return acc + bf2_row

    x = x_ref[...]                                                 # (B, in_size) f32

    # embedding (the unsqueeze(1) seq axis of length 1 stays implicit)
    emb = mm(x, sqw_ref[0], vrow("emb_b"))                         # (B, d_model)

    # --- encoder stack (post-norm, ReLU FFN, eval mode) ----------------------
    h = emb
    for i in range(n_enc):
        # residual folded into the attention weight: h + (h@W + b) = h@(W+I) + b
        a = mm(h, sqw_ref[1 + i], vrow(f"enc{i}_b_attn"))
        h = layernorm(a, vrow(f"enc{i}_g1"), vrow(f"enc{i}_bn1"))
        f = ffn(h, i, vrow(f"enc{i}_bf2"))
        h = layernorm(h + f, vrow(f"enc{i}_g2"), vrow(f"enc{i}_bn2"))
    memory = h

    # --- decoder cross-attention (depends only on memory): one matmul --------
    cross_all = jnp.dot(memory.astype(jnp.bfloat16), crossw_ref[...],
                        preferred_element_type=jnp.float32)        # (B, n_dec*d_model)

    # --- decoder stack: tgt = embedding output, memory = encoder output ------
    d = emb
    for i in range(n_dec):
        sa = mm(d, sqw_ref[1 + n_enc + i], vrow(f"dec{i}_b_sattn"))   # residual folded
        d = layernorm(sa, vrow(f"dec{i}_g1"), vrow(f"dec{i}_bn1"))
        ca = cross_all[:, i * d_model:(i + 1) * d_model] + vrow(f"dec{i}_b_cattn")
        d = layernorm(d + ca, vrow(f"dec{i}_g2"), vrow(f"dec{i}_bn2"))
        f = ffn(d, n_enc + i, vrow(f"dec{i}_bf2"))
        d = layernorm(d + f, vrow(f"dec{i}_g3"), vrow(f"dec{i}_bn3"))

    # decoder_output[:, -1, :] with seq_len == 1 is the only token -> fc
    out = jnp.dot(d.astype(jnp.bfloat16), fcw_ref[...],
                  preferred_element_type=jnp.float32) + fcb_ref[...]
    o_ref[...] = out.astype(o_ref.dtype)


# ---------------------------------------------------------------------------
# Parameters (deterministic synthetic init), host-side consolidation, reference
# ---------------------------------------------------------------------------

def init_params(key, in_size, d_model, d_ff, out_dim, n_enc, n_dec):
    """Raw f32 parameters in (in, out) layout."""
    keys = iter(jax.random.split(key, 512))

    def mat(shape, scale=0.05):
        return (scale * jax.random.normal(next(keys), shape)).astype(jnp.float32)

    def vec(d, scale=0.01):
        return (scale * jax.random.normal(next(keys), (1, d))).astype(jnp.float32)

    ones = lambda d: jnp.ones((1, d), jnp.float32)
    zeros = lambda d: jnp.zeros((1, d), jnp.float32)

    def enc_layer():
        return dict(
            wv=mat((d_model, d_model)), bv=vec(d_model),
            wo=mat((d_model, d_model)), bo=vec(d_model),
            g1=ones(d_model), bn1=zeros(d_model),
            w1=mat((d_model, d_ff)), bf1=vec(d_ff),
            w2=mat((d_ff, d_model)), bf2=vec(d_model),
            g2=ones(d_model), bn2=zeros(d_model))

    def dec_layer():
        return dict(
            swv=mat((d_model, d_model)), sbv=vec(d_model),
            swo=mat((d_model, d_model)), sbo=vec(d_model),
            g1=ones(d_model), bn1=zeros(d_model),
            cwv=mat((d_model, d_model)), cbv=vec(d_model),
            cwo=mat((d_model, d_model)), cbo=vec(d_model),
            g2=ones(d_model), bn2=zeros(d_model),
            w1=mat((d_model, d_ff)), bf1=vec(d_ff),
            w2=mat((d_ff, d_model)), bf2=vec(d_model),
            g3=ones(d_model), bn3=zeros(d_model))

    return dict(
        emb_w=mat((in_size, d_model)), emb_b=vec(d_model),
        enc=[enc_layer() for _ in range(n_enc)],
        dec=[dec_layer() for _ in range(n_dec)],
        fc_w=mat((d_model, out_dim)), fc_b=vec(out_dim))


def prepare_params(raw, n_enc, n_dec, out_dim, out_pad=128):
    """Fold attention pairs (+ residual identity), stack into a few big arrays.

    NOTE: the (wv@wo) attention fold (and dropping softmax entirely) is exact
    ONLY for seq_len == 1, which this module guarantees via x.unsqueeze(1).
    """
    bf16 = jnp.bfloat16
    d_model = raw["emb_w"].shape[1]
    eye = jnp.eye(d_model, dtype=jnp.float32)

    def fold_attn(wv, bv, wo, bo, add_identity):
        # softmax over one key == 1  =>  attn = x @ (wv @ wo) + (bv @ wo + bo)
        w = jnp.dot(wv, wo, preferred_element_type=jnp.float32)
        b = jnp.dot(bv, wo, preferred_element_type=jnp.float32) + bo
        if add_identity:                      # fold the residual: x + attn = x@(W+I)+b
            w = w + eye
        return w, b

    rows = {"emb_b": raw["emb_b"]}
    sq = [raw["emb_w"]]
    cross_ws = []

    for i, lp in enumerate(raw["enc"]):
        w_a, b_a = fold_attn(lp["wv"], lp["bv"], lp["wo"], lp["bo"], True)
        sq.append(w_a)
        rows[f"enc{i}_b_attn"] = b_a
        rows[f"enc{i}_bf2"] = lp["bf2"]
        rows[f"enc{i}_g1"] = lp["g1"]; rows[f"enc{i}_bn1"] = lp["bn1"]
        rows[f"enc{i}_g2"] = lp["g2"]; rows[f"enc{i}_bn2"] = lp["bn2"]

    for i, lp in enumerate(raw["dec"]):
        w_s, b_s = fold_attn(lp["swv"], lp["sbv"], lp["swo"], lp["sbo"], True)
        w_c, b_c = fold_attn(lp["cwv"], lp["cbv"], lp["cwo"], lp["cbo"], False)
        sq.append(w_s)
        cross_ws.append(w_c)
        rows[f"dec{i}_b_sattn"] = b_s
        rows[f"dec{i}_b_cattn"] = b_c
        rows[f"dec{i}_bf2"] = lp["bf2"]
        rows[f"dec{i}_g1"] = lp["g1"]; rows[f"dec{i}_bn1"] = lp["bn1"]
        rows[f"dec{i}_g2"] = lp["g2"]; rows[f"dec{i}_bn2"] = lp["bn2"]
        rows[f"dec{i}_g3"] = lp["g3"]; rows[f"dec{i}_bn3"] = lp["bn3"]

    vidx, n_rows = _vec_layout(n_enc, n_dec)
    order = sorted(vidx.items(), key=lambda kv: kv[1])
    vec_slab = jnp.concatenate([rows[name] for name, _ in order], axis=0)
    assert vec_slab.shape == (n_rows, d_model)

    all_layers = list(raw["enc"]) + list(raw["dec"])
    w1 = jnp.stack([lp["w1"] for lp in all_layers]).astype(bf16)        # (L, dm, dff)
    w2 = jnp.stack([lp["w2"] for lp in all_layers]).astype(bf16)        # (L, dff, dm)
    bf1 = jnp.concatenate([lp["bf1"] for lp in all_layers], axis=0)     # (L, dff) f32

    fc_w_pad = jnp.zeros((d_model, out_pad), jnp.float32).at[:, :out_dim].set(raw["fc_w"])
    fc_b_pad = jnp.zeros((1, out_pad), jnp.float32).at[:, :out_dim].set(raw["fc_b"])

    return dict(
        sq_w=jnp.stack(sq).astype(bf16),                     # (1+n_enc+n_dec, dm, dm)
        cross_w=jnp.concatenate(cross_ws, axis=1).astype(bf16),   # (dm, n_dec*dm)
        w1=w1, w2=w2, vec=vec_slab, bf1=bf1,
        fc_w=fc_w_pad.astype(bf16), fc_b=fc_b_pad)


def reference_forward(raw, x, in_size):
    """Pure-JAX f32 reference of the PyTorch forward (eval mode, seq_len == 1)."""
    xr = x.reshape(-1, in_size).astype(jnp.float32)

    def ln(v, g, b, eps=1e-5):
        mu = v.mean(-1, keepdims=True)
        vc = v - mu
        var = (vc * vc).mean(-1, keepdims=True)
        return vc * jax.lax.rsqrt(var + eps) * g + b

    def attn(src, wv, bv, wo, bo):
        # seq_len == 1: softmax over a single key == 1
        return (src @ wv + bv) @ wo + bo

    emb = xr @ raw["emb_w"] + raw["emb_b"]
    h = emb
    for lp in raw["enc"]:
        h = ln(h + attn(h, lp["wv"], lp["bv"], lp["wo"], lp["bo"]), lp["g1"], lp["bn1"])
        ff = jnp.maximum(h @ lp["w1"] + lp["bf1"], 0.0) @ lp["w2"] + lp["bf2"]
        h = ln(h + ff, lp["g2"], lp["bn2"])
    mem = h
    d = emb
    for lp in raw["dec"]:
        d = ln(d + attn(d, lp["swv"], lp["sbv"], lp["swo"], lp["sbo"]), lp["g1"], lp["bn1"])
        d = ln(d + attn(mem, lp["cwv"], lp["cbv"], lp["cwo"], lp["cbo"]), lp["g2"], lp["bn2"])
        ff = jnp.maximum(d @ lp["w1"] + lp["bf1"], 0.0) @ lp["w2"] + lp["bf2"]
        d = ln(d + ff, lp["g3"], lp["bn3"])
    return d @ raw["fc_w"] + raw["fc_b"]


# ---------------------------------------------------------------------------
# Forward pass: single fused pallas_call, wrapped in jax.jit
# ---------------------------------------------------------------------------

@partial(jax.jit,
         static_argnames=("in_size", "out_dim", "n_enc", "n_dec", "out_pad", "d_ff_chunk"))
def tft_forward(params, x, *, in_size, out_dim, n_enc, n_dec,
                out_pad=128, d_ff_chunk=512):
    xr = x.reshape(-1, in_size).astype(jnp.float32)           # x.view(-1, in_size)
    B = xr.shape[0]
    assert params["w1"].shape[2] % d_ff_chunk == 0

    kernel = partial(fused_tft_kernel, n_enc, n_dec, d_ff_chunk)
    vmem = pl.BlockSpec(memory_space=pltpu.MemorySpace.VMEM)

    out_padded = pl.pallas_call(
        kernel,
        out_shape=jax.ShapeDtypeStruct((B, out_pad), jnp.float32),
        in_specs=[vmem] * 9,
        out_specs=vmem,
    )(xr, params["sq_w"], params["cross_w"], params["w1"], params["w2"],
      params["vec"], params["bf1"], params["fc_w"], params["fc_b"])

    return out_padded[:, :out_dim]


# ---------------------------------------------------------------------------
# Example run
# ---------------------------------------------------------------------------

if __name__ == "__main__":
    # Module hyperparameters (small, consistent with the PyTorch forward)
    input_dim = (4, 8)            # in_size = 32
    output_dim = 8
    d_model_req = 32
    nhead = 4
    num_encoder_layers = 2
    num_decoder_layers = 2
    dim_feedforward = 2048        # PyTorch TransformerEncoder/DecoderLayer default

    # d_model rounding exactly as in the module __init__
    d_model = (d_model_req + (nhead - d_model_req % nhead)
               if d_model_req % nhead != 0 else d_model_req)
    in_size = input_dim[0] * input_dim[1]

    B = 16                        # batch of tokens

    key = jax.random.PRNGKey(0)
    kx, kp = jax.random.split(key)
    x = jax.random.normal(kx, (B,) + tuple(input_dim), dtype=jnp.float32)

    raw = init_params(kp, in_size, d_model, dim_feedforward, output_dim,
                      num_encoder_layers, num_decoder_layers)
    prep = prepare_params(raw, num_encoder_layers, num_decoder_layers, output_dim)

    out = tft_forward(prep, x, in_size=in_size, out_dim=output_dim,
                      n_enc=num_encoder_layers, n_dec=num_decoder_layers)
    out = jax.block_until_ready(out)
    assert out.shape == (B, output_dim), out.shape
    assert bool(jnp.all(jnp.isfinite(out)))

    # Sanity check vs pure-JAX f32 reference (bf16 weights => ~1e-2 level error).
    ref = reference_forward(raw, x, in_size)
    max_err = float(jnp.max(jnp.abs(out - ref)))
    assert max_err < 1e-1, f"max abs error vs f32 reference: {max_err}"

    print("KERNEL_OK")
</pallas_src>

<mosaic_0001>
module attributes {stable_mosaic.version = 11 : i64} {
  func.func @fused_tft_kernel(%arg0: memref<16x32xf32, #tpu.memory_space<vmem>>, %arg1: memref<5x32x32xbf16, #tpu.memory_space<vmem>>, %arg2: memref<32x64xbf16, #tpu.memory_space<vmem>>, %arg3: memref<4x32x2048xbf16, #tpu.memory_space<vmem>>, %arg4: memref<4x2048x32xbf16, #tpu.memory_space<vmem>>, %arg5: memref<31x32xf32, #tpu.memory_space<vmem>>, %arg6: memref<4x2048xf32, #tpu.memory_space<vmem>>, %arg7: memref<32x128xbf16, #tpu.memory_space<vmem>>, %arg8: memref<1x128xf32, #tpu.memory_space<vmem>>, %arg9: memref<16x128xf32, #tpu.memory_space<vmem>>) attributes {dimension_semantics = [], scalar_prefetch = 0 : i64, scratch_operands = 0 : i64, tpu.core_type = #tpu.core_type<tc>} {
    %c0 = arith.constant 0 : index
    %c0_0 = arith.constant 0 : index
    %0 = vector.load %arg0[%c0, %c0_0] : memref<16x32xf32, #tpu.memory_space<vmem>>, vector<16x32xf32>
    %c0_1 = arith.constant 0 : index
    %c0_2 = arith.constant 0 : index
    %c0_3 = arith.constant 0 : index
    %1 = vector.load %arg1[%c0_1, %c0_2, %c0_3] : memref<5x32x32xbf16, #tpu.memory_space<vmem>>, vector<1x32x32xbf16>
    %2 = vector.shape_cast %1 : vector<1x32x32xbf16> to vector<32x32xbf16>
    %c0_4 = arith.constant 0 : index
    %c0_5 = arith.constant 0 : index
    %3 = vector.load %arg5[%c0_4, %c0_5] : memref<31x32xf32, #tpu.memory_space<vmem>>, vector<1x32xf32>
    %4 = arith.truncf %0 : vector<16x32xf32> to vector<16x32xbf16>
    %cst = arith.constant dense<0.000000e+00> : vector<16x32xf32>
    %5 = tpu.matmul %4, %2, %cst {dimension_numbers = #tpu.dot_dimension_numbers<[1], [0], [0], [1], [0, 0, 1, 1], [], []>} : vector<16x32xbf16>, vector<32x32xbf16>, vector<16x32xf32> -> vector<16x32xf32>
    %6 = vector.broadcast %3 : vector<1x32xf32> to vector<16x32xf32>
    %7 = arith.addf %5, %6 : vector<16x32xf32>
    %c1 = arith.constant 1 : index
    %c0_6 = arith.constant 0 : index
    %c0_7 = arith.constant 0 : index
    %8 = vector.load %arg1[%c1, %c0_6, %c0_7] : memref<5x32x32xbf16, #tpu.memory_space<vmem>>, vector<1x32x32xbf16>
    %9 = vector.shape_cast %8 : vector<1x32x32xbf16> to vector<32x32xbf16>
    %c1_8 = arith.constant 1 : index
    %c0_9 = arith.constant 0 : index
    %10 = vector.load %arg5[%c1_8, %c0_9] : memref<31x32xf32, #tpu.memory_space<vmem>>, vector<1x32xf32>
    %11 = arith.truncf %7 : vector<16x32xf32> to vector<16x32xbf16>
    %cst_10 = arith.constant dense<0.000000e+00> : vector<16x32xf32>
    %12 = tpu.matmul %11, %9, %cst_10 {dimension_numbers = #tpu.dot_dimension_numbers<[1], [0], [0], [1], [0, 0, 1, 1], [], []>} : vector<16x32xbf16>, vector<32x32xbf16>, vector<16x32xf32> -> vector<16x32xf32>
    %13 = vector.broadcast %10 : vector<1x32xf32> to vector<16x32xf32>
    %14 = arith.addf %12, %13 : vector<16x32xf32>
    %c3 = arith.constant 3 : index
    %c0_11 = arith.constant 0 : index
    %15 = vector.load %arg5[%c3, %c0_11] : memref<31x32xf32, #tpu.memory_space<vmem>>, vector<1x32xf32>
    %c4 = arith.constant 4 : index
    %c0_12 = arith.constant 0 : index
    %16 = vector.load %arg5[%c4, %c0_12] : memref<31x32xf32, #tpu.memory_space<vmem>>, vector<1x32xf32>
    %cst_13 = arith.constant dense<0.000000e+00> : vector<16xf32>
    %17 = vector.multi_reduction <add>, %14, %cst_13 [1] : vector<16x32xf32> to vector<16xf32>
    %18 = vector.shape_cast %17 : vector<16xf32> to vector<16x1xf32>
    %cst_14 = arith.constant 3.200000e+01 : f32
    %19 = vector.broadcast %cst_14 : f32 to vector<16x1xf32>
    %20 = arith.divf %18, %19 : vector<16x1xf32>
    %21 = vector.broadcast %20 : vector<16x1xf32> to vector<16x32xf32>
    %22 = arith.subf %14, %21 : vector<16x32xf32>
    %23 = arith.mulf %22, %22 : vector<16x32xf32>
    %cst_15 = arith.constant dense<0.000000e+00> : vector<16xf32>
    %24 = vector.multi_reduction <add>, %23, %cst_15 [1] : vector<16x32xf32> to vector<16xf32>
    %25 = vector.shape_cast %24 : vector<16xf32> to vector<16x1xf32>
    %cst_16 = arith.constant 3.200000e+01 : f32
    %26 = vector.broadcast %cst_16 : f32 to vector<16x1xf32>
    %27 = arith.divf %25, %26 : vector<16x1xf32>
    %cst_17 = arith.constant 9.99999974E-6 : f32
    %28 = vector.broadcast %cst_17 : f32 to vector<16x1xf32>
    %29 = arith.addf %27, %28 : vector<16x1xf32>
    %30 = math.rsqrt %29 : vector<16x1xf32>
    %31 = vector.broadcast %30 : vector<16x1xf32> to vector<16x32xf32>
    %32 = arith.mulf %22, %31 : vector<16x32xf32>
    %33 = vector.broadcast %15 : vector<1x32xf32> to vector<16x32xf32>
    %34 = arith.mulf %32, %33 : vector<16x32xf32>
    %35 = vector.broadcast %16 : vector<1x32xf32> to vector<16x32xf32>
    %36 = arith.addf %34, %35 : vector<16x32xf32>
    %c2 = arith.constant 2 : index
    %c0_18 = arith.constant 0 : index
    %37 = vector.load %arg5[%c2, %c0_18] : memref<31x32xf32, #tpu.memory_space<vmem>>, vector<1x32xf32>
    %38 = arith.truncf %36 : vector<16x32xf32> to vector<16x32xbf16>
    %cst_19 = arith.constant 0.000000e+00 : f32
    %39 = vector.broadcast %cst_19 : f32 to vector<16x32xf32>
    %c0_20 = arith.constant 0 : index
    %c0_21 = arith.constant 0 : index
    %c0_22 = arith.constant 0 : index
    %40 = vector.load %arg3[%c0_20, %c0_21, %c0_22] : memref<4x32x2048xbf16, #tpu.memory_space<vmem>>, vector<1x32x512xbf16>
    %41 = vector.shape_cast %40 : vector<1x32x512xbf16> to vector<32x512xbf16>
    %c0_23 = arith.constant 0 : index
    %c0_24 = arith.constant 0 : index
    %42 = vector.load %arg6[%c0_23, %c0_24] : memref<4x2048xf32, #tpu.memory_space<vmem>>, vector<1x512xf32>
    %cst_25 = arith.constant dense<0.000000e+00> : vector<16x512xf32>
    %43 = tpu.matmul %38, %41, %cst_25 {dimension_numbers = #tpu.dot_dimension_numbers<[1], [0], [0], [1], [0, 0, 1, 1], [], []>} : vector<16x32xbf16>, vector<32x512xbf16>, vector<16x512xf32> -> vector<16x512xf32>
    %44 = vector.broadcast %42 : vector<1x512xf32> to vector<16x512xf32>
    %45 = arith.addf %43, %44 : vector<16x512xf32>
    %cst_26 = arith.constant 0.000000e+00 : f32
    %46 = vector.broadcast %cst_26 : f32 to vector<16x512xf32>
    %47 = arith.maximumf %45, %46 : vector<16x512xf32>
    %c0_27 = arith.constant 0 : index
    %c0_28 = arith.constant 0 : index
    %c0_29 = arith.constant 0 : index
    %48 = vector.load %arg4[%c0_27, %c0_28, %c0_29] : memref<4x2048x32xbf16, #tpu.memory_space<vmem>>, vector<1x512x32xbf16>
    %49 = vector.shape_cast %48 : vector<1x512x32xbf16> to vector<512x32xbf16>
    %50 = arith.truncf %47 : vector<16x512xf32> to vector<16x512xbf16>
    %cst_30 = arith.constant dense<0.000000e+00> : vector<16x32xf32>
    %51 = tpu.matmul %50, %49, %cst_30 {dimension_numbers = #tpu.dot_dimension_numbers<[1], [0], [0], [1], [0, 0, 1, 1], [], []>} : vector<16x512xbf16>, vector<512x32xbf16>, vector<16x32xf32> -> vector<16x32xf32>
    %52 = arith.addf %39, %51 : vector<16x32xf32>
    %c0_31 = arith.constant 0 : index
    %c0_32 = arith.constant 0 : index
    %c512 = arith.constant 512 : index
    %53 = vector.load %arg3[%c0_31, %c0_32, %c512] : memref<4x32x2048xbf16, #tpu.memory_space<vmem>>, vector<1x32x512xbf16>
    %54 = vector.shape_cast %53 : vector<1x32x512xbf16> to vector<32x512xbf16>
    %c0_33 = arith.constant 0 : index
    %c512_34 = arith.constant 512 : index
    %55 = vector.load %arg6[%c0_33, %c512_34] : memref<4x2048xf32, #tpu.memory_space<vmem>>, vector<1x512xf32>
    %cst_35 = arith.constant dense<0.000000e+00> : vector<16x512xf32>
    %56 = tpu.matmul %38, %54, %cst_35 {dimension_numbers = #tpu.dot_dimension_numbers<[1], [0], [0], [1], [0, 0, 1, 1], [], []>} : vector<16x32xbf16>, vector<32x512xbf16>, vector<16x512xf32> -> vector<16x512xf32>
    %57 = vector.broadcast %55 : vector<1x512xf32> to vector<16x512xf32>
    %58 = arith.addf %56, %57 : vector<16x512xf32>
    %cst_36 = arith.constant 0.000000e+00 : f32
    %59 = vector.broadcast %cst_36 : f32 to vector<16x512xf32>
    %60 = arith.maximumf %58, %59 : vector<16x512xf32>
    %c0_37 = arith.constant 0 : index
    %c512_38 = arith.constant 512 : index
    %c0_39 = arith.constant 0 : index
    %61 = vector.load %arg4[%c0_37, %c512_38, %c0_39] : memref<4x2048x32xbf16, #tpu.memory_space<vmem>>, vector<1x512x32xbf16>
    %62 = vector.shape_cast %61 : vector<1x512x32xbf16> to vector<512x32xbf16>
    %63 = arith.truncf %60 : vector<16x512xf32> to vector<16x512xbf16>
    %cst_40 = arith.constant dense<0.000000e+00> : vector<16x32xf32>
    %64 = tpu.matmul %63, %62, %cst_40 {dimension_numbers = #tpu.dot_dimension_numbers<[1], [0], [0], [1], [0, 0, 1, 1], [], []>} : vector<16x512xbf16>, vector<512x32xbf16>, vector<16x32xf32> -> vector<16x32xf32>
    %65 = arith.addf %52, %64 : vector<16x32xf32>
    %c0_41 = arith.constant 0 : index
    %c0_42 = arith.constant 0 : index
    %c1024 = arith.constant 1024 : index
    %66 = vector.load %arg3[%c0_41, %c0_42, %c1024] : memref<4x32x2048xbf16, #tpu.memory_space<vmem>>, vector<1x32x512xbf16>
    %67 = vector.shape_cast %66 : vector<1x32x512xbf16> to vector<32x512xbf16>
    %c0_43 = arith.constant 0 : index
    %c1024_44 = arith.constant 1024 : index
    %68 = vector.load %arg6[%c0_43, %c1024_44] : memref<4x2048xf32, #tpu.memory_space<vmem>>, vector<1x512xf32>
    %cst_45 = arith.constant dense<0.000000e+00> : vector<16x512xf32>
    %69 = tpu.matmul %38, %67, %cst_45 {dimension_numbers = #tpu.dot_dimension_numbers<[1], [0], [0], [1], [0, 0, 1, 1], [], []>} : vector<16x32xbf16>, vector<32x512xbf16>, vector<16x512xf32> -> vector<16x512xf32>
    %70 = vector.broadcast %68 : vector<1x512xf32> to vector<16x512xf32>
    %71 = arith.addf %69, %70 : vector<16x512xf32>
    %cst_46 = arith.constant 0.000000e+00 : f32
    %72 = vector.broadcast %cst_46 : f32 to vector<16x512xf32>
    %73 = arith.maximumf %71, %72 : vector<16x512xf32>
    %c0_47 = arith.constant 0 : index
    %c1024_48 = arith.constant 1024 : index
    %c0_49 = arith.constant 0 : index
    %74 = vector.load %arg4[%c0_47, %c1024_48, %c0_49] : memref<4x2048x32xbf16, #tpu.memory_space<vmem>>, vector<1x512x32xbf16>
    %75 = vector.shape_cast %74 : vector<1x512x32xbf16> to vector<512x32xbf16>
    %76 = arith.truncf %73 : vector<16x512xf32> to vector<16x512xbf16>
    %cst_50 = arith.constant dense<0.000000e+00> : vector<16x32xf32>
    %77 = tpu.matmul %76, %75, %cst_50 {dimension_numbers = #tpu.dot_dimension_numbers<[1], [0], [0], [1], [0, 0, 1, 1], [], []>} : vector<16x512xbf16>, vector<512x32xbf16>, vector<16x32xf32> -> vector<16x32xf32>
    %78 = arith.addf %65, %77 : vector<16x32xf32>
    %c0_51 = arith.constant 0 : index
    %c0_52 = arith.constant 0 : index
    %c1536 = arith.constant 1536 : index
    %79 = vector.load %arg3[%c0_51, %c0_52, %c1536] : memref<4x32x2048xbf16, #tpu.memory_space<vmem>>, vector<1x32x512xbf16>
    %80 = vector.shape_cast %79 : vector<1x32x512xbf16> to vector<32x512xbf16>
    %c0_53 = arith.constant 0 : index
    %c1536_54 = arith.constant 1536 : index
    %81 = vector.load %arg6[%c0_53, %c1536_54] : memref<4x2048xf32, #tpu.memory_space<vmem>>, vector<1x512xf32>
    %cst_55 = arith.constant dense<0.000000e+00> : vector<16x512xf32>
    %82 = tpu.matmul %38, %80, %cst_55 {dimension_numbers = #tpu.dot_dimension_numbers<[1], [0], [0], [1], [0, 0, 1, 1], [], []>} : vector<16x32xbf16>, vector<32x512xbf16>, vector<16x512xf32> -> vector<16x512xf32>
    %83 = vector.broadcast %81 : vector<1x512xf32> to vector<16x512xf32>
    %84 = arith.addf %82, %83 : vector<16x512xf32>
    %cst_56 = arith.constant 0.000000e+00 : f32
    %85 = vector.broadcast %cst_56 : f32 to vector<16x512xf32>
    %86 = arith.maximumf %84, %85 : vector<16x512xf32>
    %c0_57 = arith.constant 0 : index
    %c1536_58 = arith.constant 1536 : index
    %c0_59 = arith.constant 0 : index
    %87 = vector.load %arg4[%c0_57, %c1536_58, %c0_59] : memref<4x2048x32xbf16, #tpu.memory_space<vmem>>, vector<1x512x32xbf16>
    %88 = vector.shape_cast %87 : vector<1x512x32xbf16> to vector<512x32xbf16>
    %89 = arith.truncf %86 : vector<16x512xf32> to vector<16x512xbf16>
    %cst_60 = arith.constant dense<0.000000e+00> : vector<16x32xf32>
    %90 = tpu.matmul %89, %88, %cst_60 {dimension_numbers = #tpu.dot_dimension_numbers<[1], [0], [0], [1], [0, 0, 1, 1], [], []>} : vector<16x512xbf16>, vector<512x32xbf16>, vector<16x32xf32> -> vector<16x32xf32>
    %91 = arith.addf %78, %90 : vector<16x32xf32>
    %92 = vector.broadcast %37 : vector<1x32xf32> to vector<16x32xf32>
    %93 = arith.addf %91, %92 : vector<16x32xf32>
    %94 = arith.addf %36, %93 : vector<16x32xf32>
    %c5 = arith.constant 5 : index
    %c0_61 = arith.constant 0 : index
    %95 = vector.load %arg5[%c5, %c0_61] : memref<31x32xf32, #tpu.memory_space<vmem>>, vector<1x32xf32>
    %c6 = arith.constant 6 : index
    %c0_62 = arith.constant 0 : index
    %96 = vector.load %arg5[%c6, %c0_62] : memref<31x32xf32, #tpu.memory_space<vmem>>, vector<1x32xf32>
    %cst_63 = arith.constant dense<0.000000e+00> : vector<16xf32>
    %97 = vector.multi_reduction <add>, %94, %cst_63 [1] : vector<16x32xf32> to vector<16xf32>
    %98 = vector.shape_cast %97 : vector<16xf32> to vector<16x1xf32>
    %cst_64 = arith.constant 3.200000e+01 : f32
    %99 = vector.broadcast %cst_64 : f32 to vector<16x1xf32>
    %100 = arith.divf %98, %99 : vector<16x1xf32>
    %101 = vector.broadcast %100 : vector<16x1xf32> to vector<16x32xf32>
    %102 = arith.subf %94, %101 : vector<16x32xf32>
    %103 = arith.mulf %102, %102 : vector<16x32xf32>
    %cst_65 = arith.constant dense<0.000000e+00> : vector<16xf32>
    %104 = vector.multi_reduction <add>, %103, %cst_65 [1] : vector<16x32xf32> to vector<16xf32>
    %105 = vector.shape_cast %104 : vector<16xf32> to vector<16x1xf32>
    %cst_66 = arith.constant 3.200000e+01 : f32
    %106 = vector.broadcast %cst_66 : f32 to vector<16x1xf32>
    %107 = arith.divf %105, %106 : vector<16x1xf32>
    %cst_67 = arith.constant 9.99999974E-6 : f32
    %108 = vector.broadcast %cst_67 : f32 to vector<16x1xf32>
    %109 = arith.addf %107, %108 : vector<16x1xf32>
    %110 = math.rsqrt %109 : vector<16x1xf32>
    %111 = vector.broadcast %110 : vector<16x1xf32> to vector<16x32xf32>
    %112 = arith.mulf %102, %111 : vector<16x32xf32>
    %113 = vector.broadcast %95 : vector<1x32xf32> to vector<16x32xf32>
    %114 = arith.mulf %112, %113 : vector<16x32xf32>
    %115 = vector.broadcast %96 : vector<1x32xf32> to vector<16x32xf32>
    %116 = arith.addf %114, %115 : vector<16x32xf32>
    %c2_68 = arith.constant 2 : index
    %c0_69 = arith.constant 0 : index
    %c0_70 = arith.constant 0 : index
    %117 = vector.load %arg1[%c2_68, %c0_69, %c0_70] : memref<5x32x32xbf16, #tpu.memory_space<vmem>>, vector<1x32x32xbf16>
    %118 = vector.shape_cast %117 : vector<1x32x32xbf16> to vector<32x32xbf16>
    %c7 = arith.constant 7 : index
    %c0_71 = arith.constant 0 : index
    %119 = vector.load %arg5[%c7, %c0_71] : memref<31x32xf32, #tpu.memory_space<vmem>>, vector<1x32xf32>
    %120 = arith.truncf %116 : vector<16x32xf32> to vector<16x32xbf16>
    %cst_72 = arith.constant dense<0.000000e+00> : vector<16x32xf32>
    %121 = tpu.matmul %120, %118, %cst_72 {dimension_numbers = #tpu.dot_dimension_numbers<[1], [0], [0], [1], [0, 0, 1, 1], [], []>} : vector<16x32xbf16>, vector<32x32xbf16>, vector<16x32xf32> -> vector<16x32xf32>
    %122 = vector.broadcast %119 : vector<1x32xf32> to vector<16x32xf32>
    %123 = arith.addf %121, %122 : vector<16x32xf32>
    %c9 = arith.constant 9 : index
    %c0_73 = arith.constant 0 : index
    %124 = vector.load %arg5[%c9, %c0_73] : memref<31x32xf32, #tpu.memory_space<vmem>>, vector<1x32xf32>
    %c10 = arith.constant 10 : index
    %c0_74 = arith.constant 0 : index
    %125 = vector.load %arg5[%c10, %c0_74] : memref<31x32xf32, #tpu.memory_space<vmem>>, vector<1x32xf32>
    %cst_75 = arith.constant dense<0.000000e+00> : vector<16xf32>
    %126 = vector.multi_reduction <add>, %123, %cst_75 [1] : vector<16x32xf32> to vector<16xf32>
    %127 = vector.shape_cast %126 : vector<16xf32> to vector<16x1xf32>
    %cst_76 = arith.constant 3.200000e+01 : f32
    %128 = vector.broadcast %cst_76 : f32 to vector<16x1xf32>
    %129 = arith.divf %127, %128 : vector<16x1xf32>
    %130 = vector.broadcast %129 : vector<16x1xf32> to vector<16x32xf32>
    %131 = arith.subf %123, %130 : vector<16x32xf32>
    %132 = arith.mulf %131, %131 : vector<16x32xf32>
    %cst_77 = arith.constant dense<0.000000e+00> : vector<16xf32>
    %133 = vector.multi_reduction <add>, %132, %cst_77 [1] : vector<16x32xf32> to vector<16xf32>
    %134 = vector.shape_cast %133 : vector<16xf32> to vector<16x1xf32>
    %cst_78 = arith.constant 3.200000e+01 : f32
    %135 = vector.broadcast %cst_78 : f32 to vector<16x1xf32>
    %136 = arith.divf %134, %135 : vector<16x1xf32>
    %cst_79 = arith.constant 9.99999974E-6 : f32
    %137 = vector.broadcast %cst_79 : f32 to vector<16x1xf32>
    %138 = arith.addf %136, %137 : vector<16x1xf32>
    %139 = math.rsqrt %138 : vector<16x1xf32>
    %140 = vector.broadcast %139 : vector<16x1xf32> to vector<16x32xf32>
    %141 = arith.mulf %131, %140 : vector<16x32xf32>
    %142 = vector.broadcast %124 : vector<1x32xf32> to vector<16x32xf32>
    %143 = arith.mulf %141, %142 : vector<16x32xf32>
    %144 = vector.broadcast %125 : vector<1x32xf32> to vector<16x32xf32>
    %145 = arith.addf %143, %144 : vector<16x32xf32>
    %c8 = arith.constant 8 : index
    %c0_80 = arith.constant 0 : index
    %146 = vector.load %arg5[%c8, %c0_80] : memref<31x32xf32, #tpu.memory_space<vmem>>, vector<1x32xf32>
    %147 = arith.truncf %145 : vector<16x32xf32> to vector<16x32xbf16>
    %cst_81 = arith.constant 0.000000e+00 : f32
    %148 = vector.broadcast %cst_81 : f32 to vector<16x32xf32>
    %c1_82 = arith.constant 1 : index
    %c0_83 = arith.constant 0 : index
    %c0_84 = arith.constant 0 : index
    %149 = vector.load %arg3[%c1_82, %c0_83, %c0_84] : memref<4x32x2048xbf16, #tpu.memory_space<vmem>>, vector<1x32x512xbf16>
    %150 = vector.shape_cast %149 : vector<1x32x512xbf16> to vector<32x512xbf16>
    %c1_85 = arith.constant 1 : index
    %c0_86 = arith.constant 0 : index
    %151 = vector.load %arg6[%c1_85, %c0_86] : memref<4x2048xf32, #tpu.memory_space<vmem>>, vector<1x512xf32>
    %cst_87 = arith.constant dense<0.000000e+00> : vector<16x512xf32>
    %152 = tpu.matmul %147, %150, %cst_87 {dimension_numbers = #tpu.dot_dimension_numbers<[1], [0], [0], [1], [0, 0, 1, 1], [], []>} : vector<16x32xbf16>, vector<32x512xbf16>, vector<16x512xf32> -> vector<16x512xf32>
    %153 = vector.broadcast %151 : vector<1x512xf32> to vector<16x512xf32>
    %154 = arith.addf %152, %153 : vector<16x512xf32>
    %cst_88 = arith.constant 0.000000e+00 : f32
    %155 = vector.broadcast %cst_88 : f32 to vector<16x512xf32>
    %156 = arith.maximumf %154, %155 : vector<16x512xf32>
    %c1_89 = arith.constant 1 : index
    %c0_90 = arith.constant 0 : index
    %c0_91 = arith.constant 0 : index
    %157 = vector.load %arg4[%c1_89, %c0_90, %c0_91] : memref<4x2048x32xbf16, #tpu.memory_space<vmem>>, vector<1x512x32xbf16>
    %158 = vector.shape_cast %157 : vector<1x512x32xbf16> to vector<512x32xbf16>
    %159 = arith.truncf %156 : vector<16x512xf32> to vector<16x512xbf16>
    %cst_92 = arith.constant dense<0.000000e+00> : vector<16x32xf32>
    %160 = tpu.matmul %159, %158, %cst_92 {dimension_numbers = #tpu.dot_dimension_numbers<[1], [0], [0], [1], [0, 0, 1, 1], [], []>} : vector<16x512xbf16>, vector<512x32xbf16>, vector<16x32xf32> -> vector<16x32xf32>
    %161 = arith.addf %148, %160 : vector<16x32xf32>
    %c1_93 = arith.constant 1 : index
    %c0_94 = arith.constant 0 : index
    %c512_95 = arith.constant 512 : index
    %162 = vector.load %arg3[%c1_93, %c0_94, %c512_95] : memref<4x32x2048xbf16, #tpu.memory_space<vmem>>, vector<1x32x512xbf16>
    %163 = vector.shape_cast %162 : vector<1x32x512xbf16> to vector<32x512xbf16>
    %c1_96 = arith.constant 1 : index
    %c512_97 = arith.constant 512 : index
    %164 = vector.load %arg6[%c1_96, %c512_97] : memref<4x2048xf32, #tpu.memory_space<vmem>>, vector<1x512xf32>
    %cst_98 = arith.constant dense<0.000000e+00> : vector<16x512xf32>
    %165 = tpu.matmul %147, %163, %cst_98 {dimension_numbers = #tpu.dot_dimension_numbers<[1], [0], [0], [1], [0, 0, 1, 1], [], []>} : vector<16x32xbf16>, vector<32x512xbf16>, vector<16x512xf32> -> vector<16x512xf32>
    %166 = vector.broadcast %164 : vector<1x512xf32> to vector<16x512xf32>
    %167 = arith.addf %165, %166 : vector<16x512xf32>
    %cst_99 = arith.constant 0.000000e+00 : f32
    %168 = vector.broadcast %cst_99 : f32 to vector<16x512xf32>
    %169 = arith.maximumf %167, %168 : vector<16x512xf32>
    %c1_100 = arith.constant 1 : index
    %c512_101 = arith.constant 512 : index
    %c0_102 = arith.constant 0 : index
    %170 = vector.load %arg4[%c1_100, %c512_101, %c0_102] : memref<4x2048x32xbf16, #tpu.memory_space<vmem>>, vector<1x512x32xbf16>
    %171 = vector.shape_cast %170 : vector<1x512x32xbf16> to vector<512x32xbf16>
    %172 = arith.truncf %169 : vector<16x512xf32> to vector<16x512xbf16>
    %cst_103 = arith.constant dense<0.000000e+00> : vector<16x32xf32>
    %173 = tpu.matmul %172, %171, %cst_103 {dimension_numbers = #tpu.dot_dimension_numbers<[1], [0], [0], [1], [0, 0, 1, 1], [], []>} : vector<16x512xbf16>, vector<512x32xbf16>, vector<16x32xf32> -> vector<16x32xf32>
    %174 = arith.addf %161, %173 : vector<16x32xf32>
    %c1_104 = arith.constant 1 : index
    %c0_105 = arith.constant 0 : index
    %c1024_106 = arith.constant 1024 : index
    %175 = vector.load %arg3[%c1_104, %c0_105, %c1024_106] : memref<4x32x2048xbf16, #tpu.memory_space<vmem>>, vector<1x32x512xbf16>
    %176 = vector.shape_cast %175 : vector<1x32x512xbf16> to vector<32x512xbf16>
    %c1_107 = arith.constant 1 : index
    %c1024_108 = arith.constant 1024 : index
    %177 = vector.load %arg6[%c1_107, %c1024_108] : memref<4x2048xf32, #tpu.memory_space<vmem>>, vector<1x512xf32>
    %cst_109 = arith.constant dense<0.000000e+00> : vector<16x512xf32>
    %178 = tpu.matmul %147, %176, %cst_109 {dimension_numbers = #tpu.dot_dimension_numbers<[1], [0], [0], [1], [0, 0, 1, 1], [], []>} : vector<16x32xbf16>, vector<32x512xbf16>, vector<16x512xf32> -> vector<16x512xf32>
    %179 = vector.broadcast %177 : vector<1x512xf32> to vector<16x512xf32>
    %180 = arith.addf %178, %179 : vector<16x512xf32>
    %cst_110 = arith.constant 0.000000e+00 : f32
    %181 = vector.broadcast %cst_110 : f32 to vector<16x512xf32>
    %182 = arith.maximumf %180, %181 : vector<16x512xf32>
    %c1_111 = arith.constant 1 : index
    %c1024_112 = arith.constant 1024 : index
    %c0_113 = arith.constant 0 : index
    %183 = vector.load %arg4[%c1_111, %c1024_112, %c0_113] : memref<4x2048x32xbf16, #tpu.memory_space<vmem>>, vector<1x512x32xbf16>
    %184 = vector.shape_cast %183 : vector<1x512x32xbf16> to vector<512x32xbf16>
    %185 = arith.truncf %182 : vector<16x512xf32> to vector<16x512xbf16>
    %cst_114 = arith.constant dense<0.000000e+00> : vector<16x32xf32>
    %186 = tpu.matmul %185, %184, %cst_114 {dimension_numbers = #tpu.dot_dimension_numbers<[1], [0], [0], [1], [0, 0, 1, 1], [], []>} : vector<16x512xbf16>, vector<512x32xbf16>, vector<16x32xf32> -> vector<16x32xf32>
    %187 = arith.addf %174, %186 : vector<16x32xf32>
    %c1_115 = arith.constant 1 : index
    %c0_116 = arith.constant 0 : index
    %c1536_117 = arith.constant 1536 : index
    %188 = vector.load %arg3[%c1_115, %c0_116, %c1536_117] : memref<4x32x2048xbf16, #tpu.memory_space<vmem>>, vector<1x32x512xbf16>
    %189 = vector.shape_cast %188 : vector<1x32x512xbf16> to vector<32x512xbf16>
    %c1_118 = arith.constant 1 : index
    %c1536_119 = arith.constant 1536 : index
    %190 = vector.load %arg6[%c1_118, %c1536_119] : memref<4x2048xf32, #tpu.memory_space<vmem>>, vector<1x512xf32>
    %cst_120 = arith.constant dense<0.000000e+00> : vector<16x512xf32>
    %191 = tpu.matmul %147, %189, %cst_120 {dimension_numbers = #tpu.dot_dimension_numbers<[1], [0], [0], [1], [0, 0, 1, 1], [], []>} : vector<16x32xbf16>, vector<32x512xbf16>, vector<16x512xf32> -> vector<16x512xf32>
    %192 = vector.broadcast %190 : vector<1x512xf32> to vector<16x512xf32>
    %193 = arith.addf %191, %192 : vector<16x512xf32>
    %cst_121 = arith.constant 0.000000e+00 : f32
    %194 = vector.broadcast %cst_121 : f32 to vector<16x512xf32>
    %195 = arith.maximumf %193, %194 : vector<16x512xf32>
    %c1_122 = arith.constant 1 : index
    %c1536_123 = arith.constant 1536 : index
    %c0_124 = arith.constant 0 : index
    %196 = vector.load %arg4[%c1_122, %c1536_123, %c0_124] : memref<4x2048x32xbf16, #tpu.memory_space<vmem>>, vector<1x512x32xbf16>
    %197 = vector.shape_cast %196 : vector<1x512x32xbf16> to vector<512x32xbf16>
    %198 = arith.truncf %195 : vector<16x512xf32> to vector<16x512xbf16>
    %cst_125 = arith.constant dense<0.000000e+00> : vector<16x32xf32>
    %199 = tpu.matmul %198, %197, %cst_125 {dimension_numbers = #tpu.dot_dimension_numbers<[1], [0], [0], [1], [0, 0, 1, 1], [], []>} : vector<16x512xbf16>, vector<512x32xbf16>, vector<16x32xf32> -> vector<16x32xf32>
    %200 = arith.addf %187, %199 : vector<16x32xf32>
    %201 = vector.broadcast %146 : vector<1x32xf32> to vector<16x32xf32>
    %202 = arith.addf %200, %201 : vector<16x32xf32>
    %203 = arith.addf %145, %202 : vector<16x32xf32>
    %c11 = arith.constant 11 : index
    %c0_126 = arith.constant 0 : index
    %204 = vector.load %arg5[%c11, %c0_126] : memref<31x32xf32, #tpu.memory_space<vmem>>, vector<1x32xf32>
    %c12 = arith.constant 12 : index
    %c0_127 = arith.constant 0 : index
    %205 = vector.load %arg5[%c12, %c0_127] : memref<31x32xf32, #tpu.memory_space<vmem>>, vector<1x32xf32>
    %cst_128 = arith.constant dense<0.000000e+00> : vector<16xf32>
    %206 = vector.multi_reduction <add>, %203, %cst_128 [1] : vector<16x32xf32> to vector<16xf32>
    %207 = vector.shape_cast %206 : vector<16xf32> to vector<16x1xf32>
    %cst_129 = arith.constant 3.200000e+01 : f32
    %208 = vector.broadcast %cst_129 : f32 to vector<16x1xf32>
    %209 = arith.divf %207, %208 : vector<16x1xf32>
    %210 = vector.broadcast %209 : vector<16x1xf32> to vector<16x32xf32>
    %211 = arith.subf %203, %210 : vector<16x32xf32>
    %212 = arith.mulf %211, %211 : vector<16x32xf32>
    %cst_130 = arith.constant dense<0.000000e+00> : vector<16xf32>
    %213 = vector.multi_reduction <add>, %212, %cst_130 [1] : vector<16x32xf32> to vector<16xf32>
    %214 = vector.shape_cast %213 : vector<16xf32> to vector<16x1xf32>
    %cst_131 = arith.constant 3.200000e+01 : f32
    %215 = vector.broadcast %cst_131 : f32 to vector<16x1xf32>
    %216 = arith.divf %214, %215 : vector<16x1xf32>
    %cst_132 = arith.constant 9.99999974E-6 : f32
    %217 = vector.broadcast %cst_132 : f32 to vector<16x1xf32>
    %218 = arith.addf %216, %217 : vector<16x1xf32>
    %219 = math.rsqrt %218 : vector<16x1xf32>
    %220 = vector.broadcast %219 : vector<16x1xf32> to vector<16x32xf32>
    %221 = arith.mulf %211, %220 : vector<16x32xf32>
    %222 = vector.broadcast %204 : vector<1x32xf32> to vector<16x32xf32>
    %223 = arith.mulf %221, %222 : vector<16x32xf32>
    %224 = vector.broadcast %205 : vector<1x32xf32> to vector<16x32xf32>
    %225 = arith.addf %223, %224 : vector<16x32xf32>
    %226 = arith.truncf %225 : vector<16x32xf32> to vector<16x32xbf16>
    %c0_133 = arith.constant 0 : index
    %c0_134 = arith.constant 0 : index
    %227 = vector.load %arg2[%c0_133, %c0_134] : memref<32x64xbf16, #tpu.memory_space<vmem>>, vector<32x64xbf16>
    %cst_135 = arith.constant dense<0.000000e+00> : vector<16x64xf32>
    %228 = tpu.matmul %226, %227, %cst_135 {dimension_numbers = #tpu.dot_dimension_numbers<[1], [0], [0], [1], [0, 0, 1, 1], [], []>} : vector<16x32xbf16>, vector<32x64xbf16>, vector<16x64xf32> -> vector<16x64xf32>
    %c3_136 = arith.constant 3 : index
    %c0_137 = arith.constant 0 : index
    %c0_138 = arith.constant 0 : index
    %229 = vector.load %arg1[%c3_136, %c0_137, %c0_138] : memref<5x32x32xbf16, #tpu.memory_space<vmem>>, vector<1x32x32xbf16>
    %230 = vector.shape_cast %229 : vector<1x32x32xbf16> to vector<32x32xbf16>
    %c13 = arith.constant 13 : index
    %c0_139 = arith.constant 0 : index
    %231 = vector.load %arg5[%c13, %c0_139] : memref<31x32xf32, #tpu.memory_space<vmem>>, vector<1x32xf32>
    %232 = arith.truncf %7 : vector<16x32xf32> to vector<16x32xbf16>
    %cst_140 = arith.constant dense<0.000000e+00> : vector<16x32xf32>
    %233 = tpu.matmul %232, %230, %cst_140 {dimension_numbers = #tpu.dot_dimension_numbers<[1], [0], [0], [1], [0, 0, 1, 1], [], []>} : vector<16x32xbf16>, vector<32x32xbf16>, vector<16x32xf32> -> vector<16x32xf32>
    %234 = vector.broadcast %231 : vector<1x32xf32> to vector<16x32xf32>
    %235 = arith.addf %233, %234 : vector<16x32xf32>
    %c16 = arith.constant 16 : index
    %c0_141 = arith.constant 0 : index
    %236 = vector.load %arg5[%c16, %c0_141] : memref<31x32xf32, #tpu.memory_space<vmem>>, vector<1x32xf32>
    %c17 = arith.constant 17 : index
    %c0_142 = arith.constant 0 : index
    %237 = vector.load %arg5[%c17, %c0_142] : memref<31x32xf32, #tpu.memory_space<vmem>>, vector<1x32xf32>
    %cst_143 = arith.constant dense<0.000000e+00> : vector<16xf32>
    %238 = vector.multi_reduction <add>, %235, %cst_143 [1] : vector<16x32xf32> to vector<16xf32>
    %239 = vector.shape_cast %238 : vector<16xf32> to vector<16x1xf32>
    %cst_144 = arith.constant 3.200000e+01 : f32
    %240 = vector.broadcast %cst_144 : f32 to vector<16x1xf32>
    %241 = arith.divf %239, %240 : vector<16x1xf32>
    %242 = vector.broadcast %241 : vector<16x1xf32> to vector<16x32xf32>
    %243 = arith.subf %235, %242 : vector<16x32xf32>
    %244 = arith.mulf %243, %243 : vector<16x32xf32>
    %cst_145 = arith.constant dense<0.000000e+00> : vector<16xf32>
    %245 = vector.multi_reduction <add>, %244, %cst_145 [1] : vector<16x32xf32> to vector<16xf32>
    %246 = vector.shape_cast %245 : vector<16xf32> to vector<16x1xf32>
    %cst_146 = arith.constant 3.200000e+01 : f32
    %247 = vector.broadcast %cst_146 : f32 to vector<16x1xf32>
    %248 = arith.divf %246, %247 : vector<16x1xf32>
    %cst_147 = arith.constant 9.99999974E-6 : f32
    %249 = vector.broadcast %cst_147 : f32 to vector<16x1xf32>
    %250 = arith.addf %248, %249 : vector<16x1xf32>
    %251 = math.rsqrt %250 : vector<16x1xf32>
    %252 = vector.broadcast %251 : vector<16x1xf32> to vector<16x32xf32>
    %253 = arith.mulf %243, %252 : vector<16x32xf32>
    %254 = vector.broadcast %236 : vector<1x32xf32> to vector<16x32xf32>
    %255 = arith.mulf %253, %254 : vector<16x32xf32>
    %256 = vector.broadcast %237 : vector<1x32xf32> to vector<16x32xf32>
    %257 = arith.addf %255, %256 : vector<16x32xf32>
    %258 = vector.extract_strided_slice %228 {offsets = [0, 0], sizes = [16, 32], strides = [1, 1]} : vector<16x64xf32> to vector<16x32xf32>
    %c14 = arith.constant 14 : index
    %c0_148 = arith.constant 0 : index
    %259 = vector.load %arg5[%c14, %c0_148] : memref<31x32xf32, #tpu.memory_space<vmem>>, vector<1x32xf32>
    %260 = vector.broadcast %259 : vector<1x32xf32> to vector<16x32xf32>
    %261 = arith.addf %258, %260 : vector<16x32xf32>
    %262 = arith.addf %257, %261 : vector<16x32xf32>
    %c18 = arith.constant 18 : index
    %c0_149 = arith.constant 0 : index
    %263 = vector.load %arg5[%c18, %c0_149] : memref<31x32xf32, #tpu.memory_space<vmem>>, vector<1x32xf32>
    %c19 = arith.constant 19 : index
    %c0_150 = arith.constant 0 : index
    %264 = vector.load %arg5[%c19, %c0_150] : memref<31x32xf32, #tpu.memory_space<vmem>>, vector<1x32xf32>
    %cst_151 = arith.constant dense<0.000000e+00> : vector<16xf32>
    %265 = vector.multi_reduction <add>, %262, %cst_151 [1] : vector<16x32xf32> to vector<16xf32>
    %266 = vector.shape_cast %265 : vector<16xf32> to vector<16x1xf32>
    %cst_152 = arith.constant 3.200000e+01 : f32
    %267 = vector.broadcast %cst_152 : f32 to vector<16x1xf32>
    %268 = arith.divf %266, %267 : vector<16x1xf32>
    %269 = vector.broadcast %268 : vector<16x1xf32> to vector<16x32xf32>
    %270 = arith.subf %262, %269 : vector<16x32xf32>
    %271 = arith.mulf %270, %270 : vector<16x32xf32>
    %cst_153 = arith.constant dense<0.000000e+00> : vector<16xf32>
    %272 = vector.multi_reduction <add>, %271, %cst_153 [1] : vector<16x32xf32> to vector<16xf32>
    %273 = vector.shape_cast %272 : vector<16xf32> to vector<16x1xf32>
    %cst_154 = arith.constant 3.200000e+01 : f32
    %274 = vector.broadcast %cst_154 : f32 to vector<16x1xf32>
    %275 = arith.divf %273, %274 : vector<16x1xf32>
    %cst_155 = arith.constant 9.99999974E-6 : f32
    %276 = vector.broadcast %cst_155 : f32 to vector<16x1xf32>
    %277 = arith.addf %275, %276 : vector<16x1xf32>
    %278 = math.rsqrt %277 : vector<16x1xf32>
    %279 = vector.broadcast %278 : vector<16x1xf32> to vector<16x32xf32>
    %280 = arith.mulf %270, %279 : vector<16x32xf32>
    %281 = vector.broadcast %263 : vector<1x32xf32> to vector<16x32xf32>
    %282 = arith.mulf %280, %281 : vector<16x32xf32>
    %283 = vector.broadcast %264 : vector<1x32xf32> to vector<16x32xf32>
    %284 = arith.addf %282, %283 : vector<16x32xf32>
    %c15 = arith.constant 15 : index
    %c0_156 = arith.constant 0 : index
    %285 = vector.load %arg5[%c15, %c0_156] : memref<31x32xf32, #tpu.memory_space<vmem>>, vector<1x32xf32>
    %286 = arith.truncf %284 : vector<16x32xf32> to vector<16x32xbf16>
    %cst_157 = arith.constant 0.000000e+00 : f32
    %287 = vector.broadcast %cst_157 : f32 to vector<16x32xf32>
    %c2_158 = arith.constant 2 : index
    %c0_159 = arith.constant 0 : index
    %c0_160 = arith.constant 0 : index
    %288 = vector.load %arg3[%c2_158, %c0_159, %c0_160] : memref<4x32x2048xbf16, #tpu.memory_space<vmem>>, vector<1x32x512xbf16>
    %289 = vector.shape_cast %288 : vector<1x32x512xbf16> to vector<32x512xbf16>
    %c2_161 = arith.constant 2 : index
    %c0_162 = arith.constant 0 : index
    %290 = vector.load %arg6[%c2_161, %c0_162] : memref<4x2048xf32, #tpu.memory_space<vmem>>, vector<1x512xf32>
    %cst_163 = arith.constant dense<0.000000e+00> : vector<16x512xf32>
    %291 = tpu.matmul %286, %289, %cst_163 {dimension_numbers = #tpu.dot_dimension_numbers<[1], [0], [0], [1], [0, 0, 1, 1], [], []>} : vector<16x32xbf16>, vector<32x512xbf16>, vector<16x512xf32> -> vector<16x512xf32>
    %292 = vector.broadcast %290 : vector<1x512xf32> to vector<16x512xf32>
    %293 = arith.addf %291, %292 : vector<16x512xf32>
    %cst_164 = arith.constant 0.000000e+00 : f32
    %294 = vector.broadcast %cst_164 : f32 to vector<16x512xf32>
    %295 = arith.maximumf %293, %294 : vector<16x512xf32>
    %c2_165 = arith.constant 2 : index
    %c0_166 = arith.constant 0 : index
    %c0_167 = arith.constant 0 : index
    %296 = vector.load %arg4[%c2_165, %c0_166, %c0_167] : memref<4x2048x32xbf16, #tpu.memory_space<vmem>>, vector<1x512x32xbf16>
    %297 = vector.shape_cast %296 : vector<1x512x32xbf16> to vector<512x32xbf16>
    %298 = arith.truncf %295 : vector<16x512xf32> to vector<16x512xbf16>
    %cst_168 = arith.constant dense<0.000000e+00> : vector<16x32xf32>
    %299 = tpu.matmul %298, %297, %cst_168 {dimension_numbers = #tpu.dot_dimension_numbers<[1], [0], [0], [1], [0, 0, 1, 1], [], []>} : vector<16x512xbf16>, vector<512x32xbf16>, vector<16x32xf32> -> vector<16x32xf32>
    %300 = arith.addf %287, %299 : vector<16x32xf32>
    %c2_169 = arith.constant 2 : index
    %c0_170 = arith.constant 0 : index
    %c512_171 = arith.constant 512 : index
    %301 = vector.load %arg3[%c2_169, %c0_170, %c512_171] : memref<4x32x2048xbf16, #tpu.memory_space<vmem>>, vector<1x32x512xbf16>
    %302 = vector.shape_cast %301 : vector<1x32x512xbf16> to vector<32x512xbf16>
    %c2_172 = arith.constant 2 : index
    %c512_173 = arith.constant 512 : index
    %303 = vector.load %arg6[%c2_172, %c512_173] : memref<4x2048xf32, #tpu.memory_space<vmem>>, vector<1x512xf32>
    %cst_174 = arith.constant dense<0.000000e+00> : vector<16x512xf32>
    %304 = tpu.matmul %286, %302, %cst_174 {dimension_numbers = #tpu.dot_dimension_numbers<[1], [0], [0], [1], [0, 0, 1, 1], [], []>} : vector<16x32xbf16>, vector<32x512xbf16>, vector<16x512xf32> -> vector<16x512xf32>
    %305 = vector.broadcast %303 : vector<1x512xf32> to vector<16x512xf32>
    %306 = arith.addf %304, %305 : vector<16x512xf32>
    %cst_175 = arith.constant 0.000000e+00 : f32
    %307 = vector.broadcast %cst_175 : f32 to vector<16x512xf32>
    %308 = arith.maximumf %306, %307 : vector<16x512xf32>
    %c2_176 = arith.constant 2 : index
    %c512_177 = arith.constant 512 : index
    %c0_178 = arith.constant 0 : index
    %309 = vector.load %arg4[%c2_176, %c512_177, %c0_178] : memref<4x2048x32xbf16, #tpu.memory_space<vmem>>, vector<1x512x32xbf16>
    %310 = vector.shape_cast %309 : vector<1x512x32xbf16> to vector<512x32xbf16>
    %311 = arith.truncf %308 : vector<16x512xf32> to vector<16x512xbf16>
    %cst_179 = arith.constant dense<0.000000e+00> : vector<16x32xf32>
    %312 = tpu.matmul %311, %310, %cst_179 {dimension_numbers = #tpu.dot_dimension_numbers<[1], [0], [0], [1], [0, 0, 1, 1], [], []>} : vector<16x512xbf16>, vector<512x32xbf16>, vector<16x32xf32> -> vector<16x32xf32>
    %313 = arith.addf %300, %312 : vector<16x32xf32>
    %c2_180 = arith.constant 2 : index
    %c0_181 = arith.constant 0 : index
    %c1024_182 = arith.constant 1024 : index
    %314 = vector.load %arg3[%c2_180, %c0_181, %c1024_182] : memref<4x32x2048xbf16, #tpu.memory_space<vmem>>, vector<1x32x512xbf16>
    %315 = vector.shape_cast %314 : vector<1x32x512xbf16> to vector<32x512xbf16>
    %c2_183 = arith.constant 2 : index
    %c1024_184 = arith.constant 1024 : index
    %316 = vector.load %arg6[%c2_183, %c1024_184] : memref<4x2048xf32, #tpu.memory_space<vmem>>, vector<1x512xf32>
    %cst_185 = arith.constant dense<0.000000e+00> : vector<16x512xf32>
    %317 = tpu.matmul %286, %315, %cst_185 {dimension_numbers = #tpu.dot_dimension_numbers<[1], [0], [0], [1], [0, 0, 1, 1], [], []>} : vector<16x32xbf16>, vector<32x512xbf16>, vector<16x512xf32> -> vector<16x512xf32>
    %318 = vector.broadcast %316 : vector<1x512xf32> to vector<16x512xf32>
    %319 = arith.addf %317, %318 : vector<16x512xf32>
    %cst_186 = arith.constant 0.000000e+00 : f32
    %320 = vector.broadcast %cst_186 : f32 to vector<16x512xf32>
    %321 = arith.maximumf %319, %320 : vector<16x512xf32>
    %c2_187 = arith.constant 2 : index
    %c1024_188 = arith.constant 1024 : index
    %c0_189 = arith.constant 0 : index
    %322 = vector.load %arg4[%c2_187, %c1024_188, %c0_189] : memref<4x2048x32xbf16, #tpu.memory_space<vmem>>, vector<1x512x32xbf16>
    %323 = vector.shape_cast %322 : vector<1x512x32xbf16> to vector<512x32xbf16>
    %324 = arith.truncf %321 : vector<16x512xf32> to vector<16x512xbf16>
    %cst_190 = arith.constant dense<0.000000e+00> : vector<16x32xf32>
    %325 = tpu.matmul %324, %323, %cst_190 {dimension_numbers = #tpu.dot_dimension_numbers<[1], [0], [0], [1], [0, 0, 1, 1], [], []>} : vector<16x512xbf16>, vector<512x32xbf16>, vector<16x32xf32> -> vector<16x32xf32>
    %326 = arith.addf %313, %325 : vector<16x32xf32>
    %c2_191 = arith.constant 2 : index
    %c0_192 = arith.constant 0 : index
    %c1536_193 = arith.constant 1536 : index
    %327 = vector.load %arg3[%c2_191, %c0_192, %c1536_193] : memref<4x32x2048xbf16, #tpu.memory_space<vmem>>, vector<1x32x512xbf16>
    %328 = vector.shape_cast %327 : vector<1x32x512xbf16> to vector<32x512xbf16>
    %c2_194 = arith.constant 2 : index
    %c1536_195 = arith.constant 1536 : index
    %329 = vector.load %arg6[%c2_194, %c1536_195] : memref<4x2048xf32, #tpu.memory_space<vmem>>, vector<1x512xf32>
    %cst_196 = arith.constant dense<0.000000e+00> : vector<16x512xf32>
    %330 = tpu.matmul %286, %328, %cst_196 {dimension_numbers = #tpu.dot_dimension_numbers<[1], [0], [0], [1], [0, 0, 1, 1], [], []>} : vector<16x32xbf16>, vector<32x512xbf16>, vector<16x512xf32> -> vector<16x512xf32>
    %331 = vector.broadcast %329 : vector<1x512xf32> to vector<16x512xf32>
    %332 = arith.addf %330, %331 : vector<16x512xf32>
    %cst_197 = arith.constant 0.000000e+00 : f32
    %333 = vector.broadcast %cst_197 : f32 to vector<16x512xf32>
    %334 = arith.maximumf %332, %333 : vector<16x512xf32>
    %c2_198 = arith.constant 2 : index
    %c1536_199 = arith.constant 1536 : index
    %c0_200 = arith.constant 0 : index
    %335 = vector.load %arg4[%c2_198, %c1536_199, %c0_200] : memref<4x2048x32xbf16, #tpu.memory_space<vmem>>, vector<1x512x32xbf16>
    %336 = vector.shape_cast %335 : vector<1x512x32xbf16> to vector<512x32xbf16>
    %337 = arith.truncf %334 : vector<16x512xf32> to vector<16x512xbf16>
    %cst_201 = arith.constant dense<0.000000e+00> : vector<16x32xf32>
    %338 = tpu.matmul %337, %336, %cst_201 {dimension_numbers = #tpu.dot_dimension_numbers<[1], [0], [0], [1], [0, 0, 1, 1], [], []>} : vector<16x512xbf16>, vector<512x32xbf16>, vector<16x32xf32> -> vector<16x32xf32>
    %339 = arith.addf %326, %338 : vector<16x32xf32>
    %340 = vector.broadcast %285 : vector<1x32xf32> to vector<16x32xf32>
    %341 = arith.addf %339, %340 : vector<16x32xf32>
    %342 = arith.addf %284, %341 : vector<16x32xf32>
    %c20 = arith.constant 20 : index
    %c0_202 = arith.constant 0 : index
    %343 = vector.load %arg5[%c20, %c0_202] : memref<31x32xf32, #tpu.memory_space<vmem>>, vector<1x32xf32>
    %c21 = arith.constant 21 : index
    %c0_203 = arith.constant 0 : index
    %344 = vector.load %arg5[%c21, %c0_203] : memref<31x32xf32, #tpu.memory_space<vmem>>, vector<1x32xf32>
    %cst_204 = arith.constant dense<0.000000e+00> : vector<16xf32>
    %345 = vector.multi_reduction <add>, %342, %cst_204 [1] : vector<16x32xf32> to vector<16xf32>
    %346 = vector.shape_cast %345 : vector<16xf32> to vector<16x1xf32>
    %cst_205 = arith.constant 3.200000e+01 : f32
    %347 = vector.broadcast %cst_205 : f32 to vector<16x1xf32>
    %348 = arith.divf %346, %347 : vector<16x1xf32>
    %349 = vector.broadcast %348 : vector<16x1xf32> to vector<16x32xf32>
    %350 = arith.subf %342, %349 : vector<16x32xf32>
    %351 = arith.mulf %350, %350 : vector<16x32xf32>
    %cst_206 = arith.constant dense<0.000000e+00> : vector<16xf32>
    %352 = vector.multi_reduction <add>, %351, %cst_206 [1] : vector<16x32xf32> to vector<16xf32>
    %353 = vector.shape_cast %352 : vector<16xf32> to vector<16x1xf32>
    %cst_207 = arith.constant 3.200000e+01 : f32
    %354 = vector.broadcast %cst_207 : f32 to vector<16x1xf32>
    %355 = arith.divf %353, %354 : vector<16x1xf32>
    %cst_208 = arith.constant 9.99999974E-6 : f32
    %356 = vector.broadcast %cst_208 : f32 to vector<16x1xf32>
    %357 = arith.addf %355, %356 : vector<16x1xf32>
    %358 = math.rsqrt %357 : vector<16x1xf32>
    %359 = vector.broadcast %358 : vector<16x1xf32> to vector<16x32xf32>
    %360 = arith.mulf %350, %359 : vector<16x32xf32>
    %361 = vector.broadcast %343 : vector<1x32xf32> to vector<16x32xf32>
    %362 = arith.mulf %360, %361 : vector<16x32xf32>
    %363 = vector.broadcast %344 : vector<1x32xf32> to vector<16x32xf32>
    %364 = arith.addf %362, %363 : vector<16x32xf32>
    %c4_209 = arith.constant 4 : index
    %c0_210 = arith.constant 0 : index
    %c0_211 = arith.constant 0 : index
    %365 = vector.load %arg1[%c4_209, %c0_210, %c0_211] : memref<5x32x32xbf16, #tpu.memory_space<vmem>>, vector<1x32x32xbf16>
    %366 = vector.shape_cast %365 : vector<1x32x32xbf16> to vector<32x32xbf16>
    %c22 = arith.constant 22 : index
    %c0_212 = arith.constant 0 : index
    %367 = vector.load %arg5[%c22, %c0_212] : memref<31x32xf32, #tpu.memory_space<vmem>>, vector<1x32xf32>
    %368 = arith.truncf %364 : vector<16x32xf32> to vector<16x32xbf16>
    %cst_213 = arith.constant dense<0.000000e+00> : vector<16x32xf32>
    %369 = tpu.matmul %368, %366, %cst_213 {dimension_numbers = #tpu.dot_dimension_numbers<[1], [0], [0], [1], [0, 0, 1, 1], [], []>} : vector<16x32xbf16>, vector<32x32xbf16>, vector<16x32xf32> -> vector<16x32xf32>
    %370 = vector.broadcast %367 : vector<1x32xf32> to vector<16x32xf32>
    %371 = arith.addf %369, %370 : vector<16x32xf32>
    %c25 = arith.constant 25 : index
    %c0_214 = arith.constant 0 : index
    %372 = vector.load %arg5[%c25, %c0_214] : memref<31x32xf32, #tpu.memory_space<vmem>>, vector<1x32xf32>
    %c26 = arith.constant 26 : index
    %c0_215 = arith.constant 0 : index
    %373 = vector.load %arg5[%c26, %c0_215] : memref<31x32xf32, #tpu.memory_space<vmem>>, vector<1x32xf32>
    %cst_216 = arith.constant dense<0.000000e+00> : vector<16xf32>
    %374 = vector.multi_reduction <add>, %371, %cst_216 [1] : vector<16x32xf32> to vector<16xf32>
    %375 = vector.shape_cast %374 : vector<16xf32> to vector<16x1xf32>
    %cst_217 = arith.constant 3.200000e+01 : f32
    %376 = vector.broadcast %cst_217 : f32 to vector<16x1xf32>
    %377 = arith.divf %375, %376 : vector<16x1xf32>
    %378 = vector.broadcast %377 : vector<16x1xf32> to vector<16x32xf32>
    %379 = arith.subf %371, %378 : vector<16x32xf32>
    %380 = arith.mulf %379, %379 : vector<16x32xf32>
    %cst_218 = arith.constant dense<0.000000e+00> : vector<16xf32>
    %381 = vector.multi_reduction <add>, %380, %cst_218 [1] : vector<16x32xf32> to vector<16xf32>
    %382 = vector.shape_cast %381 : vector<16xf32> to vector<16x1xf32>
    %cst_219 = arith.constant 3.200000e+01 : f32
    %383 = vector.broadcast %cst_219 : f32 to vector<16x1xf32>
    %384 = arith.divf %382, %383 : vector<16x1xf32>
    %cst_220 = arith.constant 9.99999974E-6 : f32
    %385 = vector.broadcast %cst_220 : f32 to vector<16x1xf32>
    %386 = arith.addf %384, %385 : vector<16x1xf32>
    %387 = math.rsqrt %386 : vector<16x1xf32>
    %388 = vector.broadcast %387 : vector<16x1xf32> to vector<16x32xf32>
    %389 = arith.mulf %379, %388 : vector<16x32xf32>
    %390 = vector.broadcast %372 : vector<1x32xf32> to vector<16x32xf32>
    %391 = arith.mulf %389, %390 : vector<16x32xf32>
    %392 = vector.broadcast %373 : vector<1x32xf32> to vector<16x32xf32>
    %393 = arith.addf %391, %392 : vector<16x32xf32>
    %394 = vector.extract_strided_slice %228 {offsets = [0, 32], sizes = [16, 32], strides = [1, 1]} : vector<16x64xf32> to vector<16x32xf32>
    %c23 = arith.constant 23 : index
    %c0_221 = arith.constant 0 : index
    %395 = vector.load %arg5[%c23, %c0_221] : memref<31x32xf32, #tpu.memory_space<vmem>>, vector<1x32xf32>
    %396 = vector.broadcast %395 : vector<1x32xf32> to vector<16x32xf32>
    %397 = arith.addf %394, %396 : vector<16x32xf32>
    %398 = arith.addf %393, %397 : vector<16x32xf32>
    %c27 = arith.constant 27 : index
    %c0_222 = arith.constant 0 : index
    %399 = vector.load %arg5[%c27, %c0_222] : memref<31x32xf32, #tpu.memory_space<vmem>>, vector<1x32xf32>
    %c28 = arith.constant 28 : index
    %c0_223 = arith.constant 0 : index
    %400 = vector.load %arg5[%c28, %c0_223] : memref<31x32xf32, #tpu.memory_space<vmem>>, vector<1x32xf32>
    %cst_224 = arith.constant dense<0.000000e+00> : vector<16xf32>
    %401 = vector.multi_reduction <add>, %398, %cst_224 [1] : vector<16x32xf32> to vector<16xf32>
    %402 = vector.shape_cast %401 : vector<16xf32> to vector<16x1xf32>
    %cst_225 = arith.constant 3.200000e+01 : f32
    %403 = vector.broadcast %cst_225 : f32 to vector<16x1xf32>
    %404 = arith.divf %402, %403 : vector<16x1xf32>
    %405 = vector.broadcast %404 : vector<16x1xf32> to vector<16x32xf32>
    %406 = arith.subf %398, %405 : vector<16x32xf32>
    %407 = arith.mulf %406, %406 : vector<16x32xf32>
    %cst_226 = arith.constant dense<0.000000e+00> : vector<16xf32>
    %408 = vector.multi_reduction <add>, %407, %cst_226 [1] : vector<16x32xf32> to vector<16xf32>
    %409 = vector.shape_cast %408 : vector<16xf32> to vector<16x1xf32>
    %cst_227 = arith.constant 3.200000e+01 : f32
    %410 = vector.broadcast %cst_227 : f32 to vector<16x1xf32>
    %411 = arith.divf %409, %410 : vector<16x1xf32>
    %cst_228 = arith.constant 9.99999974E-6 : f32
    %412 = vector.broadcast %cst_228 : f32 to vector<16x1xf32>
    %413 = arith.addf %411, %412 : vector<16x1xf32>
    %414 = math.rsqrt %413 : vector<16x1xf32>
    %415 = vector.broadcast %414 : vector<16x1xf32> to vector<16x32xf32>
    %416 = arith.mulf %406, %415 : vector<16x32xf32>
    %417 = vector.broadcast %399 : vector<1x32xf32> to vector<16x32xf32>
    %418 = arith.mulf %416, %417 : vector<16x32xf32>
    %419 = vector.broadcast %400 : vector<1x32xf32> to vector<16x32xf32>
    %420 = arith.addf %418, %419 : vector<16x32xf32>
    %c24 = arith.constant 24 : index
    %c0_229 = arith.constant 0 : index
    %421 = vector.load %arg5[%c24, %c0_229] : memref<31x32xf32, #tpu.memory_space<vmem>>, vector<1x32xf32>
    %422 = arith.truncf %420 : vector<16x32xf32> to vector<16x32xbf16>
    %cst_230 = arith.constant 0.000000e+00 : f32
    %423 = vector.broadcast %cst_230 : f32 to vector<16x32xf32>
    %c3_231 = arith.constant 3 : index
    %c0_232 = arith.constant 0 : index
    %c0_233 = arith.constant 0 : index
    %424 = vector.load %arg3[%c3_231, %c0_232, %c0_233] : memref<4x32x2048xbf16, #tpu.memory_space<vmem>>, vector<1x32x512xbf16>
    %425 = vector.shape_cast %424 : vector<1x32x512xbf16> to vector<32x512xbf16>
    %c3_234 = arith.constant 3 : index
    %c0_235 = arith.constant 0 : index
    %426 = vector.load %arg6[%c3_234, %c0_235] : memref<4x2048xf32, #tpu.memory_space<vmem>>, vector<1x512xf32>
    %cst_236 = arith.constant dense<0.000000e+00> : vector<16x512xf32>
    %427 = tpu.matmul %422, %425, %cst_236 {dimension_numbers = #tpu.dot_dimension_numbers<[1], [0], [0], [1], [0, 0, 1, 1], [], []>} : vector<16x32xbf16>, vector<32x512xbf16>, vector<16x512xf32> -> vector<16x512xf32>
    %428 = vector.broadcast %426 : vector<1x512xf32> to vector<16x512xf32>
    %429 = arith.addf %427, %428 : vector<16x512xf32>
    %cst_237 = arith.constant 0.000000e+00 : f32
    %430 = vector.broadcast %cst_237 : f32 to vector<16x512xf32>
    %431 = arith.maximumf %429, %430 : vector<16x512xf32>
    %c3_238 = arith.constant 3 : index
    %c0_239 = arith.constant 0 : index
    %c0_240 = arith.constant 0 : index
    %432 = vector.load %arg4[%c3_238, %c0_239, %c0_240] : memref<4x2048x32xbf16, #tpu.memory_space<vmem>>, vector<1x512x32xbf16>
    %433 = vector.shape_cast %432 : vector<1x512x32xbf16> to vector<512x32xbf16>
    %434 = arith.truncf %431 : vector<16x512xf32> to vector<16x512xbf16>
    %cst_241 = arith.constant dense<0.000000e+00> : vector<16x32xf32>
    %435 = tpu.matmul %434, %433, %cst_241 {dimension_numbers = #tpu.dot_dimension_numbers<[1], [0], [0], [1], [0, 0, 1, 1], [], []>} : vector<16x512xbf16>, vector<512x32xbf16>, vector<16x32xf32> -> vector<16x32xf32>
    %436 = arith.addf %423, %435 : vector<16x32xf32>
    %c3_242 = arith.constant 3 : index
    %c0_243 = arith.constant 0 : index
    %c512_244 = arith.constant 512 : index
    %437 = vector.load %arg3[%c3_242, %c0_243, %c512_244] : memref<4x32x2048xbf16, #tpu.memory_space<vmem>>, vector<1x32x512xbf16>
    %438 = vector.shape_cast %437 : vector<1x32x512xbf16> to vector<32x512xbf16>
    %c3_245 = arith.constant 3 : index
    %c512_246 = arith.constant 512 : index
    %439 = vector.load %arg6[%c3_245, %c512_246] : memref<4x2048xf32, #tpu.memory_space<vmem>>, vector<1x512xf32>
    %cst_247 = arith.constant dense<0.000000e+00> : vector<16x512xf32>
    %440 = tpu.matmul %422, %438, %cst_247 {dimension_numbers = #tpu.dot_dimension_numbers<[1], [0], [0], [1], [0, 0, 1, 1], [], []>} : vector<16x32xbf16>, vector<32x512xbf16>, vector<16x512xf32> -> vector<16x512xf32>
    %441 = vector.broadcast %439 : vector<1x512xf32> to vector<16x512xf32>
    %442 = arith.addf %440, %441 : vector<16x512xf32>
    %cst_248 = arith.constant 0.000000e+00 : f32
    %443 = vector.broadcast %cst_248 : f32 to vector<16x512xf32>
    %444 = arith.maximumf %442, %443 : vector<16x512xf32>
    %c3_249 = arith.constant 3 : index
    %c512_250 = arith.constant 512 : index
    %c0_251 = arith.constant 0 : index
    %445 = vector.load %arg4[%c3_249, %c512_250, %c0_251] : memref<4x2048x32xbf16, #tpu.memory_space<vmem>>, vector<1x512x32xbf16>
    %446 = vector.shape_cast %445 : vector<1x512x32xbf16> to vector<512x32xbf16>
    %447 = arith.truncf %444 : vector<16x512xf32> to vector<16x512xbf16>
    %cst_252 = arith.constant dense<0.000000e+00> : vector<16x32xf32>
    %448 = tpu.matmul %447, %446, %cst_252 {dimension_numbers = #tpu.dot_dimension_numbers<[1], [0], [0], [1], [0, 0, 1, 1], [], []>} : vector<16x512xbf16>, vector<512x32xbf16>, vector<16x32xf32> -> vector<16x32xf32>
    %449 = arith.addf %436, %448 : vector<16x32xf32>
    %c3_253 = arith.constant 3 : index
    %c0_254 = arith.constant 0 : index
    %c1024_255 = arith.constant 1024 : index
    %450 = vector.load %arg3[%c3_253, %c0_254, %c1024_255] : memref<4x32x2048xbf16, #tpu.memory_space<vmem>>, vector<1x32x512xbf16>
    %451 = vector.shape_cast %450 : vector<1x32x512xbf16> to vector<32x512xbf16>
    %c3_256 = arith.constant 3 : index
    %c1024_257 = arith.constant 1024 : index
    %452 = vector.load %arg6[%c3_256, %c1024_257] : memref<4x2048xf32, #tpu.memory_space<vmem>>, vector<1x512xf32>
    %cst_258 = arith.constant dense<0.000000e+00> : vector<16x512xf32>
    %453 = tpu.matmul %422, %451, %cst_258 {dimension_numbers = #tpu.dot_dimension_numbers<[1], [0], [0], [1], [0, 0, 1, 1], [], []>} : vector<16x32xbf16>, vector<32x512xbf16>, vector<16x512xf32> -> vector<16x512xf32>
    %454 = vector.broadcast %452 : vector<1x512xf32> to vector<16x512xf32>
    %455 = arith.addf %453, %454 : vector<16x512xf32>
    %cst_259 = arith.constant 0.000000e+00 : f32
    %456 = vector.broadcast %cst_259 : f32 to vector<16x512xf32>
    %457 = arith.maximumf %455, %456 : vector<16x512xf32>
    %c3_260 = arith.constant 3 : index
    %c1024_261 = arith.constant 1024 : index
    %c0_262 = arith.constant 0 : index
    %458 = vector.load %arg4[%c3_260, %c1024_261, %c0_262] : memref<4x2048x32xbf16, #tpu.memory_space<vmem>>, vector<1x512x32xbf16>
    %459 = vector.shape_cast %458 : vector<1x512x32xbf16> to vector<512x32xbf16>
    %460 = arith.truncf %457 : vector<16x512xf32> to vector<16x512xbf16>
    %cst_263 = arith.constant dense<0.000000e+00> : vector<16x32xf32>
    %461 = tpu.matmul %460, %459, %cst_263 {dimension_numbers = #tpu.dot_dimension_numbers<[1], [0], [0], [1], [0, 0, 1, 1], [], []>} : vector<16x512xbf16>, vector<512x32xbf16>, vector<16x32xf32> -> vector<16x32xf32>
    %462 = arith.addf %449, %461 : vector<16x32xf32>
    %c3_264 = arith.constant 3 : index
    %c0_265 = arith.constant 0 : index
    %c1536_266 = arith.constant 1536 : index
    %463 = vector.load %arg3[%c3_264, %c0_265, %c1536_266] : memref<4x32x2048xbf16, #tpu.memory_space<vmem>>, vector<1x32x512xbf16>
    %464 = vector.shape_cast %463 : vector<1x32x512xbf16> to vector<32x512xbf16>
    %c3_267 = arith.constant 3 : index
    %c1536_268 = arith.constant 1536 : index
    %465 = vector.load %arg6[%c3_267, %c1536_268] : memref<4x2048xf32, #tpu.memory_space<vmem>>, vector<1x512xf32>
    %cst_269 = arith.constant dense<0.000000e+00> : vector<16x512xf32>
    %466 = tpu.matmul %422, %464, %cst_269 {dimension_numbers = #tpu.dot_dimension_numbers<[1], [0], [0], [1], [0, 0, 1, 1], [], []>} : vector<16x32xbf16>, vector<32x512xbf16>, vector<16x512xf32> -> vector<16x512xf32>
    %467 = vector.broadcast %465 : vector<1x512xf32> to vector<16x512xf32>
    %468 = arith.addf %466, %467 : vector<16x512xf32>
    %cst_270 = arith.constant 0.000000e+00 : f32
    %469 = vector.broadcast %cst_270 : f32 to vector<16x512xf32>
    %470 = arith.maximumf %468, %469 : vector<16x512xf32>
    %c3_271 = arith.constant 3 : index
    %c1536_272 = arith.constant 1536 : index
    %c0_273 = arith.constant 0 : index
    %471 = vector.load %arg4[%c3_271, %c1536_272, %c0_273] : memref<4x2048x32xbf16, #tpu.memory_space<vmem>>, vector<1x512x32xbf16>
    %472 = vector.shape_cast %471 : vector<1x512x32xbf16> to vector<512x32xbf16>
    %473 = arith.truncf %470 : vector<16x512xf32> to vector<16x512xbf16>
    %cst_274 = arith.constant dense<0.000000e+00> : vector<16x32xf32>
    %474 = tpu.matmul %473, %472, %cst_274 {dimension_numbers = #tpu.dot_dimension_numbers<[1], [0], [0], [1], [0, 0, 1, 1], [], []>} : vector<16x512xbf16>, vector<512x32xbf16>, vector<16x32xf32> -> vector<16x32xf32>
    %475 = arith.addf %462, %474 : vector<16x32xf32>
    %476 = vector.broadcast %421 : vector<1x32xf32> to vector<16x32xf32>
    %477 = arith.addf %475, %476 : vector<16x32xf32>
    %478 = arith.addf %420, %477 : vector<16x32xf32>
    %c29 = arith.constant 29 : index
    %c0_275 = arith.constant 0 : index
    %479 = vector.load %arg5[%c29, %c0_275] : memref<31x32xf32, #tpu.memory_space<vmem>>, vector<1x32xf32>
    %c30 = arith.constant 30 : index
    %c0_276 = arith.constant 0 : index
    %480 = vector.load %arg5[%c30, %c0_276] : memref<31x32xf32, #tpu.memory_space<vmem>>, vector<1x32xf32>
    %cst_277 = arith.constant dense<0.000000e+00> : vector<16xf32>
    %481 = vector.multi_reduction <add>, %478, %cst_277 [1] : vector<16x32xf32> to vector<16xf32>
    %482 = vector.shape_cast %481 : vector<16xf32> to vector<16x1xf32>
    %cst_278 = arith.constant 3.200000e+01 : f32
    %483 = vector.broadcast %cst_278 : f32 to vector<16x1xf32>
    %484 = arith.divf %482, %483 : vector<16x1xf32>
    %485 = vector.broadcast %484 : vector<16x1xf32> to vector<16x32xf32>
    %486 = arith.subf %478, %485 : vector<16x32xf32>
    %487 = arith.mulf %486, %486 : vector<16x32xf32>
    %cst_279 = arith.constant dense<0.000000e+00> : vector<16xf32>
    %488 = vector.multi_reduction <add>, %487, %cst_279 [1] : vector<16x32xf32> to vector<16xf32>
    %489 = vector.shape_cast %488 : vector<16xf32> to vector<16x1xf32>
    %cst_280 = arith.constant 3.200000e+01 : f32
    %490 = vector.broadcast %cst_280 : f32 to vector<16x1xf32>
    %491 = arith.divf %489, %490 : vector<16x1xf32>
    %cst_281 = arith.constant 9.99999974E-6 : f32
    %492 = vector.broadcast %cst_281 : f32 to vector<16x1xf32>
    %493 = arith.addf %491, %492 : vector<16x1xf32>
    %494 = math.rsqrt %493 : vector<16x1xf32>
    %495 = vector.broadcast %494 : vector<16x1xf32> to vector<16x32xf32>
    %496 = arith.mulf %486, %495 : vector<16x32xf32>
    %497 = vector.broadcast %479 : vector<1x32xf32> to vector<16x32xf32>
    %498 = arith.mulf %496, %497 : vector<16x32xf32>
    %499 = vector.broadcast %480 : vector<1x32xf32> to vector<16x32xf32>
    %500 = arith.addf %498, %499 : vector<16x32xf32>
    %501 = arith.truncf %500 : vector<16x32xf32> to vector<16x32xbf16>
    %c0_282 = arith.constant 0 : index
    %c0_283 = arith.constant 0 : index
    %502 = vector.load %arg7[%c0_282, %c0_283] : memref<32x128xbf16, #tpu.memory_space<vmem>>, vector<32x128xbf16>
    %cst_284 = arith.constant dense<0.000000e+00> : vector<16x128xf32>
    %503 = tpu.matmul %501, %502, %cst_284 {dimension_numbers = #tpu.dot_dimension_numbers<[1], [0], [0], [1], [0, 0, 1, 1], [], []>} : vector<16x32xbf16>, vector<32x128xbf16>, vector<16x128xf32> -> vector<16x128xf32>
    %c0_285 = arith.constant 0 : index
    %c0_286 = arith.constant 0 : index
    %504 = vector.load %arg8[%c0_285, %c0_286] : memref<1x128xf32, #tpu.memory_space<vmem>>, vector<1x128xf32>
    %505 = vector.broadcast %504 : vector<1x128xf32> to vector<16x128xf32>
    %506 = arith.addf %503, %505 : vector<16x128xf32>
    %c0_287 = arith.constant 0 : index
    %c0_288 = arith.constant 0 : index
    %507 = vector.load %arg9[%c0_287, %c0_288] : memref<16x128xf32, #tpu.memory_space<vmem>>, vector<16x128xf32>
    tpu.vector_store %arg9[%c0_287, %c0_288], %506 {strides = array<i32>} : memref<16x128xf32, #tpu.memory_space<vmem>>, vector<16x128xf32>,
    return
  }
}

</mosaic_0001>

<llo_original>
// kernel: tft_forward.1
$region0: #{tft_forward.1}
  #allocation0 [shape = 'u32[]', space=smem, size = 0x4, offset = 0x4, fixed_abs, tag = 'smem constant byte address 0x4 - core index']
  #allocation1 [shape = 'u32[72,128]{1,0:T(1,128)}', space=vmem, size = 0x9000, scoped, tag = 'internal scratch']
  %s0 = inlined_call_operand.vmem [shape: f32[16,32], index: 0, kind: input, shape index: {}]
  %s1 = inlined_call_operand.vmem [shape: bf16[5,32,32], index: 1, kind: input, shape index: {}]
  %s2 = inlined_call_operand.vmem [shape: bf16[32,64], index: 2, kind: input, shape index: {}]
  %s3 = inlined_call_operand.vmem [shape: bf16[4,32,2048], index: 3, kind: input, shape index: {}]
  %s4 = inlined_call_operand.vmem [shape: bf16[4,2048,32], index: 4, kind: input, shape index: {}]
  %s5 = inlined_call_operand.vmem [shape: f32[31,32], index: 5, kind: input, shape index: {}]
  %s6 = inlined_call_operand.vmem [shape: f32[4,2048], index: 6, kind: input, shape index: {}]
  %s7 = inlined_call_operand.vmem [shape: bf16[32,128], index: 7, kind: input, shape index: {}]
  %s8 = inlined_call_operand.vmem [shape: f32[1,128], index: 8, kind: input, shape index: {}]
  %s9 = inlined_call_operand.vmem [shape: f32[16,128], index: 9, kind: output, shape index: {}]
  %s10 = sld [smem:[#allocation0]]
  $region46: #{tft_forward.1} parent=0
    _
  %s12 = ssub.s32 1, %s10
  %s13 = scalar_select 0, %s12, %s10
  // Predicated region
  $region2: #{tft_forward.1} parent=0 // pred_check
    _
  $region3: #{tft_forward.1} parent=0 // pred_check_branch
    %15 = sbr.rel (0) target = $region5
  $region4: #{tft_forward.1} parent=0 // pred_region
    _
  $region5: #{tft_forward.1} parent=0 // pred_fallthru
    _
  // Predicated region
  $region6: #{tft_forward.1} parent=0 // pred_check
    _
  $region7: #{tft_forward.1} parent=0 // pred_check_branch
    %17 = sbr.rel (0) target = $region9
  $region8: #{tft_forward.1} parent=0 // pred_region
    _
  $region9: #{tft_forward.1} parent=0 // pred_fallthru
    _
  // Predicated region
  $region10: #{tft_forward.1} parent=0 // pred_check
    _
  $region11: #{tft_forward.1} parent=0 // pred_check_branch
    %19 = sbr.rel (0) target = $region13
  $region12: #{tft_forward.1} parent=0 // pred_region
    _
  $region13: #{tft_forward.1} parent=0 // pred_fallthru
    _
  // Predicated region
  $region14: #{tft_forward.1} parent=0 // pred_check
    _
  $region15: #{tft_forward.1} parent=0 // pred_check_branch
    %21 = sbr.rel (0) target = $region17
  $region16: #{tft_forward.1} parent=0 // pred_region
    _
  $region17: #{tft_forward.1} parent=0 // pred_fallthru
    _
  // Predicated region
  $region18: #{tft_forward.1} parent=0 // pred_check
    _
  $region19: #{tft_forward.1} parent=0 // pred_check_branch
    %23 = sbr.rel (0) target = $region21
  $region20: #{tft_forward.1} parent=0 // pred_region
    _
  $region21: #{tft_forward.1} parent=0 // pred_fallthru
    _
  // Predicated region
  $region22: #{tft_forward.1} parent=0 // pred_check
    _
  $region23: #{tft_forward.1} parent=0 // pred_check_branch
    %25 = sbr.rel (0) target = $region25
  $region24: #{tft_forward.1} parent=0 // pred_region
    _
  $region25: #{tft_forward.1} parent=0 // pred_fallthru
    _
  // Predicated region
  $region26: #{tft_forward.1} parent=0 // pred_check
    _
  $region27: #{tft_forward.1} parent=0 // pred_check_branch
    %27 = sbr.rel (0) target = $region29
  $region28: #{tft_forward.1} parent=0 // pred_region
    _
  $region29: #{tft_forward.1} parent=0 // pred_fallthru
    _
  // Predicated region
  $region30: #{tft_forward.1} parent=0 // pred_check
    _
  $region31: #{tft_forward.1} parent=0 // pred_check_branch
    %29 = sbr.rel (0) target = $region33
  $region32: #{tft_forward.1} parent=0 // pred_region
    _
  $region33: #{tft_forward.1} parent=0 // pred_fallthru
    _
  // Predicated region
  $region34: #{tft_forward.1} parent=0 // pred_check
    _
  $region35: #{tft_forward.1} parent=0 // pred_check_branch
    %31 = sbr.rel (0) target = $region37
  $region36: #{tft_forward.1} parent=0 // pred_region
    _
  $region37: #{tft_forward.1} parent=0 // pred_fallthru
    _
  %v33 = vld [vmem:[%s0] sm:$0xff]
  %v34 = vld [vmem:[%s0 + $0x8] sm:$0xff]
  %v35 = vld [vmem:[%s1] sm:$0xf]
  %v36 = vld [vmem:[%s1 + $0x4] sm:$0xf]
  %v37 = vld [vmem:[%s1 + $0x8] sm:$0xf]
  %v38 = vld [vmem:[%s1 + $0xc] sm:$0xf]
  %v39 = vld [vmem:[%s5] sm:$0x1]
  %v40 = vpack.c.bf16 %v34, %v33
  %v41 = vperm.slane %v39, 0
  %v46 = vunpack.c.l.b16 %v35
  %v47 = vunpack.c.l.b16 %v36
  %v48 = vunpack.c.l.b16 %v37
  %v49 = vunpack.c.l.b16 %v38
  %v50 = vpack.c.b16 %v47, %v46
  %v51 = vpack.c.b16 %v49, %v48
  %vm54 = vcmask 261120
  %v56 = vsel %vm54, %v40, 0
  %58 = vmatpush.bf16.msra.mxu0 0
  %59 = vmatpush.bf16.msra.mxu0 0
  %60 = vmatpush.bf16.msra.mxu0 0
  %61 = vmatpush.bf16.msra.mxu0 0
  %62 = vmatpush.bf16.msra.mxu0 0
  %63 = vmatpush.bf16.msra.mxu0 0
  %64 = vmatpush.bf16.msra.mxu0 %v51
  %65 = vmatpush.bf16.msra.mxu0 %v50
  %66 = vmatmul.bf16.gmra.mxu0 %v56
  %v67 = vpop.f32.mrf.mxu0
  %v68 = vadd.f32 %v41, %v67
  %v69 = vpop.f32.mrf.mxu0
  %v70 = vadd.f32 %v41, %v69
  %71 = vdwg.mxu0
  %s72 = scalar_lea.vmem %s1, 16
  %v73 = vld [vmem:[%s72] sm:$0xf]
  %v74 = vld [vmem:[%s72 + $0x4] sm:$0xf]
  %v75 = vld [vmem:[%s72 + $0x8] sm:$0xf]
  %v76 = vld [vmem:[%s72 + $0xc] sm:$0xf]
  %v77 = vld [vmem:[%s5 + $0x1] sm:$0x1]
  %v78 = vpack.c.bf16 %v70, %v68
  %v79 = vperm.slane %v77, 0
  %v84 = vunpack.c.l.b16 %v73
  %v85 = vunpack.c.l.b16 %v74
  %v86 = vunpack.c.l.b16 %v75
  %v87 = vunpack.c.l.b16 %v76
  %v88 = vpack.c.b16 %v85, %v84
  %v89 = vpack.c.b16 %v87, %v86
  %v93 = vsel %vm54, %v78, 0
  %95 = vmatpush.bf16.msra.mxu0 0
  %96 = vmatpush.bf16.msra.mxu0 0
  %97 = vmatpush.bf16.msra.mxu0 0
  %98 = vmatpush.bf16.msra.mxu0 0
  %99 = vmatpush.bf16.msra.mxu0 0
  %100 = vmatpush.bf16.msra.mxu0 0
  %101 = vmatpush.bf16.msra.mxu0 %v89
  %102 = vmatpush.bf16.msra.mxu0 %v88
  %103 = vmatmul.bf16.gmra.mxu0 %v93
  %v104 = vpop.f32.mrf.mxu0
  %v105 = vadd.f32 %v79, %v104
  %v106 = vpop.f32.mrf.mxu0
  %v107 = vadd.f32 %v79, %v106
  %108 = vdwg.mxu0
  %v109 = vld [vmem:[%s5 + $0x3] sm:$0x1]
  %v110 = vld [vmem:[%s5 + $0x4] sm:$0x1]
  %v111 = vsel %vm54, %v105, 0.0
  %112 = vadd.xlane.f32.xlu0 %v111
  %v113 = vpop.xlane.xlu0 %112
  %v114 = vsel %vm54, %v107, 0.0
  %115 = vadd.xlane.f32.xlu0 %v114
  %v116 = vpop.xlane.xlu0 %115
  %v117 = vrcp.pop 32.0
  %v118 = vmul.f32 32.0, %v117
  %v119 = vsub.f32 1.0, %v118
  %v120 = vmul.f32 %v117, %v119
  %v121 = vadd.f32 %v117, %v120
  %vm122 = vweird.f32 %v117
  %v123 = vsel %vm122, %v117, %v121
  %v124 = vmul.f32 %v113, %v123
  %v125 = vmul.f32 %v116, %v123
  %v126 = vsub.f32 %v105, %v124
  %v127 = vsub.f32 %v107, %v125
  %v128 = vmul.f32 %v126, %v126
  %v129 = vmul.f32 %v127, %v127
  %v130 = vsel %vm54, %v128, 0.0
  %131 = vadd.xlane.f32.xlu0 %v130
  %v132 = vpop.xlane.xlu0 %131
  %v133 = vsel %vm54, %v129, 0.0
  %134 = vadd.xlane.f32.xlu0 %v133
  %v135 = vpop.xlane.xlu0 %134
  %v136 = vmul.f32 %v132, %v123
  %v137 = vmul.f32 %v135, %v123
  %v138 = vadd.f32 %v136, 1e-05
  %v139 = vadd.f32 %v137, 1e-05
  %v140 = vrsqrt.pop %v138
  %v141 = vmul.f32 %v140, %v138
  %v142 = vmul.f32 %v141, %v140
  %v143 = vmul.f32 0.5, %v142
  %v144 = vsub.f32 1.5, %v143
  %v145 = vmul.f32 %v140, %v144
  %vm146 = vweird.f32 %v138
  %vm147 = vweird.f32 %v140
  %vm148 = vmor %vm146, %vm147
  %v149 = vsel %vm148, %v140, %v145
  %v150 = vrsqrt.pop %v139
  %v151 = vmul.f32 %v150, %v139
  %v152 = vmul.f32 %v151, %v150
  %v153 = vmul.f32 0.5, %v152
  %v154 = vsub.f32 1.5, %v153
  %v155 = vmul.f32 %v150, %v154
  %vm156 = vweird.f32 %v139
  %vm157 = vweird.f32 %v150
  %vm158 = vmor %vm156, %vm157
  %v159 = vsel %vm158, %v150, %v155
  %v160 = vmul.f32 %v126, %v149
  %v161 = vmul.f32 %v127, %v159
  %v162 = vperm.slane %v109, 0
  %v163 = vmul.f32 %v160, %v162
  %v164 = vmul.f32 %v161, %v162
  %v165 = vperm.slane %v110, 0
  %v166 = vadd.f32 %v163, %v165
  %v167 = vadd.f32 %v164, %v165
  %v168 = vld [vmem:[%s5 + $0x2] sm:$0x1]
  %v169 = vpack.c.bf16 %v167, %v166
  %v170 = vld [vmem:[%s3] sm:$0xff]
  %v171 = vld [vmem:[%s3 + $0x8] sm:$0xff]
  %v172 = vld [vmem:[%s3 + $0x40] sm:$0xff]
  %v173 = vld [vmem:[%s3 + $0x48] sm:$0xff]
  %v174 = vld [vmem:[%s3 + $0x80] sm:$0xff]
  %v175 = vld [vmem:[%s3 + $0x88] sm:$0xff]
  %v176 = vld [vmem:[%s3 + $0xc0] sm:$0xff]
  %v177 = vld [vmem:[%s3 + $0xc8] sm:$0xff]
  %v178 = vld [vmem:[%s6] ss:$4 sm:$0xf]
  %v180 = vperm.slane %v178, 0
  %v181 = vperm.slane %v178, 1
  %v182 = vperm.slane %v178, 2
  %v183 = vperm.slane %v178, 3
  %v196 = vunpack.c.l.b16 %v170
  %v197 = vunpack.c.h.b16 %v170
  %v198 = vunpack.c.l.b16 %v171
  %v199 = vunpack.c.h.b16 %v171
  %v200 = vunpack.c.l.b16 %v172
  %v201 = vunpack.c.h.b16 %v172
  %v202 = vunpack.c.l.b16 %v173
  %v203 = vunpack.c.h.b16 %v173
  %v204 = vunpack.c.l.b16 %v174
  %v205 = vunpack.c.h.b16 %v174
  %v206 = vunpack.c.l.b16 %v175
  %v207 = vunpack.c.h.b16 %v175
  %v208 = vunpack.c.l.b16 %v176
  %v209 = vunpack.c.h.b16 %v176
  %v210 = vunpack.c.l.b16 %v177
  %v211 = vunpack.c.h.b16 %v177
  %v212 = vpack.c.b16 %v200, %v196
  %v213 = vpack.c.b16 %v201, %v197
  %v214 = vpack.c.b16 %v202, %v198
  %v215 = vpack.c.b16 %v203, %v199
  %v216 = vpack.c.b16 %v208, %v204
  %v217 = vpack.c.b16 %v209, %v205
  %v218 = vpack.c.b16 %v210, %v206
  %v219 = vpack.c.b16 %v211, %v207
  %v229 = vsel %vm54, %v169, 0
  %231 = vmatpush.bf16.msra.mxu0 0
  %232 = vmatpush.bf16.msra.mxu0 0
  %233 = vmatpush.bf16.msra.mxu0 0
  %234 = vmatpush.bf16.msra.mxu0 0
  %235 = vmatpush.bf16.msra.mxu0 0
  %236 = vmatpush.bf16.msra.mxu0 0
  %237 = vmatpush.bf16.msra.mxu0 %v216
  %238 = vmatpush.bf16.msra.mxu0 %v212
  %239 = vmatmul.bf16.gmra.mxu0 %v229
  %v240 = vpop.f32.mrf.mxu0
  %v241 = vadd.f32 %v180, %v240
  %v242 = vpop.f32.mrf.mxu0
  %v243 = vadd.f32 %v180, %v242
  %244 = vdwg.mxu0
  %245 = vmatpush.bf16.msra.mxu0 0
  %246 = vmatpush.bf16.msra.mxu0 0
  %247 = vmatpush.bf16.msra.mxu0 0
  %248 = vmatpush.bf16.msra.mxu0 0
  %249 = vmatpush.bf16.msra.mxu0 0
  %250 = vmatpush.bf16.msra.mxu0 0
  %251 = vmatpush.bf16.msra.mxu0 %v217
  %252 = vmatpush.bf16.msra.mxu0 %v213
  %253 = vmatmul.bf16.gmra.mxu0 %v229
  %v254 = vpop.f32.mrf.mxu0
  %v255 = vadd.f32 %v181, %v254
  %v256 = vpop.f32.mrf.mxu0
  %v257 = vadd.f32 %v181, %v256
  %258 = vdwg.mxu0
  %259 = vmatpush.bf16.msra.mxu0 0
  %260 = vmatpush.bf16.msra.mxu0 0
  %261 = vmatpush.bf16.msra.mxu0 0
  %262 = vmatpush.bf16.msra.mxu0 0
  %263 = vmatpush.bf16.msra.mxu0 0
  %264 = vmatpush.bf16.msra.mxu0 0
  %265 = vmatpush.bf16.msra.mxu0 %v218
  %266 = vmatpush.bf16.msra.mxu0 %v214
  %267 = vmatmul.bf16.gmra.mxu0 %v229
  %v268 = vpop.f32.mrf.mxu0
  %v269 = vadd.f32 %v182, %v268
  %v270 = vpop.f32.mrf.mxu0
  %v271 = vadd.f32 %v182, %v270
  %272 = vdwg.mxu0
  %273 = vmatpush.bf16.msra.mxu0 0
  %274 = vmatpush.bf16.msra.mxu0 0
  %275 = vmatpush.bf16.msra.mxu0 0
  %276 = vmatpush.bf16.msra.mxu0 0
  %277 = vmatpush.bf16.msra.mxu0 0
  %278 = vmatpush.bf16.msra.mxu0 0
  %279 = vmatpush.bf16.msra.mxu0 %v219
  %280 = vmatpush.bf16.msra.mxu0 %v215
  %281 = vmatmul.bf16.gmra.mxu0 %v229
  %v282 = vpop.f32.mrf.mxu0
  %v283 = vadd.f32 %v183, %v282
  %v284 = vpop.f32.mrf.mxu0
  %v285 = vadd.f32 %v183, %v284
  %286 = vdwg.mxu0
  %v287 = vmax.f32 %v241, 0.0
  %v288 = vmax.f32 %v255, 0.0
  %v289 = vmax.f32 %v269, 0.0
  %v290 = vmax.f32 %v283, 0.0
  %v291 = vmax.f32 %v243, 0.0
  %v292 = vmax.f32 %v257, 0.0
  %v293 = vmax.f32 %v271, 0.0
  %v294 = vmax.f32 %v285, 0.0
  %v295 = vld [vmem:[%s4] sm:$0xf]
  %v296 = vld [vmem:[%s4 + $0x4] sm:$0xf]
  %v297 = vld [vmem:[%s4 + $0x8] sm:$0xf]
  %v298 = vld [vmem:[%s4 + $0xc] sm:$0xf]
  %v299 = vld [vmem:[%s4 + $0x10] sm:$0xf]
  %v300 = vld [vmem:[%s4 + $0x14] sm:$0xf]
  %v301 = vld [vmem:[%s4 + $0x18] sm:$0xf]
  %v302 = vld [vmem:[%s4 + $0x1c] sm:$0xf]
  %v303 = vld [vmem:[%s4 + $0x20] sm:$0xf]
  %v304 = vld [vmem:[%s4 + $0x24] sm:$0xf]
  %v305 = vld [vmem:[%s4 + $0x28] sm:$0xf]
  %v306 = vld [vmem:[%s4 + $0x2c] sm:$0xf]
  %v307 = vld [vmem:[%s4 + $0x30] sm:$0xf]
  %v308 = vld [vmem:[%s4 + $0x34] sm:$0xf]
  %v309 = vld [vmem:[%s4 + $0x38] sm:$0xf]
  %v310 = vld [vmem:[%s4 + $0x3c] sm:$0xf]
  %v311 = vld [vmem:[%s4 + $0x40] sm:$0xf]
  %v312 = vld [vmem:[%s4 + $0x44] sm:$0xf]
  %v313 = vld [vmem:[%s4 + $0x48] sm:$0xf]
  %v314 = vld [vmem:[%s4 + $0x4c] sm:$0xf]
  %v315 = vld [vmem:[%s4 + $0x50] sm:$0xf]
  %v316 = vld [vmem:[%s4 + $0x54] sm:$0xf]
  %v317 = vld [vmem:[%s4 + $0x58] sm:$0xf]
  %v318 = vld [vmem:[%s4 + $0x5c] sm:$0xf]
  %v319 = vld [vmem:[%s4 + $0x60] sm:$0xf]
  %v320 = vld [vmem:[%s4 + $0x64] sm:$0xf]
  %v321 = vld [vmem:[%s4 + $0x68] sm:$0xf]
  %v322 = vld [vmem:[%s4 + $0x6c] sm:$0xf]
  %v323 = vld [vmem:[%s4 + $0x70] sm:$0xf]
  %v324 = vld [vmem:[%s4 + $0x74] sm:$0xf]
  %v325 = vld [vmem:[%s4 + $0x78] sm:$0xf]
  %v326 = vld [vmem:[%s4 + $0x7c] sm:$0xf]
  %v327 = vld [vmem:[%s4 + $0x80] sm:$0xf]
  %v328 = vld [vmem:[%s4 + $0x84] sm:$0xf]
  %v329 = vld [vmem:[%s4 + $0x88] sm:$0xf]
  %v330 = vld [vmem:[%s4 + $0x8c] sm:$0xf]
  %v331 = vld [vmem:[%s4 + $0x90] sm:$0xf]
  %v332 = vld [vmem:[%s4 + $0x94] sm:$0xf]
  %v333 = vld [vmem:[%s4 + $0x98] sm:$0xf]
  %v334 = vld [vmem:[%s4 + $0x9c] sm:$0xf]
  %v335 = vld [vmem:[%s4 + $0xa0] sm:$0xf]
  %v336 = vld [vmem:[%s4 + $0xa4] sm:$0xf]
  %v337 = vld [vmem:[%s4 + $0xa8] sm:$0xf]
  %v338 = vld [vmem:[%s4 + $0xac] sm:$0xf]
  %v339 = vld [vmem:[%s4 + $0xb0] sm:$0xf]
  %v340 = vld [vmem:[%s4 + $0xb4] sm:$0xf]
  %v341 = vld [vmem:[%s4 + $0xb8] sm:$0xf]
  %v342 = vld [vmem:[%s4 + $0xbc] sm:$0xf]
  %v343 = vld [vmem:[%s4 + $0xc0] sm:$0xf]
  %v344 = vld [vmem:[%s4 + $0xc4] sm:$0xf]
  %v345 = vld [vmem:[%s4 + $0xc8] sm:$0xf]
  %v346 = vld [vmem:[%s4 + $0xcc] sm:$0xf]
  %v347 = vld [vmem:[%s4 + $0xd0] sm:$0xf]
  %v348 = vld [vmem:[%s4 + $0xd4] sm:$0xf]
  %v349 = vld [vmem:[%s4 + $0xd8] sm:$0xf]
  %v350 = vld [vmem:[%s4 + $0xdc] sm:$0xf]
  %v351 = vld [vmem:[%s4 + $0xe0] sm:$0xf]
  %v352 = vld [vmem:[%s4 + $0xe4] sm:$0xf]
  %v353 = vld [vmem:[%s4 + $0xe8] sm:$0xf]
  %v354 = vld [vmem:[%s4 + $0xec] sm:$0xf]
  %v355 = vld [vmem:[%s4 + $0xf0] sm:$0xf]
  %v356 = vld [vmem:[%s4 + $0xf4] sm:$0xf]
  %v357 = vld [vmem:[%s4 + $0xf8] sm:$0xf]
  %v358 = vld [vmem:[%s4 + $0xfc] sm:$0xf]
  %v359 = vpack.c.bf16 %v291, %v287
  %v360 = vpack.c.bf16 %v292, %v288
  %v361 = vpack.c.bf16 %v293, %v289
  %v362 = vpack.c.bf16 %v294, %v290
  %v363 = vld [vmem:[%s3 + $0x10] sm:$0xff]
  %v364 = vld [vmem:[%s3 + $0x18] sm:$0xff]
  %v365 = vld [vmem:[%s3 + $0x50] sm:$0xff]
  %v366 = vld [vmem:[%s3 + $0x58] sm:$0xff]
  %v367 = vld [vmem:[%s3 + $0x90] sm:$0xff]
  %v368 = vld [vmem:[%s3 + $0x98] sm:$0xff]
  %v369 = vld [vmem:[%s3 + $0xd0] sm:$0xff]
  %v370 = vld [vmem:[%s3 + $0xd8] sm:$0xff]
  %s371 = scalar_lea.vmem %s6, 16
  %v372 = vld [vmem:[%s371] ss:$4 sm:$0xf]
  %v374 = vperm.slane %v372, 0
  %v375 = vperm.slane %v372, 1
  %v376 = vperm.slane %v372, 2
  %v377 = vperm.slane %v372, 3
  %v390 = vunpack.c.l.b16 %v363
  %v391 = vunpack.c.h.b16 %v363
  %v392 = vunpack.c.l.b16 %v364
  %v393 = vunpack.c.h.b16 %v364
  %v394 = vunpack.c.l.b16 %v365
  %v395 = vunpack.c.h.b16 %v365
  %v396 = vunpack.c.l.b16 %v366
  %v397 = vunpack.c.h.b16 %v366
  %v398 = vunpack.c.l.b16 %v367
  %v399 = vunpack.c.h.b16 %v367
  %v400 = vunpack.c.l.b16 %v368
  %v401 = vunpack.c.h.b16 %v368
  %v402 = vunpack.c.l.b16 %v369
  %v403 = vunpack.c.h.b16 %v369
  %v404 = vunpack.c.l.b16 %v370
  %v405 = vunpack.c.h.b16 %v370
  %v406 = vpack.c.b16 %v394, %v390
  %v407 = vpack.c.b16 %v395, %v391
  %v408 = vpack.c.b16 %v396, %v392
  %v409 = vpack.c.b16 %v397, %v393
  %v410 = vpack.c.b16 %v402, %v398
  %v411 = vpack.c.b16 %v403, %v399
  %v412 = vpack.c.b16 %v404, %v400
  %v413 = vpack.c.b16 %v405, %v401
  %422 = vmatpush.bf16.msra.mxu0 0
  %423 = vmatpush.bf16.msra.mxu0 0
  %424 = vmatpush.bf16.msra.mxu0 0
  %425 = vmatpush.bf16.msra.mxu0 0
  %426 = vmatpush.bf16.msra.mxu0 0
  %427 = vmatpush.bf16.msra.mxu0 0
  %428 = vmatpush.bf16.msra.mxu0 %v410
  %429 = vmatpush.bf16.msra.mxu0 %v406
  %430 = vmatmul.bf16.gmra.mxu0 %v229
  %v431 = vpop.f32.mrf.mxu0
  %v432 = vadd.f32 %v374, %v431
  %v433 = vpop.f32.mrf.mxu0
  %v434 = vadd.f32 %v374, %v433
  %435 = vdwg.mxu0
  %436 = vmatpush.bf16.msra.mxu0 0
  %437 = vmatpush.bf16.msra.mxu0 0
  %438 = vmatpush.bf16.msra.mxu0 0
  %439 = vmatpush.bf16.msra.mxu0 0
  %440 = vmatpush.bf16.msra.mxu0 0
  %441 = vmatpush.bf16.msra.mxu0 0
  %442 = vmatpush.bf16.msra.mxu0 %v411
  %443 = vmatpush.bf16.msra.mxu0 %v407
  %444 = vmatmul.bf16.gmra.mxu0 %v229
  %v445 = vpop.f32.mrf.mxu0
  %v446 = vadd.f32 %v375, %v445
  %v447 = vpop.f32.mrf.mxu0
  %v448 = vadd.f32 %v375, %v447
  %449 = vdwg.mxu0
  %450 = vmatpush.bf16.msra.mxu0 0
  %451 = vmatpush.bf16.msra.mxu0 0
  %452 = vmatpush.bf16.msra.mxu0 0
  %453 = vmatpush.bf16.msra.mxu0 0
  %454 = vmatpush.bf16.msra.mxu0 0
  %455 = vmatpush.bf16.msra.mxu0 0
  %456 = vmatpush.bf16.msra.mxu0 %v412
  %457 = vmatpush.bf16.msra.mxu0 %v408
  %458 = vmatmul.bf16.gmra.mxu0 %v229
  %v459 = vpop.f32.mrf.mxu0
  %v460 = vadd.f32 %v376, %v459
  %v461 = vpop.f32.mrf.mxu0
  %v462 = vadd.f32 %v376, %v461
  %463 = vdwg.mxu0
  %464 = vmatpush.bf16.msra.mxu0 0
  %465 = vmatpush.bf16.msra.mxu0 0
  %466 = vmatpush.bf16.msra.mxu0 0
  %467 = vmatpush.bf16.msra.mxu0 0
  %468 = vmatpush.bf16.msra.mxu0 0
  %469 = vmatpush.bf16.msra.mxu0 0
  %470 = vmatpush.bf16.msra.mxu0 %v413
  %471 = vmatpush.bf16.msra.mxu0 %v409
  %472 = vmatmul.bf16.gmra.mxu0 %v229
  %v473 = vpop.f32.mrf.mxu0
  %v474 = vadd.f32 %v377, %v473
  %v475 = vpop.f32.mrf.mxu0
  %v476 = vadd.f32 %v377, %v475
  %477 = vdwg.mxu0
  %v478 = vmax.f32 %v432, 0.0
  %v479 = vmax.f32 %v446, 0.0
  %v480 = vmax.f32 %v460, 0.0
  %v481 = vmax.f32 %v474, 0.0
  %v482 = vmax.f32 %v434, 0.0
  %v483 = vmax.f32 %v448, 0.0
  %v484 = vmax.f32 %v462, 0.0
  %v485 = vmax.f32 %v476, 0.0
  %v486 = vld [vmem:[%s4 + $0x100] sm:$0xf]
  %v487 = vld [vmem:[%s4 + $0x104] sm:$0xf]
  %v488 = vld [vmem:[%s4 + $0x108] sm:$0xf]
  %v489 = vld [vmem:[%s4 + $0x10c] sm:$0xf]
  %v490 = vld [vmem:[%s4 + $0x110] sm:$0xf]
  %v491 = vld [vmem:[%s4 + $0x114] sm:$0xf]
  %v492 = vld [vmem:[%s4 + $0x118] sm:$0xf]
  %v493 = vld [vmem:[%s4 + $0x11c] sm:$0xf]
  %v494 = vld [vmem:[%s4 + $0x120] sm:$0xf]
  %v495 = vld [vmem:[%s4 + $0x124] sm:$0xf]
  %v496 = vld [vmem:[%s4 + $0x128] sm:$0xf]
  %v497 = vld [vmem:[%s4 + $0x12c] sm:$0xf]
  %v498 = vld [vmem:[%s4 + $0x130] sm:$0xf]
  %v499 = vld [vmem:[%s4 + $0x134] sm:$0xf]
  %v500 = vld [vmem:[%s4 + $0x138] sm:$0xf]
  %v501 = vld [vmem:[%s4 + $0x13c] sm:$0xf]
  %v502 = vld [vmem:[%s4 + $0x140] sm:$0xf]
  %v503 = vld [vmem:[%s4 + $0x144] sm:$0xf]
  %v504 = vld [vmem:[%s4 + $0x148] sm:$0xf]
  %v505 = vld [vmem:[%s4 + $0x14c] sm:$0xf]
  %v506 = vld [vmem:[%s4 + $0x150] sm:$0xf]
  %v507 = vld [vmem:[%s4 + $0x154] sm:$0xf]
  %v508 = vld [vmem:[%s4 + $0x158] sm:$0xf]
  %v509 = vld [vmem:[%s4 + $0x15c] sm:$0xf]
  %v510 = vld [vmem:[%s4 + $0x160] sm:$0xf]
  %v511 = vld [vmem:[%s4 + $0x164] sm:$0xf]
  %v512 = vld [vmem:[%s4 + $0x168] sm:$0xf]
  %v513 = vld [vmem:[%s4 + $0x16c] sm:$0xf]
  %v514 = vld [vmem:[%s4 + $0x170] sm:$0xf]
  %v515 = vld [vmem:[%s4 + $0x174] sm:$0xf]
  %v516 = vld [vmem:[%s4 + $0x178] sm:$0xf]
  %v517 = vld [vmem:[%s4 + $0x17c] sm:$0xf]
  %v518 = vld [vmem:[%s4 + $0x180] sm:$0xf]
  %v519 = vld [vmem:[%s4 + $0x184] sm:$0xf]
  %v520 = vld [vmem:[%s4 + $0x188] sm:$0xf]
  %v521 = vld [vmem:[%s4 + $0x18c] sm:$0xf]
  %v522 = vld [vmem:[%s4 + $0x190] sm:$0xf]
  %v523 = vld [vmem:[%s4 + $0x194] sm:$0xf]
  %v524 = vld [vmem:[%s4 + $0x198] sm:$0xf]
  %v525 = vld [vmem:[%s4 + $0x19c] sm:$0xf]
  %v526 = vld [vmem:[%s4 + $0x1a0] sm:$0xf]
  %v527 = vld [vmem:[%s4 + $0x1a4] sm:$0xf]
  %v528 = vld [vmem:[%s4 + $0x1a8] sm:$0xf]
  %v529 = vld [vmem:[%s4 + $0x1ac] sm:$0xf]
  %v530 = vld [vmem:[%s4 + $0x1b0] sm:$0xf]
  %v531 = vld [vmem:[%s4 + $0x1b4] sm:$0xf]
  %v532 = vld [vmem:[%s4 + $0x1b8] sm:$0xf]
  %v533 = vld [vmem:[%s4 + $0x1bc] sm:$0xf]
  %v534 = vld [vmem:[%s4 + $0x1c0] sm:$0xf]
  %v535 = vld [vmem:[%s4 + $0x1c4] sm:$0xf]
  %v536 = vld [vmem:[%s4 + $0x1c8] sm:$0xf]
  %v537 = vld [vmem:[%s4 + $0x1cc] sm:$0xf]
  %v538 = vld [vmem:[%s4 + $0x1d0] sm:$0xf]
  %v539 = vld [vmem:[%s4 + $0x1d4] sm:$0xf]
  %v540 = vld [vmem:[%s4 + $0x1d8] sm:$0xf]
  %v541 = vld [vmem:[%s4 + $0x1dc] sm:$0xf]
  %v542 = vld [vmem:[%s4 + $0x1e0] sm:$0xf]
  %v543 = vld [vmem:[%s4 + $0x1e4] sm:$0xf]
  %v544 = vld [vmem:[%s4 + $0x1e8] sm:$0xf]
  %v545 = vld [vmem:[%s4 + $0x1ec] sm:$0xf]
  %v546 = vld [vmem:[%s4 + $0x1f0] sm:$0xf]
  %v547 = vld [vmem:[%s4 + $0x1f4] sm:$0xf]
  %v548 = vld [vmem:[%s4 + $0x1f8] sm:$0xf]
  %v549 = vld [vmem:[%s4 + $0x1fc] sm:$0xf]
  %v550 = vpack.c.bf16 %v482, %v478
  %v551 = vpack.c.bf16 %v483, %v479
  %v552 = vpack.c.bf16 %v484, %v480
  %v553 = vpack.c.bf16 %v485, %v481
  %v618 = vunpack.c.l.b16 %v486
  %v619 = vunpack.c.l.b16 %v487
  %v620 = vunpack.c.l.b16 %v488
  %v621 = vunpack.c.l.b16 %v489
  %v622 = vunpack.c.l.b16 %v490
  %v623 = vunpack.c.l.b16 %v491
  %v624 = vunpack.c.l.b16 %v492
  %v625 = vunpack.c.l.b16 %v493
  %v626 = vunpack.c.l.b16 %v494
  %v627 = vunpack.c.l.b16 %v495
  %v628 = vunpack.c.l.b16 %v496
  %v629 = vunpack.c.l.b16 %v497
  %v630 = vunpack.c.l.b16 %v498
  %v631 = vunpack.c.l.b16 %v499
  %v632 = vunpack.c.l.b16 %v500
  %v633 = vunpack.c.l.b16 %v501
  %v634 = vunpack.c.l.b16 %v502
  %v635 = vunpack.c.l.b16 %v503
  %v636 = vunpack.c.l.b16 %v504
  %v637 = vunpack.c.l.b16 %v505
  %v638 = vunpack.c.l.b16 %v506
  %v639 = vunpack.c.l.b16 %v507
  %v640 = vunpack.c.l.b16 %v508
  %v641 = vunpack.c.l.b16 %v509
  %v642 = vunpack.c.l.b16 %v510
  %v643 = vunpack.c.l.b16 %v511
  %v644 = vunpack.c.l.b16 %v512
  %v645 = vunpack.c.l.b16 %v513
  %v646 = vunpack.c.l.b16 %v514
  %v647 = vunpack.c.l.b16 %v515
  %v648 = vunpack.c.l.b16 %v516
  %v649 = vunpack.c.l.b16 %v517
  %v650 = vunpack.c.l.b16 %v518
  %v651 = vunpack.c.l.b16 %v519
  %v652 = vunpack.c.l.b16 %v520
  %v653 = vunpack.c.l.b16 %v521
  %v654 = vunpack.c.l.b16 %v522
  %v655 = vunpack.c.l.b16 %v523
  %v656 = vunpack.c.l.b16 %v524
  %v657 = vunpack.c.l.b16 %v525
  %v658 = vunpack.c.l.b16 %v526
  %v659 = vunpack.c.l.b16 %v527
  %v660 = vunpack.c.l.b16 %v528
  %v661 = vunpack.c.l.b16 %v529
  %v662 = vunpack.c.l.b16 %v530
  %v663 = vunpack.c.l.b16 %v531
  %v664 = vunpack.c.l.b16 %v532
  %v665 = vunpack.c.l.b16 %v533
  %v666 = vunpack.c.l.b16 %v534
  %v667 = vunpack.c.l.b16 %v535
  %v668 = vunpack.c.l.b16 %v536
  %v669 = vunpack.c.l.b16 %v537
  %v670 = vunpack.c.l.b16 %v538
  %v671 = vunpack.c.l.b16 %v539
  %v672 = vunpack.c.l.b16 %v540
  %v673 = vunpack.c.l.b16 %v541
  %v674 = vunpack.c.l.b16 %v542
  %v675 = vunpack.c.l.b16 %v543
  %v676 = vunpack.c.l.b16 %v544
  %v677 = vunpack.c.l.b16 %v545
  %v678 = vunpack.c.l.b16 %v546
  %v679 = vunpack.c.l.b16 %v547
  %v680 = vunpack.c.l.b16 %v548
  %v681 = vunpack.c.l.b16 %v549
  %v682 = vpack.c.b16 %v619, %v618
  %v683 = vpack.c.b16 %v621, %v620
  %v684 = vpack.c.b16 %v623, %v622
  %v685 = vpack.c.b16 %v625, %v624
  %v686 = vpack.c.b16 %v627, %v626
  %v687 = vpack.c.b16 %v629, %v628
  %v688 = vpack.c.b16 %v631, %v630
  %v689 = vpack.c.b16 %v633, %v632
  %v690 = vpack.c.b16 %v635, %v634
  %v691 = vpack.c.b16 %v637, %v636
  %v692 = vpack.c.b16 %v639, %v638
  %v693 = vpack.c.b16 %v641, %v640
  %v694 = vpack.c.b16 %v643, %v642
  %v695 = vpack.c.b16 %v645, %v644
  %v696 = vpack.c.b16 %v647, %v646
  %v697 = vpack.c.b16 %v649, %v648
  %v698 = vpack.c.b16 %v651, %v650
  %v699 = vpack.c.b16 %v653, %v652
  %v700 = vpack.c.b16 %v655, %v654
  %v701 = vpack.c.b16 %v657, %v656
  %v702 = vpack.c.b16 %v659, %v658
  %v703 = vpack.c.b16 %v661, %v660
  %v704 = vpack.c.b16 %v663, %v662
  %v705 = vpack.c.b16 %v665, %v664
  %v706 = vpack.c.b16 %v667, %v666
  %v707 = vpack.c.b16 %v669, %v668
  %v708 = vpack.c.b16 %v671, %v670
  %v709 = vpack.c.b16 %v673, %v672
  %v710 = vpack.c.b16 %v675, %v674
  %v711 = vpack.c.b16 %v677, %v676
  %v712 = vpack.c.b16 %v679, %v678
  %v713 = vpack.c.b16 %v681, %v680
  %746 = vmatpush.bf16.msra.mxu0 %v689
  %747 = vmatpush.bf16.msra.mxu0 %v688
  %748 = vmatpush.bf16.msra.mxu0 %v687
  %749 = vmatpush.bf16.msra.mxu0 %v686
  %750 = vmatpush.bf16.msra.mxu0 %v685
  %751 = vmatpush.bf16.msra.mxu0 %v684
  %752 = vmatpush.bf16.msra.mxu0 %v683
  %753 = vmatpush.bf16.msra.mxu0 %v682
  %754 = vmatmul.bf16.gmra.mxu0 %v550
  %v755 = vpop.f32.mrf.mxu0
  %v756 = vadd.f32 0.0, %v755
  %v757 = vpop.f32.mrf.mxu0
  %v758 = vadd.f32 0.0, %v757
  %759 = vdwg.mxu0
  %760 = vmatpush.bf16.msra.mxu0 %v697
  %761 = vmatpush.bf16.msra.mxu0 %v696
  %762 = vmatpush.bf16.msra.mxu0 %v695
  %763 = vmatpush.bf16.msra.mxu0 %v694
  %764 = vmatpush.bf16.msra.mxu0 %v693
  %765 = vmatpush.bf16.msra.mxu0 %v692
  %766 = vmatpush.bf16.msra.mxu0 %v691
  %767 = vmatpush.bf16.msra.mxu0 %v690
  %768 = vmatmul.bf16.gmra.mxu0 %v551
  %v769 = vpop.f32.mrf.mxu0
  %v770 = vadd.f32 %v756, %v769
  %v771 = vpop.f32.mrf.mxu0
  %v772 = vadd.f32 %v758, %v771
  %773 = vdwg.mxu0
  %774 = vmatpush.bf16.msra.mxu0 %v705
  %775 = vmatpush.bf16.msra.mxu0 %v704
  %776 = vmatpush.bf16.msra.mxu0 %v703
  %777 = vmatpush.bf16.msra.mxu0 %v702
  %778 = vmatpush.bf16.msra.mxu0 %v701
  %779 = vmatpush.bf16.msra.mxu0 %v700
  %780 = vmatpush.bf16.msra.mxu0 %v699
  %781 = vmatpush.bf16.msra.mxu0 %v698
  %782 = vmatmul.bf16.gmra.mxu0 %v552
  %v783 = vpop.f32.mrf.mxu0
  %v784 = vadd.f32 %v770, %v783
  %v785 = vpop.f32.mrf.mxu0
  %v786 = vadd.f32 %v772, %v785
  %787 = vdwg.mxu0
  %788 = vmatpush.bf16.msra.mxu0 %v713
  %789 = vmatpush.bf16.msra.mxu0 %v712
  %790 = vmatpush.bf16.msra.mxu0 %v711
  %791 = vmatpush.bf16.msra.mxu0 %v710
  %792 = vmatpush.bf16.msra.mxu0 %v709
  %793 = vmatpush.bf16.msra.mxu0 %v708
  %794 = vmatpush.bf16.msra.mxu0 %v707
  %795 = vmatpush.bf16.msra.mxu0 %v706
  %796 = vmatmul.bf16.gmra.mxu0 %v553
  %v797 = vpop.f32.mrf.mxu0
  %v798 = vadd.f32 %v784, %v797
  %v799 = vpop.f32.mrf.mxu0
  %v800 = vadd.f32 %v786, %v799
  %801 = vdwg.mxu0
  %v866 = vunpack.c.l.b16 %v295
  %v867 = vunpack.c.l.b16 %v296
  %v868 = vunpack.c.l.b16 %v297
  %v869 = vunpack.c.l.b16 %v298
  %v870 = vunpack.c.l.b16 %v299
  %v871 = vunpack.c.l.b16 %v300
  %v872 = vunpack.c.l.b16 %v301
  %v873 = vunpack.c.l.b16 %v302
  %v874 = vunpack.c.l.b16 %v303
  %v875 = vunpack.c.l.b16 %v304
  %v876 = vunpack.c.l.b16 %v305
  %v877 = vunpack.c.l.b16 %v306
  %v878 = vunpack.c.l.b16 %v307
  %v879 = vunpack.c.l.b16 %v308
  %v880 = vunpack.c.l.b16 %v309
  %v881 = vunpack.c.l.b16 %v310
  %v882 = vunpack.c.l.b16 %v311
  %v883 = vunpack.c.l.b16 %v312
  %v884 = vunpack.c.l.b16 %v313
  %v885 = vunpack.c.l.b16 %v314
  %v886 = vunpack.c.l.b16 %v315
  %v887 = vunpack.c.l.b16 %v316
  %v888 = vunpack.c.l.b16 %v317
  %v889 = vunpack.c.l.b16 %v318
  %v890 = vunpack.c.l.b16 %v319
  %v891 = vunpack.c.l.b16 %v320
  %v892 = vunpack.c.l.b16 %v321
  %v893 = vunpack.c.l.b16 %v322
  %v894 = vunpack.c.l.b16 %v323
  %v895 = vunpack.c.l.b16 %v324
  %v896 = vunpack.c.l.b16 %v325
  %v897 = vunpack.c.l.b16 %v326
  %v898 = vunpack.c.l.b16 %v327
  %v899 = vunpack.c.l.b16 %v328
  %v900 = vunpack.c.l.b16 %v329
  %v901 = vunpack.c.l.b16 %v330
  %v902 = vunpack.c.l.b16 %v331
  %v903 = vunpack.c.l.b16 %v332
  %v904 = vunpack.c.l.b16 %v333
  %v905 = vunpack.c.l.b16 %v334
  %v906 = vunpack.c.l.b16 %v335
  %v907 = vunpack.c.l.b16 %v336
  %v908 = vunpack.c.l.b16 %v337
  %v909 = vunpack.c.l.b16 %v338
  %v910 = vunpack.c.l.b16 %v339
  %v911 = vunpack.c.l.b16 %v340
  %v912 = vunpack.c.l.b16 %v341
  %v913 = vunpack.c.l.b16 %v342
  %v914 = vunpack.c.l.b16 %v343
  %v915 = vunpack.c.l.b16 %v344
  %v916 = vunpack.c.l.b16 %v345
  %v917 = vunpack.c.l.b16 %v346
  %v918 = vunpack.c.l.b16 %v347
  %v919 = vunpack.c.l.b16 %v348
  %v920 = vunpack.c.l.b16 %v349
  %v921 = vunpack.c.l.b16 %v350
  %v922 = vunpack.c.l.b16 %v351
  %v923 = vunpack.c.l.b16 %v352
  %v924 = vunpack.c.l.b16 %v353
  %v925 = vunpack.c.l.b16 %v354
  %v926 = vunpack.c.l.b16 %v355
  %v927 = vunpack.c.l.b16 %v356
  %v928 = vunpack.c.l.b16 %v357
  %v929 = vunpack.c.l.b16 %v358
  %v930 = vpack.c.b16 %v867, %v866
  %v931 = vpack.c.b16 %v869, %v868
  %v932 = vpack.c.b16 %v871, %v870
  %v933 = vpack.c.b16 %v873, %v872
  %v934 = vpack.c.b16 %v875, %v874
  %v935 = vpack.c.b16 %v877, %v876
  %v936 = vpack.c.b16 %v879, %v878
  %v937 = vpack.c.b16 %v881, %v880
  %v938 = vpack.c.b16 %v883, %v882
  %v939 = vpack.c.b16 %v885, %v884
  %v940 = vpack.c.b16 %v887, %v886
  %v941 = vpack.c.b16 %v889, %v888
  %v942 = vpack.c.b16 %v891, %v890
  %v943 = vpack.c.b16 %v893, %v892
  %v944 = vpack.c.b16 %v895, %v894
  %v945 = vpack.c.b16 %v897, %v896
  %v946 = vpack.c.b16 %v899, %v898
  %v947 = vpack.c.b16 %v901, %v900
  %v948 = vpack.c.b16 %v903, %v902
  %v949 = vpack.c.b16 %v905, %v904
  %v950 = vpack.c.b16 %v907, %v906
  %v951 = vpack.c.b16 %v909, %v908
  %v952 = vpack.c.b16 %v911, %v910
  %v953 = vpack.c.b16 %v913, %v912
  %v954 = vpack.c.b16 %v915, %v914
  %v955 = vpack.c.b16 %v917, %v916
  %v956 = vpack.c.b16 %v919, %v918
  %v957 = vpack.c.b16 %v921, %v920
  %v958 = vpack.c.b16 %v923, %v922
  %v959 = vpack.c.b16 %v925, %v924
  %v960 = vpack.c.b16 %v927, %v926
  %v961 = vpack.c.b16 %v929, %v928
  %994 = vmatpush.bf16.msra.mxu0 %v937
  %995 = vmatpush.bf16.msra.mxu0 %v936
  %996 = vmatpush.bf16.msra.mxu0 %v935
  %997 = vmatpush.bf16.msra.mxu0 %v934
  %998 = vmatpush.bf16.msra.mxu0 %v933
  %999 = vmatpush.bf16.msra.mxu0 %v932
  %1000 = vmatpush.bf16.msra.mxu0 %v931
  %1001 = vmatpush.bf16.msra.mxu0 %v930
  %1002 = vmatmul.bf16.gmra.mxu0 %v359
  %v1003 = vpop.f32.mrf.mxu0
  %v1004 = vadd.f32 %v798, %v1003
  %v1005 = vpop.f32.mrf.mxu0
  %v1006 = vadd.f32 %v800, %v1005
  %1007 = vdwg.mxu0
  %1008 = vmatpush.bf16.msra.mxu0 %v945
  %1009 = vmatpush.bf16.msra.mxu0 %v944
  %1010 = vmatpush.bf16.msra.mxu0 %v943
  %1011 = vmatpush.bf16.msra.mxu0 %v942
  %1012 = vmatpush.bf16.msra.mxu0 %v941
  %1013 = vmatpush.bf16.msra.mxu0 %v940
  %1014 = vmatpush.bf16.msra.mxu0 %v939
  %1015 = vmatpush.bf16.msra.mxu0 %v938
  %1016 = vmatmul.bf16.gmra.mxu0 %v360
  %v1017 = vpop.f32.mrf.mxu0
  %v1018 = vadd.f32 %v1004, %v1017
  %v1019 = vpop.f32.mrf.mxu0
  %v1020 = vadd.f32 %v1006, %v1019
  %1021 = vdwg.mxu0
  %1022 = vmatpush.bf16.msra.mxu0 %v953
  %1023 = vmatpush.bf16.msra.mxu0 %v952
  %1024 = vmatpush.bf16.msra.mxu0 %v951
  %1025 = vmatpush.bf16.msra.mxu0 %v950
  %1026 = vmatpush.bf16.msra.mxu0 %v949
  %1027 = vmatpush.bf16.msra.mxu0 %v948
  %1028 = vmatpush.bf16.msra.mxu0 %v947
  %1029 = vmatpush.bf16.msra.mxu0 %v946
  %1030 = vmatmul.bf16.gmra.mxu0 %v361
  %v1031 = vpop.f32.mrf.mxu0
  %v1032 = vadd.f32 %v1018, %v1031
  %v1033 = vpop.f32.mrf.mxu0
  %v1034 = vadd.f32 %v1020, %v1033
  %1035 = vdwg.mxu0
  %1036 = vmatpush.bf16.msra.mxu0 %v961
  %1037 = vmatpush.bf16.msra.mxu0 %v960
  %1038 = vmatpush.bf16.msra.mxu0 %v959
  %1039 = vmatpush.bf16.msra.mxu0 %v958
  %1040 = vmatpush.bf16.msra.mxu0 %v957
  %1041 = vmatpush.bf16.msra.mxu0 %v956
  %1042 = vmatpush.bf16.msra.mxu0 %v955
  %1043 = vmatpush.bf16.msra.mxu0 %v954
  %1044 = vmatmul.bf16.gmra.mxu0 %v362
  %v1045 = vpop.f32.mrf.mxu0
  %v1046 = vadd.f32 %v1032, %v1045
  %v1047 = vpop.f32.mrf.mxu0
  %v1048 = vadd.f32 %v1034, %v1047
  %1049 = vdwg.mxu0
  %v1050 = vld [vmem:[%s3 + $0x20] sm:$0xff]
  %v1051 = vld [vmem:[%s3 + $0x28] sm:$0xff]
  %v1052 = vld [vmem:[%s3 + $0x60] sm:$0xff]
  %v1053 = vld [vmem:[%s3 + $0x68] sm:$0xff]
  %v1054 = vld [vmem:[%s3 + $0xa0] sm:$0xff]
  %v1055 = vld [vmem:[%s3 + $0xa8] sm:$0xff]
  %v1056 = vld [vmem:[%s3 + $0xe0] sm:$0xff]
  %v1057 = vld [vmem:[%s3 + $0xe8] sm:$0xff]
  %s1058 = scalar_lea.vmem %s6, 32
  %v1059 = vld [vmem:[%s1058] ss:$4 sm:$0xf]
  %v1061 = vperm.slane %v1059, 0
  %v1062 = vperm.slane %v1059, 1
  %v1063 = vperm.slane %v1059, 2
  %v1064 = vperm.slane %v1059, 3
  %v1077 = vunpack.c.l.b16 %v1050
  %v1078 = vunpack.c.h.b16 %v1050
  %v1079 = vunpack.c.l.b16 %v1051
  %v1080 = vunpack.c.h.b16 %v1051
  %v1081 = vunpack.c.l.b16 %v1052
  %v1082 = vunpack.c.h.b16 %v1052
  %v1083 = vunpack.c.l.b16 %v1053
  %v1084 = vunpack.c.h.b16 %v1053
  %v1085 = vunpack.c.l.b16 %v1054
  %v1086 = vunpack.c.h.b16 %v1054
  %v1087 = vunpack.c.l.b16 %v1055
  %v1088 = vunpack.c.h.b16 %v1055
  %v1089 = vunpack.c.l.b16 %v1056
  %v1090 = vunpack.c.h.b16 %v1056
  %v1091 = vunpack.c.l.b16 %v1057
  %v1092 = vunpack.c.h.b16 %v1057
  %v1093 = vpack.c.b16 %v1081, %v1077
  %v1094 = vpack.c.b16 %v1082, %v1078
  %v1095 = vpack.c.b16 %v1083, %v1079
  %v1096 = vpack.c.b16 %v1084, %v1080
  %v1097 = vpack.c.b16 %v1089, %v1085
  %v1098 = vpack.c.b16 %v1090, %v1086
  %v1099 = vpack.c.b16 %v1091, %v1087
  %v1100 = vpack.c.b16 %v1092, %v1088
  %1109 = vmatpush.bf16.msra.mxu0 0
  %1110 = vmatpush.bf16.msra.mxu0 0
  %1111 = vmatpush.bf16.msra.mxu0 0
  %1112 = vmatpush.bf16.msra.mxu0 0
  %1113 = vmatpush.bf16.msra.mxu0 0
  %1114 = vmatpush.bf16.msra.mxu0 0
  %1115 = vmatpush.bf16.msra.mxu0 %v1097
  %1116 = vmatpush.bf16.msra.mxu0 %v1093
  %1117 = vmatmul.bf16.gmra.mxu0 %v229
  %v1118 = vpop.f32.mrf.mxu0
  %v1119 = vadd.f32 %v1061, %v1118
  %v1120 = vpop.f32.mrf.mxu0
  %v1121 = vadd.f32 %v1061, %v1120
  %1122 = vdwg.mxu0
  %1123 = vmatpush.bf16.msra.mxu0 0
  %1124 = vmatpush.bf16.msra.mxu0 0
  %1125 = vmatpush.bf16.msra.mxu0 0
  %1126 = vmatpush.bf16.msra.mxu0 0
  %1127 = vmatpush.bf16.msra.mxu0 0
  %1128 = vmatpush.bf16.msra.mxu0 0
  %1129 = vmatpush.bf16.msra.mxu0 %v1098
  %1130 = vmatpush.bf16.msra.mxu0 %v1094
  %1131 = vmatmul.bf16.gmra.mxu0 %v229
  %v1132 = vpop.f32.mrf.mxu0
  %v1133 = vadd.f32 %v1062, %v1132
  %v1134 = vpop.f32.mrf.mxu0
  %v1135 = vadd.f32 %v1062, %v1134
  %1136 = vdwg.mxu0
  %1137 = vmatpush.bf16.msra.mxu0 0
  %1138 = vmatpush.bf16.msra.mxu0 0
  %1139 = vmatpush.bf16.msra.mxu0 0
  %1140 = vmatpush.bf16.msra.mxu0 0
  %1141 = vmatpush.bf16.msra.mxu0 0
  %1142 = vmatpush.bf16.msra.mxu0 0
  %1143 = vmatpush.bf16.msra.mxu0 %v1099
  %1144 = vmatpush.bf16.msra.mxu0 %v1095
  %1145 = vmatmul.bf16.gmra.mxu0 %v229
  %v1146 = vpop.f32.mrf.mxu0
  %v1147 = vadd.f32 %v1063, %v1146
  %v1148 = vpop.f32.mrf.mxu0
  %v1149 = vadd.f32 %v1063, %v1148
  %1150 = vdwg.mxu0
  %1151 = vmatpush.bf16.msra.mxu0 0
  %1152 = vmatpush.bf16.msra.mxu0 0
  %1153 = vmatpush.bf16.msra.mxu0 0
  %1154 = vmatpush.bf16.msra.mxu0 0
  %1155 = vmatpush.bf16.msra.mxu0 0
  %1156 = vmatpush.bf16.msra.mxu0 0
  %1157 = vmatpush.bf16.msra.mxu0 %v1100
  %1158 = vmatpush.bf16.msra.mxu0 %v1096
  %1159 = vmatmul.bf16.gmra.mxu0 %v229
  %v1160 = vpop.f32.mrf.mxu0
  %v1161 = vadd.f32 %v1064, %v1160
  %v1162 = vpop.f32.mrf.mxu0
  %v1163 = vadd.f32 %v1064, %v1162
  %1164 = vdwg.mxu0
  %v1165 = vmax.f32 %v1119, 0.0
  %v1166 = vmax.f32 %v1133, 0.0
  %v1167 = vmax.f32 %v1147, 0.0
  %v1168 = vmax.f32 %v1161, 0.0
  %v1169 = vmax.f32 %v1121, 0.0
  %v1170 = vmax.f32 %v1135, 0.0
  %v1171 = vmax.f32 %v1149, 0.0
  %v1172 = vmax.f32 %v1163, 0.0
  %v1173 = vld [vmem:[%s4 + $0x200] sm:$0xf]
  %v1174 = vld [vmem:[%s4 + $0x204] sm:$0xf]
  %v1175 = vld [vmem:[%s4 + $0x208] sm:$0xf]
  %v1176 = vld [vmem:[%s4 + $0x20c] sm:$0xf]
  %v1177 = vld [vmem:[%s4 + $0x210] sm:$0xf]
  %v1178 = vld [vmem:[%s4 + $0x214] sm:$0xf]
  %v1179 = vld [vmem:[%s4 + $0x218] sm:$0xf]
  %v1180 = vld [vmem:[%s4 + $0x21c] sm:$0xf]
  %v1181 = vld [vmem:[%s4 + $0x220] sm:$0xf]
  %v1182 = vld [vmem:[%s4 + $0x224] sm:$0xf]
  %v1183 = vld [vmem:[%s4 + $0x228] sm:$0xf]
  %v1184 = vld [vmem:[%s4 + $0x22c] sm:$0xf]
  %v1185 = vld [vmem:[%s4 + $0x230] sm:$0xf]
  %v1186 = vld [vmem:[%s4 + $0x234] sm:$0xf]
  %v1187 = vld [vmem:[%s4 + $0x238] sm:$0xf]
  %v1188 = vld [vmem:[%s4 + $0x23c] sm:$0xf]
  %v1189 = vld [vmem:[%s4 + $0x240] sm:$0xf]
  %v1190 = vld [vmem:[%s4 + $0x244] sm:$0xf]
  %v1191 = vld [vmem:[%s4 + $0x248] sm:$0xf]
  %v1192 = vld [vmem:[%s4 + $0x24c] sm:$0xf]
  %v1193 = vld [vmem:[%s4 + $0x250] sm:$0xf]
  %v1194 = vld [vmem:[%s4 + $0x254] sm:$0xf]
  %v1195 = vld [vmem:[%s4 + $0x258] sm:$0xf]
  %v1196 = vld [vmem:[%s4 + $0x25c] sm:$0xf]
  %v1197 = vld [vmem:[%s4 + $0x260] sm:$0xf]
  %v1198 = vld [vmem:[%s4 + $0x264] sm:$0xf]
  %v1199 = vld [vmem:[%s4 + $0x268] sm:$0xf]
  %v1200 = vld [vmem:[%s4 + $0x26c] sm:$0xf]
  %v1201 = vld [vmem:[%s4 + $0x270] sm:$0xf]
  %v1202 = vld [vmem:[%s4 + $0x274] sm:$0xf]
  %v1203 = vld [vmem:[%s4 + $0x278] sm:$0xf]
  %v1204 = vld [vmem:[%s4 + $0x27c] sm:$0xf]
  %v1205 = vld [vmem:[%s4 + $0x280] sm:$0xf]
  %v1206 = vld [vmem:[%s4 + $0x284] sm:$0xf]
  %v1207 = vld [vmem:[%s4 + $0x288] sm:$0xf]
  %v1208 = vld [vmem:[%s4 + $0x28c] sm:$0xf]
  %v1209 = vld [vmem:[%s4 + $0x290] sm:$0xf]
  %v1210 = vld [vmem:[%s4 + $0x294] sm:$0xf]
  %v1211 = vld [vmem:[%s4 + $0x298] sm:$0xf]
  %v1212 = vld [vmem:[%s4 + $0x29c] sm:$0xf]
  %v1213 = vld [vmem:[%s4 + $0x2a0] sm:$0xf]
  %v1214 = vld [vmem:[%s4 + $0x2a4] sm:$0xf]
  %v1215 = vld [vmem:[%s4 + $0x2a8] sm:$0xf]
  %v1216 = vld [vmem:[%s4 + $0x2ac] sm:$0xf]
  %v1217 = vld [vmem:[%s4 + $0x2b0] sm:$0xf]
  %v1218 = vld [vmem:[%s4 + $0x2b4] sm:$0xf]
  %v1219 = vld [vmem:[%s4 + $0x2b8] sm:$0xf]
  %v1220 = vld [vmem:[%s4 + $0x2bc] sm:$0xf]
  %v1221 = vld [vmem:[%s4 + $0x2c0] sm:$0xf]
  %v1222 = vld [vmem:[%s4 + $0x2c4] sm:$0xf]
  %v1223 = vld [vmem:[%s4 + $0x2c8] sm:$0xf]
  %v1224 = vld [vmem:[%s4 + $0x2cc] sm:$0xf]
  %v1225 = vld [vmem:[%s4 + $0x2d0] sm:$0xf]
  %v1226 = vld [vmem:[%s4 + $0x2d4] sm:$0xf]
  %v1227 = vld [vmem:[%s4 + $0x2d8] sm:$0xf]
  %v1228 = vld [vmem:[%s4 + $0x2dc] sm:$0xf]
  %v1229 = vld [vmem:[%s4 + $0x2e0] sm:$0xf]
  %v1230 = vld [vmem:[%s4 + $0x2e4] sm:$0xf]
  %v1231 = vld [vmem:[%s4 + $0x2e8] sm:$0xf]
  %v1232 = vld [vmem:[%s4 + $0x2ec] sm:$0xf]
  %v1233 = vld [vmem:[%s4 + $0x2f0] sm:$0xf]
  %v1234 = vld [vmem:[%s4 + $0x2f4] sm:$0xf]
  %v1235 = vld [vmem:[%s4 + $0x2f8] sm:$0xf]
  %v1236 = vld [vmem:[%s4 + $0x2fc] sm:$0xf]
  %v1237 = vpack.c.bf16 %v1169, %v1165
  %v1238 = vpack.c.bf16 %v1170, %v1166
  %v1239 = vpack.c.bf16 %v1171, %v1167
  %v1240 = vpack.c.bf16 %v1172, %v1168
  %v1305 = vunpack.c.l.b16 %v1173
  %v1306 = vunpack.c.l.b16 %v1174
  %v1307 = vunpack.c.l.b16 %v1175
  %v1308 = vunpack.c.l.b16 %v1176
  %v1309 = vunpack.c.l.b16 %v1177
  %v1310 = vunpack.c.l.b16 %v1178
  %v1311 = vunpack.c.l.b16 %v1179
  %v1312 = vunpack.c.l.b16 %v1180
  %v1313 = vunpack.c.l.b16 %v1181
  %v1314 = vunpack.c.l.b16 %v1182
  %v1315 = vunpack.c.l.b16 %v1183
  %v1316 = vunpack.c.l.b16 %v1184
  %v1317 = vunpack.c.l.b16 %v1185
  %v1318 = vunpack.c.l.b16 %v1186
  %v1319 = vunpack.c.l.b16 %v1187
  %v1320 = vunpack.c.l.b16 %v1188
  %v1321 = vunpack.c.l.b16 %v1189
  %v1322 = vunpack.c.l.b16 %v1190
  %v1323 = vunpack.c.l.b16 %v1191
  %v1324 = vunpack.c.l.b16 %v1192
  %v1325 = vunpack.c.l.b16 %v1193
  %v1326 = vunpack.c.l.b16 %v1194
  %v1327 = vunpack.c.l.b16 %v1195
  %v1328 = vunpack.c.l.b16 %v1196
  %v1329 = vunpack.c.l.b16 %v1197
  %v1330 = vunpack.c.l.b16 %v1198
  %v1331 = vunpack.c.l.b16 %v1199
  %v1332 = vunpack.c.l.b16 %v1200
  %v1333 = vunpack.c.l.b16 %v1201
  %v1334 = vunpack.c.l.b16 %v1202
  %v1335 = vunpack.c.l.b16 %v1203
  %v1336 = vunpack.c.l.b16 %v1204
  %v1337 = vunpack.c.l.b16 %v1205
  %v1338 = vunpack.c.l.b16 %v1206
  %v1339 = vunpack.c.l.b16 %v1207
  %v1340 = vunpack.c.l.b16 %v1208
  %v1341 = vunpack.c.l.b16 %v1209
  %v1342 = vunpack.c.l.b16 %v1210
  %v1343 = vunpack.c.l.b16 %v1211
  %v1344 = vunpack.c.l.b16 %v1212
  %v1345 = vunpack.c.l.b16 %v1213
  %v1346 = vunpack.c.l.b16 %v1214
  %v1347 = vunpack.c.l.b16 %v1215
  %v1348 = vunpack.c.l.b16 %v1216
  %v1349 = vunpack.c.l.b16 %v1217
  %v1350 = vunpack.c.l.b16 %v1218
  %v1351 = vunpack.c.l.b16 %v1219
  %v1352 = vunpack.c.l.b16 %v1220
  %v1353 = vunpack.c.l.b16 %v1221
  %v1354 = vunpack.c.l.b16 %v1222
  %v1355 = vunpack.c.l.b16 %v1223
  %v1356 = vunpack.c.l.b16 %v1224
  %v1357 = vunpack.c.l.b16 %v1225
  %v1358 = vunpack.c.l.b16 %v1226
  %v1359 = vunpack.c.l.b16 %v1227
  %v1360 = vunpack.c.l.b16 %v1228
  %v1361 = vunpack.c.l.b16 %v1229
  %v1362 = vunpack.c.l.b16 %v1230
  %v1363 = vunpack.c.l.b16 %v1231
  %v1364 = vunpack.c.l.b16 %v1232
  %v1365 = vunpack.c.l.b16 %v1233
  %v1366 = vunpack.c.l.b16 %v1234
  %v1367 = vunpack.c.l.b16 %v1235
  %v1368 = vunpack.c.l.b16 %v1236
  %v1369 = vpack.c.b16 %v1306, %v1305
  %v1370 = vpack.c.b16 %v1308, %v1307
  %v1371 = vpack.c.b16 %v1310, %v1309
  %v1372 = vpack.c.b16 %v1312, %v1311
  %v1373 = vpack.c.b16 %v1314, %v1313
  %v1374 = vpack.c.b16 %v1316, %v1315
  %v1375 = vpack.c.b16 %v1318, %v1317
  %v1376 = vpack.c.b16 %v1320, %v1319
  %v1377 = vpack.c.b16 %v1322, %v1321
  %v1378 = vpack.c.b16 %v1324, %v1323
  %v1379 = vpack.c.b16 %v1326, %v1325
  %v1380 = vpack.c.b16 %v1328, %v1327
  %v1381 = vpack.c.b16 %v1330, %v1329
  %v1382 = vpack.c.b16 %v1332, %v1331
  %v1383 = vpack.c.b16 %v1334, %v1333
  %v1384 = vpack.c.b16 %v1336, %v1335
  %v1385 = vpack.c.b16 %v1338, %v1337
  %v1386 = vpack.c.b16 %v1340, %v1339
  %v1387 = vpack.c.b16 %v1342, %v1341
  %v1388 = vpack.c.b16 %v1344, %v1343
  %v1389 = vpack.c.b16 %v1346, %v1345
  %v1390 = vpack.c.b16 %v1348, %v1347
  %v1391 = vpack.c.b16 %v1350, %v1349
  %v1392 = vpack.c.b16 %v1352, %v1351
  %v1393 = vpack.c.b16 %v1354, %v1353
  %v1394 = vpack.c.b16 %v1356, %v1355
  %v1395 = vpack.c.b16 %v1358, %v1357
  %v1396 = vpack.c.b16 %v1360, %v1359
  %v1397 = vpack.c.b16 %v1362, %v1361
  %v1398 = vpack.c.b16 %v1364, %v1363
  %v1399 = vpack.c.b16 %v1366, %v1365
  %v1400 = vpack.c.b16 %v1368, %v1367
  %1433 = vmatpush.bf16.msra.mxu0 %v1376
  %1434 = vmatpush.bf16.msra.mxu0 %v1375
  %1435 = vmatpush.bf16.msra.mxu0 %v1374
  %1436 = vmatpush.bf16.msra.mxu0 %v1373
  %1437 = vmatpush.bf16.msra.mxu0 %v1372
  %1438 = vmatpush.bf16.msra.mxu0 %v1371
  %1439 = vmatpush.bf16.msra.mxu0 %v1370
  %1440 = vmatpush.bf16.msra.mxu0 %v1369
  %1441 = vmatmul.bf16.gmra.mxu0 %v1237
  %v1442 = vpop.f32.mrf.mxu0
  %v1443 = vadd.f32 0.0, %v1442
  %v1444 = vpop.f32.mrf.mxu0
  %v1445 = vadd.f32 0.0, %v1444
  %1446 = vdwg.mxu0
  %1447 = vmatpush.bf16.msra.mxu0 %v1384
  %1448 = vmatpush.bf16.msra.mxu0 %v1383
  %1449 = vmatpush.bf16.msra.mxu0 %v1382
  %1450 = vmatpush.bf16.msra.mxu0 %v1381
  %1451 = vmatpush.bf16.msra.mxu0 %v1380
  %1452 = vmatpush.bf16.msra.mxu0 %v1379
  %1453 = vmatpush.bf16.msra.mxu0 %v1378
  %1454 = vmatpush.bf16.msra.mxu0 %v1377
  %1455 = vmatmul.bf16.gmra.mxu0 %v1238
  %v1456 = vpop.f32.mrf.mxu0
  %v1457 = vadd.f32 %v1443, %v1456
  %v1458 = vpop.f32.mrf.mxu0
  %v1459 = vadd.f32 %v1445, %v1458
  %1460 = vdwg.mxu0
  %1461 = vmatpush.bf16.msra.mxu0 %v1392
  %1462 = vmatpush.bf16.msra.mxu0 %v1391
  %1463 = vmatpush.bf16.msra.mxu0 %v1390
  %1464 = vmatpush.bf16.msra.mxu0 %v1389
  %1465 = vmatpush.bf16.msra.mxu0 %v1388
  %1466 = vmatpush.bf16.msra.mxu0 %v1387
  %1467 = vmatpush.bf16.msra.mxu0 %v1386
  %1468 = vmatpush.bf16.msra.mxu0 %v1385
  %1469 = vmatmul.bf16.gmra.mxu0 %v1239
  %v1470 = vpop.f32.mrf.mxu0
  %v1471 = vadd.f32 %v1457, %v1470
  %v1472 = vpop.f32.mrf.mxu0
  %v1473 = vadd.f32 %v1459, %v1472
  %1474 = vdwg.mxu0
  %1475 = vmatpush.bf16.msra.mxu0 %v1400
  %1476 = vmatpush.bf16.msra.mxu0 %v1399
  %1477 = vmatpush.bf16.msra.mxu0 %v1398
  %1478 = vmatpush.bf16.msra.mxu0 %v1397
  %1479 = vmatpush.bf16.msra.mxu0 %v1396
  %1480 = vmatpush.bf16.msra.mxu0 %v1395
  %1481 = vmatpush.bf16.msra.mxu0 %v1394
  %1482 = vmatpush.bf16.msra.mxu0 %v1393
  %1483 = vmatmul.bf16.gmra.mxu0 %v1240
  %v1484 = vpop.f32.mrf.mxu0
  %v1485 = vadd.f32 %v1471, %v1484
  %v1486 = vpop.f32.mrf.mxu0
  %v1487 = vadd.f32 %v1473, %v1486
  %1488 = vdwg.mxu0
  %v1489 = vadd.f32 %v1046, %v1485
  %v1490 = vadd.f32 %v1048, %v1487
  %v1491 = vld [vmem:[%s3 + $0x30] sm:$0xff]
  %v1492 = vld [vmem:[%s3 + $0x38] sm:$0xff]
  %v1493 = vld [vmem:[%s3 + $0x70] sm:$0xff]
  %v1494 = vld [vmem:[%s3 + $0x78] sm:$0xff]
  %v1495 = vld [vmem:[%s3 + $0xb0] sm:$0xff]
  %v1496 = vld [vmem:[%s3 + $0xb8] sm:$0xff]
  %v1497 = vld [vmem:[%s3 + $0xf0] sm:$0xff]
  %v1498 = vld [vmem:[%s3 + $0xf8] sm:$0xff]
  %s1499 = scalar_lea.vmem %s6, 48
  %v1500 = vld [vmem:[%s1499] ss:$4 sm:$0xf]
  %v1502 = vperm.slane %v1500, 0
  %v1503 = vperm.slane %v1500, 1
  %v1504 = vperm.slane %v1500, 2
  %v1505 = vperm.slane %v1500, 3
  %v1518 = vunpack.c.l.b16 %v1491
  %v1519 = vunpack.c.h.b16 %v1491
  %v1520 = vunpack.c.l.b16 %v1492
  %v1521 = vunpack.c.h.b16 %v1492
  %v1522 = vunpack.c.l.b16 %v1493
  %v1523 = vunpack.c.h.b16 %v1493
  %v1524 = vunpack.c.l.b16 %v1494
  %v1525 = vunpack.c.h.b16 %v1494
  %v1526 = vunpack.c.l.b16 %v1495
  %v1527 = vunpack.c.h.b16 %v1495
  %v1528 = vunpack.c.l.b16 %v1496
  %v1529 = vunpack.c.h.b16 %v1496
  %v1530 = vunpack.c.l.b16 %v1497
  %v1531 = vunpack.c.h.b16 %v1497
  %v1532 = vunpack.c.l.b16 %v1498
  %v1533 = vunpack.c.h.b16 %v1498
  %v1534 = vpack.c.b16 %v1522, %v1518
  %v1535 = vpack.c.b16 %v1523, %v1519
  %v1536 = vpack.c.b16 %v1524, %v1520
  %v1537 = vpack.c.b16 %v1525, %v1521
  %v1538 = vpack.c.b16 %v1530, %v1526
  %v1539 = vpack.c.b16 %v1531, %v1527
  %v1540 = vpack.c.b16 %v1532, %v1528
  %v1541 = vpack.c.b16 %v1533, %v1529
  %1550 = vmatpush.bf16.msra.mxu0 0
  %1551 = vmatpush.bf16.msra.mxu0 0
  %1552 = vmatpush.bf16.msra.mxu0 0
  %1553 = vmatpush.bf16.msra.mxu0 0
  %1554 = vmatpush.bf16.msra.mxu0 0
  %1555 = vmatpush.bf16.msra.mxu0 0
  %1556 = vmatpush.bf16.msra.mxu0 %v1538
  %1557 = vmatpush.bf16.msra.mxu0 %v1534
  %1558 = vmatmul.bf16.gmra.mxu0 %v229
  %v1559 = vpop.f32.mrf.mxu0
  %v1560 = vadd.f32 %v1502, %v1559
  %v1561 = vpop.f32.mrf.mxu0
  %v1562 = vadd.f32 %v1502, %v1561
  %1563 = vdwg.mxu0
  %1564 = vmatpush.bf16.msra.mxu0 0
  %1565 = vmatpush.bf16.msra.mxu0 0
  %1566 = vmatpush.bf16.msra.mxu0 0
  %1567 = vmatpush.bf16.msra.mxu0 0
  %1568 = vmatpush.bf16.msra.mxu0 0
  %1569 = vmatpush.bf16.msra.mxu0 0
  %1570 = vmatpush.bf16.msra.mxu0 %v1539
  %1571 = vmatpush.bf16.msra.mxu0 %v1535
  %1572 = vmatmul.bf16.gmra.mxu0 %v229
  %v1573 = vpop.f32.mrf.mxu0
  %v1574 = vadd.f32 %v1503, %v1573
  %v1575 = vpop.f32.mrf.mxu0
  %v1576 = vadd.f32 %v1503, %v1575
  %1577 = vdwg.mxu0
  %1578 = vmatpush.bf16.msra.mxu0 0
  %1579 = vmatpush.bf16.msra.mxu0 0
  %1580 = vmatpush.bf16.msra.mxu0 0
  %1581 = vmatpush.bf16.msra.mxu0 0
  %1582 = vmatpush.bf16.msra.mxu0 0
  %1583 = vmatpush.bf16.msra.mxu0 0
  %1584 = vmatpush.bf16.msra.mxu0 %v1540
  %1585 = vmatpush.bf16.msra.mxu0 %v1536
  %1586 = vmatmul.bf16.gmra.mxu0 %v229
  %v1587 = vpop.f32.mrf.mxu0
  %v1588 = vadd.f32 %v1504, %v1587
  %v1589 = vpop.f32.mrf.mxu0
  %v1590 = vadd.f32 %v1504, %v1589
  %1591 = vdwg.mxu0
  %1592 = vmatpush.bf16.msra.mxu0 0
  %1593 = vmatpush.bf16.msra.mxu0 0
  %1594 = vmatpush.bf16.msra.mxu0 0
  %1595 = vmatpush.bf16.msra.mxu0 0
  %1596 = vmatpush.bf16.msra.mxu0 0
  %1597 = vmatpush.bf16.msra.mxu0 0
  %1598 = vmatpush.bf16.msra.mxu0 %v1541
  %1599 = vmatpush.bf16.msra.mxu0 %v1537
  %1600 = vmatmul.bf16.gmra.mxu0 %v229
  %v1601 = vpop.f32.mrf.mxu0
  %v1602 = vadd.f32 %v1505, %v1601
  %v1603 = vpop.f32.mrf.mxu0
  %v1604 = vadd.f32 %v1505, %v1603
  %1605 = vdwg.mxu0
  %v1606 = vmax.f32 %v1560, 0.0
  %v1607 = vmax.f32 %v1574, 0.0
  %v1608 = vmax.f32 %v1588, 0.0
  %v1609 = vmax.f32 %v1602, 0.0
  %v1610 = vmax.f32 %v1562, 0.0
  %v1611 = vmax.f32 %v1576, 0.0
  %v1612 = vmax.f32 %v1590, 0.0
  %v1613 = vmax.f32 %v1604, 0.0
  %v1614 = vld [vmem:[%s4 + $0x300] sm:$0xf]
  %v1615 = vld [vmem:[%s4 + $0x304] sm:$0xf]
  %v1616 = vld [vmem:[%s4 + $0x308] sm:$0xf]
  %v1617 = vld [vmem:[%s4 + $0x30c] sm:$0xf]
  %v1618 = vld [vmem:[%s4 + $0x310] sm:$0xf]
  %v1619 = vld [vmem:[%s4 + $0x314] sm:$0xf]
  %v1620 = vld [vmem:[%s4 + $0x318] sm:$0xf]
  %v1621 = vld [vmem:[%s4 + $0x31c] sm:$0xf]
  %v1622 = vld [vmem:[%s4 + $0x320] sm:$0xf]
  %v1623 = vld [vmem:[%s4 + $0x324] sm:$0xf]
  %v1624 = vld [vmem:[%s4 + $0x328] sm:$0xf]
  %v1625 = vld [vmem:[%s4 + $0x32c] sm:$0xf]
  %v1626 = vld [vmem:[%s4 + $0x330] sm:$0xf]
  %v1627 = vld [vmem:[%s4 + $0x334] sm:$0xf]
  %v1628 = vld [vmem:[%s4 + $0x338] sm:$0xf]
  %v1629 = vld [vmem:[%s4 + $0x33c] sm:$0xf]
  %v1630 = vld [vmem:[%s4 + $0x340] sm:$0xf]
  %v1631 = vld [vmem:[%s4 + $0x344] sm:$0xf]
  %v1632 = vld [vmem:[%s4 + $0x348] sm:$0xf]
  %v1633 = vld [vmem:[%s4 + $0x34c] sm:$0xf]
  %v1634 = vld [vmem:[%s4 + $0x350] sm:$0xf]
  %v1635 = vld [vmem:[%s4 + $0x354] sm:$0xf]
  %v1636 = vld [vmem:[%s4 + $0x358] sm:$0xf]
  %v1637 = vld [vmem:[%s4 + $0x35c] sm:$0xf]
  %v1638 = vld [vmem:[%s4 + $0x360] sm:$0xf]
  %v1639 = vld [vmem:[%s4 + $0x364] sm:$0xf]
  %v1640 = vld [vmem:[%s4 + $0x368] sm:$0xf]
  %v1641 = vld [vmem:[%s4 + $0x36c] sm:$0xf]
  %v1642 = vld [vmem:[%s4 + $0x370] sm:$0xf]
  %v1643 = vld [vmem:[%s4 + $0x374] sm:$0xf]
  %v1644 = vld [vmem:[%s4 + $0x378] sm:$0xf]
  %v1645 = vld [vmem:[%s4 + $0x37c] sm:$0xf]
  %v1646 = vld [vmem:[%s4 + $0x380] sm:$0xf]
  %v1647 = vld [vmem:[%s4 + $0x384] sm:$0xf]
  %v1648 = vld [vmem:[%s4 + $0x388] sm:$0xf]
  %v1649 = vld [vmem:[%s4 + $0x38c] sm:$0xf]
  %v1650 = vld [vmem:[%s4 + $0x390] sm:$0xf]
  %v1651 = vld [vmem:[%s4 + $0x394] sm:$0xf]
  %v1652 = vld [vmem:[%s4 + $0x398] sm:$0xf]
  %v1653 = vld [vmem:[%s4 + $0x39c] sm:$0xf]
  %v1654 = vld [vmem:[%s4 + $0x3a0] sm:$0xf]
  %v1655 = vld [vmem:[%s4 + $0x3a4] sm:$0xf]
  %v1656 = vld [vmem:[%s4 + $0x3a8] sm:$0xf]
  %v1657 = vld [vmem:[%s4 + $0x3ac] sm:$0xf]
  %v1658 = vld [vmem:[%s4 + $0x3b0] sm:$0xf]
  %v1659 = vld [vmem:[%s4 + $0x3b4] sm:$0xf]
  %v1660 = vld [vmem:[%s4 + $0x3b8] sm:$0xf]
  %v1661 = vld [vmem:[%s4 + $0x3bc] sm:$0xf]
  %v1662 = vld [vmem:[%s4 + $0x3c0] sm:$0xf]
  %v1663 = vld [vmem:[%s4 + $0x3c4] sm:$0xf]
  %v1664 = vld [vmem:[%s4 + $0x3c8] sm:$0xf]
  %v1665 = vld [vmem:[%s4 + $0x3cc] sm:$0xf]
  %v1666 = vld [vmem:[%s4 + $0x3d0] sm:$0xf]
  %v1667 = vld [vmem:[%s4 + $0x3d4] sm:$0xf]
  %v1668 = vld [vmem:[%s4 + $0x3d8] sm:$0xf]
  %v1669 = vld [vmem:[%s4 + $0x3dc] sm:$0xf]
  %v1670 = vld [vmem:[%s4 + $0x3e0] sm:$0xf]
  %v1671 = vld [vmem:[%s4 + $0x3e4] sm:$0xf]
  %v1672 = vld [vmem:[%s4 + $0x3e8] sm:$0xf]
  %v1673 = vld [vmem:[%s4 + $0x3ec] sm:$0xf]
  %v1674 = vld [vmem:[%s4 + $0x3f0] sm:$0xf]
  %v1675 = vld [vmem:[%s4 + $0x3f4] sm:$0xf]
  %v1676 = vld [vmem:[%s4 + $0x3f8] sm:$0xf]
  %v1677 = vld [vmem:[%s4 + $0x3fc] sm:$0xf]
  %v1678 = vpack.c.bf16 %v1610, %v1606
  %v1679 = vpack.c.bf16 %v1611, %v1607
  %v1680 = vpack.c.bf16 %v1612, %v1608
  %v1681 = vpack.c.bf16 %v1613, %v1609
  %v1746 = vunpack.c.l.b16 %v1614
  %v1747 = vunpack.c.l.b16 %v1615
  %v1748 = vunpack.c.l.b16 %v1616
  %v1749 = vunpack.c.l.b16 %v1617
  %v1750 = vunpack.c.l.b16 %v1618
  %v1751 = vunpack.c.l.b16 %v1619
  %v1752 = vunpack.c.l.b16 %v1620
  %v1753 = vunpack.c.l.b16 %v1621
  %v1754 = vunpack.c.l.b16 %v1622
  %v1755 = vunpack.c.l.b16 %v1623
  %v1756 = vunpack.c.l.b16 %v1624
  %v1757 = vunpack.c.l.b16 %v1625
  %v1758 = vunpack.c.l.b16 %v1626
  %v1759 = vunpack.c.l.b16 %v1627
  %v1760 = vunpack.c.l.b16 %v1628
  %v1761 = vunpack.c.l.b16 %v1629
  %v1762 = vunpack.c.l.b16 %v1630
  %v1763 = vunpack.c.l.b16 %v1631
  %v1764 = vunpack.c.l.b16 %v1632
  %v1765 = vunpack.c.l.b16 %v1633
  %v1766 = vunpack.c.l.b16 %v1634
  %v1767 = vunpack.c.l.b16 %v1635
  %v1768 = vunpack.c.l.b16 %v1636
  %v1769 = vunpack.c.l.b16 %v1637
  %v1770 = vunpack.c.l.b16 %v1638
  %v1771 = vunpack.c.l.b16 %v1639
  %v1772 = vunpack.c.l.b16 %v1640
  %v1773 = vunpack.c.l.b16 %v1641
  %v1774 = vunpack.c.l.b16 %v1642
  %v1775 = vunpack.c.l.b16 %v1643
  %v1776 = vunpack.c.l.b16 %v1644
  %v1777 = vunpack.c.l.b16 %v1645
  %v1778 = vunpack.c.l.b16 %v1646
  %v1779 = vunpack.c.l.b16 %v1647
  %v1780 = vunpack.c.l.b16 %v1648
  %v1781 = vunpack.c.l.b16 %v1649
  %v1782 = vunpack.c.l.b16 %v1650
  %v1783 = vunpack.c.l.b16 %v1651
  %v1784 = vunpack.c.l.b16 %v1652
  %v1785 = vunpack.c.l.b16 %v1653
  %v1786 = vunpack.c.l.b16 %v1654
  %v1787 = vunpack.c.l.b16 %v1655
  %v1788 = vunpack.c.l.b16 %v1656
  %v1789 = vunpack.c.l.b16 %v1657
  %v1790 = vunpack.c.l.b16 %v1658
  %v1791 = vunpack.c.l.b16 %v1659
  %v1792 = vunpack.c.l.b16 %v1660
  %v1793 = vunpack.c.l.b16 %v1661
  %v1794 = vunpack.c.l.b16 %v1662
  %v1795 = vunpack.c.l.b16 %v1663
  %v1796 = vunpack.c.l.b16 %v1664
  %v1797 = vunpack.c.l.b16 %v1665
  %v1798 = vunpack.c.l.b16 %v1666
  %v1799 = vunpack.c.l.b16 %v1667
  %v1800 = vunpack.c.l.b16 %v1668
  %v1801 = vunpack.c.l.b16 %v1669
  %v1802 = vunpack.c.l.b16 %v1670
  %v1803 = vunpack.c.l.b16 %v1671
  %v1804 = vunpack.c.l.b16 %v1672
  %v1805 = vunpack.c.l.b16 %v1673
  %v1806 = vunpack.c.l.b16 %v1674
  %v1807 = vunpack.c.l.b16 %v1675
  %v1808 = vunpack.c.l.b16 %v1676
  %v1809 = vunpack.c.l.b16 %v1677
  %v1810 = vpack.c.b16 %v1747, %v1746
  %v1811 = vpack.c.b16 %v1749, %v1748
  %v1812 = vpack.c.b16 %v1751, %v1750
  %v1813 = vpack.c.b16 %v1753, %v1752
  %v1814 = vpack.c.b16 %v1755, %v1754
  %v1815 = vpack.c.b16 %v1757, %v1756
  %v1816 = vpack.c.b16 %v1759, %v1758
  %v1817 = vpack.c.b16 %v1761, %v1760
  %v1818 = vpack.c.b16 %v1763, %v1762
  %v1819 = vpack.c.b16 %v1765, %v1764
  %v1820 = vpack.c.b16 %v1767, %v1766
  %v1821 = vpack.c.b16 %v1769, %v1768
  %v1822 = vpack.c.b16 %v1771, %v1770
  %v1823 = vpack.c.b16 %v1773, %v1772
  %v1824 = vpack.c.b16 %v1775, %v1774
  %v1825 = vpack.c.b16 %v1777, %v1776
  %v1826 = vpack.c.b16 %v1779, %v1778
  %v1827 = vpack.c.b16 %v1781, %v1780
  %v1828 = vpack.c.b16 %v1783, %v1782
  %v1829 = vpack.c.b16 %v1785, %v1784
  %v1830 = vpack.c.b16 %v1787, %v1786
  %v1831 = vpack.c.b16 %v1789, %v1788
  %v1832 = vpack.c.b16 %v1791, %v1790
  %v1833 = vpack.c.b16 %v1793, %v1792
  %v1834 = vpack.c.b16 %v1795, %v1794
  %v1835 = vpack.c.b16 %v1797, %v1796
  %v1836 = vpack.c.b16 %v1799, %v1798
  %v1837 = vpack.c.b16 %v1801, %v1800
  %v1838 = vpack.c.b16 %v1803, %v1802
  %v1839 = vpack.c.b16 %v1805, %v1804
  %v1840 = vpack.c.b16 %v1807, %v1806
  %v1841 = vpack.c.b16 %v1809, %v1808
  %1874 = vmatpush.bf16.msra.mxu0 %v1817
  %1875 = vmatpush.bf16.msra.mxu0 %v1816
  %1876 = vmatpush.bf16.msra.mxu0 %v1815
  %1877 = vmatpush.bf16.msra.mxu0 %v1814
  %1878 = vmatpush.bf16.msra.mxu0 %v1813
  %1879 = vmatpush.bf16.msra.mxu0 %v1812
  %1880 = vmatpush.bf16.msra.mxu0 %v1811
  %1881 = vmatpush.bf16.msra.mxu0 %v1810
  %1882 = vmatmul.bf16.gmra.mxu0 %v1678
  %v1883 = vpop.f32.mrf.mxu0
  %v1884 = vadd.f32 0.0, %v1883
  %v1885 = vpop.f32.mrf.mxu0
  %v1886 = vadd.f32 0.0, %v1885
  %1887 = vdwg.mxu0
  %1888 = vmatpush.bf16.msra.mxu0 %v1825
  %1889 = vmatpush.bf16.msra.mxu0 %v1824
  %1890 = vmatpush.bf16.msra.mxu0 %v1823
  %1891 = vmatpush.bf16.msra.mxu0 %v1822
  %1892 = vmatpush.bf16.msra.mxu0 %v1821
  %1893 = vmatpush.bf16.msra.mxu0 %v1820
  %1894 = vmatpush.bf16.msra.mxu0 %v1819
  %1895 = vmatpush.bf16.msra.mxu0 %v1818
  %1896 = vmatmul.bf16.gmra.mxu0 %v1679
  %v1897 = vpop.f32.mrf.mxu0
  %v1898 = vadd.f32 %v1884, %v1897
  %v1899 = vpop.f32.mrf.mxu0
  %v1900 = vadd.f32 %v1886, %v1899
  %1901 = vdwg.mxu0
  %1902 = vmatpush.bf16.msra.mxu0 %v1833
  %1903 = vmatpush.bf16.msra.mxu0 %v1832
  %1904 = vmatpush.bf16.msra.mxu0 %v1831
  %1905 = vmatpush.bf16.msra.mxu0 %v1830
  %1906 = vmatpush.bf16.msra.mxu0 %v1829
  %1907 = vmatpush.bf16.msra.mxu0 %v1828
  %1908 = vmatpush.bf16.msra.mxu0 %v1827
  %1909 = vmatpush.bf16.msra.mxu0 %v1826
  %1910 = vmatmul.bf16.gmra.mxu0 %v1680
  %v1911 = vpop.f32.mrf.mxu0
  %v1912 = vadd.f32 %v1898, %v1911
  %v1913 = vpop.f32.mrf.mxu0
  %v1914 = vadd.f32 %v1900, %v1913
  %1915 = vdwg.mxu0
  %1916 = vmatpush.bf16.msra.mxu0 %v1841
  %1917 = vmatpush.bf16.msra.mxu0 %v1840
  %1918 = vmatpush.bf16.msra.mxu0 %v1839
  %1919 = vmatpush.bf16.msra.mxu0 %v1838
  %1920 = vmatpush.bf16.msra.mxu0 %v1837
  %1921 = vmatpush.bf16.msra.mxu0 %v1836
  %1922 = vmatpush.bf16.msra.mxu0 %v1835
  %1923 = vmatpush.bf16.msra.mxu0 %v1834
  %1924 = vmatmul.bf16.gmra.mxu0 %v1681
  %v1925 = vpop.f32.mrf.mxu0
  %v1926 = vadd.f32 %v1912, %v1925
  %v1927 = vpop.f32.mrf.mxu0
  %v1928 = vadd.f32 %v1914, %v1927
  %1929 = vdwg.mxu0
  %v1930 = vadd.f32 %v1489, %v1926
  %v1931 = vadd.f32 %v1490, %v1928
  %v1932 = vperm.slane %v168, 0
  %v1933 = vadd.f32 %v1930, %v1932
  %v1934 = vadd.f32 %v1931, %v1932
  %v1935 = vadd.f32 %v166, %v1933
  %v1936 = vadd.f32 %v167, %v1934
  %v1937 = vld [vmem:[%s5 + $0x5] sm:$0x1]
  %v1938 = vld [vmem:[%s5 + $0x6] sm:$0x1]
  %v1939 = vsel %vm54, %v1935, 0.0
  %1940 = vadd.xlane.f32.xlu0 %v1939
  %v1941 = vpop.xlane.xlu0 %1940
  %v1942 = vsel %vm54, %v1936, 0.0
  %1943 = vadd.xlane.f32.xlu0 %v1942
  %v1944 = vpop.xlane.xlu0 %1943
  %v1945 = vmul.f32 %v1941, %v123
  %v1946 = vmul.f32 %v1944, %v123
  %v1947 = vsub.f32 %v1935, %v1945
  %v1948 = vsub.f32 %v1936, %v1946
  %v1949 = vmul.f32 %v1947, %v1947
  %v1950 = vmul.f32 %v1948, %v1948
  %v1951 = vsel %vm54, %v1949, 0.0
  %1952 = vadd.xlane.f32.xlu0 %v1951
  %v1953 = vpop.xlane.xlu0 %1952
  %v1954 = vsel %vm54, %v1950, 0.0
  %1955 = vadd.xlane.f32.xlu0 %v1954
  %v1956 = vpop.xlane.xlu0 %1955
  %v1957 = vmul.f32 %v1953, %v123
  %v1958 = vmul.f32 %v1956, %v123
  %v1959 = vadd.f32 %v1957, 1e-05
  %v1960 = vadd.f32 %v1958, 1e-05
  %v1961 = vrsqrt.pop %v1959
  %v1962 = vmul.f32 %v1961, %v1959
  %v1963 = vmul.f32 %v1962, %v1961
  %v1964 = vmul.f32 0.5, %v1963
  %v1965 = vsub.f32 1.5, %v1964
  %v1966 = vmul.f32 %v1961, %v1965
  %vm1967 = vweird.f32 %v1959
  %vm1968 = vweird.f32 %v1961
  %vm1969 = vmor %vm1967, %vm1968
  %v1970 = vsel %vm1969, %v1961, %v1966
  %v1971 = vrsqrt.pop %v1960
  %v1972 = vmul.f32 %v1971, %v1960
  %v1973 = vmul.f32 %v1972, %v1971
  %v1974 = vmul.f32 0.5, %v1973
  %v1975 = vsub.f32 1.5, %v1974
  %v1976 = vmul.f32 %v1971, %v1975
  %vm1977 = vweird.f32 %v1960
  %vm1978 = vweird.f32 %v1971
  %vm1979 = vmor %vm1977, %vm1978
  %v1980 = vsel %vm1979, %v1971, %v1976
  %v1981 = vmul.f32 %v1947, %v1970
  %v1982 = vmul.f32 %v1948, %v1980
  %v1983 = vperm.slane %v1937, 0
  %v1984 = vmul.f32 %v1981, %v1983
  %v1985 = vmul.f32 %v1982, %v1983
  %v1986 = vperm.slane %v1938, 0
  %v1987 = vadd.f32 %v1984, %v1986
  %v1988 = vadd.f32 %v1985, %v1986
  %s1989 = scalar_lea.vmem %s1, 32
  %v1990 = vld [vmem:[%s1989] sm:$0xf]
  %v1991 = vld [vmem:[%s1989 + $0x4] sm:$0xf]
  %v1992 = vld [vmem:[%s1989 + $0x8] sm:$0xf]
  %v1993 = vld [vmem:[%s1989 + $0xc] sm:$0xf]
  %v1994 = vld [vmem:[%s5 + $0x7] sm:$0x1]
  %v1995 = vpack.c.bf16 %v1988, %v1987
  %v1996 = vperm.slane %v1994, 0
  %v2001 = vunpack.c.l.b16 %v1990
  %v2002 = vunpack.c.l.b16 %v1991
  %v2003 = vunpack.c.l.b16 %v1992
  %v2004 = vunpack.c.l.b16 %v1993
  %v2005 = vpack.c.b16 %v2002, %v2001
  %v2006 = vpack.c.b16 %v2004, %v2003
  %v2010 = vsel %vm54, %v1995, 0
  %2012 = vmatpush.bf16.msra.mxu0 0
  %2013 = vmatpush.bf16.msra.mxu0 0
  %2014 = vmatpush.bf16.msra.mxu0 0
  %2015 = vmatpush.bf16.msra.mxu0 0
  %2016 = vmatpush.bf16.msra.mxu0 0
  %2017 = vmatpush.bf16.msra.mxu0 0
  %2018 = vmatpush.bf16.msra.mxu0 %v2006
  %2019 = vmatpush.bf16.msra.mxu0 %v2005
  %2020 = vmatmul.bf16.gmra.mxu0 %v2010
  %v2021 = vpop.f32.mrf.mxu0
  %v2022 = vadd.f32 %v1996, %v2021
  %v2023 = vpop.f32.mrf.mxu0
  %v2024 = vadd.f32 %v1996, %v2023
  %2025 = vdwg.mxu0
  %v2026 = vld [vmem:[%s5 + $0x9] sm:$0x1]
  %v2027 = vld [vmem:[%s5 + $0xa] sm:$0x1]
  %v2028 = vsel %vm54, %v2022, 0.0
  %2029 = vadd.xlane.f32.xlu0 %v2028
  %v2030 = vpop.xlane.xlu0 %2029
  %v2031 = vsel %vm54, %v2024, 0.0
  %2032 = vadd.xlane.f32.xlu0 %v2031
  %v2033 = vpop.xlane.xlu0 %2032
  %v2034 = vmul.f32 %v2030, %v123
  %v2035 = vmul.f32 %v2033, %v123
  %v2036 = vsub.f32 %v2022, %v2034
  %v2037 = vsub.f32 %v2024, %v2035
  %v2038 = vmul.f32 %v2036, %v2036
  %v2039 = vmul.f32 %v2037, %v2037
  %v2040 = vsel %vm54, %v2038, 0.0
  %2041 = vadd.xlane.f32.xlu0 %v2040
  %v2042 = vpop.xlane.xlu0 %2041
  %v2043 = vsel %vm54, %v2039, 0.0
  %2044 = vadd.xlane.f32.xlu0 %v2043
  %v2045 = vpop.xlane.xlu0 %2044
  %v2046 = vmul.f32 %v2042, %v123
  %v2047 = vmul.f32 %v2045, %v123
  %v2048 = vadd.f32 %v2046, 1e-05
  %v2049 = vadd.f32 %v2047, 1e-05
  %v2050 = vrsqrt.pop %v2048
  %v2051 = vmul.f32 %v2050, %v2048
  %v2052 = vmul.f32 %v2051, %v2050
  %v2053 = vmul.f32 0.5, %v2052
  %v2054 = vsub.f32 1.5, %v2053
  %v2055 = vmul.f32 %v2050, %v2054
  %vm2056 = vweird.f32 %v2048
  %vm2057 = vweird.f32 %v2050
  %vm2058 = vmor %vm2056, %vm2057
  %v2059 = vsel %vm2058, %v2050, %v2055
  %v2060 = vrsqrt.pop %v2049
  %v2061 = vmul.f32 %v2060, %v2049
  %v2062 = vmul.f32 %v2061, %v2060
  %v2063 = vmul.f32 0.5, %v2062
  %v2064 = vsub.f32 1.5, %v2063
  %v2065 = vmul.f32 %v2060, %v2064
  %vm2066 = vweird.f32 %v2049
  %vm2067 = vweird.f32 %v2060
  %vm2068 = vmor %vm2066, %vm2067
  %v2069 = vsel %vm2068, %v2060, %v2065
  %v2070 = vmul.f32 %v2036, %v2059
  %v2071 = vmul.f32 %v2037, %v2069
  %v2072 = vperm.slane %v2026, 0
  %v2073 = vmul.f32 %v2070, %v2072
  %v2074 = vmul.f32 %v2071, %v2072
  %v2075 = vperm.slane %v2027, 0
  %v2076 = vadd.f32 %v2073, %v2075
  %v2077 = vadd.f32 %v2074, %v2075
  %v2078 = vld [vmem:[%s5 + $0x8] sm:$0x1]
  %v2079 = vpack.c.bf16 %v2077, %v2076
  %s2080 = scalar_lea.vmem %s3, 256
  %v2081 = vld [vmem:[%s2080] sm:$0xff]
  %v2082 = vld [vmem:[%s2080 + $0x8] sm:$0xff]
  %v2083 = vld [vmem:[%s2080 + $0x40] sm:$0xff]
  %v2084 = vld [vmem:[%s2080 + $0x48] sm:$0xff]
  %v2085 = vld [vmem:[%s2080 + $0x80] sm:$0xff]
  %v2086 = vld [vmem:[%s2080 + $0x88] sm:$0xff]
  %v2087 = vld [vmem:[%s2080 + $0xc0] sm:$0xff]
  %v2088 = vld [vmem:[%s2080 + $0xc8] sm:$0xff]
  %s2089 = scalar_lea.vmem %s6, 1
  %v2090 = vld [vmem:[%s2089] ss:$4 sm:$0xf]
  %v2092 = vperm.slane %v2090, 0
  %v2093 = vperm.slane %v2090, 1
  %v2094 = vperm.slane %v2090, 2
  %v2095 = vperm.slane %v2090, 3
  %v2108 = vunpack.c.l.b16 %v2081
  %v2109 = vunpack.c.h.b16 %v2081
  %v2110 = vunpack.c.l.b16 %v2082
  %v2111 = vunpack.c.h.b16 %v2082
  %v2112 = vunpack.c.l.b16 %v2083
  %v2113 = vunpack.c.h.b16 %v2083
  %v2114 = vunpack.c.l.b16 %v2084
  %v2115 = vunpack.c.h.b16 %v2084
  %v2116 = vunpack.c.l.b16 %v2085
  %v2117 = vunpack.c.h.b16 %v2085
  %v2118 = vunpack.c.l.b16 %v2086
  %v2119 = vunpack.c.h.b16 %v2086
  %v2120 = vunpack.c.l.b16 %v2087
  %v2121 = vunpack.c.h.b16 %v2087
  %v2122 = vunpack.c.l.b16 %v2088
  %v2123 = vunpack.c.h.b16 %v2088
  %v2124 = vpack.c.b16 %v2112, %v2108
  %v2125 = vpack.c.b16 %v2113, %v2109
  %v2126 = vpack.c.b16 %v2114, %v2110
  %v2127 = vpack.c.b16 %v2115, %v2111
  %v2128 = vpack.c.b16 %v2120, %v2116
  %v2129 = vpack.c.b16 %v2121, %v2117
  %v2130 = vpack.c.b16 %v2122, %v2118
  %v2131 = vpack.c.b16 %v2123, %v2119
  %v2141 = vsel %vm54, %v2079, 0
  %2143 = vmatpush.bf16.msra.mxu0 0
  %2144 = vmatpush.bf16.msra.mxu0 0
  %2145 = vmatpush.bf16.msra.mxu0 0
  %2146 = vmatpush.bf16.msra.mxu0 0
  %2147 = vmatpush.bf16.msra.mxu0 0
  %2148 = vmatpush.bf16.msra.mxu0 0
  %2149 = vmatpush.bf16.msra.mxu0 %v2128
  %2150 = vmatpush.bf16.msra.mxu0 %v2124
  %2151 = vmatmul.bf16.gmra.mxu0 %v2141
  %v2152 = vpop.f32.mrf.mxu0
  %v2153 = vadd.f32 %v2092, %v2152
  %v2154 = vpop.f32.mrf.mxu0
  %v2155 = vadd.f32 %v2092, %v2154
  %2156 = vdwg.mxu0
  %2157 = vmatpush.bf16.msra.mxu0 0
  %2158 = vmatpush.bf16.msra.mxu0 0
  %2159 = vmatpush.bf16.msra.mxu0 0
  %2160 = vmatpush.bf16.msra.mxu0 0
  %2161 = vmatpush.bf16.msra.mxu0 0
  %2162 = vmatpush.bf16.msra.mxu0 0
  %2163 = vmatpush.bf16.msra.mxu0 %v2129
  %2164 = vmatpush.bf16.msra.mxu0 %v2125
  %2165 = vmatmul.bf16.gmra.mxu0 %v2141
  %v2166 = vpop.f32.mrf.mxu0
  %v2167 = vadd.f32 %v2093, %v2166
  %v2168 = vpop.f32.mrf.mxu0
  %v2169 = vadd.f32 %v2093, %v2168
  %2170 = vdwg.mxu0
  %2171 = vmatpush.bf16.msra.mxu0 0
  %2172 = vmatpush.bf16.msra.mxu0 0
  %2173 = vmatpush.bf16.msra.mxu0 0
  %2174 = vmatpush.bf16.msra.mxu0 0
  %2175 = vmatpush.bf16.msra.mxu0 0
  %2176 = vmatpush.bf16.msra.mxu0 0
  %2177 = vmatpush.bf16.msra.mxu0 %v2130
  %2178 = vmatpush.bf16.msra.mxu0 %v2126
  %2179 = vmatmul.bf16.gmra.mxu0 %v2141
  %v2180 = vpop.f32.mrf.mxu0
  %v2181 = vadd.f32 %v2094, %v2180
  %v2182 = vpop.f32.mrf.mxu0
  %v2183 = vadd.f32 %v2094, %v2182
  %2184 = vdwg.mxu0
  %2185 = vmatpush.bf16.msra.mxu0 0
  %2186 = vmatpush.bf16.msra.mxu0 0
  %2187 = vmatpush.bf16.msra.mxu0 0
  %2188 = vmatpush.bf16.msra.mxu0 0
  %2189 = vmatpush.bf16.msra.mxu0 0
  %2190 = vmatpush.bf16.msra.mxu0 0
  %2191 = vmatpush.bf16.msra.mxu0 %v2131
  %2192 = vmatpush.bf16.msra.mxu0 %v2127
  %2193 = vmatmul.bf16.gmra.mxu0 %v2141
  %v2194 = vpop.f32.mrf.mxu0
  %v2195 = vadd.f32 %v2095, %v2194
  %v2196 = vpop.f32.mrf.mxu0
  %v2197 = vadd.f32 %v2095, %v2196
  %2198 = vdwg.mxu0
  %v2199 = vmax.f32 %v2153, 0.0
  %v2200 = vmax.f32 %v2167, 0.0
  %v2201 = vmax.f32 %v2181, 0.0
  %v2202 = vmax.f32 %v2195, 0.0
  %v2203 = vmax.f32 %v2155, 0.0
  %v2204 = vmax.f32 %v2169, 0.0
  %v2205 = vmax.f32 %v2183, 0.0
  %v2206 = vmax.f32 %v2197, 0.0
  %s2207 = scalar_lea.vmem %s4, 1024
  %v2208 = vld [vmem:[%s2207] sm:$0xf]
  %v2209 = vld [vmem:[%s2207 + $0x4] sm:$0xf]
  %v2210 = vld [vmem:[%s2207 + $0x8] sm:$0xf]
  %v2211 = vld [vmem:[%s2207 + $0xc] sm:$0xf]
  %v2212 = vld [vmem:[%s2207 + $0x10] sm:$0xf]
  %v2213 = vld [vmem:[%s2207 + $0x14] sm:$0xf]
  %v2214 = vld [vmem:[%s2207 + $0x18] sm:$0xf]
  %v2215 = vld [vmem:[%s2207 + $0x1c] sm:$0xf]
  %v2216 = vld [vmem:[%s2207 + $0x20] sm:$0xf]
  %v2217 = vld [vmem:[%s2207 + $0x24] sm:$0xf]
  %v2218 = vld [vmem:[%s2207 + $0x28] sm:$0xf]
  %v2219 = vld [vmem:[%s2207 + $0x2c] sm:$0xf]
  %v2220 = vld [vmem:[%s2207 + $0x30] sm:$0xf]
  %v2221 = vld [vmem:[%s2207 + $0x34] sm:$0xf]
  %v2222 = vld [vmem:[%s2207 + $0x38] sm:$0xf]
  %v2223 = vld [vmem:[%s2207 + $0x3c] sm:$0xf]
  %v2224 = vld [vmem:[%s2207 + $0x40] sm:$0xf]
  %v2225 = vld [vmem:[%s2207 + $0x44] sm:$0xf]
  %v2226 = vld [vmem:[%s2207 + $0x48] sm:$0xf]
  %v2227 = vld [vmem:[%s2207 + $0x4c] sm:$0xf]
  %v2228 = vld [vmem:[%s2207 + $0x50] sm:$0xf]
  %v2229 = vld [vmem:[%s2207 + $0x54] sm:$0xf]
  %v2230 = vld [vmem:[%s2207 + $0x58] sm:$0xf]
  %v2231 = vld [vmem:[%s2207 + $0x5c] sm:$0xf]
  %v2232 = vld [vmem:[%s2207 + $0x60] sm:$0xf]
  %v2233 = vld [vmem:[%s2207 + $0x64] sm:$0xf]
  %v2234 = vld [vmem:[%s2207 + $0x68] sm:$0xf]
  %v2235 = vld [vmem:[%s2207 + $0x6c] sm:$0xf]
  %v2236 = vld [vmem:[%s2207 + $0x70] sm:$0xf]
  %v2237 = vld [vmem:[%s2207 + $0x74] sm:$0xf]
  %v2238 = vld [vmem:[%s2207 + $0x78] sm:$0xf]
  %v2239 = vld [vmem:[%s2207 + $0x7c] sm:$0xf]
  %v2240 = vld [vmem:[%s2207 + $0x80] sm:$0xf]
  %v2241 = vld [vmem:[%s2207 + $0x84] sm:$0xf]
  %v2242 = vld [vmem:[%s2207 + $0x88] sm:$0xf]
  %v2243 = vld [vmem:[%s2207 + $0x8c] sm:$0xf]
  %v2244 = vld [vmem:[%s2207 + $0x90] sm:$0xf]
  %v2245 = vld [vmem:[%s2207 + $0x94] sm:$0xf]
  %v2246 = vld [vmem:[%s2207 + $0x98] sm:$0xf]
  %v2247 = vld [vmem:[%s2207 + $0x9c] sm:$0xf]
  %v2248 = vld [vmem:[%s2207 + $0xa0] sm:$0xf]
  %v2249 = vld [vmem:[%s2207 + $0xa4] sm:$0xf]
  %v2250 = vld [vmem:[%s2207 + $0xa8] sm:$0xf]
  %v2251 = vld [vmem:[%s2207 + $0xac] sm:$0xf]
  %v2252 = vld [vmem:[%s2207 + $0xb0] sm:$0xf]
  %v2253 = vld [vmem:[%s2207 + $0xb4] sm:$0xf]
  %v2254 = vld [vmem:[%s2207 + $0xb8] sm:$0xf]
  %v2255 = vld [vmem:[%s2207 + $0xbc] sm:$0xf]
  %v2256 = vld [vmem:[%s2207 + $0xc0] sm:$0xf]
  %v2257 = vld [vmem:[%s2207 + $0xc4] sm:$0xf]
  %v2258 = vld [vmem:[%s2207 + $0xc8] sm:$0xf]
  %v2259 = vld [vmem:[%s2207 + $0xcc] sm:$0xf]
  %v2260 = vld [vmem:[%s2207 + $0xd0] sm:$0xf]
  %v2261 = vld [vmem:[%s2207 + $0xd4] sm:$0xf]
  %v2262 = vld [vmem:[%s2207 + $0xd8] sm:$0xf]
  %v2263 = vld [vmem:[%s2207 + $0xdc] sm:$0xf]
  %v2264 = vld [vmem:[%s2207 + $0xe0] sm:$0xf]
  %v2265 = vld [vmem:[%s2207 + $0xe4] sm:$0xf]
  %v2266 = vld [vmem:[%s2207 + $0xe8] sm:$0xf]
  %v2267 = vld [vmem:[%s2207 + $0xec] sm:$0xf]
  %v2268 = vld [vmem:[%s2207 + $0xf0] sm:$0xf]
  %v2269 = vld [vmem:[%s2207 + $0xf4] sm:$0xf]
  %v2270 = vld [vmem:[%s2207 + $0xf8] sm:$0xf]
  %v2271 = vld [vmem:[%s2207 + $0xfc] sm:$0xf]
  %v2272 = vpack.c.bf16 %v2203, %v2199
  %v2273 = vpack.c.bf16 %v2204, %v2200
  %v2274 = vpack.c.bf16 %v2205, %v2201
  %v2275 = vpack.c.bf16 %v2206, %v2202
  %v2276 = vld [vmem:[%s2080 + $0x10] sm:$0xff]
  %v2277 = vld [vmem:[%s2080 + $0x18] sm:$0xff]
  %v2278 = vld [vmem:[%s2080 + $0x50] sm:$0xff]
  %v2279 = vld [vmem:[%s2080 + $0x58] sm:$0xff]
  %v2280 = vld [vmem:[%s2080 + $0x90] sm:$0xff]
  %v2281 = vld [vmem:[%s2080 + $0x98] sm:$0xff]
  %v2282 = vld [vmem:[%s2080 + $0xd0] sm:$0xff]
  %v2283 = vld [vmem:[%s2080 + $0xd8] sm:$0xff]
  %s2284 = scalar_lea.vmem %s6, 17
  %v2285 = vld [vmem:[%s2284] ss:$4 sm:$0xf]
  %v2287 = vperm.slane %v2285, 0
  %v2288 = vperm.slane %v2285, 1
  %v2289 = vperm.slane %v2285, 2
  %v2290 = vperm.slane %v2285, 3
  %v2303 = vunpack.c.l.b16 %v2276
  %v2304 = vunpack.c.h.b16 %v2276
  %v2305 = vunpack.c.l.b16 %v2277
  %v2306 = vunpack.c.h.b16 %v2277
  %v2307 = vunpack.c.l.b16 %v2278
  %v2308 = vunpack.c.h.b16 %v2278
  %v2309 = vunpack.c.l.b16 %v2279
  %v2310 = vunpack.c.h.b16 %v2279
  %v2311 = vunpack.c.l.b16 %v2280
  %v2312 = vunpack.c.h.b16 %v2280
  %v2313 = vunpack.c.l.b16 %v2281
  %v2314 = vunpack.c.h.b16 %v2281
  %v2315 = vunpack.c.l.b16 %v2282
  %v2316 = vunpack.c.h.b16 %v2282
  %v2317 = vunpack.c.l.b16 %v2283
  %v2318 = vunpack.c.h.b16 %v2283
  %v2319 = vpack.c.b16 %v2307, %v2303
  %v2320 = vpack.c.b16 %v2308, %v2304
  %v2321 = vpack.c.b16 %v2309, %v2305
  %v2322 = vpack.c.b16 %v2310, %v2306
  %v2323 = vpack.c.b16 %v2315, %v2311
  %v2324 = vpack.c.b16 %v2316, %v2312
  %v2325 = vpack.c.b16 %v2317, %v2313
  %v2326 = vpack.c.b16 %v2318, %v2314
  %2335 = vmatpush.bf16.msra.mxu0 0
  %2336 = vmatpush.bf16.msra.mxu0 0
  %2337 = vmatpush.bf16.msra.mxu0 0
  %2338 = vmatpush.bf16.msra.mxu0 0
  %2339 = vmatpush.bf16.msra.mxu0 0
  %2340 = vmatpush.bf16.msra.mxu0 0
  %2341 = vmatpush.bf16.msra.mxu0 %v2323
  %2342 = vmatpush.bf16.msra.mxu0 %v2319
  %2343 = vmatmul.bf16.gmra.mxu0 %v2141
  %v2344 = vpop.f32.mrf.mxu0
  %v2345 = vadd.f32 %v2287, %v2344
  %v2346 = vpop.f32.mrf.mxu0
  %v2347 = vadd.f32 %v2287, %v2346
  %2348 = vdwg.mxu0
  %2349 = vmatpush.bf16.msra.mxu0 0
  %2350 = vmatpush.bf16.msra.mxu0 0
  %2351 = vmatpush.bf16.msra.mxu0 0
  %2352 = vmatpush.bf16.msra.mxu0 0
  %2353 = vmatpush.bf16.msra.mxu0 0
  %2354 = vmatpush.bf16.msra.mxu0 0
  %2355 = vmatpush.bf16.msra.mxu0 %v2324
  %2356 = vmatpush.bf16.msra.mxu0 %v2320
  %2357 = vmatmul.bf16.gmra.mxu0 %v2141
  %v2358 = vpop.f32.mrf.mxu0
  %v2359 = vadd.f32 %v2288, %v2358
  %v2360 = vpop.f32.mrf.mxu0
  %v2361 = vadd.f32 %v2288, %v2360
  %2362 = vdwg.mxu0
  %2363 = vmatpush.bf16.msra.mxu0 0
  %2364 = vmatpush.bf16.msra.mxu0 0
  %2365 = vmatpush.bf16.msra.mxu0 0
  %2366 = vmatpush.bf16.msra.mxu0 0
  %2367 = vmatpush.bf16.msra.mxu0 0
  %2368 = vmatpush.bf16.msra.mxu0 0
  %2369 = vmatpush.bf16.msra.mxu0 %v2325
  %2370 = vmatpush.bf16.msra.mxu0 %v2321
  %2371 = vmatmul.bf16.gmra.mxu0 %v2141
  %v2372 = vpop.f32.mrf.mxu0
  %v2373 = vadd.f32 %v2289, %v2372
  %v2374 = vpop.f32.mrf.mxu0
  %v2375 = vadd.f32 %v2289, %v2374
  %2376 = vdwg.mxu0
  %2377 = vmatpush.bf16.msra.mxu0 0
  %2378 = vmatpush.bf16.msra.mxu0 0
  %2379 = vmatpush.bf16.msra.mxu0 0
  %2380 = vmatpush.bf16.msra.mxu0 0
  %2381 = vmatpush.bf16.msra.mxu0 0
  %2382 = vmatpush.bf16.msra.mxu0 0
  %2383 = vmatpush.bf16.msra.mxu0 %v2326
  %2384 = vmatpush.bf16.msra.mxu0 %v2322
  %2385 = vmatmul.bf16.gmra.mxu0 %v2141
  %v2386 = vpop.f32.mrf.mxu0
  %v2387 = vadd.f32 %v2290, %v2386
  %v2388 = vpop.f32.mrf.mxu0
  %v2389 = vadd.f32 %v2290, %v2388
  %2390 = vdwg.mxu0
  %v2391 = vmax.f32 %v2345, 0.0
  %v2392 = vmax.f32 %v2359, 0.0
  %v2393 = vmax.f32 %v2373, 0.0
  %v2394 = vmax.f32 %v2387, 0.0
  %v2395 = vmax.f32 %v2347, 0.0
  %v2396 = vmax.f32 %v2361, 0.0
  %v2397 = vmax.f32 %v2375, 0.0
  %v2398 = vmax.f32 %v2389, 0.0
  %v2399 = vld [vmem:[%s2207 + $0x100] sm:$0xf]
  %v2400 = vld [vmem:[%s2207 + $0x104] sm:$0xf]
  %v2401 = vld [vmem:[%s2207 + $0x108] sm:$0xf]
  %v2402 = vld [vmem:[%s2207 + $0x10c] sm:$0xf]
  %v2403 = vld [vmem:[%s2207 + $0x110] sm:$0xf]
  %v2404 = vld [vmem:[%s2207 + $0x114] sm:$0xf]
  %v2405 = vld [vmem:[%s2207 + $0x118] sm:$0xf]
  %v2406 = vld [vmem:[%s2207 + $0x11c] sm:$0xf]
  %v2407 = vld [vmem:[%s2207 + $0x120] sm:$0xf]
  %v2408 = vld [vmem:[%s2207 + $0x124] sm:$0xf]
  %v2409 = vld [vmem:[%s2207 + $0x128] sm:$0xf]
  %v2410 = vld [vmem:[%s2207 + $0x12c] sm:$0xf]
  %v2411 = vld [vmem:[%s2207 + $0x130] sm:$0xf]
  %v2412 = vld [vmem:[%s2207 + $0x134] sm:$0xf]
  %v2413 = vld [vmem:[%s2207 + $0x138] sm:$0xf]
  %v2414 = vld [vmem:[%s2207 + $0x13c] sm:$0xf]
  %v2415 = vld [vmem:[%s2207 + $0x140] sm:$0xf]
  %v2416 = vld [vmem:[%s2207 + $0x144] sm:$0xf]
  %v2417 = vld [vmem:[%s2207 + $0x148] sm:$0xf]
  %v2418 = vld [vmem:[%s2207 + $0x14c] sm:$0xf]
  %v2419 = vld [vmem:[%s2207 + $0x150] sm:$0xf]
  %v2420 = vld [vmem:[%s2207 + $0x154] sm:$0xf]
  %v2421 = vld [vmem:[%s2207 + $0x158] sm:$0xf]
  %v2422 = vld [vmem:[%s2207 + $0x15c] sm:$0xf]
  %v2423 = vld [vmem:[%s2207 + $0x160] sm:$0xf]
  %v2424 = vld [vmem:[%s2207 + $0x164] sm:$0xf]
  %v2425 = vld [vmem:[%s2207 + $0x168] sm:$0xf]
  %v2426 = vld [vmem:[%s2207 + $0x16c] sm:$0xf]
  %v2427 = vld [vmem:[%s2207 + $0x170] sm:$0xf]
  %v2428 = vld [vmem:[%s2207 + $0x174] sm:$0xf]
  %v2429 = vld [vmem:[%s2207 + $0x178] sm:$0xf]
  %v2430 = vld [vmem:[%s2207 + $0x17c] sm:$0xf]
  %v2431 = vld [vmem:[%s2207 + $0x180] sm:$0xf]
  %v2432 = vld [vmem:[%s2207 + $0x184] sm:$0xf]
  %v2433 = vld [vmem:[%s2207 + $0x188] sm:$0xf]
  %v2434 = vld [vmem:[%s2207 + $0x18c] sm:$0xf]
  %v2435 = vld [vmem:[%s2207 + $0x190] sm:$0xf]
  %v2436 = vld [vmem:[%s2207 + $0x194] sm:$0xf]
  %v2437 = vld [vmem:[%s2207 + $0x198] sm:$0xf]
  %v2438 = vld [vmem:[%s2207 + $0x19c] sm:$0xf]
  %v2439 = vld [vmem:[%s2207 + $0x1a0] sm:$0xf]
  %v2440 = vld [vmem:[%s2207 + $0x1a4] sm:$0xf]
  %v2441 = vld [vmem:[%s2207 + $0x1a8] sm:$0xf]
  %v2442 = vld [vmem:[%s2207 + $0x1ac] sm:$0xf]
  %v2443 = vld [vmem:[%s2207 + $0x1b0] sm:$0xf]
  %v2444 = vld [vmem:[%s2207 + $0x1b4] sm:$0xf]
  %v2445 = vld [vmem:[%s2207 + $0x1b8] sm:$0xf]
  %v2446 = vld [vmem:[%s2207 + $0x1bc] sm:$0xf]
  %v2447 = vld [vmem:[%s2207 + $0x1c0] sm:$0xf]
  %v2448 = vld [vmem:[%s2207 + $0x1c4] sm:$0xf]
  %v2449 = vld [vmem:[%s2207 + $0x1c8] sm:$0xf]
  %v2450 = vld [vmem:[%s2207 + $0x1cc] sm:$0xf]
  %v2451 = vld [vmem:[%s2207 + $0x1d0] sm:$0xf]
  %v2452 = vld [vmem:[%s2207 + $0x1d4] sm:$0xf]
  %v2453 = vld [vmem:[%s2207 + $0x1d8] sm:$0xf]
  %v2454 = vld [vmem:[%s2207 + $0x1dc] sm:$0xf]
  %v2455 = vld [vmem:[%s2207 + $0x1e0] sm:$0xf]
  %v2456 = vld [vmem:[%s2207 + $0x1e4] sm:$0xf]
  %v2457 = vld [vmem:[%s2207 + $0x1e8] sm:$0xf]
  %v2458 = vld [vmem:[%s2207 + $0x1ec] sm:$0xf]
  %v2459 = vld [vmem:[%s2207 + $0x1f0] sm:$0xf]
  %v2460 = vld [vmem:[%s2207 + $0x1f4] sm:$0xf]
  %v2461 = vld [vmem:[%s2207 + $0x1f8] sm:$0xf]
  %v2462 = vld [vmem:[%s2207 + $0x1fc] sm:$0xf]
  %v2463 = vpack.c.bf16 %v2395, %v2391
  %v2464 = vpack.c.bf16 %v2396, %v2392
  %v2465 = vpack.c.bf16 %v2397, %v2393
  %v2466 = vpack.c.bf16 %v2398, %v2394
  %v2531 = vunpack.c.l.b16 %v2399
  %v2532 = vunpack.c.l.b16 %v2400
  %v2533 = vunpack.c.l.b16 %v2401
  %v2534 = vunpack.c.l.b16 %v2402
  %v2535 = vunpack.c.l.b16 %v2403
  %v2536 = vunpack.c.l.b16 %v2404
  %v2537 = vunpack.c.l.b16 %v2405
  %v2538 = vunpack.c.l.b16 %v2406
  %v2539 = vunpack.c.l.b16 %v2407
  %v2540 = vunpack.c.l.b16 %v2408
  %v2541 = vunpack.c.l.b16 %v2409
  %v2542 = vunpack.c.l.b16 %v2410
  %v2543 = vunpack.c.l.b16 %v2411
  %v2544 = vunpack.c.l.b16 %v2412
  %v2545 = vunpack.c.l.b16 %v2413
  %v2546 = vunpack.c.l.b16 %v2414
  %v2547 = vunpack.c.l.b16 %v2415
  %v2548 = vunpack.c.l.b16 %v2416
  %v2549 = vunpack.c.l.b16 %v2417
  %v2550 = vunpack.c.l.b16 %v2418
  %v2551 = vunpack.c.l.b16 %v2419
  %v2552 = vunpack.c.l.b16 %v2420
  %v2553 = vunpack.c.l.b16 %v2421
  %v2554 = vunpack.c.l.b16 %v2422
  %v2555 = vunpack.c.l.b16 %v2423
  %v2556 = vunpack.c.l.b16 %v2424
  %v2557 = vunpack.c.l.b16 %v2425
  %v2558 = vunpack.c.l.b16 %v2426
  %v2559 = vunpack.c.l.b16 %v2427
  %v2560 = vunpack.c.l.b16 %v2428
  %v2561 = vunpack.c.l.b16 %v2429
  %v2562 = vunpack.c.l.b16 %v2430
  %v2563 = vunpack.c.l.b16 %v2431
  %v2564 = vunpack.c.l.b16 %v2432
  %v2565 = vunpack.c.l.b16 %v2433
  %v2566 = vunpack.c.l.b16 %v2434
  %v2567 = vunpack.c.l.b16 %v2435
  %v2568 = vunpack.c.l.b16 %v2436
  %v2569 = vunpack.c.l.b16 %v2437
  %v2570 = vunpack.c.l.b16 %v2438
  %v2571 = vunpack.c.l.b16 %v2439
  %v2572 = vunpack.c.l.b16 %v2440
  %v2573 = vunpack.c.l.b16 %v2441
  %v2574 = vunpack.c.l.b16 %v2442
  %v2575 = vunpack.c.l.b16 %v2443
  %v2576 = vunpack.c.l.b16 %v2444
  %v2577 = vunpack.c.l.b16 %v2445
  %v2578 = vunpack.c.l.b16 %v2446
  %v2579 = vunpack.c.l.b16 %v2447
  %v2580 = vunpack.c.l.b16 %v2448
  %v2581 = vunpack.c.l.b16 %v2449
  %v2582 = vunpack.c.l.b16 %v2450
  %v2583 = vunpack.c.l.b16 %v2451
  %v2584 = vunpack.c.l.b16 %v2452
  %v2585 = vunpack.c.l.b16 %v2453
  %v2586 = vunpack.c.l.b16 %v2454
  %v2587 = vunpack.c.l.b16 %v2455
  %v2588 = vunpack.c.l.b16 %v2456
  %v2589 = vunpack.c.l.b16 %v2457
  %v2590 = vunpack.c.l.b16 %v2458
  %v2591 = vunpack.c.l.b16 %v2459
  %v2592 = vunpack.c.l.b16 %v2460
  %v2593 = vunpack.c.l.b16 %v2461
  %v2594 = vunpack.c.l.b16 %v2462
  %v2595 = vpack.c.b16 %v2532, %v2531
  %v2596 = vpack.c.b16 %v2534, %v2533
  %v2597 = vpack.c.b16 %v2536, %v2535
  %v2598 = vpack.c.b16 %v2538, %v2537
  %v2599 = vpack.c.b16 %v2540, %v2539
  %v2600 = vpack.c.b16 %v2542, %v2541
  %v2601 = vpack.c.b16 %v2544, %v2543
  %v2602 = vpack.c.b16 %v2546, %v2545
  %v2603 = vpack.c.b16 %v2548, %v2547
  %v2604 = vpack.c.b16 %v2550, %v2549
  %v2605 = vpack.c.b16 %v2552, %v2551
  %v2606 = vpack.c.b16 %v2554, %v2553
  %v2607 = vpack.c.b16 %v2556, %v2555
  %v2608 = vpack.c.b16 %v2558, %v2557
  %v2609 = vpack.c.b16 %v2560, %v2559
  %v2610 = vpack.c.b16 %v2562, %v2561
  %v2611 = vpack.c.b16 %v2564, %v2563
  %v2612 = vpack.c.b16 %v2566, %v2565
  %v2613 = vpack.c.b16 %v2568, %v2567
  %v2614 = vpack.c.b16 %v2570, %v2569
  %v2615 = vpack.c.b16 %v2572, %v2571
  %v2616 = vpack.c.b16 %v2574, %v2573
  %v2617 = vpack.c.b16 %v2576, %v2575
  %v2618 = vpack.c.b16 %v2578, %v2577
  %v2619 = vpack.c.b16 %v2580, %v2579
  %v2620 = vpack.c.b16 %v2582, %v2581
  %v2621 = vpack.c.b16 %v2584, %v2583
  %v2622 = vpack.c.b16 %v2586, %v2585
  %v2623 = vpack.c.b16 %v2588, %v2587
  %v2624 = vpack.c.b16 %v2590, %v2589
  %v2625 = vpack.c.b16 %v2592, %v2591
  %v2626 = vpack.c.b16 %v2594, %v2593
  %2659 = vmatpush.bf16.msra.mxu0 %v2602
  %2660 = vmatpush.bf16.msra.mxu0 %v2601
  %2661 = vmatpush.bf16.msra.mxu0 %v2600
  %2662 = vmatpush.bf16.msra.mxu0 %v2599
  %2663 = vmatpush.bf16.msra.mxu0 %v2598
  %2664 = vmatpush.bf16.msra.mxu0 %v2597
  %2665 = vmatpush.bf16.msra.mxu0 %v2596
  %2666 = vmatpush.bf16.msra.mxu0 %v2595
  %2667 = vmatmul.bf16.gmra.mxu0 %v2463
  %v2668 = vpop.f32.mrf.mxu0
  %v2669 = vadd.f32 0.0, %v2668
  %v2670 = vpop.f32.mrf.mxu0
  %v2671 = vadd.f32 0.0, %v2670
  %2672 = vdwg.mxu0
  %2673 = vmatpush.bf16.msra.mxu0 %v2610
  %2674 = vmatpush.bf16.msra.mxu0 %v2609
  %2675 = vmatpush.bf16.msra.mxu0 %v2608
  %2676 = vmatpush.bf16.msra.mxu0 %v2607
  %2677 = vmatpush.bf16.msra.mxu0 %v2606
  %2678 = vmatpush.bf16.msra.mxu0 %v2605
  %2679 = vmatpush.bf16.msra.mxu0 %v2604
  %2680 = vmatpush.bf16.msra.mxu0 %v2603
  %2681 = vmatmul.bf16.gmra.mxu0 %v2464
  %v2682 = vpop.f32.mrf.mxu0
  %v2683 = vadd.f32 %v2669, %v2682
  %v2684 = vpop.f32.mrf.mxu0
  %v2685 = vadd.f32 %v2671, %v2684
  %2686 = vdwg.mxu0
  %2687 = vmatpush.bf16.msra.mxu0 %v2618
  %2688 = vmatpush.bf16.msra.mxu0 %v2617
  %2689 = vmatpush.bf16.msra.mxu0 %v2616
  %2690 = vmatpush.bf16.msra.mxu0 %v2615
  %2691 = vmatpush.bf16.msra.mxu0 %v2614
  %2692 = vmatpush.bf16.msra.mxu0 %v2613
  %2693 = vmatpush.bf16.msra.mxu0 %v2612
  %2694 = vmatpush.bf16.msra.mxu0 %v2611
  %2695 = vmatmul.bf16.gmra.mxu0 %v2465
  %v2696 = vpop.f32.mrf.mxu0
  %v2697 = vadd.f32 %v2683, %v2696
  %v2698 = vpop.f32.mrf.mxu0
  %v2699 = vadd.f32 %v2685, %v2698
  %2700 = vdwg.mxu0
  %2701 = vmatpush.bf16.msra.mxu0 %v2626
  %2702 = vmatpush.bf16.msra.mxu0 %v2625
  %2703 = vmatpush.bf16.msra.mxu0 %v2624
  %2704 = vmatpush.bf16.msra.mxu0 %v2623
  %2705 = vmatpush.bf16.msra.mxu0 %v2622
  %2706 = vmatpush.bf16.msra.mxu0 %v2621
  %2707 = vmatpush.bf16.msra.mxu0 %v2620
  %2708 = vmatpush.bf16.msra.mxu0 %v2619
  %2709 = vmatmul.bf16.gmra.mxu0 %v2466
  %v2710 = vpop.f32.mrf.mxu0
  %v2711 = vadd.f32 %v2697, %v2710
  %v2712 = vpop.f32.mrf.mxu0
  %v2713 = vadd.f32 %v2699, %v2712
  %2714 = vdwg.mxu0
  %v2779 = vunpack.c.l.b16 %v2208
  %v2780 = vunpack.c.l.b16 %v2209
  %v2781 = vunpack.c.l.b16 %v2210
  %v2782 = vunpack.c.l.b16 %v2211
  %v2783 = vunpack.c.l.b16 %v2212
  %v2784 = vunpack.c.l.b16 %v2213
  %v2785 = vunpack.c.l.b16 %v2214
  %v2786 = vunpack.c.l.b16 %v2215
  %v2787 = vunpack.c.l.b16 %v2216
  %v2788 = vunpack.c.l.b16 %v2217
  %v2789 = vunpack.c.l.b16 %v2218
  %v2790 = vunpack.c.l.b16 %v2219
  %v2791 = vunpack.c.l.b16 %v2220
  %v2792 = vunpack.c.l.b16 %v2221
  %v2793 = vunpack.c.l.b16 %v2222
  %v2794 = vunpack.c.l.b16 %v2223
  %v2795 = vunpack.c.l.b16 %v2224
  %v2796 = vunpack.c.l.b16 %v2225
  %v2797 = vunpack.c.l.b16 %v2226
  %v2798 = vunpack.c.l.b16 %v2227
  %v2799 = vunpack.c.l.b16 %v2228
  %v2800 = vunpack.c.l.b16 %v2229
  %v2801 = vunpack.c.l.b16 %v2230
  %v2802 = vunpack.c.l.b16 %v2231
  %v2803 = vunpack.c.l.b16 %v2232
  %v2804 = vunpack.c.l.b16 %v2233
  %v2805 = vunpack.c.l.b16 %v2234
  %v2806 = vunpack.c.l.b16 %v2235
  %v2807 = vunpack.c.l.b16 %v2236
  %v2808 = vunpack.c.l.b16 %v2237
  %v2809 = vunpack.c.l.b16 %v2238
  %v2810 = vunpack.c.l.b16 %v2239
  %v2811 = vunpack.c.l.b16 %v2240
  %v2812 = vunpack.c.l.b16 %v2241
  %v2813 = vunpack.c.l.b16 %v2242
  %v2814 = vunpack.c.l.b16 %v2243
  %v2815 = vunpack.c.l.b16 %v2244
  %v2816 = vunpack.c.l.b16 %v2245
  %v2817 = vunpack.c.l.b16 %v2246
  %v2818 = vunpack.c.l.b16 %v2247
  %v2819 = vunpack.c.l.b16 %v2248
  %v2820 = vunpack.c.l.b16 %v2249
  %v2821 = vunpack.c.l.b16 %v2250
  %v2822 = vunpack.c.l.b16 %v2251
  %v2823 = vunpack.c.l.b16 %v2252
  %v2824 = vunpack.c.l.b16 %v2253
  %v2825 = vunpack.c.l.b16 %v2254
  %v2826 = vunpack.c.l.b16 %v2255
  %v2827 = vunpack.c.l.b16 %v2256
  %v2828 = vunpack.c.l.b16 %v2257
  %v2829 = vunpack.c.l.b16 %v2258
  %v2830 = vunpack.c.l.b16 %v2259
  %v2831 = vunpack.c.l.b16 %v2260
  %v2832 = vunpack.c.l.b16 %v2261
  %v2833 = vunpack.c.l.b16 %v2262
  %v2834 = vunpack.c.l.b16 %v2263
  %v2835 = vunpack.c.l.b16 %v2264
  %v2836 = vunpack.c.l.b16 %v2265
  %v2837 = vunpack.c.l.b16 %v2266
  %v2838 = vunpack.c.l.b16 %v2267
  %v2839 = vunpack.c.l.b16 %v2268
  %v2840 = vunpack.c.l.b16 %v2269
  %v2841 = vunpack.c.l.b16 %v2270
  %v2842 = vunpack.c.l.b16 %v2271
  %v2843 = vpack.c.b16 %v2780, %v2779
  %v2844 = vpack.c.b16 %v2782, %v2781
  %v2845 = vpack.c.b16 %v2784, %v2783
  %v2846 = vpack.c.b16 %v2786, %v2785
  %v2847 = vpack.c.b16 %v2788, %v2787
  %v2848 = vpack.c.b16 %v2790, %v2789
  %v2849 = vpack.c.b16 %v2792, %v2791
  %v2850 = vpack.c.b16 %v2794, %v2793
  %v2851 = vpack.c.b16 %v2796, %v2795
  %v2852 = vpack.c.b16 %v2798, %v2797
  %v2853 = vpack.c.b16 %v2800, %v2799
  %v2854 = vpack.c.b16 %v2802, %v2801
  %v2855 = vpack.c.b16 %v2804, %v2803
  %v2856 = vpack.c.b16 %v2806, %v2805
  %v2857 = vpack.c.b16 %v2808, %v2807
  %v2858 = vpack.c.b16 %v2810, %v2809
  %v2859 = vpack.c.b16 %v2812, %v2811
  %v2860 = vpack.c.b16 %v2814, %v2813
  %v2861 = vpack.c.b16 %v2816, %v2815
  %v2862 = vpack.c.b16 %v2818, %v2817
  %v2863 = vpack.c.b16 %v2820, %v2819
  %v2864 = vpack.c.b16 %v2822, %v2821
  %v2865 = vpack.c.b16 %v2824, %v2823
  %v2866 = vpack.c.b16 %v2826, %v2825
  %v2867 = vpack.c.b16 %v2828, %v2827
  %v2868 = vpack.c.b16 %v2830, %v2829
  %v2869 = vpack.c.b16 %v2832, %v2831
  %v2870 = vpack.c.b16 %v2834, %v2833
  %v2871 = vpack.c.b16 %v2836, %v2835
  %v2872 = vpack.c.b16 %v2838, %v2837
  %v2873 = vpack.c.b16 %v2840, %v2839
  %v2874 = vpack.c.b16 %v2842, %v2841
  %2907 = vmatpush.bf16.msra.mxu0 %v2850
  %2908 = vmatpush.bf16.msra.mxu0 %v2849
  %2909 = vmatpush.bf16.msra.mxu0 %v2848
  %2910 = vmatpush.bf16.msra.mxu0 %v2847
  %2911 = vmatpush.bf16.msra.mxu0 %v2846
  %2912 = vmatpush.bf16.msra.mxu0 %v2845
  %2913 = vmatpush.bf16.msra.mxu0 %v2844
  %2914 = vmatpush.bf16.msra.mxu0 %v2843
  %2915 = vmatmul.bf16.gmra.mxu0 %v2272
  %v2916 = vpop.f32.mrf.mxu0
  %v2917 = vadd.f32 %v2711, %v2916
  %v2918 = vpop.f32.mrf.mxu0
  %v2919 = vadd.f32 %v2713, %v2918
  %2920 = vdwg.mxu0
  %2921 = vmatpush.bf16.msra.mxu0 %v2858
  %2922 = vmatpush.bf16.msra.mxu0 %v2857
  %2923 = vmatpush.bf16.msra.mxu0 %v2856
  %2924 = vmatpush.bf16.msra.mxu0 %v2855
  %2925 = vmatpush.bf16.msra.mxu0 %v2854
  %2926 = vmatpush.bf16.msra.mxu0 %v2853
  %2927 = vmatpush.bf16.msra.mxu0 %v2852
  %2928 = vmatpush.bf16.msra.mxu0 %v2851
  %2929 = vmatmul.bf16.gmra.mxu0 %v2273
  %v2930 = vpop.f32.mrf.mxu0
  %v2931 = vadd.f32 %v2917, %v2930
  %v2932 = vpop.f32.mrf.mxu0
  %v2933 = vadd.f32 %v2919, %v2932
  %2934 = vdwg.mxu0
  %2935 = vmatpush.bf16.msra.mxu0 %v2866
  %2936 = vmatpush.bf16.msra.mxu0 %v2865
  %2937 = vmatpush.bf16.msra.mxu0 %v2864
  %2938 = vmatpush.bf16.msra.mxu0 %v2863
  %2939 = vmatpush.bf16.msra.mxu0 %v2862
  %2940 = vmatpush.bf16.msra.mxu0 %v2861
  %2941 = vmatpush.bf16.msra.mxu0 %v2860
  %2942 = vmatpush.bf16.msra.mxu0 %v2859
  %2943 = vmatmul.bf16.gmra.mxu0 %v2274
  %v2944 = vpop.f32.mrf.mxu0
  %v2945 = vadd.f32 %v2931, %v2944
  %v2946 = vpop.f32.mrf.mxu0
  %v2947 = vadd.f32 %v2933, %v2946
  %2948 = vdwg.mxu0
  %2949 = vmatpush.bf16.msra.mxu0 %v2874
  %2950 = vmatpush.bf16.msra.mxu0 %v2873
  %2951 = vmatpush.bf16.msra.mxu0 %v2872
  %2952 = vmatpush.bf16.msra.mxu0 %v2871
  %2953 = vmatpush.bf16.msra.mxu0 %v2870
  %2954 = vmatpush.bf16.msra.mxu0 %v2869
  %2955 = vmatpush.bf16.msra.mxu0 %v2868
  %2956 = vmatpush.bf16.msra.mxu0 %v2867
  %2957 = vmatmul.bf16.gmra.mxu0 %v2275
  %v2958 = vpop.f32.mrf.mxu0
  %v2959 = vadd.f32 %v2945, %v2958
  %v2960 = vpop.f32.mrf.mxu0
  %v2961 = vadd.f32 %v2947, %v2960
  %2962 = vdwg.mxu0
  %v2963 = vld [vmem:[%s2080 + $0x20] sm:$0xff]
  %v2964 = vld [vmem:[%s2080 + $0x28] sm:$0xff]
  %v2965 = vld [vmem:[%s2080 + $0x60] sm:$0xff]
  %v2966 = vld [vmem:[%s2080 + $0x68] sm:$0xff]
  %v2967 = vld [vmem:[%s2080 + $0xa0] sm:$0xff]
  %v2968 = vld [vmem:[%s2080 + $0xa8] sm:$0xff]
  %v2969 = vld [vmem:[%s2080 + $0xe0] sm:$0xff]
  %v2970 = vld [vmem:[%s2080 + $0xe8] sm:$0xff]
  %s2971 = scalar_lea.vmem %s6, 33
  %v2972 = vld [vmem:[%s2971] ss:$4 sm:$0xf]
  %v2974 = vperm.slane %v2972, 0
  %v2975 = vperm.slane %v2972, 1
  %v2976 = vperm.slane %v2972, 2
  %v2977 = vperm.slane %v2972, 3
  %v2990 = vunpack.c.l.b16 %v2963
  %v2991 = vunpack.c.h.b16 %v2963
  %v2992 = vunpack.c.l.b16 %v2964
  %v2993 = vunpack.c.h.b16 %v2964
  %v2994 = vunpack.c.l.b16 %v2965
  %v2995 = vunpack.c.h.b16 %v2965
  %v2996 = vunpack.c.l.b16 %v2966
  %v2997 = vunpack.c.h.b16 %v2966
  %v2998 = vunpack.c.l.b16 %v2967
  %v2999 = vunpack.c.h.b16 %v2967
  %v3000 = vunpack.c.l.b16 %v2968
  %v3001 = vunpack.c.h.b16 %v2968
  %v3002 = vunpack.c.l.b16 %v2969
  %v3003 = vunpack.c.h.b16 %v2969
  %v3004 = vunpack.c.l.b16 %v2970
  %v3005 = vunpack.c.h.b16 %v2970
  %v3006 = vpack.c.b16 %v2994, %v2990
  %v3007 = vpack.c.b16 %v2995, %v2991
  %v3008 = vpack.c.b16 %v2996, %v2992
  %v3009 = vpack.c.b16 %v2997, %v2993
  %v3010 = vpack.c.b16 %v3002, %v2998
  %v3011 = vpack.c.b16 %v3003, %v2999
  %v3012 = vpack.c.b16 %v3004, %v3000
  %v3013 = vpack.c.b16 %v3005, %v3001
  %3022 = vmatpush.bf16.msra.mxu0 0
  %3023 = vmatpush.bf16.msra.mxu0 0
  %3024 = vmatpush.bf16.msra.mxu0 0
  %3025 = vmatpush.bf16.msra.mxu0 0
  %3026 = vmatpush.bf16.msra.mxu0 0
  %3027 = vmatpush.bf16.msra.mxu0 0
  %3028 = vmatpush.bf16.msra.mxu0 %v3010
  %3029 = vmatpush.bf16.msra.mxu0 %v3006
  %3030 = vmatmul.bf16.gmra.mxu0 %v2141
  %v3031 = vpop.f32.mrf.mxu0
  %v3032 = vadd.f32 %v2974, %v3031
  %v3033 = vpop.f32.mrf.mxu0
  %v3034 = vadd.f32 %v2974, %v3033
  %3035 = vdwg.mxu0
  %3036 = vmatpush.bf16.msra.mxu0 0
  %3037 = vmatpush.bf16.msra.mxu0 0
  %3038 = vmatpush.bf16.msra.mxu0 0
  %3039 = vmatpush.bf16.msra.mxu0 0
  %3040 = vmatpush.bf16.msra.mxu0 0
  %3041 = vmatpush.bf16.msra.mxu0 0
  %3042 = vmatpush.bf16.msra.mxu0 %v3011
  %3043 = vmatpush.bf16.msra.mxu0 %v3007
  %3044 = vmatmul.bf16.gmra.mxu0 %v2141
  %v3045 = vpop.f32.mrf.mxu0
  %v3046 = vadd.f32 %v2975, %v3045
  %v3047 = vpop.f32.mrf.mxu0
  %v3048 = vadd.f32 %v2975, %v3047
  %3049 = vdwg.mxu0
  %3050 = vmatpush.bf16.msra.mxu0 0
  %3051 = vmatpush.bf16.msra.mxu0 0
  %3052 = vmatpush.bf16.msra.mxu0 0
  %3053 = vmatpush.bf16.msra.mxu0 0
  %3054 = vmatpush.bf16.msra.mxu0 0
  %3055 = vmatpush.bf16.msra.mxu0 0
  %3056 = vmatpush.bf16.msra.mxu0 %v3012
  %3057 = vmatpush.bf16.msra.mxu0 %v3008
  %3058 = vmatmul.bf16.gmra.mxu0 %v2141
  %v3059 = vpop.f32.mrf.mxu0
  %v3060 = vadd.f32 %v2976, %v3059
  %v3061 = vpop.f32.mrf.mxu0
  %v3062 = vadd.f32 %v2976, %v3061
  %3063 = vdwg.mxu0
  %3064 = vmatpush.bf16.msra.mxu0 0
  %3065 = vmatpush.bf16.msra.mxu0 0
  %3066 = vmatpush.bf16.msra.mxu0 0
  %3067 = vmatpush.bf16.msra.mxu0 0
  %3068 = vmatpush.bf16.msra.mxu0 0
  %3069 = vmatpush.bf16.msra.mxu0 0
  %3070 = vmatpush.bf16.msra.mxu0 %v3013
  %3071 = vmatpush.bf16.msra.mxu0 %v3009
  %3072 = vmatmul.bf16.gmra.mxu0 %v2141
  %v3073 = vpop.f32.mrf.mxu0
  %v3074 = vadd.f32 %v2977, %v3073
  %v3075 = vpop.f32.mrf.mxu0
  %v3076 = vadd.f32 %v2977, %v3075
  %3077 = vdwg.mxu0
  %v3078 = vmax.f32 %v3032, 0.0
  %v3079 = vmax.f32 %v3046, 0.0
  %v3080 = vmax.f32 %v3060, 0.0
  %v3081 = vmax.f32 %v3074, 0.0
  %v3082 = vmax.f32 %v3034, 0.0
  %v3083 = vmax.f32 %v3048, 0.0
  %v3084 = vmax.f32 %v3062, 0.0
  %v3085 = vmax.f32 %v3076, 0.0
  %v3086 = vld [vmem:[%s2207 + $0x200] sm:$0xf]
  %v3087 = vld [vmem:[%s2207 + $0x204] sm:$0xf]
  %v3088 = vld [vmem:[%s2207 + $0x208] sm:$0xf]
  %v3089 = vld [vmem:[%s2207 + $0x20c] sm:$0xf]
  %v3090 = vld [vmem:[%s2207 + $0x210] sm:$0xf]
  %v3091 = vld [vmem:[%s2207 + $0x214] sm:$0xf]
  %v3092 = vld [vmem:[%s2207 + $0x218] sm:$0xf]
  %v3093 = vld [vmem:[%s2207 + $0x21c] sm:$0xf]
  %v3094 = vld [vmem:[%s2207 + $0x220] sm:$0xf]
  %v3095 = vld [vmem:[%s2207 + $0x224] sm:$0xf]
  %v3096 = vld [vmem:[%s2207 + $0x228] sm:$0xf]
  %v3097 = vld [vmem:[%s2207 + $0x22c] sm:$0xf]
  %v3098 = vld [vmem:[%s2207 + $0x230] sm:$0xf]
  %v3099 = vld [vmem:[%s2207 + $0x234] sm:$0xf]
  %v3100 = vld [vmem:[%s2207 + $0x238] sm:$0xf]
  %v3101 = vld [vmem:[%s2207 + $0x23c] sm:$0xf]
  %v3102 = vld [vmem:[%s2207 + $0x240] sm:$0xf]
  %v3103 = vld [vmem:[%s2207 + $0x244] sm:$0xf]
  %v3104 = vld [vmem:[%s2207 + $0x248] sm:$0xf]
  %v3105 = vld [vmem:[%s2207 + $0x24c] sm:$0xf]
  %v3106 = vld [vmem:[%s2207 + $0x250] sm:$0xf]
  %v3107 = vld [vmem:[%s2207 + $0x254] sm:$0xf]
  %v3108 = vld [vmem:[%s2207 + $0x258] sm:$0xf]
  %v3109 = vld [vmem:[%s2207 + $0x25c] sm:$0xf]
  %v3110 = vld [vmem:[%s2207 + $0x260] sm:$0xf]
  %v3111 = vld [vmem:[%s2207 + $0x264] sm:$0xf]
  %v3112 = vld [vmem:[%s2207 + $0x268] sm:$0xf]
  %v3113 = vld [vmem:[%s2207 + $0x26c] sm:$0xf]
  %v3114 = vld [vmem:[%s2207 + $0x270] sm:$0xf]
  %v3115 = vld [vmem:[%s2207 + $0x274] sm:$0xf]
  %v3116 = vld [vmem:[%s2207 + $0x278] sm:$0xf]
  %v3117 = vld [vmem:[%s2207 + $0x27c] sm:$0xf]
  %v3118 = vld [vmem:[%s2207 + $0x280] sm:$0xf]
  %v3119 = vld [vmem:[%s2207 + $0x284] sm:$0xf]
  %v3120 = vld [vmem:[%s2207 + $0x288] sm:$0xf]
  %v3121 = vld [vmem:[%s2207 + $0x28c] sm:$0xf]
  %v3122 = vld [vmem:[%s2207 + $0x290] sm:$0xf]
  %v3123 = vld [vmem:[%s2207 + $0x294] sm:$0xf]
  %v3124 = vld [vmem:[%s2207 + $0x298] sm:$0xf]
  %v3125 = vld [vmem:[%s2207 + $0x29c] sm:$0xf]
  %v3126 = vld [vmem:[%s2207 + $0x2a0] sm:$0xf]
  %v3127 = vld [vmem:[%s2207 + $0x2a4] sm:$0xf]
  %v3128 = vld [vmem:[%s2207 + $0x2a8] sm:$0xf]
  %v3129 = vld [vmem:[%s2207 + $0x2ac] sm:$0xf]
  %v3130 = vld [vmem:[%s2207 + $0x2b0] sm:$0xf]
  %v3131 = vld [vmem:[%s2207 + $0x2b4] sm:$0xf]
  %v3132 = vld [vmem:[%s2207 + $0x2b8] sm:$0xf]
  %v3133 = vld [vmem:[%s2207 + $0x2bc] sm:$0xf]
  %v3134 = vld [vmem:[%s2207 + $0x2c0] sm:$0xf]
  %v3135 = vld [vmem:[%s2207 + $0x2c4] sm:$0xf]
  %v3136 = vld [vmem:[%s2207 + $0x2c8] sm:$0xf]
  %v3137 = vld [vmem:[%s2207 + $0x2cc] sm:$0xf]
  %v3138 = vld [vmem:[%s2207 + $0x2d0] sm:$0xf]
  %v3139 = vld [vmem:[%s2207 + $0x2d4] sm:$0xf]
  %v3140 = vld [vmem:[%s2207 + $0x2d8] sm:$0xf]
  %v3141 = vld [vmem:[%s2207 + $0x2dc] sm:$0xf]
  %v3142 = vld [vmem:[%s2207 + $0x2e0] sm:$0xf]
  %v3143 = vld [vmem:[%s2207 + $0x2e4] sm:$0xf]
  %v3144 = vld [vmem:[%s2207 + $0x2e8] sm:$0xf]
  %v3145 = vld [vmem:[%s2207 + $0x2ec] sm:$0xf]
  %v3146 = vld [vmem:[%s2207 + $0x2f0] sm:$0xf]
  %v3147 = vld [vmem:[%s2207 + $0x2f4] sm:$0xf]
  %v3148 = vld [vmem:[%s2207 + $0x2f8] sm:$0xf]
  %v3149 = vld [vmem:[%s2207 + $0x2fc] sm:$0xf]
  %v3150 = vpack.c.bf16 %v3082, %v3078
  %v3151 = vpack.c.bf16 %v3083, %v3079
  %v3152 = vpack.c.bf16 %v3084, %v3080
  %v3153 = vpack.c.bf16 %v3085, %v3081
  %v3218 = vunpack.c.l.b16 %v3086
  %v3219 = vunpack.c.l.b16 %v3087
  %v3220 = vunpack.c.l.b16 %v3088
  %v3221 = vunpack.c.l.b16 %v3089
  %v3222 = vunpack.c.l.b16 %v3090
  %v3223 = vunpack.c.l.b16 %v3091
  %v3224 = vunpack.c.l.b16 %v3092
  %v3225 = vunpack.c.l.b16 %v3093
  %v3226 = vunpack.c.l.b16 %v3094
  %v3227 = vunpack.c.l.b16 %v3095
  %v3228 = vunpack.c.l.b16 %v3096
  %v3229 = vunpack.c.l.b16 %v3097
  %v3230 = vunpack.c.l.b16 %v3098
  %v3231 = vunpack.c.l.b16 %v3099
  %v3232 = vunpack.c.l.b16 %v3100
  %v3233 = vunpack.c.l.b16 %v3101
  %v3234 = vunpack.c.l.b16 %v3102
  %v3235 = vunpack.c.l.b16 %v3103
  %v3236 = vunpack.c.l.b16 %v3104
  %v3237 = vunpack.c.l.b16 %v3105
  %v3238 = vunpack.c.l.b16 %v3106
  %v3239 = vunpack.c.l.b16 %v3107
  %v3240 = vunpack.c.l.b16 %v3108
  %v3241 = vunpack.c.l.b16 %v3109
  %v3242 = vunpack.c.l.b16 %v3110
  %v3243 = vunpack.c.l.b16 %v3111
  %v3244 = vunpack.c.l.b16 %v3112
  %v3245 = vunpack.c.l.b16 %v3113
  %v3246 = vunpack.c.l.b16 %v3114
  %v3247 = vunpack.c.l.b16 %v3115
  %v3248 = vunpack.c.l.b16 %v3116
  %v3249 = vunpack.c.l.b16 %v3117
  %v3250 = vunpack.c.l.b16 %v3118
  %v3251 = vunpack.c.l.b16 %v3119
  %v3252 = vunpack.c.l.b16 %v3120
  %v3253 = vunpack.c.l.b16 %v3121
  %v3254 = vunpack.c.l.b16 %v3122
  %v3255 = vunpack.c.l.b16 %v3123
  %v3256 = vunpack.c.l.b16 %v3124
  %v3257 = vunpack.c.l.b16 %v3125
  %v3258 = vunpack.c.l.b16 %v3126
  %v3259 = vunpack.c.l.b16 %v3127
  %v3260 = vunpack.c.l.b16 %v3128
  %v3261 = vunpack.c.l.b16 %v3129
  %v3262 = vunpack.c.l.b16 %v3130
  %v3263 = vunpack.c.l.b16 %v3131
  %v3264 = vunpack.c.l.b16 %v3132
  %v3265 = vunpack.c.l.b16 %v3133
  %v3266 = vunpack.c.l.b16 %v3134
  %v3267 = vunpack.c.l.b16 %v3135
  %v3268 = vunpack.c.l.b16 %v3136
  %v3269 = vunpack.c.l.b16 %v3137
  %v3270 = vunpack.c.l.b16 %v3138
  %v3271 = vunpack.c.l.b16 %v3139
  %v3272 = vunpack.c.l.b16 %v3140
  %v3273 = vunpack.c.l.b16 %v3141
  %v3274 = vunpack.c.l.b16 %v3142
  %v3275 = vunpack.c.l.b16 %v3143
  %v3276 = vunpack.c.l.b16 %v3144
  %v3277 = vunpack.c.l.b16 %v3145
  %v3278 = vunpack.c.l.b16 %v3146
  %v3279 = vunpack.c.l.b16 %v3147
  %v3280 = vunpack.c.l.b16 %v3148
  %v3281 = vunpack.c.l.b16 %v3149
  %v3282 = vpack.c.b16 %v3219, %v3218
  %v3283 = vpack.c.b16 %v3221, %v3220
  %v3284 = vpack.c.b16 %v3223, %v3222
  %v3285 = vpack.c.b16 %v3225, %v3224
  %v3286 = vpack.c.b16 %v3227, %v3226
  %v3287 = vpack.c.b16 %v3229, %v3228
  %v3288 = vpack.c.b16 %v3231, %v3230
  %v3289 = vpack.c.b16 %v3233, %v3232
  %v3290 = vpack.c.b16 %v3235, %v3234
  %v3291 = vpack.c.b16 %v3237, %v3236
  %v3292 = vpack.c.b16 %v3239, %v3238
  %v3293 = vpack.c.b16 %v3241, %v3240
  %v3294 = vpack.c.b16 %v3243, %v3242
  %v3295 = vpack.c.b16 %v3245, %v3244
  %v3296 = vpack.c.b16 %v3247, %v3246
  %v3297 = vpack.c.b16 %v3249, %v3248
  %v3298 = vpack.c.b16 %v3251, %v3250
  %v3299 = vpack.c.b16 %v3253, %v3252
  %v3300 = vpack.c.b16 %v3255, %v3254
  %v3301 = vpack.c.b16 %v3257, %v3256
  %v3302 = vpack.c.b16 %v3259, %v3258
  %v3303 = vpack.c.b16 %v3261, %v3260
  %v3304 = vpack.c.b16 %v3263, %v3262
  %v3305 = vpack.c.b16 %v3265, %v3264
  %v3306 = vpack.c.b16 %v3267, %v3266
  %v3307 = vpack.c.b16 %v3269, %v3268
  %v3308 = vpack.c.b16 %v3271, %v3270
  %v3309 = vpack.c.b16 %v3273, %v3272
  %v3310 = vpack.c.b16 %v3275, %v3274
  %v3311 = vpack.c.b16 %v3277, %v3276
  %v3312 = vpack.c.b16 %v3279, %v3278
  %v3313 = vpack.c.b16 %v3281, %v3280
  %3346 = vmatpush.bf16.msra.mxu0 %v3289
  %3347 = vmatpush.bf16.msra.mxu0 %v3288
  %3348 = vmatpush.bf16.msra.mxu0 %v3287
  %3349 = vmatpush.bf16.msra.mxu0 %v3286
  %3350 = vmatpush.bf16.msra.mxu0 %v3285
  %3351 = vmatpush.bf16.msra.mxu0 %v3284
  %3352 = vmatpush.bf16.msra.mxu0 %v3283
  %3353 = vmatpush.bf16.msra.mxu0 %v3282
  %3354 = vmatmul.bf16.gmra.mxu0 %v3150
  %v3355 = vpop.f32.mrf.mxu0
  %v3356 = vadd.f32 0.0, %v3355
  %v3357 = vpop.f32.mrf.mxu0
  %v3358 = vadd.f32 0.0, %v3357
  %3359 = vdwg.mxu0
  %3360 = vmatpush.bf16.msra.mxu0 %v3297
  %3361 = vmatpush.bf16.msra.mxu0 %v3296
  %3362 = vmatpush.bf16.msra.mxu0 %v3295
  %3363 = vmatpush.bf16.msra.mxu0 %v3294
  %3364 = vmatpush.bf16.msra.mxu0 %v3293
  %3365 = vmatpush.bf16.msra.mxu0 %v3292
  %3366 = vmatpush.bf16.msra.mxu0 %v3291
  %3367 = vmatpush.bf16.msra.mxu0 %v3290
  %3368 = vmatmul.bf16.gmra.mxu0 %v3151
  %v3369 = vpop.f32.mrf.mxu0
  %v3370 = vadd.f32 %v3356, %v3369
  %v3371 = vpop.f32.mrf.mxu0
  %v3372 = vadd.f32 %v3358, %v3371
  %3373 = vdwg.mxu0
  %3374 = vmatpush.bf16.msra.mxu0 %v3305
  %3375 = vmatpush.bf16.msra.mxu0 %v3304
  %3376 = vmatpush.bf16.msra.mxu0 %v3303
  %3377 = vmatpush.bf16.msra.mxu0 %v3302
  %3378 = vmatpush.bf16.msra.mxu0 %v3301
  %3379 = vmatpush.bf16.msra.mxu0 %v3300
  %3380 = vmatpush.bf16.msra.mxu0 %v3299
  %3381 = vmatpush.bf16.msra.mxu0 %v3298
  %3382 = vmatmul.bf16.gmra.mxu0 %v3152
  %v3383 = vpop.f32.mrf.mxu0
  %v3384 = vadd.f32 %v3370, %v3383
  %v3385 = vpop.f32.mrf.mxu0
  %v3386 = vadd.f32 %v3372, %v3385
  %3387 = vdwg.mxu0
  %3388 = vmatpush.bf16.msra.mxu0 %v3313
  %3389 = vmatpush.bf16.msra.mxu0 %v3312
  %3390 = vmatpush.bf16.msra.mxu0 %v3311
  %3391 = vmatpush.bf16.msra.mxu0 %v3310
  %3392 = vmatpush.bf16.msra.mxu0 %v3309
  %3393 = vmatpush.bf16.msra.mxu0 %v3308
  %3394 = vmatpush.bf16.msra.mxu0 %v3307
  %3395 = vmatpush.bf16.msra.mxu0 %v3306
  %3396 = vmatmul.bf16.gmra.mxu0 %v3153
  %v3397 = vpop.f32.mrf.mxu0
  %v3398 = vadd.f32 %v3384, %v3397
  %v3399 = vpop.f32.mrf.mxu0
  %v3400 = vadd.f32 %v3386, %v3399
  %3401 = vdwg.mxu0
  %v3402 = vadd.f32 %v2959, %v3398
  %v3403 = vadd.f32 %v2961, %v3400
  %v3404 = vld [vmem:[%s2080 + $0x30] sm:$0xff]
  %v3405 = vld [vmem:[%s2080 + $0x38] sm:$0xff]
  %v3406 = vld [vmem:[%s2080 + $0x70] sm:$0xff]
  %v3407 = vld [vmem:[%s2080 + $0x78] sm:$0xff]
  %v3408 = vld [vmem:[%s2080 + $0xb0] sm:$0xff]
  %v3409 = vld [vmem:[%s2080 + $0xb8] sm:$0xff]
  %v3410 = vld [vmem:[%s2080 + $0xf0] sm:$0xff]
  %v3411 = vld [vmem:[%s2080 + $0xf8] sm:$0xff]
  %s3412 = scalar_lea.vmem %s6, 49
  %v3413 = vld [vmem:[%s3412] ss:$4 sm:$0xf]
  %v3415 = vperm.slane %v3413, 0
  %v3416 = vperm.slane %v3413, 1
  %v3417 = vperm.slane %v3413, 2
  %v3418 = vperm.slane %v3413, 3
  %v3431 = vunpack.c.l.b16 %v3404
  %v3432 = vunpack.c.h.b16 %v3404
  %v3433 = vunpack.c.l.b16 %v3405
  %v3434 = vunpack.c.h.b16 %v3405
  %v3435 = vunpack.c.l.b16 %v3406
  %v3436 = vunpack.c.h.b16 %v3406
  %v3437 = vunpack.c.l.b16 %v3407
  %v3438 = vunpack.c.h.b16 %v3407
  %v3439 = vunpack.c.l.b16 %v3408
  %v3440 = vunpack.c.h.b16 %v3408
  %v3441 = vunpack.c.l.b16 %v3409
  %v3442 = vunpack.c.h.b16 %v3409
  %v3443 = vunpack.c.l.b16 %v3410
  %v3444 = vunpack.c.h.b16 %v3410
  %v3445 = vunpack.c.l.b16 %v3411
  %v3446 = vunpack.c.h.b16 %v3411
  %v3447 = vpack.c.b16 %v3435, %v3431
  %v3448 = vpack.c.b16 %v3436, %v3432
  %v3449 = vpack.c.b16 %v3437, %v3433
  %v3450 = vpack.c.b16 %v3438, %v3434
  %v3451 = vpack.c.b16 %v3443, %v3439
  %v3452 = vpack.c.b16 %v3444, %v3440
  %v3453 = vpack.c.b16 %v3445, %v3441
  %v3454 = vpack.c.b16 %v3446, %v3442
  %3463 = vmatpush.bf16.msra.mxu0 0
  %3464 = vmatpush.bf16.msra.mxu0 0
  %3465 = vmatpush.bf16.msra.mxu0 0
  %3466 = vmatpush.bf16.msra.mxu0 0
  %3467 = vmatpush.bf16.msra.mxu0 0
  %3468 = vmatpush.bf16.msra.mxu0 0
  %3469 = vmatpush.bf16.msra.mxu0 %v3451
  %3470 = vmatpush.bf16.msra.mxu0 %v3447
  %3471 = vmatmul.bf16.gmra.mxu0 %v2141
  %v3472 = vpop.f32.mrf.mxu0
  %v3473 = vadd.f32 %v3415, %v3472
  %v3474 = vpop.f32.mrf.mxu0
  %v3475 = vadd.f32 %v3415, %v3474
  %3476 = vdwg.mxu0
  %3477 = vmatpush.bf16.msra.mxu0 0
  %3478 = vmatpush.bf16.msra.mxu0 0
  %3479 = vmatpush.bf16.msra.mxu0 0
  %3480 = vmatpush.bf16.msra.mxu0 0
  %3481 = vmatpush.bf16.msra.mxu0 0
  %3482 = vmatpush.bf16.msra.mxu0 0
  %3483 = vmatpush.bf16.msra.mxu0 %v3452
  %3484 = vmatpush.bf16.msra.mxu0 %v3448
  %3485 = vmatmul.bf16.gmra.mxu0 %v2141
  %v3486 = vpop.f32.mrf.mxu0
  %v3487 = vadd.f32 %v3416, %v3486
  %v3488 = vpop.f32.mrf.mxu0
  %v3489 = vadd.f32 %v3416, %v3488
  %3490 = vdwg.mxu0
  %3491 = vmatpush.bf16.msra.mxu0 0
  %3492 = vmatpush.bf16.msra.mxu0 0
  %3493 = vmatpush.bf16.msra.mxu0 0
  %3494 = vmatpush.bf16.msra.mxu0 0
  %3495 = vmatpush.bf16.msra.mxu0 0
  %3496 = vmatpush.bf16.msra.mxu0 0
  %3497 = vmatpush.bf16.msra.mxu0 %v3453
  %3498 = vmatpush.bf16.msra.mxu0 %v3449
  %3499 = vmatmul.bf16.gmra.mxu0 %v2141
  %v3500 = vpop.f32.mrf.mxu0
  %v3501 = vadd.f32 %v3417, %v3500
  %v3502 = vpop.f32.mrf.mxu0
  %v3503 = vadd.f32 %v3417, %v3502
  %3504 = vdwg.mxu0
  %3505 = vmatpush.bf16.msra.mxu0 0
  %3506 = vmatpush.bf16.msra.mxu0 0
  %3507 = vmatpush.bf16.msra.mxu0 0
  %3508 = vmatpush.bf16.msra.mxu0 0
  %3509 = vmatpush.bf16.msra.mxu0 0
  %3510 = vmatpush.bf16.msra.mxu0 0
  %3511 = vmatpush.bf16.msra.mxu0 %v3454
  %3512 = vmatpush.bf16.msra.mxu0 %v3450
  %3513 = vmatmul.bf16.gmra.mxu0 %v2141
  %v3514 = vpop.f32.mrf.mxu0
  %v3515 = vadd.f32 %v3418, %v3514
  %v3516 = vpop.f32.mrf.mxu0
  %v3517 = vadd.f32 %v3418, %v3516
  %3518 = vdwg.mxu0
  %v3519 = vmax.f32 %v3473, 0.0
  %v3520 = vmax.f32 %v3487, 0.0
  %v3521 = vmax.f32 %v3501, 0.0
  %v3522 = vmax.f32 %v3515, 0.0
  %v3523 = vmax.f32 %v3475, 0.0
  %v3524 = vmax.f32 %v3489, 0.0
  %v3525 = vmax.f32 %v3503, 0.0
  %v3526 = vmax.f32 %v3517, 0.0
  %v3527 = vld [vmem:[%s2207 + $0x300] sm:$0xf]
  %v3528 = vld [vmem:[%s2207 + $0x304] sm:$0xf]
  %v3529 = vld [vmem:[%s2207 + $0x308] sm:$0xf]
  %v3530 = vld [vmem:[%s2207 + $0x30c] sm:$0xf]
  %v3531 = vld [vmem:[%s2207 + $0x310] sm:$0xf]
  %v3532 = vld [vmem:[%s2207 + $0x314] sm:$0xf]
  %v3533 = vld [vmem:[%s2207 + $0x318] sm:$0xf]
  %v3534 = vld [vmem:[%s2207 + $0x31c] sm:$0xf]
  %v3535 = vld [vmem:[%s2207 + $0x320] sm:$0xf]
  %v3536 = vld [vmem:[%s2207 + $0x324] sm:$0xf]
  %v3537 = vld [vmem:[%s2207 + $0x328] sm:$0xf]
  %v3538 = vld [vmem:[%s2207 + $0x32c] sm:$0xf]
  %v3539 = vld [vmem:[%s2207 + $0x330] sm:$0xf]
  %v3540 = vld [vmem:[%s2207 + $0x334] sm:$0xf]
  %v3541 = vld [vmem:[%s2207 + $0x338] sm:$0xf]
  %v3542 = vld [vmem:[%s2207 + $0x33c] sm:$0xf]
  %v3543 = vld [vmem:[%s2207 + $0x340] sm:$0xf]
  %v3544 = vld [vmem:[%s2207 + $0x344] sm:$0xf]
  %v3545 = vld [vmem:[%s2207 + $0x348] sm:$0xf]
  %v3546 = vld [vmem:[%s2207 + $0x34c] sm:$0xf]
  %v3547 = vld [vmem:[%s2207 + $0x350] sm:$0xf]
  %v3548 = vld [vmem:[%s2207 + $0x354] sm:$0xf]
  %v3549 = vld [vmem:[%s2207 + $0x358] sm:$0xf]
  %v3550 = vld [vmem:[%s2207 + $0x35c] sm:$0xf]
  %v3551 = vld [vmem:[%s2207 + $0x360] sm:$0xf]
  %v3552 = vld [vmem:[%s2207 + $0x364] sm:$0xf]
  %v3553 = vld [vmem:[%s2207 + $0x368] sm:$0xf]
  %v3554 = vld [vmem:[%s2207 + $0x36c] sm:$0xf]
  %v3555 = vld [vmem:[%s2207 + $0x370] sm:$0xf]
  %v3556 = vld [vmem:[%s2207 + $0x374] sm:$0xf]
  %v3557 = vld [vmem:[%s2207 + $0x378] sm:$0xf]
  %v3558 = vld [vmem:[%s2207 + $0x37c] sm:$0xf]
  %v3559 = vld [vmem:[%s2207 + $0x380] sm:$0xf]
  %v3560 = vld [vmem:[%s2207 + $0x384] sm:$0xf]
  %v3561 = vld [vmem:[%s2207 + $0x388] sm:$0xf]
  %v3562 = vld [vmem:[%s2207 + $0x38c] sm:$0xf]
  %v3563 = vld [vmem:[%s2207 + $0x390] sm:$0xf]
  %v3564 = vld [vmem:[%s2207 + $0x394] sm:$0xf]
  %v3565 = vld [vmem:[%s2207 + $0x398] sm:$0xf]
  %v3566 = vld [vmem:[%s2207 + $0x39c] sm:$0xf]
  %v3567 = vld [vmem:[%s2207 + $0x3a0] sm:$0xf]
  %v3568 = vld [vmem:[%s2207 + $0x3a4] sm:$0xf]
  %v3569 = vld [vmem:[%s2207 + $0x3a8] sm:$0xf]
  %v3570 = vld [vmem:[%s2207 + $0x3ac] sm:$0xf]
  %v3571 = vld [vmem:[%s2207 + $0x3b0] sm:$0xf]
  %v3572 = vld [vmem:[%s2207 + $0x3b4] sm:$0xf]
  %v3573 = vld [vmem:[%s2207 + $0x3b8] sm:$0xf]
  %v3574 = vld [vmem:[%s2207 + $0x3bc] sm:$0xf]
  %v3575 = vld [vmem:[%s2207 + $0x3c0] sm:$0xf]
  %v3576 = vld [vmem:[%s2207 + $0x3c4] sm:$0xf]
  %v3577 = vld [vmem:[%s2207 + $0x3c8] sm:$0xf]
  %v3578 = vld [vmem:[%s2207 + $0x3cc] sm:$0xf]
  %v3579 = vld [vmem:[%s2207 + $0x3d0] sm:$0xf]
  %v3580 = vld [vmem:[%s2207 + $0x3d4] sm:$0xf]
  %v3581 = vld [vmem:[%s2207 + $0x3d8] sm:$0xf]
  %v3582 = vld [vmem:[%s2207 + $0x3dc] sm:$0xf]
  %v3583 = vld [vmem:[%s2207 + $0x3e0] sm:$0xf]
  %v3584 = vld [vmem:[%s2207 + $0x3e4] sm:$0xf]
  %v3585 = vld [vmem:[%s2207 + $0x3e8] sm:$0xf]
  %v3586 = vld [vmem:[%s2207 + $0x3ec] sm:$0xf]
  %v3587 = vld [vmem:[%s2207 + $0x3f0] sm:$0xf]
  %v3588 = vld [vmem:[%s2207 + $0x3f4] sm:$0xf]
  %v3589 = vld [vmem:[%s2207 + $0x3f8] sm:$0xf]
  %v3590 = vld [vmem:[%s2207 + $0x3fc] sm:$0xf]
  %v3591 = vpack.c.bf16 %v3523, %v3519
  %v3592 = vpack.c.bf16 %v3524, %v3520
  %v3593 = vpack.c.bf16 %v3525, %v3521
  %v3594 = vpack.c.bf16 %v3526, %v3522
  %v3659 = vunpack.c.l.b16 %v3527
  %v3660 = vunpack.c.l.b16 %v3528
  %v3661 = vunpack.c.l.b16 %v3529
  %v3662 = vunpack.c.l.b16 %v3530
  %v3663 = vunpack.c.l.b16 %v3531
  %v3664 = vunpack.c.l.b16 %v3532
  %v3665 = vunpack.c.l.b16 %v3533
  %v3666 = vunpack.c.l.b16 %v3534
  %v3667 = vunpack.c.l.b16 %v3535
  %v3668 = vunpack.c.l.b16 %v3536
  %v3669 = vunpack.c.l.b16 %v3537
  %v3670 = vunpack.c.l.b16 %v3538
  %v3671 = vunpack.c.l.b16 %v3539
  %v3672 = vunpack.c.l.b16 %v3540
  %v3673 = vunpack.c.l.b16 %v3541
  %v3674 = vunpack.c.l.b16 %v3542
  %v3675 = vunpack.c.l.b16 %v3543
  %v3676 = vunpack.c.l.b16 %v3544
  %v3677 = vunpack.c.l.b16 %v3545
  %v3678 = vunpack.c.l.b16 %v3546
  %v3679 = vunpack.c.l.b16 %v3547
  %v3680 = vunpack.c.l.b16 %v3548
  %v3681 = vunpack.c.l.b16 %v3549
  %v3682 = vunpack.c.l.b16 %v3550
  %v3683 = vunpack.c.l.b16 %v3551
  %v3684 = vunpack.c.l.b16 %v3552
  %v3685 = vunpack.c.l.b16 %v3553
  %v3686 = vunpack.c.l.b16 %v3554
  %v3687 = vunpack.c.l.b16 %v3555
  %v3688 = vunpack.c.l.b16 %v3556
  %v3689 = vunpack.c.l.b16 %v3557
  %v3690 = vunpack.c.l.b16 %v3558
  %v3691 = vunpack.c.l.b16 %v3559
  %v3692 = vunpack.c.l.b16 %v3560
  %v3693 = vunpack.c.l.b16 %v3561
  %v3694 = vunpack.c.l.b16 %v3562
  %v3695 = vunpack.c.l.b16 %v3563
  %v3696 = vunpack.c.l.b16 %v3564
  %v3697 = vunpack.c.l.b16 %v3565
  %v3698 = vunpack.c.l.b16 %v3566
  %v3699 = vunpack.c.l.b16 %v3567
  %v3700 = vunpack.c.l.b16 %v3568
  %v3701 = vunpack.c.l.b16 %v3569
  %v3702 = vunpack.c.l.b16 %v3570
  %v3703 = vunpack.c.l.b16 %v3571
  %v3704 = vunpack.c.l.b16 %v3572
  %v3705 = vunpack.c.l.b16 %v3573
  %v3706 = vunpack.c.l.b16 %v3574
  %v3707 = vunpack.c.l.b16 %v3575
  %v3708 = vunpack.c.l.b16 %v3576
  %v3709 = vunpack.c.l.b16 %v3577
  %v3710 = vunpack.c.l.b16 %v3578
  %v3711 = vunpack.c.l.b16 %v3579
  %v3712 = vunpack.c.l.b16 %v3580
  %v3713 = vunpack.c.l.b16 %v3581
  %v3714 = vunpack.c.l.b16 %v3582
  %v3715 = vunpack.c.l.b16 %v3583
  %v3716 = vunpack.c.l.b16 %v3584
  %v3717 = vunpack.c.l.b16 %v3585
  %v3718 = vunpack.c.l.b16 %v3586
  %v3719 = vunpack.c.l.b16 %v3587
  %v3720 = vunpack.c.l.b16 %v3588
  %v3721 = vunpack.c.l.b16 %v3589
  %v3722 = vunpack.c.l.b16 %v3590
  %v3723 = vpack.c.b16 %v3660, %v3659
  %v3724 = vpack.c.b16 %v3662, %v3661
  %v3725 = vpack.c.b16 %v3664, %v3663
  %v3726 = vpack.c.b16 %v3666, %v3665
  %v3727 = vpack.c.b16 %v3668, %v3667
  %v3728 = vpack.c.b16 %v3670, %v3669
  %v3729 = vpack.c.b16 %v3672, %v3671
  %v3730 = vpack.c.b16 %v3674, %v3673
  %v3731 = vpack.c.b16 %v3676, %v3675
  %v3732 = vpack.c.b16 %v3678, %v3677
  %v3733 = vpack.c.b16 %v3680, %v3679
  %v3734 = vpack.c.b16 %v3682, %v3681
  %v3735 = vpack.c.b16 %v3684, %v3683
  %v3736 = vpack.c.b16 %v3686, %v3685
  %v3737 = vpack.c.b16 %v3688, %v3687
  %v3738 = vpack.c.b16 %v3690, %v3689
  %v3739 = vpack.c.b16 %v3692, %v3691
  %v3740 = vpack.c.b16 %v3694, %v3693
  %v3741 = vpack.c.b16 %v3696, %v3695
  %v3742 = vpack.c.b16 %v3698, %v3697
  %v3743 = vpack.c.b16 %v3700, %v3699
  %v3744 = vpack.c.b16 %v3702, %v3701
  %v3745 = vpack.c.b16 %v3704, %v3703
  %v3746 = vpack.c.b16 %v3706, %v3705
  %v3747 = vpack.c.b16 %v3708, %v3707
  %v3748 = vpack.c.b16 %v3710, %v3709
  %v3749 = vpack.c.b16 %v3712, %v3711
  %v3750 = vpack.c.b16 %v3714, %v3713
  %v3751 = vpack.c.b16 %v3716, %v3715
  %v3752 = vpack.c.b16 %v3718, %v3717
  %v3753 = vpack.c.b16 %v3720, %v3719
  %v3754 = vpack.c.b16 %v3722, %v3721
  %3787 = vmatpush.bf16.msra.mxu0 %v3730
  %3788 = vmatpush.bf16.msra.mxu0 %v3729
  %3789 = vmatpush.bf16.msra.mxu0 %v3728
  %3790 = vmatpush.bf16.msra.mxu0 %v3727
  %3791 = vmatpush.bf16.msra.mxu0 %v3726
  %3792 = vmatpush.bf16.msra.mxu0 %v3725
  %3793 = vmatpush.bf16.msra.mxu0 %v3724
  %3794 = vmatpush.bf16.msra.mxu0 %v3723
  %3795 = vmatmul.bf16.gmra.mxu0 %v3591
  %v3796 = vpop.f32.mrf.mxu0
  %v3797 = vadd.f32 0.0, %v3796
  %v3798 = vpop.f32.mrf.mxu0
  %v3799 = vadd.f32 0.0, %v3798
  %3800 = vdwg.mxu0
  %3801 = vmatpush.bf16.msra.mxu0 %v3738
  %3802 = vmatpush.bf16.msra.mxu0 %v3737
  %3803 = vmatpush.bf16.msra.mxu0 %v3736
  %3804 = vmatpush.bf16.msra.mxu0 %v3735
  %3805 = vmatpush.bf16.msra.mxu0 %v3734
  %3806 = vmatpush.bf16.msra.mxu0 %v3733
  %3807 = vmatpush.bf16.msra.mxu0 %v3732
  %3808 = vmatpush.bf16.msra.mxu0 %v3731
  %3809 = vmatmul.bf16.gmra.mxu0 %v3592
  %v3810 = vpop.f32.mrf.mxu0
  %v3811 = vadd.f32 %v3797, %v3810
  %v3812 = vpop.f32.mrf.mxu0
  %v3813 = vadd.f32 %v3799, %v3812
  %3814 = vdwg.mxu0
  %3815 = vmatpush.bf16.msra.mxu0 %v3746
  %3816 = vmatpush.bf16.msra.mxu0 %v3745
  %3817 = vmatpush.bf16.msra.mxu0 %v3744
  %3818 = vmatpush.bf16.msra.mxu0 %v3743
  %3819 = vmatpush.bf16.msra.mxu0 %v3742
  %3820 = vmatpush.bf16.msra.mxu0 %v3741
  %3821 = vmatpush.bf16.msra.mxu0 %v3740
  %3822 = vmatpush.bf16.msra.mxu0 %v3739
  %3823 = vmatmul.bf16.gmra.mxu0 %v3593
  %v3824 = vpop.f32.mrf.mxu0
  %v3825 = vadd.f32 %v3811, %v3824
  %v3826 = vpop.f32.mrf.mxu0
  %v3827 = vadd.f32 %v3813, %v3826
  %3828 = vdwg.mxu0
  %3829 = vmatpush.bf16.msra.mxu0 %v3754
  %3830 = vmatpush.bf16.msra.mxu0 %v3753
  %3831 = vmatpush.bf16.msra.mxu0 %v3752
  %3832 = vmatpush.bf16.msra.mxu0 %v3751
  %3833 = vmatpush.bf16.msra.mxu0 %v3750
  %3834 = vmatpush.bf16.msra.mxu0 %v3749
  %3835 = vmatpush.bf16.msra.mxu0 %v3748
  %3836 = vmatpush.bf16.msra.mxu0 %v3747
  %3837 = vmatmul.bf16.gmra.mxu0 %v3594
  %v3838 = vpop.f32.mrf.mxu0
  %v3839 = vadd.f32 %v3825, %v3838
  %v3840 = vpop.f32.mrf.mxu0
  %v3841 = vadd.f32 %v3827, %v3840
  %3842 = vdwg.mxu0
  %v3843 = vadd.f32 %v3402, %v3839
  %v3844 = vadd.f32 %v3403, %v3841
  %v3845 = vperm.slane %v2078, 0
  %v3846 = vadd.f32 %v3843, %v3845
  %v3847 = vadd.f32 %v3844, %v3845
  %v3848 = vadd.f32 %v2076, %v3846
  %v3849 = vadd.f32 %v2077, %v3847
  %v3850 = vld [vmem:[%s5 + $0xb] sm:$0x1]
  %v3851 = vld [vmem:[%s5 + $0xc] sm:$0x1]
  %v3852 = vsel %vm54, %v3848, 0.0
  %3853 = vadd.xlane.f32.xlu0 %v3852
  %v3854 = vpop.xlane.xlu0 %3853
  %v3855 = vsel %vm54, %v3849, 0.0
  %3856 = vadd.xlane.f32.xlu0 %v3855
  %v3857 = vpop.xlane.xlu0 %3856
  %v3858 = vmul.f32 %v3854, %v123
  %v3859 = vmul.f32 %v3857, %v123
  %v3860 = vsub.f32 %v3848, %v3858
  %v3861 = vsub.f32 %v3849, %v3859
  %v3862 = vmul.f32 %v3860, %v3860
  %v3863 = vmul.f32 %v3861, %v3861
  %v3864 = vsel %vm54, %v3862, 0.0
  %3865 = vadd.xlane.f32.xlu0 %v3864
  %v3866 = vpop.xlane.xlu0 %3865
  %v3867 = vsel %vm54, %v3863, 0.0
  %3868 = vadd.xlane.f32.xlu0 %v3867
  %v3869 = vpop.xlane.xlu0 %3868
  %v3870 = vmul.f32 %v3866, %v123
  %v3871 = vmul.f32 %v3869, %v123
  %v3872 = vadd.f32 %v3870, 1e-05
  %v3873 = vadd.f32 %v3871, 1e-05
  %v3874 = vrsqrt.pop %v3872
  %v3875 = vmul.f32 %v3874, %v3872
  %v3876 = vmul.f32 %v3875, %v3874
  %v3877 = vmul.f32 0.5, %v3876
  %v3878 = vsub.f32 1.5, %v3877
  %v3879 = vmul.f32 %v3874, %v3878
  %vm3880 = vweird.f32 %v3872
  %vm3881 = vweird.f32 %v3874
  %vm3882 = vmor %vm3880, %vm3881
  %v3883 = vsel %vm3882, %v3874, %v3879
  %v3884 = vrsqrt.pop %v3873
  %v3885 = vmul.f32 %v3884, %v3873
  %v3886 = vmul.f32 %v3885, %v3884
  %v3887 = vmul.f32 0.5, %v3886
  %v3888 = vsub.f32 1.5, %v3887
  %v3889 = vmul.f32 %v3884, %v3888
  %vm3890 = vweird.f32 %v3873
  %vm3891 = vweird.f32 %v3884
  %vm3892 = vmor %vm3890, %vm3891
  %v3893 = vsel %vm3892, %v3884, %v3889
  %v3894 = vmul.f32 %v3860, %v3883
  %v3895 = vmul.f32 %v3861, %v3893
  %v3896 = vperm.slane %v3850, 0
  %v3897 = vmul.f32 %v3894, %v3896
  %v3898 = vmul.f32 %v3895, %v3896
  %v3899 = vperm.slane %v3851, 0
  %v3900 = vadd.f32 %v3897, %v3899
  %v3901 = vadd.f32 %v3898, %v3899
  %v3902 = vpack.c.bf16 %v3901, %v3900
  %v3903 = vld [vmem:[%s2] sm:$0xf]
  %v3904 = vld [vmem:[%s2 + $0x4] sm:$0xf]
  %v3905 = vld [vmem:[%s2 + $0x8] sm:$0xf]
  %v3906 = vld [vmem:[%s2 + $0xc] sm:$0xf]
  %v3911 = vunpack.c.l.b16 %v3903
  %v3912 = vunpack.c.l.b16 %v3904
  %v3913 = vunpack.c.l.b16 %v3905
  %v3914 = vunpack.c.l.b16 %v3906
  %v3915 = vpack.c.b16 %v3912, %v3911
  %v3916 = vpack.c.b16 %v3914, %v3913
  %v3920 = vsel %vm54, %v3902, 0
  %3922 = vmatpush.bf16.msra.mxu0 0
  %3923 = vmatpush.bf16.msra.mxu0 0
  %3924 = vmatpush.bf16.msra.mxu0 0
  %3925 = vmatpush.bf16.msra.mxu0 0
  %3926 = vmatpush.bf16.msra.mxu0 0
  %3927 = vmatpush.bf16.msra.mxu0 0
  %3928 = vmatpush.bf16.msra.mxu0 %v3916
  %3929 = vmatpush.bf16.msra.mxu0 %v3915
  %3930 = vmatmul.bf16.gmra.mxu0 %v3920
  %v3931 = vpop.f32.mrf.mxu0
  %v3932 = vadd.f32 0.0, %v3931
  %v3933 = vpop.f32.mrf.mxu0
  %v3934 = vadd.f32 0.0, %v3933
  %3935 = vdwg.mxu0
  %s3936 = scalar_lea.vmem %s1, 48
  %v3937 = vld [vmem:[%s3936] sm:$0xf]
  %v3938 = vld [vmem:[%s3936 + $0x4] sm:$0xf]
  %v3939 = vld [vmem:[%s3936 + $0x8] sm:$0xf]
  %v3940 = vld [vmem:[%s3936 + $0xc] sm:$0xf]
  %v3941 = vld [vmem:[%s5 + $0xd] sm:$0x1]
  %v3942 = vperm.slane %v3941, 0
  %v3947 = vunpack.c.l.b16 %v3937
  %v3948 = vunpack.c.l.b16 %v3938
  %v3949 = vunpack.c.l.b16 %v3939
  %v3950 = vunpack.c.l.b16 %v3940
  %v3951 = vpack.c.b16 %v3948, %v3947
  %v3952 = vpack.c.b16 %v3950, %v3949
  %3955 = vmatpush.bf16.msra.mxu0 0
  %3956 = vmatpush.bf16.msra.mxu0 0
  %3957 = vmatpush.bf16.msra.mxu0 0
  %3958 = vmatpush.bf16.msra.mxu0 0
  %3959 = vmatpush.bf16.msra.mxu0 0
  %3960 = vmatpush.bf16.msra.mxu0 0
  %3961 = vmatpush.bf16.msra.mxu0 %v3952
  %3962 = vmatpush.bf16.msra.mxu0 %v3951
  %3963 = vmatmul.bf16.gmra.mxu0 %v93
  %v3964 = vpop.f32.mrf.mxu0
  %v3965 = vadd.f32 %v3942, %v3964
  %v3966 = vpop.f32.mrf.mxu0
  %v3967 = vadd.f32 %v3942, %v3966
  %3968 = vdwg.mxu0
  %v3969 = vld [vmem:[%s5 + $0x10] sm:$0x1]
  %v3970 = vld [vmem:[%s5 + $0x11] sm:$0x1]
  %v3971 = vsel %vm54, %v3965, 0.0
  %3972 = vadd.xlane.f32.xlu0 %v3971
  %v3973 = vpop.xlane.xlu0 %3972
  %v3974 = vsel %vm54, %v3967, 0.0
  %3975 = vadd.xlane.f32.xlu0 %v3974
  %v3976 = vpop.xlane.xlu0 %3975
  %v3977 = vmul.f32 %v3973, %v123
  %v3978 = vmul.f32 %v3976, %v123
  %v3979 = vsub.f32 %v3965, %v3977
  %v3980 = vsub.f32 %v3967, %v3978
  %v3981 = vmul.f32 %v3979, %v3979
  %v3982 = vmul.f32 %v3980, %v3980
  %v3983 = vsel %vm54, %v3981, 0.0
  %3984 = vadd.xlane.f32.xlu0 %v3983
  %v3985 = vpop.xlane.xlu0 %3984
  %v3986 = vsel %vm54, %v3982, 0.0
  %3987 = vadd.xlane.f32.xlu0 %v3986
  %v3988 = vpop.xlane.xlu0 %3987
  %v3989 = vmul.f32 %v3985, %v123
  %v3990 = vmul.f32 %v3988, %v123
  %v3991 = vadd.f32 %v3989, 1e-05
  %v3992 = vadd.f32 %v3990, 1e-05
  %v3993 = vrsqrt.pop %v3991
  %v3994 = vmul.f32 %v3993, %v3991
  %v3995 = vmul.f32 %v3994, %v3993
  %v3996 = vmul.f32 0.5, %v3995
  %v3997 = vsub.f32 1.5, %v3996
  %v3998 = vmul.f32 %v3993, %v3997
  %vm3999 = vweird.f32 %v3991
  %vm4000 = vweird.f32 %v3993
  %vm4001 = vmor %vm3999, %vm4000
  %v4002 = vsel %vm4001, %v3993, %v3998
  %v4003 = vrsqrt.pop %v3992
  %v4004 = vmul.f32 %v4003, %v3992
  %v4005 = vmul.f32 %v4004, %v4003
  %v4006 = vmul.f32 0.5, %v4005
  %v4007 = vsub.f32 1.5, %v4006
  %v4008 = vmul.f32 %v4003, %v4007
  %vm4009 = vweird.f32 %v3992
  %vm4010 = vweird.f32 %v4003
  %vm4011 = vmor %vm4009, %vm4010
  %v4012 = vsel %vm4011, %v4003, %v4008
  %v4013 = vmul.f32 %v3979, %v4002
  %v4014 = vmul.f32 %v3980, %v4012
  %v4015 = vperm.slane %v3969, 0
  %v4016 = vmul.f32 %v4013, %v4015
  %v4017 = vmul.f32 %v4014, %v4015
  %v4018 = vperm.slane %v3970, 0
  %v4019 = vadd.f32 %v4016, %v4018
  %v4020 = vadd.f32 %v4017, %v4018
  %v4021 = vld [vmem:[%s5 + $0xe] sm:$0x1]
  %v4022 = vperm.slane %v4021, 0
  %v4023 = vadd.f32 %v3932, %v4022
  %v4024 = vadd.f32 %v3934, %v4022
  %v4025 = vadd.f32 %v4019, %v4023
  %v4026 = vadd.f32 %v4020, %v4024
  %v4027 = vld [vmem:[%s5 + $0x12] sm:$0x1]
  %v4028 = vld [vmem:[%s5 + $0x13] sm:$0x1]
  %v4029 = vsel %vm54, %v4025, 0.0
  %4030 = vadd.xlane.f32.xlu0 %v4029
  %v4031 = vpop.xlane.xlu0 %4030
  %v4032 = vsel %vm54, %v4026, 0.0
  %4033 = vadd.xlane.f32.xlu0 %v4032
  %v4034 = vpop.xlane.xlu0 %4033
  %v4035 = vmul.f32 %v4031, %v123
  %v4036 = vmul.f32 %v4034, %v123
  %v4037 = vsub.f32 %v4025, %v4035
  %v4038 = vsub.f32 %v4026, %v4036
  %v4039 = vmul.f32 %v4037, %v4037
  %v4040 = vmul.f32 %v4038, %v4038
  %v4041 = vsel %vm54, %v4039, 0.0
  %4042 = vadd.xlane.f32.xlu0 %v4041
  %v4043 = vpop.xlane.xlu0 %4042
  %v4044 = vsel %vm54, %v4040, 0.0
  %4045 = vadd.xlane.f32.xlu0 %v4044
  %v4046 = vpop.xlane.xlu0 %4045
  %v4047 = vmul.f32 %v4043, %v123
  %v4048 = vmul.f32 %v4046, %v123
  %v4049 = vadd.f32 %v4047, 1e-05
  %v4050 = vadd.f32 %v4048, 1e-05
  %v4051 = vrsqrt.pop %v4049
  %v4052 = vmul.f32 %v4051, %v4049
  %v4053 = vmul.f32 %v4052, %v4051
  %v4054 = vmul.f32 0.5, %v4053
  %v4055 = vsub.f32 1.5, %v4054
  %v4056 = vmul.f32 %v4051, %v4055
  %vm4057 = vweird.f32 %v4049
  %vm4058 = vweird.f32 %v4051
  %vm4059 = vmor %vm4057, %vm4058
  %v4060 = vsel %vm4059, %v4051, %v4056
  %v4061 = vrsqrt.pop %v4050
  %v4062 = vmul.f32 %v4061, %v4050
  %v4063 = vmul.f32 %v4062, %v4061
  %v4064 = vmul.f32 0.5, %v4063
  %v4065 = vsub.f32 1.5, %v4064
  %v4066 = vmul.f32 %v4061, %v4065
  %vm4067 = vweird.f32 %v4050
  %vm4068 = vweird.f32 %v4061
  %vm4069 = vmor %vm4067, %vm4068
  %v4070 = vsel %vm4069, %v4061, %v4066
  %v4071 = vmul.f32 %v4037, %v4060
  %v4072 = vmul.f32 %v4038, %v4070
  %v4073 = vperm.slane %v4027, 0
  %v4074 = vmul.f32 %v4071, %v4073
  %v4075 = vmul.f32 %v4072, %v4073
  %v4076 = vperm.slane %v4028, 0
  %v4077 = vadd.f32 %v4074, %v4076
  %v4078 = vadd.f32 %v4075, %v4076
  %v4079 = vld [vmem:[%s5 + $0xf] sm:$0x1]
  %v4080 = vpack.c.bf16 %v4078, %v4077
  %s4081 = scalar_lea.vmem %s3, 512
  %v4082 = vld [vmem:[%s4081] sm:$0xff]
  %v4083 = vld [vmem:[%s4081 + $0x8] sm:$0xff]
  %v4084 = vld [vmem:[%s4081 + $0x40] sm:$0xff]
  %v4085 = vld [vmem:[%s4081 + $0x48] sm:$0xff]
  %v4086 = vld [vmem:[%s4081 + $0x80] sm:$0xff]
  %v4087 = vld [vmem:[%s4081 + $0x88] sm:$0xff]
  %v4088 = vld [vmem:[%s4081 + $0xc0] sm:$0xff]
  %v4089 = vld [vmem:[%s4081 + $0xc8] sm:$0xff]
  %s4090 = scalar_lea.vmem %s6, 2
  %v4091 = vld [vmem:[%s4090] ss:$4 sm:$0xf]
  %v4093 = vperm.slane %v4091, 0
  %v4094 = vperm.slane %v4091, 1
  %v4095 = vperm.slane %v4091, 2
  %v4096 = vperm.slane %v4091, 3
  %v4109 = vunpack.c.l.b16 %v4082
  %v4110 = vunpack.c.h.b16 %v4082
  %v4111 = vunpack.c.l.b16 %v4083
  %v4112 = vunpack.c.h.b16 %v4083
  %v4113 = vunpack.c.l.b16 %v4084
  %v4114 = vunpack.c.h.b16 %v4084
  %v4115 = vunpack.c.l.b16 %v4085
  %v4116 = vunpack.c.h.b16 %v4085
  %v4117 = vunpack.c.l.b16 %v4086
  %v4118 = vunpack.c.h.b16 %v4086
  %v4119 = vunpack.c.l.b16 %v4087
  %v4120 = vunpack.c.h.b16 %v4087
  %v4121 = vunpack.c.l.b16 %v4088
  %v4122 = vunpack.c.h.b16 %v4088
  %v4123 = vunpack.c.l.b16 %v4089
  %v4124 = vunpack.c.h.b16 %v4089
  %v4125 = vpack.c.b16 %v4113, %v4109
  %v4126 = vpack.c.b16 %v4114, %v4110
  %v4127 = vpack.c.b16 %v4115, %v4111
  %v4128 = vpack.c.b16 %v4116, %v4112
  %v4129 = vpack.c.b16 %v4121, %v4117
  %v4130 = vpack.c.b16 %v4122, %v4118
  %v4131 = vpack.c.b16 %v4123, %v4119
  %v4132 = vpack.c.b16 %v4124, %v4120
  %v4142 = vsel %vm54, %v4080, 0
  %4144 = vmatpush.bf16.msra.mxu0 0
  %4145 = vmatpush.bf16.msra.mxu0 0
  %4146 = vmatpush.bf16.msra.mxu0 0
  %4147 = vmatpush.bf16.msra.mxu0 0
  %4148 = vmatpush.bf16.msra.mxu0 0
  %4149 = vmatpush.bf16.msra.mxu0 0
  %4150 = vmatpush.bf16.msra.mxu0 %v4129
  %4151 = vmatpush.bf16.msra.mxu0 %v4125
  %4152 = vmatmul.bf16.gmra.mxu0 %v4142
  %v4153 = vpop.f32.mrf.mxu0
  %v4154 = vadd.f32 %v4093, %v4153
  %v4155 = vpop.f32.mrf.mxu0
  %v4156 = vadd.f32 %v4093, %v4155
  %4157 = vdwg.mxu0
  %4158 = vmatpush.bf16.msra.mxu0 0
  %4159 = vmatpush.bf16.msra.mxu0 0
  %4160 = vmatpush.bf16.msra.mxu0 0
  %4161 = vmatpush.bf16.msra.mxu0 0
  %4162 = vmatpush.bf16.msra.mxu0 0
  %4163 = vmatpush.bf16.msra.mxu0 0
  %4164 = vmatpush.bf16.msra.mxu0 %v4130
  %4165 = vmatpush.bf16.msra.mxu0 %v4126
  %4166 = vmatmul.bf16.gmra.mxu0 %v4142
  %v4167 = vpop.f32.mrf.mxu0
  %v4168 = vadd.f32 %v4094, %v4167
  %v4169 = vpop.f32.mrf.mxu0
  %v4170 = vadd.f32 %v4094, %v4169
  %4171 = vdwg.mxu0
  %4172 = vmatpush.bf16.msra.mxu0 0
  %4173 = vmatpush.bf16.msra.mxu0 0
  %4174 = vmatpush.bf16.msra.mxu0 0
  %4175 = vmatpush.bf16.msra.mxu0 0
  %4176 = vmatpush.bf16.msra.mxu0 0
  %4177 = vmatpush.bf16.msra.mxu0 0
  %4178 = vmatpush.bf16.msra.mxu0 %v4131
  %4179 = vmatpush.bf16.msra.mxu0 %v4127
  %4180 = vmatmul.bf16.gmra.mxu0 %v4142
  %v4181 = vpop.f32.mrf.mxu0
  %v4182 = vadd.f32 %v4095, %v4181
  %v4183 = vpop.f32.mrf.mxu0
  %v4184 = vadd.f32 %v4095, %v4183
  %4185 = vdwg.mxu0
  %4186 = vmatpush.bf16.msra.mxu0 0
  %4187 = vmatpush.bf16.msra.mxu0 0
  %4188 = vmatpush.bf16.msra.mxu0 0
  %4189 = vmatpush.bf16.msra.mxu0 0
  %4190 = vmatpush.bf16.msra.mxu0 0
  %4191 = vmatpush.bf16.msra.mxu0 0
  %4192 = vmatpush.bf16.msra.mxu0 %v4132
  %4193 = vmatpush.bf16.msra.mxu0 %v4128
  %4194 = vmatmul.bf16.gmra.mxu0 %v4142
  %v4195 = vpop.f32.mrf.mxu0
  %v4196 = vadd.f32 %v4096, %v4195
  %v4197 = vpop.f32.mrf.mxu0
  %v4198 = vadd.f32 %v4096, %v4197
  %4199 = vdwg.mxu0
  %v4200 = vmax.f32 %v4154, 0.0
  %v4201 = vmax.f32 %v4168, 0.0
  %v4202 = vmax.f32 %v4182, 0.0
  %v4203 = vmax.f32 %v4196, 0.0
  %v4204 = vmax.f32 %v4156, 0.0
  %v4205 = vmax.f32 %v4170, 0.0
  %v4206 = vmax.f32 %v4184, 0.0
  %v4207 = vmax.f32 %v4198, 0.0
  %s4208 = scalar_lea.vmem %s4, 2048
  %v4209 = vld [vmem:[%s4208] sm:$0xf]
  %v4210 = vld [vmem:[%s4208 + $0x4] sm:$0xf]
  %v4211 = vld [vmem:[%s4208 + $0x8] sm:$0xf]
  %v4212 = vld [vmem:[%s4208 + $0xc] sm:$0xf]
  %v4213 = vld [vmem:[%s4208 + $0x10] sm:$0xf]
  %v4214 = vld [vmem:[%s4208 + $0x14] sm:$0xf]
  %v4215 = vld [vmem:[%s4208 + $0x18] sm:$0xf]
  %v4216 = vld [vmem:[%s4208 + $0x1c] sm:$0xf]
  %v4217 = vld [vmem:[%s4208 + $0x20] sm:$0xf]
  %v4218 = vld [vmem:[%s4208 + $0x24] sm:$0xf]
  %v4219 = vld [vmem:[%s4208 + $0x28] sm:$0xf]
  %v4220 = vld [vmem:[%s4208 + $0x2c] sm:$0xf]
  %v4221 = vld [vmem:[%s4208 + $0x30] sm:$0xf]
  %v4222 = vld [vmem:[%s4208 + $0x34] sm:$0xf]
  %v4223 = vld [vmem:[%s4208 + $0x38] sm:$0xf]
  %v4224 = vld [vmem:[%s4208 + $0x3c] sm:$0xf]
  %v4225 = vld [vmem:[%s4208 + $0x40] sm:$0xf]
  %v4226 = vld [vmem:[%s4208 + $0x44] sm:$0xf]
  %v4227 = vld [vmem:[%s4208 + $0x48] sm:$0xf]
  %v4228 = vld [vmem:[%s4208 + $0x4c] sm:$0xf]
  %v4229 = vld [vmem:[%s4208 + $0x50] sm:$0xf]
  %v4230 = vld [vmem:[%s4208 + $0x54] sm:$0xf]
  %v4231 = vld [vmem:[%s4208 + $0x58] sm:$0xf]
  %v4232 = vld [vmem:[%s4208 + $0x5c] sm:$0xf]
  %v4233 = vld [vmem:[%s4208 + $0x60] sm:$0xf]
  %v4234 = vld [vmem:[%s4208 + $0x64] sm:$0xf]
  %v4235 = vld [vmem:[%s4208 + $0x68] sm:$0xf]
  %v4236 = vld [vmem:[%s4208 + $0x6c] sm:$0xf]
  %v4237 = vld [vmem:[%s4208 + $0x70] sm:$0xf]
  %v4238 = vld [vmem:[%s4208 + $0x74] sm:$0xf]
  %v4239 = vld [vmem:[%s4208 + $0x78] sm:$0xf]
  %v4240 = vld [vmem:[%s4208 + $0x7c] sm:$0xf]
  %v4241 = vld [vmem:[%s4208 + $0x80] sm:$0xf]
  %v4242 = vld [vmem:[%s4208 + $0x84] sm:$0xf]
  %v4243 = vld [vmem:[%s4208 + $0x88] sm:$0xf]
  %v4244 = vld [vmem:[%s4208 + $0x8c] sm:$0xf]
  %v4245 = vld [vmem:[%s4208 + $0x90] sm:$0xf]
  %v4246 = vld [vmem:[%s4208 + $0x94] sm:$0xf]
  %v4247 = vld [vmem:[%s4208 + $0x98] sm:$0xf]
  %v4248 = vld [vmem:[%s4208 + $0x9c] sm:$0xf]
  %v4249 = vld [vmem:[%s4208 + $0xa0] sm:$0xf]
  %v4250 = vld [vmem:[%s4208 + $0xa4] sm:$0xf]
  %v4251 = vld [vmem:[%s4208 + $0xa8] sm:$0xf]
  %v4252 = vld [vmem:[%s4208 + $0xac] sm:$0xf]
  %v4253 = vld [vmem:[%s4208 + $0xb0] sm:$0xf]
  %v4254 = vld [vmem:[%s4208 + $0xb4] sm:$0xf]
  %v4255 = vld [vmem:[%s4208 + $0xb8] sm:$0xf]
  %v4256 = vld [vmem:[%s4208 + $0xbc] sm:$0xf]
  %v4257 = vld [vmem:[%s4208 + $0xc0] sm:$0xf]
  %v4258 = vld [vmem:[%s4208 + $0xc4] sm:$0xf]
  %v4259 = vld [vmem:[%s4208 + $0xc8] sm:$0xf]
  %v4260 = vld [vmem:[%s4208 + $0xcc] sm:$0xf]
  %v4261 = vld [vmem:[%s4208 + $0xd0] sm:$0xf]
  %v4262 = vld [vmem:[%s4208 + $0xd4] sm:$0xf]
  %v4263 = vld [vmem:[%s4208 + $0xd8] sm:$0xf]
  %v4264 = vld [vmem:[%s4208 + $0xdc] sm:$0xf]
  %v4265 = vld [vmem:[%s4208 + $0xe0] sm:$0xf]
  %v4266 = vld [vmem:[%s4208 + $0xe4] sm:$0xf]
  %v4267 = vld [vmem:[%s4208 + $0xe8] sm:$0xf]
  %v4268 = vld [vmem:[%s4208 + $0xec] sm:$0xf]
  %v4269 = vld [vmem:[%s4208 + $0xf0] sm:$0xf]
  %v4270 = vld [vmem:[%s4208 + $0xf4] sm:$0xf]
  %v4271 = vld [vmem:[%s4208 + $0xf8] sm:$0xf]
  %v4272 = vld [vmem:[%s4208 + $0xfc] sm:$0xf]
  %v4273 = vpack.c.bf16 %v4204, %v4200
  %v4274 = vpack.c.bf16 %v4205, %v4201
  %v4275 = vpack.c.bf16 %v4206, %v4202
  %v4276 = vpack.c.bf16 %v4207, %v4203
  %v4277 = vld [vmem:[%s4081 + $0x10] sm:$0xff]
  %v4278 = vld [vmem:[%s4081 + $0x18] sm:$0xff]
  %v4279 = vld [vmem:[%s4081 + $0x50] sm:$0xff]
  %v4280 = vld [vmem:[%s4081 + $0x58] sm:$0xff]
  %v4281 = vld [vmem:[%s4081 + $0x90] sm:$0xff]
  %v4282 = vld [vmem:[%s4081 + $0x98] sm:$0xff]
  %v4283 = vld [vmem:[%s4081 + $0xd0] sm:$0xff]
  %v4284 = vld [vmem:[%s4081 + $0xd8] sm:$0xff]
  %s4285 = scalar_lea.vmem %s6, 18
  %v4286 = vld [vmem:[%s4285] ss:$4 sm:$0xf]
  %v4288 = vperm.slane %v4286, 0
  %v4289 = vperm.slane %v4286, 1
  %v4290 = vperm.slane %v4286, 2
  %v4291 = vperm.slane %v4286, 3
  %v4304 = vunpack.c.l.b16 %v4277
  %v4305 = vunpack.c.h.b16 %v4277
  %v4306 = vunpack.c.l.b16 %v4278
  %v4307 = vunpack.c.h.b16 %v4278
  %v4308 = vunpack.c.l.b16 %v4279
  %v4309 = vunpack.c.h.b16 %v4279
  %v4310 = vunpack.c.l.b16 %v4280
  %v4311 = vunpack.c.h.b16 %v4280
  %v4312 = vunpack.c.l.b16 %v4281
  %v4313 = vunpack.c.h.b16 %v4281
  %v4314 = vunpack.c.l.b16 %v4282
  %v4315 = vunpack.c.h.b16 %v4282
  %v4316 = vunpack.c.l.b16 %v4283
  %v4317 = vunpack.c.h.b16 %v4283
  %v4318 = vunpack.c.l.b16 %v4284
  %v4319 = vunpack.c.h.b16 %v4284
  %v4320 = vpack.c.b16 %v4308, %v4304
  %v4321 = vpack.c.b16 %v4309, %v4305
  %v4322 = vpack.c.b16 %v4310, %v4306
  %v4323 = vpack.c.b16 %v4311, %v4307
  %v4324 = vpack.c.b16 %v4316, %v4312
  %v4325 = vpack.c.b16 %v4317, %v4313
  %v4326 = vpack.c.b16 %v4318, %v4314
  %v4327 = vpack.c.b16 %v4319, %v4315
  %4336 = vmatpush.bf16.msra.mxu0 0
  %4337 = vmatpush.bf16.msra.mxu0 0
  %4338 = vmatpush.bf16.msra.mxu0 0
  %4339 = vmatpush.bf16.msra.mxu0 0
  %4340 = vmatpush.bf16.msra.mxu0 0
  %4341 = vmatpush.bf16.msra.mxu0 0
  %4342 = vmatpush.bf16.msra.mxu0 %v4324
  %4343 = vmatpush.bf16.msra.mxu0 %v4320
  %4344 = vmatmul.bf16.gmra.mxu0 %v4142
  %v4345 = vpop.f32.mrf.mxu0
  %v4346 = vadd.f32 %v4288, %v4345
  %v4347 = vpop.f32.mrf.mxu0
  %v4348 = vadd.f32 %v4288, %v4347
  %4349 = vdwg.mxu0
  %4350 = vmatpush.bf16.msra.mxu0 0
  %4351 = vmatpush.bf16.msra.mxu0 0
  %4352 = vmatpush.bf16.msra.mxu0 0
  %4353 = vmatpush.bf16.msra.mxu0 0
  %4354 = vmatpush.bf16.msra.mxu0 0
  %4355 = vmatpush.bf16.msra.mxu0 0
  %4356 = vmatpush.bf16.msra.mxu0 %v4325
  %4357 = vmatpush.bf16.msra.mxu0 %v4321
  %4358 = vmatmul.bf16.gmra.mxu0 %v4142
  %v4359 = vpop.f32.mrf.mxu0
  %v4360 = vadd.f32 %v4289, %v4359
  %v4361 = vpop.f32.mrf.mxu0
  %v4362 = vadd.f32 %v4289, %v4361
  %4363 = vdwg.mxu0
  %4364 = vmatpush.bf16.msra.mxu0 0
  %4365 = vmatpush.bf16.msra.mxu0 0
  %4366 = vmatpush.bf16.msra.mxu0 0
  %4367 = vmatpush.bf16.msra.mxu0 0
  %4368 = vmatpush.bf16.msra.mxu0 0
  %4369 = vmatpush.bf16.msra.mxu0 0
  %4370 = vmatpush.bf16.msra.mxu0 %v4326
  %4371 = vmatpush.bf16.msra.mxu0 %v4322
  %4372 = vmatmul.bf16.gmra.mxu0 %v4142
  %v4373 = vpop.f32.mrf.mxu0
  %v4374 = vadd.f32 %v4290, %v4373
  %v4375 = vpop.f32.mrf.mxu0
  %v4376 = vadd.f32 %v4290, %v4375
  %4377 = vdwg.mxu0
  %4378 = vmatpush.bf16.msra.mxu0 0
  %4379 = vmatpush.bf16.msra.mxu0 0
  %4380 = vmatpush.bf16.msra.mxu0 0
  %4381 = vmatpush.bf16.msra.mxu0 0
  %4382 = vmatpush.bf16.msra.mxu0 0
  %4383 = vmatpush.bf16.msra.mxu0 0
  %4384 = vmatpush.bf16.msra.mxu0 %v4327
  %4385 = vmatpush.bf16.msra.mxu0 %v4323
  %4386 = vmatmul.bf16.gmra.mxu0 %v4142
  %v4387 = vpop.f32.mrf.mxu0
  %v4388 = vadd.f32 %v4291, %v4387
  %v4389 = vpop.f32.mrf.mxu0
  %v4390 = vadd.f32 %v4291, %v4389
  %4391 = vdwg.mxu0
  %v4392 = vmax.f32 %v4346, 0.0
  %v4393 = vmax.f32 %v4360, 0.0
  %v4394 = vmax.f32 %v4374, 0.0
  %v4395 = vmax.f32 %v4388, 0.0
  %v4396 = vmax.f32 %v4348, 0.0
  %v4397 = vmax.f32 %v4362, 0.0
  %v4398 = vmax.f32 %v4376, 0.0
  %v4399 = vmax.f32 %v4390, 0.0
  %v4400 = vld [vmem:[%s4208 + $0x100] sm:$0xf]
  %v4401 = vld [vmem:[%s4208 + $0x104] sm:$0xf]
  %v4402 = vld [vmem:[%s4208 + $0x108] sm:$0xf]
  %v4403 = vld [vmem:[%s4208 + $0x10c] sm:$0xf]
  %v4404 = vld [vmem:[%s4208 + $0x110] sm:$0xf]
  %v4405 = vld [vmem:[%s4208 + $0x114] sm:$0xf]
  %v4406 = vld [vmem:[%s4208 + $0x118] sm:$0xf]
  %v4407 = vld [vmem:[%s4208 + $0x11c] sm:$0xf]
  %v4408 = vld [vmem:[%s4208 + $0x120] sm:$0xf]
  %v4409 = vld [vmem:[%s4208 + $0x124] sm:$0xf]
  %v4410 = vld [vmem:[%s4208 + $0x128] sm:$0xf]
  %v4411 = vld [vmem:[%s4208 + $0x12c] sm:$0xf]
  %v4412 = vld [vmem:[%s4208 + $0x130] sm:$0xf]
  %v4413 = vld [vmem:[%s4208 + $0x134] sm:$0xf]
  %v4414 = vld [vmem:[%s4208 + $0x138] sm:$0xf]
  %v4415 = vld [vmem:[%s4208 + $0x13c] sm:$0xf]
  %v4416 = vld [vmem:[%s4208 + $0x140] sm:$0xf]
  %v4417 = vld [vmem:[%s4208 + $0x144] sm:$0xf]
  %v4418 = vld [vmem:[%s4208 + $0x148] sm:$0xf]
  %v4419 = vld [vmem:[%s4208 + $0x14c] sm:$0xf]
  %v4420 = vld [vmem:[%s4208 + $0x150] sm:$0xf]
  %v4421 = vld [vmem:[%s4208 + $0x154] sm:$0xf]
  %v4422 = vld [vmem:[%s4208 + $0x158] sm:$0xf]
  %v4423 = vld [vmem:[%s4208 + $0x15c] sm:$0xf]
  %v4424 = vld [vmem:[%s4208 + $0x160] sm:$0xf]
  %v4425 = vld [vmem:[%s4208 + $0x164] sm:$0xf]
  %v4426 = vld [vmem:[%s4208 + $0x168] sm:$0xf]
  %v4427 = vld [vmem:[%s4208 + $0x16c] sm:$0xf]
  %v4428 = vld [vmem:[%s4208 + $0x170] sm:$0xf]
  %v4429 = vld [vmem:[%s4208 + $0x174] sm:$0xf]
  %v4430 = vld [vmem:[%s4208 + $0x178] sm:$0xf]
  %v4431 = vld [vmem:[%s4208 + $0x17c] sm:$0xf]
  %v4432 = vld [vmem:[%s4208 + $0x180] sm:$0xf]
  %v4433 = vld [vmem:[%s4208 + $0x184] sm:$0xf]
  %v4434 = vld [vmem:[%s4208 + $0x188] sm:$0xf]
  %v4435 = vld [vmem:[%s4208 + $0x18c] sm:$0xf]
  %v4436 = vld [vmem:[%s4208 + $0x190] sm:$0xf]
  %v4437 = vld [vmem:[%s4208 + $0x194] sm:$0xf]
  %v4438 = vld [vmem:[%s4208 + $0x198] sm:$0xf]
  %v4439 = vld [vmem:[%s4208 + $0x19c] sm:$0xf]
  %v4440 = vld [vmem:[%s4208 + $0x1a0] sm:$0xf]
  %v4441 = vld [vmem:[%s4208 + $0x1a4] sm:$0xf]
  %v4442 = vld [vmem:[%s4208 + $0x1a8] sm:$0xf]
  %v4443 = vld [vmem:[%s4208 + $0x1ac] sm:$0xf]
  %v4444 = vld [vmem:[%s4208 + $0x1b0] sm:$0xf]
  %v4445 = vld [vmem:[%s4208 + $0x1b4] sm:$0xf]
  %v4446 = vld [vmem:[%s4208 + $0x1b8] sm:$0xf]
  %v4447 = vld [vmem:[%s4208 + $0x1bc] sm:$0xf]
  %v4448 = vld [vmem:[%s4208 + $0x1c0] sm:$0xf]
  %v4449 = vld [vmem:[%s4208 + $0x1c4] sm:$0xf]
  %v4450 = vld [vmem:[%s4208 + $0x1c8] sm:$0xf]
  %v4451 = vld [vmem:[%s4208 + $0x1cc] sm:$0xf]
  %v4452 = vld [vmem:[%s4208 + $0x1d0] sm:$0xf]
  %v4453 = vld [vmem:[%s4208 + $0x1d4] sm:$0xf]
  %v4454 = vld [vmem:[%s4208 + $0x1d8] sm:$0xf]
  %v4455 = vld [vmem:[%s4208 + $0x1dc] sm:$0xf]
  %v4456 = vld [vmem:[%s4208 + $0x1e0] sm:$0xf]
  %v4457 = vld [vmem:[%s4208 + $0x1e4] sm:$0xf]
  %v4458 = vld [vmem:[%s4208 + $0x1e8] sm:$0xf]
  %v4459 = vld [vmem:[%s4208 + $0x1ec] sm:$0xf]
  %v4460 = vld [vmem:[%s4208 + $0x1f0] sm:$0xf]
  %v4461 = vld [vmem:[%s4208 + $0x1f4] sm:$0xf]
  %v4462 = vld [vmem:[%s4208 + $0x1f8] sm:$0xf]
  %v4463 = vld [vmem:[%s4208 + $0x1fc] sm:$0xf]
  %v4464 = vpack.c.bf16 %v4396, %v4392
  %v4465 = vpack.c.bf16 %v4397, %v4393
  %v4466 = vpack.c.bf16 %v4398, %v4394
  %v4467 = vpack.c.bf16 %v4399, %v4395
  %v4532 = vunpack.c.l.b16 %v4400
  %v4533 = vunpack.c.l.b16 %v4401
  %v4534 = vunpack.c.l.b16 %v4402
  %v4535 = vunpack.c.l.b16 %v4403
  %v4536 = vunpack.c.l.b16 %v4404
  %v4537 = vunpack.c.l.b16 %v4405
  %v4538 = vunpack.c.l.b16 %v4406
  %v4539 = vunpack.c.l.b16 %v4407
  %v4540 = vunpack.c.l.b16 %v4408
  %v4541 = vunpack.c.l.b16 %v4409
  %v4542 = vunpack.c.l.b16 %v4410
  %v4543 = vunpack.c.l.b16 %v4411
  %v4544 = vunpack.c.l.b16 %v4412
  %v4545 = vunpack.c.l.b16 %v4413
  %v4546 = vunpack.c.l.b16 %v4414
  %v4547 = vunpack.c.l.b16 %v4415
  %v4548 = vunpack.c.l.b16 %v4416
  %v4549 = vunpack.c.l.b16 %v4417
  %v4550 = vunpack.c.l.b16 %v4418
  %v4551 = vunpack.c.l.b16 %v4419
  %v4552 = vunpack.c.l.b16 %v4420
  %v4553 = vunpack.c.l.b16 %v4421
  %v4554 = vunpack.c.l.b16 %v4422
  %v4555 = vunpack.c.l.b16 %v4423
  %v4556 = vunpack.c.l.b16 %v4424
  %v4557 = vunpack.c.l.b16 %v4425
  %v4558 = vunpack.c.l.b16 %v4426
  %v4559 = vunpack.c.l.b16 %v4427
  %v4560 = vunpack.c.l.b16 %v4428
  %v4561 = vunpack.c.l.b16 %v4429
  %v4562 = vunpack.c.l.b16 %v4430
  %v4563 = vunpack.c.l.b16 %v4431
  %v4564 = vunpack.c.l.b16 %v4432
  %v4565 = vunpack.c.l.b16 %v4433
  %v4566 = vunpack.c.l.b16 %v4434
  %v4567 = vunpack.c.l.b16 %v4435
  %v4568 = vunpack.c.l.b16 %v4436
  %v4569 = vunpack.c.l.b16 %v4437
  %v4570 = vunpack.c.l.b16 %v4438
  %v4571 = vunpack.c.l.b16 %v4439
  %v4572 = vunpack.c.l.b16 %v4440
  %v4573 = vunpack.c.l.b16 %v4441
  %v4574 = vunpack.c.l.b16 %v4442
  %v4575 = vunpack.c.l.b16 %v4443
  %v4576 = vunpack.c.l.b16 %v4444
  %v4577 = vunpack.c.l.b16 %v4445
  %v4578 = vunpack.c.l.b16 %v4446
  %v4579 = vunpack.c.l.b16 %v4447
  %v4580 = vunpack.c.l.b16 %v4448
  %v4581 = vunpack.c.l.b16 %v4449
  %v4582 = vunpack.c.l.b16 %v4450
  %v4583 = vunpack.c.l.b16 %v4451
  %v4584 = vunpack.c.l.b16 %v4452
  %v4585 = vunpack.c.l.b16 %v4453
  %v4586 = vunpack.c.l.b16 %v4454
  %v4587 = vunpack.c.l.b16 %v4455
  %v4588 = vunpack.c.l.b16 %v4456
  %v4589 = vunpack.c.l.b16 %v4457
  %v4590 = vunpack.c.l.b16 %v4458
  %v4591 = vunpack.c.l.b16 %v4459
  %v4592 = vunpack.c.l.b16 %v4460
  %v4593 = vunpack.c.l.b16 %v4461
  %v4594 = vunpack.c.l.b16 %v4462
  %v4595 = vunpack.c.l.b16 %v4463
  %v4596 = vpack.c.b16 %v4533, %v4532
  %v4597 = vpack.c.b16 %v4535, %v4534
  %v4598 = vpack.c.b16 %v4537, %v4536
  %v4599 = vpack.c.b16 %v4539, %v4538
  %v4600 = vpack.c.b16 %v4541, %v4540
  %v4601 = vpack.c.b16 %v4543, %v4542
  %v4602 = vpack.c.b16 %v4545, %v4544
  %v4603 = vpack.c.b16 %v4547, %v4546
  %v4604 = vpack.c.b16 %v4549, %v4548
  %v4605 = vpack.c.b16 %v4551, %v4550
  %v4606 = vpack.c.b16 %v4553, %v4552
  %v4607 = vpack.c.b16 %v4555, %v4554
  %v4608 = vpack.c.b16 %v4557, %v4556
  %v4609 = vpack.c.b16 %v4559, %v4558
  %v4610 = vpack.c.b16 %v4561, %v4560
  %v4611 = vpack.c.b16 %v4563, %v4562
  %v4612 = vpack.c.b16 %v4565, %v4564
  %v4613 = vpack.c.b16 %v4567, %v4566
  %v4614 = vpack.c.b16 %v4569, %v4568
  %v4615 = vpack.c.b16 %v4571, %v4570
  %v4616 = vpack.c.b16 %v4573, %v4572
  %v4617 = vpack.c.b16 %v4575, %v4574
  %v4618 = vpack.c.b16 %v4577, %v4576
  %v4619 = vpack.c.b16 %v4579, %v4578
  %v4620 = vpack.c.b16 %v4581, %v4580
  %v4621 = vpack.c.b16 %v4583, %v4582
  %v4622 = vpack.c.b16 %v4585, %v4584
  %v4623 = vpack.c.b16 %v4587, %v4586
  %v4624 = vpack.c.b16 %v4589, %v4588
  %v4625 = vpack.c.b16 %v4591, %v4590
  %v4626 = vpack.c.b16 %v4593, %v4592
  %v4627 = vpack.c.b16 %v4595, %v4594
  %4660 = vmatpush.bf16.msra.mxu0 %v4603
  %4661 = vmatpush.bf16.msra.mxu0 %v4602
  %4662 = vmatpush.bf16.msra.mxu0 %v4601
  %4663 = vmatpush.bf16.msra.mxu0 %v4600
  %4664 = vmatpush.bf16.msra.mxu0 %v4599
  %4665 = vmatpush.bf16.msra.mxu0 %v4598
  %4666 = vmatpush.bf16.msra.mxu0 %v4597
  %4667 = vmatpush.bf16.msra.mxu0 %v4596
  %4668 = vmatmul.bf16.gmra.mxu0 %v4464
  %v4669 = vpop.f32.mrf.mxu0
  %v4670 = vadd.f32 0.0, %v4669
  %v4671 = vpop.f32.mrf.mxu0
  %v4672 = vadd.f32 0.0, %v4671
  %4673 = vdwg.mxu0
  %4674 = vmatpush.bf16.msra.mxu0 %v4611
  %4675 = vmatpush.bf16.msra.mxu0 %v4610
  %4676 = vmatpush.bf16.msra.mxu0 %v4609
  %4677 = vmatpush.bf16.msra.mxu0 %v4608
  %4678 = vmatpush.bf16.msra.mxu0 %v4607
  %4679 = vmatpush.bf16.msra.mxu0 %v4606
  %4680 = vmatpush.bf16.msra.mxu0 %v4605
  %4681 = vmatpush.bf16.msra.mxu0 %v4604
  %4682 = vmatmul.bf16.gmra.mxu0 %v4465
  %v4683 = vpop.f32.mrf.mxu0
  %v4684 = vadd.f32 %v4670, %v4683
  %v4685 = vpop.f32.mrf.mxu0
  %v4686 = vadd.f32 %v4672, %v4685
  %4687 = vdwg.mxu0
  %4688 = vmatpush.bf16.msra.mxu0 %v4619
  %4689 = vmatpush.bf16.msra.mxu0 %v4618
  %4690 = vmatpush.bf16.msra.mxu0 %v4617
  %4691 = vmatpush.bf16.msra.mxu0 %v4616
  %4692 = vmatpush.bf16.msra.mxu0 %v4615
  %4693 = vmatpush.bf16.msra.mxu0 %v4614
  %4694 = vmatpush.bf16.msra.mxu0 %v4613
  %4695 = vmatpush.bf16.msra.mxu0 %v4612
  %4696 = vmatmul.bf16.gmra.mxu0 %v4466
  %v4697 = vpop.f32.mrf.mxu0
  %v4698 = vadd.f32 %v4684, %v4697
  %v4699 = vpop.f32.mrf.mxu0
  %v4700 = vadd.f32 %v4686, %v4699
  %4701 = vdwg.mxu0
  %4702 = vmatpush.bf16.msra.mxu0 %v4627
  %4703 = vmatpush.bf16.msra.mxu0 %v4626
  %4704 = vmatpush.bf16.msra.mxu0 %v4625
  %4705 = vmatpush.bf16.msra.mxu0 %v4624
  %4706 = vmatpush.bf16.msra.mxu0 %v4623
  %4707 = vmatpush.bf16.msra.mxu0 %v4622
  %4708 = vmatpush.bf16.msra.mxu0 %v4621
  %4709 = vmatpush.bf16.msra.mxu0 %v4620
  %4710 = vmatmul.bf16.gmra.mxu0 %v4467
  %v4711 = vpop.f32.mrf.mxu0
  %v4712 = vadd.f32 %v4698, %v4711
  %v4713 = vpop.f32.mrf.mxu0
  %v4714 = vadd.f32 %v4700, %v4713
  %4715 = vdwg.mxu0
  %v4780 = vunpack.c.l.b16 %v4209
  %v4781 = vunpack.c.l.b16 %v4210
  %v4782 = vunpack.c.l.b16 %v4211
  %v4783 = vunpack.c.l.b16 %v4212
  %v4784 = vunpack.c.l.b16 %v4213
  %v4785 = vunpack.c.l.b16 %v4214
  %v4786 = vunpack.c.l.b16 %v4215
  %v4787 = vunpack.c.l.b16 %v4216
  %v4788 = vunpack.c.l.b16 %v4217
  %v4789 = vunpack.c.l.b16 %v4218
  %v4790 = vunpack.c.l.b16 %v4219
  %v4791 = vunpack.c.l.b16 %v4220
  %v4792 = vunpack.c.l.b16 %v4221
  %v4793 = vunpack.c.l.b16 %v4222
  %v4794 = vunpack.c.l.b16 %v4223
  %v4795 = vunpack.c.l.b16 %v4224
  %v4796 = vunpack.c.l.b16 %v4225
  %v4797 = vunpack.c.l.b16 %v4226
  %v4798 = vunpack.c.l.b16 %v4227
  %v4799 = vunpack.c.l.b16 %v4228
  %v4800 = vunpack.c.l.b16 %v4229
  %v4801 = vunpack.c.l.b16 %v4230
  %v4802 = vunpack.c.l.b16 %v4231
  %v4803 = vunpack.c.l.b16 %v4232
  %v4804 = vunpack.c.l.b16 %v4233
  %v4805 = vunpack.c.l.b16 %v4234
  %v4806 = vunpack.c.l.b16 %v4235
  %v4807 = vunpack.c.l.b16 %v4236
  %v4808 = vunpack.c.l.b16 %v4237
  %v4809 = vunpack.c.l.b16 %v4238
  %v4810 = vunpack.c.l.b16 %v4239
  %v4811 = vunpack.c.l.b16 %v4240
  %v4812 = vunpack.c.l.b16 %v4241
  %v4813 = vunpack.c.l.b16 %v4242
  %v4814 = vunpack.c.l.b16 %v4243
  %v4815 = vunpack.c.l.b16 %v4244
  %v4816 = vunpack.c.l.b16 %v4245
  %v4817 = vunpack.c.l.b16 %v4246
  %v4818 = vunpack.c.l.b16 %v4247
  %v4819 = vunpack.c.l.b16 %v4248
  %v4820 = vunpack.c.l.b16 %v4249
  %v4821 = vunpack.c.l.b16 %v4250
  %v4822 = vunpack.c.l.b16 %v4251
  %v4823 = vunpack.c.l.b16 %v4252
  %v4824 = vunpack.c.l.b16 %v4253
  %v4825 = vunpack.c.l.b16 %v4254
  %v4826 = vunpack.c.l.b16 %v4255
  %v4827 = vunpack.c.l.b16 %v4256
  %v4828 = vunpack.c.l.b16 %v4257
  %v4829 = vunpack.c.l.b16 %v4258
  %v4830 = vunpack.c.l.b16 %v4259
  %v4831 = vunpack.c.l.b16 %v4260
  %v4832 = vunpack.c.l.b16 %v4261
  %v4833 = vunpack.c.l.b16 %v4262
  %v4834 = vunpack.c.l.b16 %v4263
  %v4835 = vunpack.c.l.b16 %v4264
  %v4836 = vunpack.c.l.b16 %v4265
  %v4837 = vunpack.c.l.b16 %v4266
  %v4838 = vunpack.c.l.b16 %v4267
  %v4839 = vunpack.c.l.b16 %v4268
  %v4840 = vunpack.c.l.b16 %v4269
  %v4841 = vunpack.c.l.b16 %v4270
  %v4842 = vunpack.c.l.b16 %v4271
  %v4843 = vunpack.c.l.b16 %v4272
  %v4844 = vpack.c.b16 %v4781, %v4780
  %v4845 = vpack.c.b16 %v4783, %v4782
  %v4846 = vpack.c.b16 %v4785, %v4784
  %v4847 = vpack.c.b16 %v4787, %v4786
  %v4848 = vpack.c.b16 %v4789, %v4788
  %v4849 = vpack.c.b16 %v4791, %v4790
  %v4850 = vpack.c.b16 %v4793, %v4792
  %v4851 = vpack.c.b16 %v4795, %v4794
  %v4852 = vpack.c.b16 %v4797, %v4796
  %v4853 = vpack.c.b16 %v4799, %v4798
  %v4854 = vpack.c.b16 %v4801, %v4800
  %v4855 = vpack.c.b16 %v4803, %v4802
  %v4856 = vpack.c.b16 %v4805, %v4804
  %v4857 = vpack.c.b16 %v4807, %v4806
  %v4858 = vpack.c.b16 %v4809, %v4808
  %v4859 = vpack.c.b16 %v4811, %v4810
  %v4860 = vpack.c.b16 %v4813, %v4812
  %v4861 = vpack.c.b16 %v4815, %v4814
  %v4862 = vpack.c.b16 %v4817, %v4816
  %v4863 = vpack.c.b16 %v4819, %v4818
  %v4864 = vpack.c.b16 %v4821, %v4820
  %v4865 = vpack.c.b16 %v4823, %v4822
  %v4866 = vpack.c.b16 %v4825, %v4824
  %v4867 = vpack.c.b16 %v4827, %v4826
  %v4868 = vpack.c.b16 %v4829, %v4828
  %v4869 = vpack.c.b16 %v4831, %v4830
  %v4870 = vpack.c.b16 %v4833, %v4832
  %v4871 = vpack.c.b16 %v4835, %v4834
  %v4872 = vpack.c.b16 %v4837, %v4836
  %v4873 = vpack.c.b16 %v4839, %v4838
  %v4874 = vpack.c.b16 %v4841, %v4840
  %v4875 = vpack.c.b16 %v4843, %v4842
  %4908 = vmatpush.bf16.msra.mxu0 %v4851
  %4909 = vmatpush.bf16.msra.mxu0 %v4850
  %4910 = vmatpush.bf16.msra.mxu0 %v4849
  %4911 = vmatpush.bf16.msra.mxu0 %v4848
  %4912 = vmatpush.bf16.msra.mxu0 %v4847
  %4913 = vmatpush.bf16.msra.mxu0 %v4846
  %4914 = vmatpush.bf16.msra.mxu0 %v4845
  %4915 = vmatpush.bf16.msra.mxu0 %v4844
  %4916 = vmatmul.bf16.gmra.mxu0 %v4273
  %v4917 = vpop.f32.mrf.mxu0
  %v4918 = vadd.f32 %v4712, %v4917
  %v4919 = vpop.f32.mrf.mxu0
  %v4920 = vadd.f32 %v4714, %v4919
  %4921 = vdwg.mxu0
  %4922 = vmatpush.bf16.msra.mxu0 %v4859
  %4923 = vmatpush.bf16.msra.mxu0 %v4858
  %4924 = vmatpush.bf16.msra.mxu0 %v4857
  %4925 = vmatpush.bf16.msra.mxu0 %v4856
  %4926 = vmatpush.bf16.msra.mxu0 %v4855
  %4927 = vmatpush.bf16.msra.mxu0 %v4854
  %4928 = vmatpush.bf16.msra.mxu0 %v4853
  %4929 = vmatpush.bf16.msra.mxu0 %v4852
  %4930 = vmatmul.bf16.gmra.mxu0 %v4274
  %v4931 = vpop.f32.mrf.mxu0
  %v4932 = vadd.f32 %v4918, %v4931
  %v4933 = vpop.f32.mrf.mxu0
  %v4934 = vadd.f32 %v4920, %v4933
  %4935 = vdwg.mxu0
  %4936 = vmatpush.bf16.msra.mxu0 %v4867
  %4937 = vmatpush.bf16.msra.mxu0 %v4866
  %4938 = vmatpush.bf16.msra.mxu0 %v4865
  %4939 = vmatpush.bf16.msra.mxu0 %v4864
  %4940 = vmatpush.bf16.msra.mxu0 %v4863
  %4941 = vmatpush.bf16.msra.mxu0 %v4862
  %4942 = vmatpush.bf16.msra.mxu0 %v4861
  %4943 = vmatpush.bf16.msra.mxu0 %v4860
  %4944 = vmatmul.bf16.gmra.mxu0 %v4275
  %v4945 = vpop.f32.mrf.mxu0
  %v4946 = vadd.f32 %v4932, %v4945
  %v4947 = vpop.f32.mrf.mxu0
  %v4948 = vadd.f32 %v4934, %v4947
  %4949 = vdwg.mxu0
  %4950 = vmatpush.bf16.msra.mxu0 %v4875
  %4951 = vmatpush.bf16.msra.mxu0 %v4874
  %4952 = vmatpush.bf16.msra.mxu0 %v4873
  %4953 = vmatpush.bf16.msra.mxu0 %v4872
  %4954 = vmatpush.bf16.msra.mxu0 %v4871
  %4955 = vmatpush.bf16.msra.mxu0 %v4870
  %4956 = vmatpush.bf16.msra.mxu0 %v4869
  %4957 = vmatpush.bf16.msra.mxu0 %v4868
  %4958 = vmatmul.bf16.gmra.mxu0 %v4276
  %v4959 = vpop.f32.mrf.mxu0
  %v4960 = vadd.f32 %v4946, %v4959
  %v4961 = vpop.f32.mrf.mxu0
  %v4962 = vadd.f32 %v4948, %v4961
  %4963 = vdwg.mxu0
  %v4964 = vld [vmem:[%s4081 + $0x20] sm:$0xff]
  %v4965 = vld [vmem:[%s4081 + $0x28] sm:$0xff]
  %v4966 = vld [vmem:[%s4081 + $0x60] sm:$0xff]
  %v4967 = vld [vmem:[%s4081 + $0x68] sm:$0xff]
  %v4968 = vld [vmem:[%s4081 + $0xa0] sm:$0xff]
  %v4969 = vld [vmem:[%s4081 + $0xa8] sm:$0xff]
  %v4970 = vld [vmem:[%s4081 + $0xe0] sm:$0xff]
  %v4971 = vld [vmem:[%s4081 + $0xe8] sm:$0xff]
  %s4972 = scalar_lea.vmem %s6, 34
  %v4973 = vld [vmem:[%s4972] ss:$4 sm:$0xf]
  %v4975 = vperm.slane %v4973, 0
  %v4976 = vperm.slane %v4973, 1
  %v4977 = vperm.slane %v4973, 2
  %v4978 = vperm.slane %v4973, 3
  %v4991 = vunpack.c.l.b16 %v4964
  %v4992 = vunpack.c.h.b16 %v4964
  %v4993 = vunpack.c.l.b16 %v4965
  %v4994 = vunpack.c.h.b16 %v4965
  %v4995 = vunpack.c.l.b16 %v4966
  %v4996 = vunpack.c.h.b16 %v4966
  %v4997 = vunpack.c.l.b16 %v4967
  %v4998 = vunpack.c.h.b16 %v4967
  %v4999 = vunpack.c.l.b16 %v4968
  %v5000 = vunpack.c.h.b16 %v4968
  %v5001 = vunpack.c.l.b16 %v4969
  %v5002 = vunpack.c.h.b16 %v4969
  %v5003 = vunpack.c.l.b16 %v4970
  %v5004 = vunpack.c.h.b16 %v4970
  %v5005 = vunpack.c.l.b16 %v4971
  %v5006 = vunpack.c.h.b16 %v4971
  %v5007 = vpack.c.b16 %v4995, %v4991
  %v5008 = vpack.c.b16 %v4996, %v4992
  %v5009 = vpack.c.b16 %v4997, %v4993
  %v5010 = vpack.c.b16 %v4998, %v4994
  %v5011 = vpack.c.b16 %v5003, %v4999
  %v5012 = vpack.c.b16 %v5004, %v5000
  %v5013 = vpack.c.b16 %v5005, %v5001
  %v5014 = vpack.c.b16 %v5006, %v5002
  %5023 = vmatpush.bf16.msra.mxu0 0
  %5024 = vmatpush.bf16.msra.mxu0 0
  %5025 = vmatpush.bf16.msra.mxu0 0
  %5026 = vmatpush.bf16.msra.mxu0 0
  %5027 = vmatpush.bf16.msra.mxu0 0
  %5028 = vmatpush.bf16.msra.mxu0 0
  %5029 = vmatpush.bf16.msra.mxu0 %v5011
  %5030 = vmatpush.bf16.msra.mxu0 %v5007
  %5031 = vmatmul.bf16.gmra.mxu0 %v4142
  %v5032 = vpop.f32.mrf.mxu0
  %v5033 = vadd.f32 %v4975, %v5032
  %v5034 = vpop.f32.mrf.mxu0
  %v5035 = vadd.f32 %v4975, %v5034
  %5036 = vdwg.mxu0
  %5037 = vmatpush.bf16.msra.mxu0 0
  %5038 = vmatpush.bf16.msra.mxu0 0
  %5039 = vmatpush.bf16.msra.mxu0 0
  %5040 = vmatpush.bf16.msra.mxu0 0
  %5041 = vmatpush.bf16.msra.mxu0 0
  %5042 = vmatpush.bf16.msra.mxu0 0
  %5043 = vmatpush.bf16.msra.mxu0 %v5012
  %5044 = vmatpush.bf16.msra.mxu0 %v5008
  %5045 = vmatmul.bf16.gmra.mxu0 %v4142
  %v5046 = vpop.f32.mrf.mxu0
  %v5047 = vadd.f32 %v4976, %v5046
  %v5048 = vpop.f32.mrf.mxu0
  %v5049 = vadd.f32 %v4976, %v5048
  %5050 = vdwg.mxu0
  %5051 = vmatpush.bf16.msra.mxu0 0
  %5052 = vmatpush.bf16.msra.mxu0 0
  %5053 = vmatpush.bf16.msra.mxu0 0
  %5054 = vmatpush.bf16.msra.mxu0 0
  %5055 = vmatpush.bf16.msra.mxu0 0
  %5056 = vmatpush.bf16.msra.mxu0 0
  %5057 = vmatpush.bf16.msra.mxu0 %v5013
  %5058 = vmatpush.bf16.msra.mxu0 %v5009
  %5059 = vmatmul.bf16.gmra.mxu0 %v4142
  %v5060 = vpop.f32.mrf.mxu0
  %v5061 = vadd.f32 %v4977, %v5060
  %v5062 = vpop.f32.mrf.mxu0
  %v5063 = vadd.f32 %v4977, %v5062
  %5064 = vdwg.mxu0
  %5065 = vmatpush.bf16.msra.mxu0 0
  %5066 = vmatpush.bf16.msra.mxu0 0
  %5067 = vmatpush.bf16.msra.mxu0 0
  %5068 = vmatpush.bf16.msra.mxu0 0
  %5069 = vmatpush.bf16.msra.mxu0 0
  %5070 = vmatpush.bf16.msra.mxu0 0
  %5071 = vmatpush.bf16.msra.mxu0 %v5014
  %5072 = vmatpush.bf16.msra.mxu0 %v5010
  %5073 = vmatmul.bf16.gmra.mxu0 %v4142
  %v5074 = vpop.f32.mrf.mxu0
  %v5075 = vadd.f32 %v4978, %v5074
  %v5076 = vpop.f32.mrf.mxu0
  %v5077 = vadd.f32 %v4978, %v5076
  %5078 = vdwg.mxu0
  %v5079 = vmax.f32 %v5033, 0.0
  %v5080 = vmax.f32 %v5047, 0.0
  %v5081 = vmax.f32 %v5061, 0.0
  %v5082 = vmax.f32 %v5075, 0.0
  %v5083 = vmax.f32 %v5035, 0.0
  %v5084 = vmax.f32 %v5049, 0.0
  %v5085 = vmax.f32 %v5063, 0.0
  %v5086 = vmax.f32 %v5077, 0.0
  %v5087 = vld [vmem:[%s4208 + $0x200] sm:$0xf]
  %v5088 = vld [vmem:[%s4208 + $0x204] sm:$0xf]
  %v5089 = vld [vmem:[%s4208 + $0x208] sm:$0xf]
  %v5090 = vld [vmem:[%s4208 + $0x20c] sm:$0xf]
  %v5091 = vld [vmem:[%s4208 + $0x210] sm:$0xf]
  %v5092 = vld [vmem:[%s4208 + $0x214] sm:$0xf]
  %v5093 = vld [vmem:[%s4208 + $0x218] sm:$0xf]
  %v5094 = vld [vmem:[%s4208 + $0x21c] sm:$0xf]
  %v5095 = vld [vmem:[%s4208 + $0x220] sm:$0xf]
  %v5096 = vld [vmem:[%s4208 + $0x224] sm:$0xf]
  %v5097 = vld [vmem:[%s4208 + $0x228] sm:$0xf]
  %v5098 = vld [vmem:[%s4208 + $0x22c] sm:$0xf]
  %v5099 = vld [vmem:[%s4208 + $0x230] sm:$0xf]
  %v5100 = vld [vmem:[%s4208 + $0x234] sm:$0xf]
  %v5101 = vld [vmem:[%s4208 + $0x238] sm:$0xf]
  %v5102 = vld [vmem:[%s4208 + $0x23c] sm:$0xf]
  %v5103 = vld [vmem:[%s4208 + $0x240] sm:$0xf]
  %v5104 = vld [vmem:[%s4208 + $0x244] sm:$0xf]
  %v5105 = vld [vmem:[%s4208 + $0x248] sm:$0xf]
  %v5106 = vld [vmem:[%s4208 + $0x24c] sm:$0xf]
  %v5107 = vld [vmem:[%s4208 + $0x250] sm:$0xf]
  %v5108 = vld [vmem:[%s4208 + $0x254] sm:$0xf]
  %v5109 = vld [vmem:[%s4208 + $0x258] sm:$0xf]
  %v5110 = vld [vmem:[%s4208 + $0x25c] sm:$0xf]
  %v5111 = vld [vmem:[%s4208 + $0x260] sm:$0xf]
  %v5112 = vld [vmem:[%s4208 + $0x264] sm:$0xf]
  %v5113 = vld [vmem:[%s4208 + $0x268] sm:$0xf]
  %v5114 = vld [vmem:[%s4208 + $0x26c] sm:$0xf]
  %v5115 = vld [vmem:[%s4208 + $0x270] sm:$0xf]
  %v5116 = vld [vmem:[%s4208 + $0x274] sm:$0xf]
  %v5117 = vld [vmem:[%s4208 + $0x278] sm:$0xf]
  %v5118 = vld [vmem:[%s4208 + $0x27c] sm:$0xf]
  %v5119 = vld [vmem:[%s4208 + $0x280] sm:$0xf]
  %v5120 = vld [vmem:[%s4208 + $0x284] sm:$0xf]
  %v5121 = vld [vmem:[%s4208 + $0x288] sm:$0xf]
  %v5122 = vld [vmem:[%s4208 + $0x28c] sm:$0xf]
  %v5123 = vld [vmem:[%s4208 + $0x290] sm:$0xf]
  %v5124 = vld [vmem:[%s4208 + $0x294] sm:$0xf]
  %v5125 = vld [vmem:[%s4208 + $0x298] sm:$0xf]
  %v5126 = vld [vmem:[%s4208 + $0x29c] sm:$0xf]
  %v5127 = vld [vmem:[%s4208 + $0x2a0] sm:$0xf]
  %v5128 = vld [vmem:[%s4208 + $0x2a4] sm:$0xf]
  %v5129 = vld [vmem:[%s4208 + $0x2a8] sm:$0xf]
  %v5130 = vld [vmem:[%s4208 + $0x2ac] sm:$0xf]
  %v5131 = vld [vmem:[%s4208 + $0x2b0] sm:$0xf]
  %v5132 = vld [vmem:[%s4208 + $0x2b4] sm:$0xf]
  %v5133 = vld [vmem:[%s4208 + $0x2b8] sm:$0xf]
  %v5134 = vld [vmem:[%s4208 + $0x2bc] sm:$0xf]
  %v5135 = vld [vmem:[%s4208 + $0x2c0] sm:$0xf]
  %v5136 = vld [vmem:[%s4208 + $0x2c4] sm:$0xf]
  %v5137 = vld [vmem:[%s4208 + $0x2c8] sm:$0xf]
  %v5138 = vld [vmem:[%s4208 + $0x2cc] sm:$0xf]
  %v5139 = vld [vmem:[%s4208 + $0x2d0] sm:$0xf]
  %v5140 = vld [vmem:[%s4208 + $0x2d4] sm:$0xf]
  %v5141 = vld [vmem:[%s4208 + $0x2d8] sm:$0xf]
  %v5142 = vld [vmem:[%s4208 + $0x2dc] sm:$0xf]
  %v5143 = vld [vmem:[%s4208 + $0x2e0] sm:$0xf]
  %v5144 = vld [vmem:[%s4208 + $0x2e4] sm:$0xf]
  %v5145 = vld [vmem:[%s4208 + $0x2e8] sm:$0xf]
  %v5146 = vld [vmem:[%s4208 + $0x2ec] sm:$0xf]
  %v5147 = vld [vmem:[%s4208 + $0x2f0] sm:$0xf]
  %v5148 = vld [vmem:[%s4208 + $0x2f4] sm:$0xf]
  %v5149 = vld [vmem:[%s4208 + $0x2f8] sm:$0xf]
  %v5150 = vld [vmem:[%s4208 + $0x2fc] sm:$0xf]
  %v5151 = vpack.c.bf16 %v5083, %v5079
  %v5152 = vpack.c.bf16 %v5084, %v5080
  %v5153 = vpack.c.bf16 %v5085, %v5081
  %v5154 = vpack.c.bf16 %v5086, %v5082
  %v5219 = vunpack.c.l.b16 %v5087
  %v5220 = vunpack.c.l.b16 %v5088
  %v5221 = vunpack.c.l.b16 %v5089
  %v5222 = vunpack.c.l.b16 %v5090
  %v5223 = vunpack.c.l.b16 %v5091
  %v5224 = vunpack.c.l.b16 %v5092
  %v5225 = vunpack.c.l.b16 %v5093
  %v5226 = vunpack.c.l.b16 %v5094
  %v5227 = vunpack.c.l.b16 %v5095
  %v5228 = vunpack.c.l.b16 %v5096
  %v5229 = vunpack.c.l.b16 %v5097
  %v5230 = vunpack.c.l.b16 %v5098
  %v5231 = vunpack.c.l.b16 %v5099
  %v5232 = vunpack.c.l.b16 %v5100
  %v5233 = vunpack.c.l.b16 %v5101
  %v5234 = vunpack.c.l.b16 %v5102
  %v5235 = vunpack.c.l.b16 %v5103
  %v5236 = vunpack.c.l.b16 %v5104
  %v5237 = vunpack.c.l.b16 %v5105
  %v5238 = vunpack.c.l.b16 %v5106
  %v5239 = vunpack.c.l.b16 %v5107
  %v5240 = vunpack.c.l.b16 %v5108
  %v5241 = vunpack.c.l.b16 %v5109
  %v5242 = vunpack.c.l.b16 %v5110
  %v5243 = vunpack.c.l.b16 %v5111
  %v5244 = vunpack.c.l.b16 %v5112
  %v5245 = vunpack.c.l.b16 %v5113
  %v5246 = vunpack.c.l.b16 %v5114
  %v5247 = vunpack.c.l.b16 %v5115
  %v5248 = vunpack.c.l.b16 %v5116
  %v5249 = vunpack.c.l.b16 %v5117
  %v5250 = vunpack.c.l.b16 %v5118
  %v5251 = vunpack.c.l.b16 %v5119
  %v5252 = vunpack.c.l.b16 %v5120
  %v5253 = vunpack.c.l.b16 %v5121
  %v5254 = vunpack.c.l.b16 %v5122
  %v5255 = vunpack.c.l.b16 %v5123
  %v5256 = vunpack.c.l.b16 %v5124
  %v5257 = vunpack.c.l.b16 %v5125
  %v5258 = vunpack.c.l.b16 %v5126
  %v5259 = vunpack.c.l.b16 %v5127
  %v5260 = vunpack.c.l.b16 %v5128
  %v5261 = vunpack.c.l.b16 %v5129
  %v5262 = vunpack.c.l.b16 %v5130
  %v5263 = vunpack.c.l.b16 %v5131
  %v5264 = vunpack.c.l.b16 %v5132
  %v5265 = vunpack.c.l.b16 %v5133
  %v5266 = vunpack.c.l.b16 %v5134
  %v5267 = vunpack.c.l.b16 %v5135
  %v5268 = vunpack.c.l.b16 %v5136
  %v5269 = vunpack.c.l.b16 %v5137
  %v5270 = vunpack.c.l.b16 %v5138
  %v5271 = vunpack.c.l.b16 %v5139
  %v5272 = vunpack.c.l.b16 %v5140
  %v5273 = vunpack.c.l.b16 %v5141
  %v5274 = vunpack.c.l.b16 %v5142
  %v5275 = vunpack.c.l.b16 %v5143
  %v5276 = vunpack.c.l.b16 %v5144
  %v5277 = vunpack.c.l.b16 %v5145
  %v5278 = vunpack.c.l.b16 %v5146
  %v5279 = vunpack.c.l.b16 %v5147
  %v5280 = vunpack.c.l.b16 %v5148
  %v5281 = vunpack.c.l.b16 %v5149
  %v5282 = vunpack.c.l.b16 %v5150
  %v5283 = vpack.c.b16 %v5220, %v5219
  %v5284 = vpack.c.b16 %v5222, %v5221
  %v5285 = vpack.c.b16 %v5224, %v5223
  %v5286 = vpack.c.b16 %v5226, %v5225
  %v5287 = vpack.c.b16 %v5228, %v5227
  %v5288 = vpack.c.b16 %v5230, %v5229
  %v5289 = vpack.c.b16 %v5232, %v5231
  %v5290 = vpack.c.b16 %v5234, %v5233
  %v5291 = vpack.c.b16 %v5236, %v5235
  %v5292 = vpack.c.b16 %v5238, %v5237
  %v5293 = vpack.c.b16 %v5240, %v5239
  %v5294 = vpack.c.b16 %v5242, %v5241
  %v5295 = vpack.c.b16 %v5244, %v5243
  %v5296 = vpack.c.b16 %v5246, %v5245
  %v5297 = vpack.c.b16 %v5248, %v5247
  %v5298 = vpack.c.b16 %v5250, %v5249
  %v5299 = vpack.c.b16 %v5252, %v5251
  %v5300 = vpack.c.b16 %v5254, %v5253
  %v5301 = vpack.c.b16 %v5256, %v5255
  %v5302 = vpack.c.b16 %v5258, %v5257
  %v5303 = vpack.c.b16 %v5260, %v5259
  %v5304 = vpack.c.b16 %v5262, %v5261
  %v5305 = vpack.c.b16 %v5264, %v5263
  %v5306 = vpack.c.b16 %v5266, %v5265
  %v5307 = vpack.c.b16 %v5268, %v5267
  %v5308 = vpack.c.b16 %v5270, %v5269
  %v5309 = vpack.c.b16 %v5272, %v5271
  %v5310 = vpack.c.b16 %v5274, %v5273
  %v5311 = vpack.c.b16 %v5276, %v5275
  %v5312 = vpack.c.b16 %v5278, %v5277
  %v5313 = vpack.c.b16 %v5280, %v5279
  %v5314 = vpack.c.b16 %v5282, %v5281
  %5347 = vmatpush.bf16.msra.mxu0 %v5290
  %5348 = vmatpush.bf16.msra.mxu0 %v5289
  %5349 = vmatpush.bf16.msra.mxu0 %v5288
  %5350 = vmatpush.bf16.msra.mxu0 %v5287
  %5351 = vmatpush.bf16.msra.mxu0 %v5286
  %5352 = vmatpush.bf16.msra.mxu0 %v5285
  %5353 = vmatpush.bf16.msra.mxu0 %v5284
  %5354 = vmatpush.bf16.msra.mxu0 %v5283
  %5355 = vmatmul.bf16.gmra.mxu0 %v5151
  %v5356 = vpop.f32.mrf.mxu0
  %v5357 = vadd.f32 0.0, %v5356
  %v5358 = vpop.f32.mrf.mxu0
  %v5359 = vadd.f32 0.0, %v5358
  %5360 = vdwg.mxu0
  %5361 = vmatpush.bf16.msra.mxu0 %v5298
  %5362 = vmatpush.bf16.msra.mxu0 %v5297
  %5363 = vmatpush.bf16.msra.mxu0 %v5296
  %5364 = vmatpush.bf16.msra.mxu0 %v5295
  %5365 = vmatpush.bf16.msra.mxu0 %v5294
  %5366 = vmatpush.bf16.msra.mxu0 %v5293
  %5367 = vmatpush.bf16.msra.mxu0 %v5292
  %5368 = vmatpush.bf16.msra.mxu0 %v5291
  %5369 = vmatmul.bf16.gmra.mxu0 %v5152
  %v5370 = vpop.f32.mrf.mxu0
  %v5371 = vadd.f32 %v5357, %v5370
  %v5372 = vpop.f32.mrf.mxu0
  %v5373 = vadd.f32 %v5359, %v5372
  %5374 = vdwg.mxu0
  %5375 = vmatpush.bf16.msra.mxu0 %v5306
  %5376 = vmatpush.bf16.msra.mxu0 %v5305
  %5377 = vmatpush.bf16.msra.mxu0 %v5304
  %5378 = vmatpush.bf16.msra.mxu0 %v5303
  %5379 = vmatpush.bf16.msra.mxu0 %v5302
  %5380 = vmatpush.bf16.msra.mxu0 %v5301
  %5381 = vmatpush.bf16.msra.mxu0 %v5300
  %5382 = vmatpush.bf16.msra.mxu0 %v5299
  %5383 = vmatmul.bf16.gmra.mxu0 %v5153
  %v5384 = vpop.f32.mrf.mxu0
  %v5385 = vadd.f32 %v5371, %v5384
  %v5386 = vpop.f32.mrf.mxu0
  %v5387 = vadd.f32 %v5373, %v5386
  %5388 = vdwg.mxu0
  %5389 = vmatpush.bf16.msra.mxu0 %v5314
  %5390 = vmatpush.bf16.msra.mxu0 %v5313
  %5391 = vmatpush.bf16.msra.mxu0 %v5312
  %5392 = vmatpush.bf16.msra.mxu0 %v5311
  %5393 = vmatpush.bf16.msra.mxu0 %v5310
  %5394 = vmatpush.bf16.msra.mxu0 %v5309
  %5395 = vmatpush.bf16.msra.mxu0 %v5308
  %5396 = vmatpush.bf16.msra.mxu0 %v5307
  %5397 = vmatmul.bf16.gmra.mxu0 %v5154
  %v5398 = vpop.f32.mrf.mxu0
  %v5399 = vadd.f32 %v5385, %v5398
  %v5400 = vpop.f32.mrf.mxu0
  %v5401 = vadd.f32 %v5387, %v5400
  %5402 = vdwg.mxu0
  %v5403 = vadd.f32 %v4960, %v5399
  %v5404 = vadd.f32 %v4962, %v5401
  %v5405 = vld [vmem:[%s4081 + $0x30] sm:$0xff]
  %v5406 = vld [vmem:[%s4081 + $0x38] sm:$0xff]
  %v5407 = vld [vmem:[%s4081 + $0x70] sm:$0xff]
  %v5408 = vld [vmem:[%s4081 + $0x78] sm:$0xff]
  %v5409 = vld [vmem:[%s4081 + $0xb0] sm:$0xff]
  %v5410 = vld [vmem:[%s4081 + $0xb8] sm:$0xff]
  %v5411 = vld [vmem:[%s4081 + $0xf0] sm:$0xff]
  %v5412 = vld [vmem:[%s4081 + $0xf8] sm:$0xff]
  %s5413 = scalar_lea.vmem %s6, 50
  %v5414 = vld [vmem:[%s5413] ss:$4 sm:$0xf]
  %v5416 = vperm.slane %v5414, 0
  %v5417 = vperm.slane %v5414, 1
  %v5418 = vperm.slane %v5414, 2
  %v5419 = vperm.slane %v5414, 3
  %v5432 = vunpack.c.l.b16 %v5405
  %v5433 = vunpack.c.h.b16 %v5405
  %v5434 = vunpack.c.l.b16 %v5406
  %v5435 = vunpack.c.h.b16 %v5406
  %v5436 = vunpack.c.l.b16 %v5407
  %v5437 = vunpack.c.h.b16 %v5407
  %v5438 = vunpack.c.l.b16 %v5408
  %v5439 = vunpack.c.h.b16 %v5408
  %v5440 = vunpack.c.l.b16 %v5409
  %v5441 = vunpack.c.h.b16 %v5409
  %v5442 = vunpack.c.l.b16 %v5410
  %v5443 = vunpack.c.h.b16 %v5410
  %v5444 = vunpack.c.l.b16 %v5411
  %v5445 = vunpack.c.h.b16 %v5411
  %v5446 = vunpack.c.l.b16 %v5412
  %v5447 = vunpack.c.h.b16 %v5412
  %v5448 = vpack.c.b16 %v5436, %v5432
  %v5449 = vpack.c.b16 %v5437, %v5433
  %v5450 = vpack.c.b16 %v5438, %v5434
  %v5451 = vpack.c.b16 %v5439, %v5435
  %v5452 = vpack.c.b16 %v5444, %v5440
  %v5453 = vpack.c.b16 %v5445, %v5441
  %v5454 = vpack.c.b16 %v5446, %v5442
  %v5455 = vpack.c.b16 %v5447, %v5443
  %5464 = vmatpush.bf16.msra.mxu0 0
  %5465 = vmatpush.bf16.msra.mxu0 0
  %5466 = vmatpush.bf16.msra.mxu0 0
  %5467 = vmatpush.bf16.msra.mxu0 0
  %5468 = vmatpush.bf16.msra.mxu0 0
  %5469 = vmatpush.bf16.msra.mxu0 0
  %5470 = vmatpush.bf16.msra.mxu0 %v5452
  %5471 = vmatpush.bf16.msra.mxu0 %v5448
  %5472 = vmatmul.bf16.gmra.mxu0 %v4142
  %v5473 = vpop.f32.mrf.mxu0
  %v5474 = vadd.f32 %v5416, %v5473
  %v5475 = vpop.f32.mrf.mxu0
  %v5476 = vadd.f32 %v5416, %v5475
  %5477 = vdwg.mxu0
  %5478 = vmatpush.bf16.msra.mxu0 0
  %5479 = vmatpush.bf16.msra.mxu0 0
  %5480 = vmatpush.bf16.msra.mxu0 0
  %5481 = vmatpush.bf16.msra.mxu0 0
  %5482 = vmatpush.bf16.msra.mxu0 0
  %5483 = vmatpush.bf16.msra.mxu0 0
  %5484 = vmatpush.bf16.msra.mxu0 %v5453
  %5485 = vmatpush.bf16.msra.mxu0 %v5449
  %5486 = vmatmul.bf16.gmra.mxu0 %v4142
  %v5487 = vpop.f32.mrf.mxu0
  %v5488 = vadd.f32 %v5417, %v5487
  %v5489 = vpop.f32.mrf.mxu0
  %v5490 = vadd.f32 %v5417, %v5489
  %5491 = vdwg.mxu0
  %5492 = vmatpush.bf16.msra.mxu0 0
  %5493 = vmatpush.bf16.msra.mxu0 0
  %5494 = vmatpush.bf16.msra.mxu0 0
  %5495 = vmatpush.bf16.msra.mxu0 0
  %5496 = vmatpush.bf16.msra.mxu0 0
  %5497 = vmatpush.bf16.msra.mxu0 0
  %5498 = vmatpush.bf16.msra.mxu0 %v5454
  %5499 = vmatpush.bf16.msra.mxu0 %v5450
  %5500 = vmatmul.bf16.gmra.mxu0 %v4142
  %v5501 = vpop.f32.mrf.mxu0
  %v5502 = vadd.f32 %v5418, %v5501
  %v5503 = vpop.f32.mrf.mxu0
  %v5504 = vadd.f32 %v5418, %v5503
  %5505 = vdwg.mxu0
  %5506 = vmatpush.bf16.msra.mxu0 0
  %5507 = vmatpush.bf16.msra.mxu0 0
  %5508 = vmatpush.bf16.msra.mxu0 0
  %5509 = vmatpush.bf16.msra.mxu0 0
  %5510 = vmatpush.bf16.msra.mxu0 0
  %5511 = vmatpush.bf16.msra.mxu0 0
  %5512 = vmatpush.bf16.msra.mxu0 %v5455
  %5513 = vmatpush.bf16.msra.mxu0 %v5451
  %5514 = vmatmul.bf16.gmra.mxu0 %v4142
  %v5515 = vpop.f32.mrf.mxu0
  %v5516 = vadd.f32 %v5419, %v5515
  %v5517 = vpop.f32.mrf.mxu0
  %v5518 = vadd.f32 %v5419, %v5517
  %5519 = vdwg.mxu0
  %v5520 = vmax.f32 %v5474, 0.0
  %v5521 = vmax.f32 %v5488, 0.0
  %v5522 = vmax.f32 %v5502, 0.0
  %v5523 = vmax.f32 %v5516, 0.0
  %v5524 = vmax.f32 %v5476, 0.0
  %v5525 = vmax.f32 %v5490, 0.0
  %v5526 = vmax.f32 %v5504, 0.0
  %v5527 = vmax.f32 %v5518, 0.0
  %v5528 = vld [vmem:[%s4208 + $0x300] sm:$0xf]
  %v5529 = vld [vmem:[%s4208 + $0x304] sm:$0xf]
  %v5530 = vld [vmem:[%s4208 + $0x308] sm:$0xf]
  %v5531 = vld [vmem:[%s4208 + $0x30c] sm:$0xf]
  %v5532 = vld [vmem:[%s4208 + $0x310] sm:$0xf]
  %v5533 = vld [vmem:[%s4208 + $0x314] sm:$0xf]
  %v5534 = vld [vmem:[%s4208 + $0x318] sm:$0xf]
  %v5535 = vld [vmem:[%s4208 + $0x31c] sm:$0xf]
  %v5536 = vld [vmem:[%s4208 + $0x320] sm:$0xf]
  %v5537 = vld [vmem:[%s4208 + $0x324] sm:$0xf]
  %v5538 = vld [vmem:[%s4208 + $0x328] sm:$0xf]
  %v5539 = vld [vmem:[%s4208 + $0x32c] sm:$0xf]
  %v5540 = vld [vmem:[%s4208 + $0x330] sm:$0xf]
  %v5541 = vld [vmem:[%s4208 + $0x334] sm:$0xf]
  %v5542 = vld [vmem:[%s4208 + $0x338] sm:$0xf]
  %v5543 = vld [vmem:[%s4208 + $0x33c] sm:$0xf]
  %v5544 = vld [vmem:[%s4208 + $0x340] sm:$0xf]
  %v5545 = vld [vmem:[%s4208 + $0x344] sm:$0xf]
  %v5546 = vld [vmem:[%s4208 + $0x348] sm:$0xf]
  %v5547 = vld [vmem:[%s4208 + $0x34c] sm:$0xf]
  %v5548 = vld [vmem:[%s4208 + $0x350] sm:$0xf]
  %v5549 = vld [vmem:[%s4208 + $0x354] sm:$0xf]
  %v5550 = vld [vmem:[%s4208 + $0x358] sm:$0xf]
  %v5551 = vld [vmem:[%s4208 + $0x35c] sm:$0xf]
  %v5552 = vld [vmem:[%s4208 + $0x360] sm:$0xf]
  %v5553 = vld [vmem:[%s4208 + $0x364] sm:$0xf]
  %v5554 = vld [vmem:[%s4208 + $0x368] sm:$0xf]
  %v5555 = vld [vmem:[%s4208 + $0x36c] sm:$0xf]
  %v5556 = vld [vmem:[%s4208 + $0x370] sm:$0xf]
  %v5557 = vld [vmem:[%s4208 + $0x374] sm:$0xf]
  %v5558 = vld [vmem:[%s4208 + $0x378] sm:$0xf]
  %v5559 = vld [vmem:[%s4208 + $0x37c] sm:$0xf]
  %v5560 = vld [vmem:[%s4208 + $0x380] sm:$0xf]
  %v5561 = vld [vmem:[%s4208 + $0x384] sm:$0xf]
  %v5562 = vld [vmem:[%s4208 + $0x388] sm:$0xf]
  %v5563 = vld [vmem:[%s4208 + $0x38c] sm:$0xf]
  %v5564 = vld [vmem:[%s4208 + $0x390] sm:$0xf]
  %v5565 = vld [vmem:[%s4208 + $0x394] sm:$0xf]
  %v5566 = vld [vmem:[%s4208 + $0x398] sm:$0xf]
  %v5567 = vld [vmem:[%s4208 + $0x39c] sm:$0xf]
  %v5568 = vld [vmem:[%s4208 + $0x3a0] sm:$0xf]
  %v5569 = vld [vmem:[%s4208 + $0x3a4] sm:$0xf]
  %v5570 = vld [vmem:[%s4208 + $0x3a8] sm:$0xf]
  %v5571 = vld [vmem:[%s4208 + $0x3ac] sm:$0xf]
  %v5572 = vld [vmem:[%s4208 + $0x3b0] sm:$0xf]
  %v5573 = vld [vmem:[%s4208 + $0x3b4] sm:$0xf]
  %v5574 = vld [vmem:[%s4208 + $0x3b8] sm:$0xf]
  %v5575 = vld [vmem:[%s4208 + $0x3bc] sm:$0xf]
  %v5576 = vld [vmem:[%s4208 + $0x3c0] sm:$0xf]
  %v5577 = vld [vmem:[%s4208 + $0x3c4] sm:$0xf]
  %v5578 = vld [vmem:[%s4208 + $0x3c8] sm:$0xf]
  %v5579 = vld [vmem:[%s4208 + $0x3cc] sm:$0xf]
  %v5580 = vld [vmem:[%s4208 + $0x3d0] sm:$0xf]
  %v5581 = vld [vmem:[%s4208 + $0x3d4] sm:$0xf]
  %v5582 = vld [vmem:[%s4208 + $0x3d8] sm:$0xf]
  %v5583 = vld [vmem:[%s4208 + $0x3dc] sm:$0xf]
  %v5584 = vld [vmem:[%s4208 + $0x3e0] sm:$0xf]
  %v5585 = vld [vmem:[%s4208 + $0x3e4] sm:$0xf]
  %v5586 = vld [vmem:[%s4208 + $0x3e8] sm:$0xf]
  %v5587 = vld [vmem:[%s4208 + $0x3ec] sm:$0xf]
  %v5588 = vld [vmem:[%s4208 + $0x3f0] sm:$0xf]
  %v5589 = vld [vmem:[%s4208 + $0x3f4] sm:$0xf]
  %v5590 = vld [vmem:[%s4208 + $0x3f8] sm:$0xf]
  %v5591 = vld [vmem:[%s4208 + $0x3fc] sm:$0xf]
  %v5592 = vpack.c.bf16 %v5524, %v5520
  %v5593 = vpack.c.bf16 %v5525, %v5521
  %v5594 = vpack.c.bf16 %v5526, %v5522
  %v5595 = vpack.c.bf16 %v5527, %v5523
  %v5660 = vunpack.c.l.b16 %v5528
  %v5661 = vunpack.c.l.b16 %v5529
  %v5662 = vunpack.c.l.b16 %v5530
  %v5663 = vunpack.c.l.b16 %v5531
  %v5664 = vunpack.c.l.b16 %v5532
  %v5665 = vunpack.c.l.b16 %v5533
  %v5666 = vunpack.c.l.b16 %v5534
  %v5667 = vunpack.c.l.b16 %v5535
  %v5668 = vunpack.c.l.b16 %v5536
  %v5669 = vunpack.c.l.b16 %v5537
  %v5670 = vunpack.c.l.b16 %v5538
  %v5671 = vunpack.c.l.b16 %v5539
  %v5672 = vunpack.c.l.b16 %v5540
  %v5673 = vunpack.c.l.b16 %v5541
  %v5674 = vunpack.c.l.b16 %v5542
  %v5675 = vunpack.c.l.b16 %v5543
  %v5676 = vunpack.c.l.b16 %v5544
  %v5677 = vunpack.c.l.b16 %v5545
  %v5678 = vunpack.c.l.b16 %v5546
  %v5679 = vunpack.c.l.b16 %v5547
  %v5680 = vunpack.c.l.b16 %v5548
  %v5681 = vunpack.c.l.b16 %v5549
  %v5682 = vunpack.c.l.b16 %v5550
  %v5683 = vunpack.c.l.b16 %v5551
  %v5684 = vunpack.c.l.b16 %v5552
  %v5685 = vunpack.c.l.b16 %v5553
  %v5686 = vunpack.c.l.b16 %v5554
  %v5687 = vunpack.c.l.b16 %v5555
  %v5688 = vunpack.c.l.b16 %v5556
  %v5689 = vunpack.c.l.b16 %v5557
  %v5690 = vunpack.c.l.b16 %v5558
  %v5691 = vunpack.c.l.b16 %v5559
  %v5692 = vunpack.c.l.b16 %v5560
  %v5693 = vunpack.c.l.b16 %v5561
  %v5694 = vunpack.c.l.b16 %v5562
  %v5695 = vunpack.c.l.b16 %v5563
  %v5696 = vunpack.c.l.b16 %v5564
  %v5697 = vunpack.c.l.b16 %v5565
  %v5698 = vunpack.c.l.b16 %v5566
  %v5699 = vunpack.c.l.b16 %v5567
  %v5700 = vunpack.c.l.b16 %v5568
  %v5701 = vunpack.c.l.b16 %v5569
  %v5702 = vunpack.c.l.b16 %v5570
  %v5703 = vunpack.c.l.b16 %v5571
  %v5704 = vunpack.c.l.b16 %v5572
  %v5705 = vunpack.c.l.b16 %v5573
  %v5706 = vunpack.c.l.b16 %v5574
  %v5707 = vunpack.c.l.b16 %v5575
  %v5708 = vunpack.c.l.b16 %v5576
  %v5709 = vunpack.c.l.b16 %v5577
  %v5710 = vunpack.c.l.b16 %v5578
  %v5711 = vunpack.c.l.b16 %v5579
  %v5712 = vunpack.c.l.b16 %v5580
  %v5713 = vunpack.c.l.b16 %v5581
  %v5714 = vunpack.c.l.b16 %v5582
  %v5715 = vunpack.c.l.b16 %v5583
  %v5716 = vunpack.c.l.b16 %v5584
  %v5717 = vunpack.c.l.b16 %v5585
  %v5718 = vunpack.c.l.b16 %v5586
  %v5719 = vunpack.c.l.b16 %v5587
  %v5720 = vunpack.c.l.b16 %v5588
  %v5721 = vunpack.c.l.b16 %v5589
  %v5722 = vunpack.c.l.b16 %v5590
  %v5723 = vunpack.c.l.b16 %v5591
  %v5724 = vpack.c.b16 %v5661, %v5660
  %v5725 = vpack.c.b16 %v5663, %v5662
  %v5726 = vpack.c.b16 %v5665, %v5664
  %v5727 = vpack.c.b16 %v5667, %v5666
  %v5728 = vpack.c.b16 %v5669, %v5668
  %v5729 = vpack.c.b16 %v5671, %v5670
  %v5730 = vpack.c.b16 %v5673, %v5672
  %v5731 = vpack.c.b16 %v5675, %v5674
  %v5732 = vpack.c.b16 %v5677, %v5676
  %v5733 = vpack.c.b16 %v5679, %v5678
  %v5734 = vpack.c.b16 %v5681, %v5680
  %v5735 = vpack.c.b16 %v5683, %v5682
  %v5736 = vpack.c.b16 %v5685, %v5684
  %v5737 = vpack.c.b16 %v5687, %v5686
  %v5738 = vpack.c.b16 %v5689, %v5688
  %v5739 = vpack.c.b16 %v5691, %v5690
  %v5740 = vpack.c.b16 %v5693, %v5692
  %v5741 = vpack.c.b16 %v5695, %v5694
  %v5742 = vpack.c.b16 %v5697, %v5696
  %v5743 = vpack.c.b16 %v5699, %v5698
  %v5744 = vpack.c.b16 %v5701, %v5700
  %v5745 = vpack.c.b16 %v5703, %v5702
  %v5746 = vpack.c.b16 %v5705, %v5704
  %v5747 = vpack.c.b16 %v5707, %v5706
  %v5748 = vpack.c.b16 %v5709, %v5708
  %v5749 = vpack.c.b16 %v5711, %v5710
  %v5750 = vpack.c.b16 %v5713, %v5712
  %v5751 = vpack.c.b16 %v5715, %v5714
  %v5752 = vpack.c.b16 %v5717, %v5716
  %v5753 = vpack.c.b16 %v5719, %v5718
  %v5754 = vpack.c.b16 %v5721, %v5720
  %v5755 = vpack.c.b16 %v5723, %v5722
  %5788 = vmatpush.bf16.msra.mxu0 %v5731
  %5789 = vmatpush.bf16.msra.mxu0 %v5730
  %5790 = vmatpush.bf16.msra.mxu0 %v5729
  %5791 = vmatpush.bf16.msra.mxu0 %v5728
  %5792 = vmatpush.bf16.msra.mxu0 %v5727
  %5793 = vmatpush.bf16.msra.mxu0 %v5726
  %5794 = vmatpush.bf16.msra.mxu0 %v5725
  %5795 = vmatpush.bf16.msra.mxu0 %v5724
  %5796 = vmatmul.bf16.gmra.mxu0 %v5592
  %v5797 = vpop.f32.mrf.mxu0
  %v5798 = vadd.f32 0.0, %v5797
  %v5799 = vpop.f32.mrf.mxu0
  %v5800 = vadd.f32 0.0, %v5799
  %5801 = vdwg.mxu0
  %5802 = vmatpush.bf16.msra.mxu0 %v5739
  %5803 = vmatpush.bf16.msra.mxu0 %v5738
  %5804 = vmatpush.bf16.msra.mxu0 %v5737
  %5805 = vmatpush.bf16.msra.mxu0 %v5736
  %5806 = vmatpush.bf16.msra.mxu0 %v5735
  %5807 = vmatpush.bf16.msra.mxu0 %v5734
  %5808 = vmatpush.bf16.msra.mxu0 %v5733
  %5809 = vmatpush.bf16.msra.mxu0 %v5732
  %5810 = vmatmul.bf16.gmra.mxu0 %v5593
  %v5811 = vpop.f32.mrf.mxu0
  %v5812 = vadd.f32 %v5798, %v5811
  %v5813 = vpop.f32.mrf.mxu0
  %v5814 = vadd.f32 %v5800, %v5813
  %5815 = vdwg.mxu0
  %5816 = vmatpush.bf16.msra.mxu0 %v5747
  %5817 = vmatpush.bf16.msra.mxu0 %v5746
  %5818 = vmatpush.bf16.msra.mxu0 %v5745
  %5819 = vmatpush.bf16.msra.mxu0 %v5744
  %5820 = vmatpush.bf16.msra.mxu0 %v5743
  %5821 = vmatpush.bf16.msra.mxu0 %v5742
  %5822 = vmatpush.bf16.msra.mxu0 %v5741
  %5823 = vmatpush.bf16.msra.mxu0 %v5740
  %5824 = vmatmul.bf16.gmra.mxu0 %v5594
  %v5825 = vpop.f32.mrf.mxu0
  %v5826 = vadd.f32 %v5812, %v5825
  %v5827 = vpop.f32.mrf.mxu0
  %v5828 = vadd.f32 %v5814, %v5827
  %5829 = vdwg.mxu0
  %5830 = vmatpush.bf16.msra.mxu0 %v5755
  %5831 = vmatpush.bf16.msra.mxu0 %v5754
  %5832 = vmatpush.bf16.msra.mxu0 %v5753
  %5833 = vmatpush.bf16.msra.mxu0 %v5752
  %5834 = vmatpush.bf16.msra.mxu0 %v5751
  %5835 = vmatpush.bf16.msra.mxu0 %v5750
  %5836 = vmatpush.bf16.msra.mxu0 %v5749
  %5837 = vmatpush.bf16.msra.mxu0 %v5748
  %5838 = vmatmul.bf16.gmra.mxu0 %v5595
  %v5839 = vpop.f32.mrf.mxu0
  %v5840 = vadd.f32 %v5826, %v5839
  %v5841 = vpop.f32.mrf.mxu0
  %v5842 = vadd.f32 %v5828, %v5841
  %5843 = vdwg.mxu0
  %v5844 = vadd.f32 %v5403, %v5840
  %v5845 = vadd.f32 %v5404, %v5842
  %v5846 = vperm.slane %v4079, 0
  %v5847 = vadd.f32 %v5844, %v5846
  %v5848 = vadd.f32 %v5845, %v5846
  %v5849 = vadd.f32 %v4077, %v5847
  %v5850 = vadd.f32 %v4078, %v5848
  %v5851 = vld [vmem:[%s5 + $0x14] sm:$0x1]
  %v5852 = vld [vmem:[%s5 + $0x15] sm:$0x1]
  %v5853 = vsel %vm54, %v5849, 0.0
  %5854 = vadd.xlane.f32.xlu0 %v5853
  %v5855 = vpop.xlane.xlu0 %5854
  %v5856 = vsel %vm54, %v5850, 0.0
  %5857 = vadd.xlane.f32.xlu0 %v5856
  %v5858 = vpop.xlane.xlu0 %5857
  %v5859 = vmul.f32 %v5855, %v123
  %v5860 = vmul.f32 %v5858, %v123
  %v5861 = vsub.f32 %v5849, %v5859
  %v5862 = vsub.f32 %v5850, %v5860
  %v5863 = vmul.f32 %v5861, %v5861
  %v5864 = vmul.f32 %v5862, %v5862
  %v5865 = vsel %vm54, %v5863, 0.0
  %5866 = vadd.xlane.f32.xlu0 %v5865
  %v5867 = vpop.xlane.xlu0 %5866
  %v5868 = vsel %vm54, %v5864, 0.0
  %5869 = vadd.xlane.f32.xlu0 %v5868
  %v5870 = vpop.xlane.xlu0 %5869
  %v5871 = vmul.f32 %v5867, %v123
  %v5872 = vmul.f32 %v5870, %v123
  %v5873 = vadd.f32 %v5871, 1e-05
  %v5874 = vadd.f32 %v5872, 1e-05
  %v5875 = vrsqrt.pop %v5873
  %v5876 = vmul.f32 %v5875, %v5873
  %v5877 = vmul.f32 %v5876, %v5875
  %v5878 = vmul.f32 0.5, %v5877
  %v5879 = vsub.f32 1.5, %v5878
  %v5880 = vmul.f32 %v5875, %v5879
  %vm5881 = vweird.f32 %v5873
  %vm5882 = vweird.f32 %v5875
  %vm5883 = vmor %vm5881, %vm5882
  %v5884 = vsel %vm5883, %v5875, %v5880
  %v5885 = vrsqrt.pop %v5874
  %v5886 = vmul.f32 %v5885, %v5874
  %v5887 = vmul.f32 %v5886, %v5885
  %v5888 = vmul.f32 0.5, %v5887
  %v5889 = vsub.f32 1.5, %v5888
  %v5890 = vmul.f32 %v5885, %v5889
  %vm5891 = vweird.f32 %v5874
  %vm5892 = vweird.f32 %v5885
  %vm5893 = vmor %vm5891, %vm5892
  %v5894 = vsel %vm5893, %v5885, %v5890
  %v5895 = vmul.f32 %v5861, %v5884
  %v5896 = vmul.f32 %v5862, %v5894
  %v5897 = vperm.slane %v5851, 0
  %v5898 = vmul.f32 %v5895, %v5897
  %v5899 = vmul.f32 %v5896, %v5897
  %v5900 = vperm.slane %v5852, 0
  %v5901 = vadd.f32 %v5898, %v5900
  %v5902 = vadd.f32 %v5899, %v5900
  %s5903 = scalar_lea.vmem %s1, 64
  %v5904 = vld [vmem:[%s5903] sm:$0xf]
  %v5905 = vld [vmem:[%s5903 + $0x4] sm:$0xf]
  %v5906 = vld [vmem:[%s5903 + $0x8] sm:$0xf]
  %v5907 = vld [vmem:[%s5903 + $0xc] sm:$0xf]
  %v5908 = vld [vmem:[%s5 + $0x16] sm:$0x1]
  %v5909 = vpack.c.bf16 %v5902, %v5901
  %v5910 = vperm.slane %v5908, 0
  %v5915 = vunpack.c.l.b16 %v5904
  %v5916 = vunpack.c.l.b16 %v5905
  %v5917 = vunpack.c.l.b16 %v5906
  %v5918 = vunpack.c.l.b16 %v5907
  %v5919 = vpack.c.b16 %v5916, %v5915
  %v5920 = vpack.c.b16 %v5918, %v5917
  %v5924 = vsel %vm54, %v5909, 0
  %5926 = vmatpush.bf16.msra.mxu0 0
  %5927 = vmatpush.bf16.msra.mxu0 0
  %5928 = vmatpush.bf16.msra.mxu0 0
  %5929 = vmatpush.bf16.msra.mxu0 0
  %5930 = vmatpush.bf16.msra.mxu0 0
  %5931 = vmatpush.bf16.msra.mxu0 0
  %5932 = vmatpush.bf16.msra.mxu0 %v5920
  %5933 = vmatpush.bf16.msra.mxu0 %v5919
  %5934 = vmatmul.bf16.gmra.mxu0 %v5924
  %v5935 = vpop.f32.mrf.mxu0
  %v5936 = vadd.f32 %v5910, %v5935
  %v5937 = vpop.f32.mrf.mxu0
  %v5938 = vadd.f32 %v5910, %v5937
  %5939 = vdwg.mxu0
  %v5940 = vld [vmem:[%s5 + $0x19] sm:$0x1]
  %v5941 = vld [vmem:[%s5 + $0x1a] sm:$0x1]
  %v5942 = vsel %vm54, %v5936, 0.0
  %5943 = vadd.xlane.f32.xlu0 %v5942
  %v5944 = vpop.xlane.xlu0 %5943
  %v5945 = vsel %vm54, %v5938, 0.0
  %5946 = vadd.xlane.f32.xlu0 %v5945
  %v5947 = vpop.xlane.xlu0 %5946
  %v5948 = vmul.f32 %v5944, %v123
  %v5949 = vmul.f32 %v5947, %v123
  %v5950 = vsub.f32 %v5936, %v5948
  %v5951 = vsub.f32 %v5938, %v5949
  %v5952 = vmul.f32 %v5950, %v5950
  %v5953 = vmul.f32 %v5951, %v5951
  %v5954 = vsel %vm54, %v5952, 0.0
  %5955 = vadd.xlane.f32.xlu0 %v5954
  %v5956 = vpop.xlane.xlu0 %5955
  %v5957 = vsel %vm54, %v5953, 0.0
  %5958 = vadd.xlane.f32.xlu0 %v5957
  %v5959 = vpop.xlane.xlu0 %5958
  %v5960 = vmul.f32 %v5956, %v123
  %v5961 = vmul.f32 %v5959, %v123
  %v5962 = vadd.f32 %v5960, 1e-05
  %v5963 = vadd.f32 %v5961, 1e-05
  %v5964 = vrsqrt.pop %v5962
  %v5965 = vmul.f32 %v5964, %v5962
  %v5966 = vmul.f32 %v5965, %v5964
  %v5967 = vmul.f32 0.5, %v5966
  %v5968 = vsub.f32 1.5, %v5967
  %v5969 = vmul.f32 %v5964, %v5968
  %vm5970 = vweird.f32 %v5962
  %vm5971 = vweird.f32 %v5964
  %vm5972 = vmor %vm5970, %vm5971
  %v5973 = vsel %vm5972, %v5964, %v5969
  %v5974 = vrsqrt.pop %v5963
  %v5975 = vmul.f32 %v5974, %v5963
  %v5976 = vmul.f32 %v5975, %v5974
  %v5977 = vmul.f32 0.5, %v5976
  %v5978 = vsub.f32 1.5, %v5977
  %v5979 = vmul.f32 %v5974, %v5978
  %vm5980 = vweird.f32 %v5963
  %vm5981 = vweird.f32 %v5974
  %vm5982 = vmor %vm5980, %vm5981
  %v5983 = vsel %vm5982, %v5974, %v5979
  %v5984 = vmul.f32 %v5950, %v5973
  %v5985 = vmul.f32 %v5951, %v5983
  %v5986 = vperm.slane %v5940, 0
  %v5987 = vmul.f32 %v5984, %v5986
  %v5988 = vmul.f32 %v5985, %v5986
  %v5989 = vperm.slane %v5941, 0
  %v5990 = vadd.f32 %v5987, %v5989
  %v5991 = vadd.f32 %v5988, %v5989
  %v5992 = vld [vmem:[%s5 + $0x17] sm:$0x1]
  %v5993 = vperm.slane %v5992, 0
  %5995 = vrot.lane.b32.xlu0 %v5993, 32
  %v5996 = vpop.permute.xlu0 %5995
  %v5998 = vadd.f32 %v3932, %v5996
  %v5999 = vadd.f32 %v3934, %v5996
  %6002 = vrot.lane.b32.xlu0 %v5998, 96
  %v6003 = vpop.permute.xlu0 %6002
  %6004 = vrot.lane.b32.xlu0 %v5999, 96
  %v6005 = vpop.permute.xlu0 %6004
  %v6008 = vadd.f32 %v5990, %v6003
  %v6009 = vadd.f32 %v5991, %v6005
  %v6010 = vld [vmem:[%s5 + $0x1b] sm:$0x1]
  %v6011 = vld [vmem:[%s5 + $0x1c] sm:$0x1]
  %v6012 = vsel %vm54, %v6008, 0.0
  %6013 = vadd.xlane.f32.xlu0 %v6012
  %v6014 = vpop.xlane.xlu0 %6013
  %v6015 = vsel %vm54, %v6009, 0.0
  %6016 = vadd.xlane.f32.xlu0 %v6015
  %v6017 = vpop.xlane.xlu0 %6016
  %v6018 = vmul.f32 %v6014, %v123
  %v6019 = vmul.f32 %v6017, %v123
  %v6020 = vsub.f32 %v6008, %v6018
  %v6021 = vsub.f32 %v6009, %v6019
  %v6022 = vmul.f32 %v6020, %v6020
  %v6023 = vmul.f32 %v6021, %v6021
  %v6024 = vsel %vm54, %v6022, 0.0
  %6025 = vadd.xlane.f32.xlu0 %v6024
  %v6026 = vpop.xlane.xlu0 %6025
  %v6027 = vsel %vm54, %v6023, 0.0
  %6028 = vadd.xlane.f32.xlu0 %v6027
  %v6029 = vpop.xlane.xlu0 %6028
  %v6030 = vmul.f32 %v6026, %v123
  %v6031 = vmul.f32 %v6029, %v123
  %v6032 = vadd.f32 %v6030, 1e-05
  %v6033 = vadd.f32 %v6031, 1e-05
  %v6034 = vrsqrt.pop %v6032
  %v6035 = vmul.f32 %v6034, %v6032
  %v6036 = vmul.f32 %v6035, %v6034
  %v6037 = vmul.f32 0.5, %v6036
  %v6038 = vsub.f32 1.5, %v6037
  %v6039 = vmul.f32 %v6034, %v6038
  %vm6040 = vweird.f32 %v6032
  %vm6041 = vweird.f32 %v6034
  %vm6042 = vmor %vm6040, %vm6041
  %v6043 = vsel %vm6042, %v6034, %v6039
  %v6044 = vrsqrt.pop %v6033
  %v6045 = vmul.f32 %v6044, %v6033
  %v6046 = vmul.f32 %v6045, %v6044
  %v6047 = vmul.f32 0.5, %v6046
  %v6048 = vsub.f32 1.5, %v6047
  %v6049 = vmul.f32 %v6044, %v6048
  %vm6050 = vweird.f32 %v6033
  %vm6051 = vweird.f32 %v6044
  %vm6052 = vmor %vm6050, %vm6051
  %v6053 = vsel %vm6052, %v6044, %v6049
  %v6054 = vmul.f32 %v6020, %v6043
  %v6055 = vmul.f32 %v6021, %v6053
  %v6056 = vperm.slane %v6010, 0
  %v6057 = vmul.f32 %v6054, %v6056
  %v6058 = vmul.f32 %v6055, %v6056
  %v6059 = vperm.slane %v6011, 0
  %v6060 = vadd.f32 %v6057, %v6059
  %v6061 = vadd.f32 %v6058, %v6059
  %v6062 = vld [vmem:[%s5 + $0x18] sm:$0x1]
  %v6063 = vpack.c.bf16 %v6061, %v6060
  %s6064 = scalar_lea.vmem %s3, 768
  %v6065 = vld [vmem:[%s6064] sm:$0xff]
  %v6066 = vld [vmem:[%s6064 + $0x8] sm:$0xff]
  %v6067 = vld [vmem:[%s6064 + $0x40] sm:$0xff]
  %v6068 = vld [vmem:[%s6064 + $0x48] sm:$0xff]
  %v6069 = vld [vmem:[%s6064 + $0x80] sm:$0xff]
  %v6070 = vld [vmem:[%s6064 + $0x88] sm:$0xff]
  %v6071 = vld [vmem:[%s6064 + $0xc0] sm:$0xff]
  %v6072 = vld [vmem:[%s6064 + $0xc8] sm:$0xff]
  %s6073 = scalar_lea.vmem %s6, 3
  %v6074 = vld [vmem:[%s6073] ss:$4 sm:$0xf]
  %v6076 = vperm.slane %v6074, 0
  %v6077 = vperm.slane %v6074, 1
  %v6078 = vperm.slane %v6074, 2
  %v6079 = vperm.slane %v6074, 3
  %v6092 = vunpack.c.l.b16 %v6065
  %v6093 = vunpack.c.h.b16 %v6065
  %v6094 = vunpack.c.l.b16 %v6066
  %v6095 = vunpack.c.h.b16 %v6066
  %v6096 = vunpack.c.l.b16 %v6067
  %v6097 = vunpack.c.h.b16 %v6067
  %v6098 = vunpack.c.l.b16 %v6068
  %v6099 = vunpack.c.h.b16 %v6068
  %v6100 = vunpack.c.l.b16 %v6069
  %v6101 = vunpack.c.h.b16 %v6069
  %v6102 = vunpack.c.l.b16 %v6070
  %v6103 = vunpack.c.h.b16 %v6070
  %v6104 = vunpack.c.l.b16 %v6071
  %v6105 = vunpack.c.h.b16 %v6071
  %v6106 = vunpack.c.l.b16 %v6072
  %v6107 = vunpack.c.h.b16 %v6072
  %v6108 = vpack.c.b16 %v6096, %v6092
  %v6109 = vpack.c.b16 %v6097, %v6093
  %v6110 = vpack.c.b16 %v6098, %v6094
  %v6111 = vpack.c.b16 %v6099, %v6095
  %v6112 = vpack.c.b16 %v6104, %v6100
  %v6113 = vpack.c.b16 %v6105, %v6101
  %v6114 = vpack.c.b16 %v6106, %v6102
  %v6115 = vpack.c.b16 %v6107, %v6103
  %v6125 = vsel %vm54, %v6063, 0
  %6127 = vmatpush.bf16.msra.mxu0 0
  %6128 = vmatpush.bf16.msra.mxu0 0
  %6129 = vmatpush.bf16.msra.mxu0 0
  %6130 = vmatpush.bf16.msra.mxu0 0
  %6131 = vmatpush.bf16.msra.mxu0 0
  %6132 = vmatpush.bf16.msra.mxu0 0
  %6133 = vmatpush.bf16.msra.mxu0 %v6112
  %6134 = vmatpush.bf16.msra.mxu0 %v6108
  %6135 = vmatmul.bf16.gmra.mxu0 %v6125
  %v6136 = vpop.f32.mrf.mxu0
  %v6137 = vadd.f32 %v6076, %v6136
  %v6138 = vpop.f32.mrf.mxu0
  %v6139 = vadd.f32 %v6076, %v6138
  %6140 = vdwg.mxu0
  %6141 = vmatpush.bf16.msra.mxu0 0
  %6142 = vmatpush.bf16.msra.mxu0 0
  %6143 = vmatpush.bf16.msra.mxu0 0
  %6144 = vmatpush.bf16.msra.mxu0 0
  %6145 = vmatpush.bf16.msra.mxu0 0
  %6146 = vmatpush.bf16.msra.mxu0 0
  %6147 = vmatpush.bf16.msra.mxu0 %v6113
  %6148 = vmatpush.bf16.msra.mxu0 %v6109
  %6149 = vmatmul.bf16.gmra.mxu0 %v6125
  %v6150 = vpop.f32.mrf.mxu0
  %v6151 = vadd.f32 %v6077, %v6150
  %v6152 = vpop.f32.mrf.mxu0
  %v6153 = vadd.f32 %v6077, %v6152
  %6154 = vdwg.mxu0
  %6155 = vmatpush.bf16.msra.mxu0 0
  %6156 = vmatpush.bf16.msra.mxu0 0
  %6157 = vmatpush.bf16.msra.mxu0 0
  %6158 = vmatpush.bf16.msra.mxu0 0
  %6159 = vmatpush.bf16.msra.mxu0 0
  %6160 = vmatpush.bf16.msra.mxu0 0
  %6161 = vmatpush.bf16.msra.mxu0 %v6114
  %6162 = vmatpush.bf16.msra.mxu0 %v6110
  %6163 = vmatmul.bf16.gmra.mxu0 %v6125
  %v6164 = vpop.f32.mrf.mxu0
  %v6165 = vadd.f32 %v6078, %v6164
  %v6166 = vpop.f32.mrf.mxu0
  %v6167 = vadd.f32 %v6078, %v6166
  %6168 = vdwg.mxu0
  %6169 = vmatpush.bf16.msra.mxu0 0
  %6170 = vmatpush.bf16.msra.mxu0 0
  %6171 = vmatpush.bf16.msra.mxu0 0
  %6172 = vmatpush.bf16.msra.mxu0 0
  %6173 = vmatpush.bf16.msra.mxu0 0
  %6174 = vmatpush.bf16.msra.mxu0 0
  %6175 = vmatpush.bf16.msra.mxu0 %v6115
  %6176 = vmatpush.bf16.msra.mxu0 %v6111
  %6177 = vmatmul.bf16.gmra.mxu0 %v6125
  %v6178 = vpop.f32.mrf.mxu0
  %v6179 = vadd.f32 %v6079, %v6178
  %v6180 = vpop.f32.mrf.mxu0
  %v6181 = vadd.f32 %v6079, %v6180
  %6182 = vdwg.mxu0
  %v6183 = vmax.f32 %v6137, 0.0
  %v6184 = vmax.f32 %v6151, 0.0
  %v6185 = vmax.f32 %v6165, 0.0
  %v6186 = vmax.f32 %v6179, 0.0
  %v6187 = vmax.f32 %v6139, 0.0
  %v6188 = vmax.f32 %v6153, 0.0
  %v6189 = vmax.f32 %v6167, 0.0
  %v6190 = vmax.f32 %v6181, 0.0
  %s6191 = scalar_lea.vmem %s4, 3072
  %v6192 = vld [vmem:[%s6191] sm:$0xf]
  %v6193 = vld [vmem:[%s6191 + $0x4] sm:$0xf]
  %v6194 = vld [vmem:[%s6191 + $0x8] sm:$0xf]
  %v6195 = vld [vmem:[%s6191 + $0xc] sm:$0xf]
  %v6196 = vld [vmem:[%s6191 + $0x10] sm:$0xf]
  %v6197 = vld [vmem:[%s6191 + $0x14] sm:$0xf]
  %v6198 = vld [vmem:[%s6191 + $0x18] sm:$0xf]
  %v6199 = vld [vmem:[%s6191 + $0x1c] sm:$0xf]
  %v6200 = vld [vmem:[%s6191 + $0x20] sm:$0xf]
  %v6201 = vld [vmem:[%s6191 + $0x24] sm:$0xf]
  %v6202 = vld [vmem:[%s6191 + $0x28] sm:$0xf]
  %v6203 = vld [vmem:[%s6191 + $0x2c] sm:$0xf]
  %v6204 = vld [vmem:[%s6191 + $0x30] sm:$0xf]
  %v6205 = vld [vmem:[%s6191 + $0x34] sm:$0xf]
  %v6206 = vld [vmem:[%s6191 + $0x38] sm:$0xf]
  %v6207 = vld [vmem:[%s6191 + $0x3c] sm:$0xf]
  %v6208 = vld [vmem:[%s6191 + $0x40] sm:$0xf]
  %v6209 = vld [vmem:[%s6191 + $0x44] sm:$0xf]
  %v6210 = vld [vmem:[%s6191 + $0x48] sm:$0xf]
  %v6211 = vld [vmem:[%s6191 + $0x4c] sm:$0xf]
  %v6212 = vld [vmem:[%s6191 + $0x50] sm:$0xf]
  %v6213 = vld [vmem:[%s6191 + $0x54] sm:$0xf]
  %v6214 = vld [vmem:[%s6191 + $0x58] sm:$0xf]
  %v6215 = vld [vmem:[%s6191 + $0x5c] sm:$0xf]
  %v6216 = vld [vmem:[%s6191 + $0x60] sm:$0xf]
  %v6217 = vld [vmem:[%s6191 + $0x64] sm:$0xf]
  %v6218 = vld [vmem:[%s6191 + $0x68] sm:$0xf]
  %v6219 = vld [vmem:[%s6191 + $0x6c] sm:$0xf]
  %v6220 = vld [vmem:[%s6191 + $0x70] sm:$0xf]
  %v6221 = vld [vmem:[%s6191 + $0x74] sm:$0xf]
  %v6222 = vld [vmem:[%s6191 + $0x78] sm:$0xf]
  %v6223 = vld [vmem:[%s6191 + $0x7c] sm:$0xf]
  %v6224 = vld [vmem:[%s6191 + $0x80] sm:$0xf]
  %v6225 = vld [vmem:[%s6191 + $0x84] sm:$0xf]
  %v6226 = vld [vmem:[%s6191 + $0x88] sm:$0xf]
  %v6227 = vld [vmem:[%s6191 + $0x8c] sm:$0xf]
  %v6228 = vld [vmem:[%s6191 + $0x90] sm:$0xf]
  %v6229 = vld [vmem:[%s6191 + $0x94] sm:$0xf]
  %v6230 = vld [vmem:[%s6191 + $0x98] sm:$0xf]
  %v6231 = vld [vmem:[%s6191 + $0x9c] sm:$0xf]
  %v6232 = vld [vmem:[%s6191 + $0xa0] sm:$0xf]
  %v6233 = vld [vmem:[%s6191 + $0xa4] sm:$0xf]
  %v6234 = vld [vmem:[%s6191 + $0xa8] sm:$0xf]
  %v6235 = vld [vmem:[%s6191 + $0xac] sm:$0xf]
  %v6236 = vld [vmem:[%s6191 + $0xb0] sm:$0xf]
  %v6237 = vld [vmem:[%s6191 + $0xb4] sm:$0xf]
  %v6238 = vld [vmem:[%s6191 + $0xb8] sm:$0xf]
  %v6239 = vld [vmem:[%s6191 + $0xbc] sm:$0xf]
  %v6240 = vld [vmem:[%s6191 + $0xc0] sm:$0xf]
  %v6241 = vld [vmem:[%s6191 + $0xc4] sm:$0xf]
  %v6242 = vld [vmem:[%s6191 + $0xc8] sm:$0xf]
  %v6243 = vld [vmem:[%s6191 + $0xcc] sm:$0xf]
  %v6244 = vld [vmem:[%s6191 + $0xd0] sm:$0xf]
  %v6245 = vld [vmem:[%s6191 + $0xd4] sm:$0xf]
  %v6246 = vld [vmem:[%s6191 + $0xd8] sm:$0xf]
  %v6247 = vld [vmem:[%s6191 + $0xdc] sm:$0xf]
  %v6248 = vld [vmem:[%s6191 + $0xe0] sm:$0xf]
  %v6249 = vld [vmem:[%s6191 + $0xe4] sm:$0xf]
  %v6250 = vld [vmem:[%s6191 + $0xe8] sm:$0xf]
  %v6251 = vld [vmem:[%s6191 + $0xec] sm:$0xf]
  %v6252 = vld [vmem:[%s6191 + $0xf0] sm:$0xf]
  %v6253 = vld [vmem:[%s6191 + $0xf4] sm:$0xf]
  %v6254 = vld [vmem:[%s6191 + $0xf8] sm:$0xf]
  %v6255 = vld [vmem:[%s6191 + $0xfc] sm:$0xf]
  %v6256 = vpack.c.bf16 %v6187, %v6183
  %v6257 = vpack.c.bf16 %v6188, %v6184
  %v6258 = vpack.c.bf16 %v6189, %v6185
  %v6259 = vpack.c.bf16 %v6190, %v6186
  %v6260 = vld [vmem:[%s6064 + $0x10] sm:$0xff]
  %v6261 = vld [vmem:[%s6064 + $0x18] sm:$0xff]
  %v6262 = vld [vmem:[%s6064 + $0x50] sm:$0xff]
  %v6263 = vld [vmem:[%s6064 + $0x58] sm:$0xff]
  %v6264 = vld [vmem:[%s6064 + $0x90] sm:$0xff]
  %v6265 = vld [vmem:[%s6064 + $0x98] sm:$0xff]
  %v6266 = vld [vmem:[%s6064 + $0xd0] sm:$0xff]
  %v6267 = vld [vmem:[%s6064 + $0xd8] sm:$0xff]
  %s6268 = scalar_lea.vmem %s6, 19
  %v6269 = vld [vmem:[%s6268] ss:$4 sm:$0xf]
  %v6271 = vperm.slane %v6269, 0
  %v6272 = vperm.slane %v6269, 1
  %v6273 = vperm.slane %v6269, 2
  %v6274 = vperm.slane %v6269, 3
  %v6287 = vunpack.c.l.b16 %v6260
  %v6288 = vunpack.c.h.b16 %v6260
  %v6289 = vunpack.c.l.b16 %v6261
  %v6290 = vunpack.c.h.b16 %v6261
  %v6291 = vunpack.c.l.b16 %v6262
  %v6292 = vunpack.c.h.b16 %v6262
  %v6293 = vunpack.c.l.b16 %v6263
  %v6294 = vunpack.c.h.b16 %v6263
  %v6295 = vunpack.c.l.b16 %v6264
  %v6296 = vunpack.c.h.b16 %v6264
  %v6297 = vunpack.c.l.b16 %v6265
  %v6298 = vunpack.c.h.b16 %v6265
  %v6299 = vunpack.c.l.b16 %v6266
  %v6300 = vunpack.c.h.b16 %v6266
  %v6301 = vunpack.c.l.b16 %v6267
  %v6302 = vunpack.c.h.b16 %v6267
  %v6303 = vpack.c.b16 %v6291, %v6287
  %v6304 = vpack.c.b16 %v6292, %v6288
  %v6305 = vpack.c.b16 %v6293, %v6289
  %v6306 = vpack.c.b16 %v6294, %v6290
  %v6307 = vpack.c.b16 %v6299, %v6295
  %v6308 = vpack.c.b16 %v6300, %v6296
  %v6309 = vpack.c.b16 %v6301, %v6297
  %v6310 = vpack.c.b16 %v6302, %v6298
  %6319 = vmatpush.bf16.msra.mxu0 0
  %6320 = vmatpush.bf16.msra.mxu0 0
  %6321 = vmatpush.bf16.msra.mxu0 0
  %6322 = vmatpush.bf16.msra.mxu0 0
  %6323 = vmatpush.bf16.msra.mxu0 0
  %6324 = vmatpush.bf16.msra.mxu0 0
  %6325 = vmatpush.bf16.msra.mxu0 %v6307
  %6326 = vmatpush.bf16.msra.mxu0 %v6303
  %6327 = vmatmul.bf16.gmra.mxu0 %v6125
  %v6328 = vpop.f32.mrf.mxu0
  %v6329 = vadd.f32 %v6271, %v6328
  %v6330 = vpop.f32.mrf.mxu0
  %v6331 = vadd.f32 %v6271, %v6330
  %6332 = vdwg.mxu0
  %6333 = vmatpush.bf16.msra.mxu0 0
  %6334 = vmatpush.bf16.msra.mxu0 0
  %6335 = vmatpush.bf16.msra.mxu0 0
  %6336 = vmatpush.bf16.msra.mxu0 0
  %6337 = vmatpush.bf16.msra.mxu0 0
  %6338 = vmatpush.bf16.msra.mxu0 0
  %6339 = vmatpush.bf16.msra.mxu0 %v6308
  %6340 = vmatpush.bf16.msra.mxu0 %v6304
  %6341 = vmatmul.bf16.gmra.mxu0 %v6125
  %v6342 = vpop.f32.mrf.mxu0
  %v6343 = vadd.f32 %v6272, %v6342
  %v6344 = vpop.f32.mrf.mxu0
  %v6345 = vadd.f32 %v6272, %v6344
  %6346 = vdwg.mxu0
  %6347 = vmatpush.bf16.msra.mxu0 0
  %6348 = vmatpush.bf16.msra.mxu0 0
  %6349 = vmatpush.bf16.msra.mxu0 0
  %6350 = vmatpush.bf16.msra.mxu0 0
  %6351 = vmatpush.bf16.msra.mxu0 0
  %6352 = vmatpush.bf16.msra.mxu0 0
  %6353 = vmatpush.bf16.msra.mxu0 %v6309
  %6354 = vmatpush.bf16.msra.mxu0 %v6305
  %6355 = vmatmul.bf16.gmra.mxu0 %v6125
  %v6356 = vpop.f32.mrf.mxu0
  %v6357 = vadd.f32 %v6273, %v6356
  %v6358 = vpop.f32.mrf.mxu0
  %v6359 = vadd.f32 %v6273, %v6358
  %6360 = vdwg.mxu0
  %6361 = vmatpush.bf16.msra.mxu0 0
  %6362 = vmatpush.bf16.msra.mxu0 0
  %6363 = vmatpush.bf16.msra.mxu0 0
  %6364 = vmatpush.bf16.msra.mxu0 0
  %6365 = vmatpush.bf16.msra.mxu0 0
  %6366 = vmatpush.bf16.msra.mxu0 0
  %6367 = vmatpush.bf16.msra.mxu0 %v6310
  %6368 = vmatpush.bf16.msra.mxu0 %v6306
  %6369 = vmatmul.bf16.gmra.mxu0 %v6125
  %v6370 = vpop.f32.mrf.mxu0
  %v6371 = vadd.f32 %v6274, %v6370
  %v6372 = vpop.f32.mrf.mxu0
  %v6373 = vadd.f32 %v6274, %v6372
  %6374 = vdwg.mxu0
  %v6375 = vmax.f32 %v6329, 0.0
  %v6376 = vmax.f32 %v6343, 0.0
  %v6377 = vmax.f32 %v6357, 0.0
  %v6378 = vmax.f32 %v6371, 0.0
  %v6379 = vmax.f32 %v6331, 0.0
  %v6380 = vmax.f32 %v6345, 0.0
  %v6381 = vmax.f32 %v6359, 0.0
  %v6382 = vmax.f32 %v6373, 0.0
  %v6383 = vld [vmem:[%s6191 + $0x100] sm:$0xf]
  %v6384 = vld [vmem:[%s6191 + $0x104] sm:$0xf]
  %v6385 = vld [vmem:[%s6191 + $0x108] sm:$0xf]
  %v6386 = vld [vmem:[%s6191 + $0x10c] sm:$0xf]
  %v6387 = vld [vmem:[%s6191 + $0x110] sm:$0xf]
  %v6388 = vld [vmem:[%s6191 + $0x114] sm:$0xf]
  %v6389 = vld [vmem:[%s6191 + $0x118] sm:$0xf]
  %v6390 = vld [vmem:[%s6191 + $0x11c] sm:$0xf]
  %v6391 = vld [vmem:[%s6191 + $0x120] sm:$0xf]
  %v6392 = vld [vmem:[%s6191 + $0x124] sm:$0xf]
  %v6393 = vld [vmem:[%s6191 + $0x128] sm:$0xf]
  %v6394 = vld [vmem:[%s6191 + $0x12c] sm:$0xf]
  %v6395 = vld [vmem:[%s6191 + $0x130] sm:$0xf]
  %v6396 = vld [vmem:[%s6191 + $0x134] sm:$0xf]
  %v6397 = vld [vmem:[%s6191 + $0x138] sm:$0xf]
  %v6398 = vld [vmem:[%s6191 + $0x13c] sm:$0xf]
  %v6399 = vld [vmem:[%s6191 + $0x140] sm:$0xf]
  %v6400 = vld [vmem:[%s6191 + $0x144] sm:$0xf]
  %v6401 = vld [vmem:[%s6191 + $0x148] sm:$0xf]
  %v6402 = vld [vmem:[%s6191 + $0x14c] sm:$0xf]
  %v6403 = vld [vmem:[%s6191 + $0x150] sm:$0xf]
  %v6404 = vld [vmem:[%s6191 + $0x154] sm:$0xf]
  %v6405 = vld [vmem:[%s6191 + $0x158] sm:$0xf]
  %v6406 = vld [vmem:[%s6191 + $0x15c] sm:$0xf]
  %v6407 = vld [vmem:[%s6191 + $0x160] sm:$0xf]
  %v6408 = vld [vmem:[%s6191 + $0x164] sm:$0xf]
  %v6409 = vld [vmem:[%s6191 + $0x168] sm:$0xf]
  %v6410 = vld [vmem:[%s6191 + $0x16c] sm:$0xf]
  %v6411 = vld [vmem:[%s6191 + $0x170] sm:$0xf]
  %v6412 = vld [vmem:[%s6191 + $0x174] sm:$0xf]
  %v6413 = vld [vmem:[%s6191 + $0x178] sm:$0xf]
  %v6414 = vld [vmem:[%s6191 + $0x17c] sm:$0xf]
  %v6415 = vld [vmem:[%s6191 + $0x180] sm:$0xf]
  %v6416 = vld [vmem:[%s6191 + $0x184] sm:$0xf]
  %v6417 = vld [vmem:[%s6191 + $0x188] sm:$0xf]
  %v6418 = vld [vmem:[%s6191 + $0x18c] sm:$0xf]
  %v6419 = vld [vmem:[%s6191 + $0x190] sm:$0xf]
  %v6420 = vld [vmem:[%s6191 + $0x194] sm:$0xf]
  %v6421 = vld [vmem:[%s6191 + $0x198] sm:$0xf]
  %v6422 = vld [vmem:[%s6191 + $0x19c] sm:$0xf]
  %v6423 = vld [vmem:[%s6191 + $0x1a0] sm:$0xf]
  %v6424 = vld [vmem:[%s6191 + $0x1a4] sm:$0xf]
  %v6425 = vld [vmem:[%s6191 + $0x1a8] sm:$0xf]
  %v6426 = vld [vmem:[%s6191 + $0x1ac] sm:$0xf]
  %v6427 = vld [vmem:[%s6191 + $0x1b0] sm:$0xf]
  %v6428 = vld [vmem:[%s6191 + $0x1b4] sm:$0xf]
  %v6429 = vld [vmem:[%s6191 + $0x1b8] sm:$0xf]
  %v6430 = vld [vmem:[%s6191 + $0x1bc] sm:$0xf]
  %v6431 = vld [vmem:[%s6191 + $0x1c0] sm:$0xf]
  %v6432 = vld [vmem:[%s6191 + $0x1c4] sm:$0xf]
  %v6433 = vld [vmem:[%s6191 + $0x1c8] sm:$0xf]
  %v6434 = vld [vmem:[%s6191 + $0x1cc] sm:$0xf]
  %v6435 = vld [vmem:[%s6191 + $0x1d0] sm:$0xf]
  %v6436 = vld [vmem:[%s6191 + $0x1d4] sm:$0xf]
  %v6437 = vld [vmem:[%s6191 + $0x1d8] sm:$0xf]
  %v6438 = vld [vmem:[%s6191 + $0x1dc] sm:$0xf]
  %v6439 = vld [vmem:[%s6191 + $0x1e0] sm:$0xf]
  %v6440 = vld [vmem:[%s6191 + $0x1e4] sm:$0xf]
  %v6441 = vld [vmem:[%s6191 + $0x1e8] sm:$0xf]
  %v6442 = vld [vmem:[%s6191 + $0x1ec] sm:$0xf]
  %v6443 = vld [vmem:[%s6191 + $0x1f0] sm:$0xf]
  %v6444 = vld [vmem:[%s6191 + $0x1f4] sm:$0xf]
  %v6445 = vld [vmem:[%s6191 + $0x1f8] sm:$0xf]
  %v6446 = vld [vmem:[%s6191 + $0x1fc] sm:$0xf]
  %v6447 = vpack.c.bf16 %v6379, %v6375
  %v6448 = vpack.c.bf16 %v6380, %v6376
  %v6449 = vpack.c.bf16 %v6381, %v6377
  %v6450 = vpack.c.bf16 %v6382, %v6378
  %v6515 = vunpack.c.l.b16 %v6383
  %v6516 = vunpack.c.l.b16 %v6384
  %v6517 = vunpack.c.l.b16 %v6385
  %v6518 = vunpack.c.l.b16 %v6386
  %v6519 = vunpack.c.l.b16 %v6387
  %v6520 = vunpack.c.l.b16 %v6388
  %v6521 = vunpack.c.l.b16 %v6389
  %v6522 = vunpack.c.l.b16 %v6390
  %v6523 = vunpack.c.l.b16 %v6391
  %v6524 = vunpack.c.l.b16 %v6392
  %v6525 = vunpack.c.l.b16 %v6393
  %v6526 = vunpack.c.l.b16 %v6394
  %v6527 = vunpack.c.l.b16 %v6395
  %v6528 = vunpack.c.l.b16 %v6396
  %v6529 = vunpack.c.l.b16 %v6397
  %v6530 = vunpack.c.l.b16 %v6398
  %v6531 = vunpack.c.l.b16 %v6399
  %v6532 = vunpack.c.l.b16 %v6400
  %v6533 = vunpack.c.l.b16 %v6401
  %v6534 = vunpack.c.l.b16 %v6402
  %v6535 = vunpack.c.l.b16 %v6403
  %v6536 = vunpack.c.l.b16 %v6404
  %v6537 = vunpack.c.l.b16 %v6405
  %v6538 = vunpack.c.l.b16 %v6406
  %v6539 = vunpack.c.l.b16 %v6407
  %v6540 = vunpack.c.l.b16 %v6408
  %v6541 = vunpack.c.l.b16 %v6409
  %v6542 = vunpack.c.l.b16 %v6410
  %v6543 = vunpack.c.l.b16 %v6411
  %v6544 = vunpack.c.l.b16 %v6412
  %v6545 = vunpack.c.l.b16 %v6413
  %v6546 = vunpack.c.l.b16 %v6414
  %v6547 = vunpack.c.l.b16 %v6415
  %v6548 = vunpack.c.l.b16 %v6416
  %v6549 = vunpack.c.l.b16 %v6417
  %v6550 = vunpack.c.l.b16 %v6418
  %v6551 = vunpack.c.l.b16 %v6419
  %v6552 = vunpack.c.l.b16 %v6420
  %v6553 = vunpack.c.l.b16 %v6421
  %v6554 = vunpack.c.l.b16 %v6422
  %v6555 = vunpack.c.l.b16 %v6423
  %v6556 = vunpack.c.l.b16 %v6424
  %v6557 = vunpack.c.l.b16 %v6425
  %v6558 = vunpack.c.l.b16 %v6426
  %v6559 = vunpack.c.l.b16 %v6427
  %v6560 = vunpack.c.l.b16 %v6428
  %v6561 = vunpack.c.l.b16 %v6429
  %v6562 = vunpack.c.l.b16 %v6430
  %v6563 = vunpack.c.l.b16 %v6431
  %v6564 = vunpack.c.l.b16 %v6432
  %v6565 = vunpack.c.l.b16 %v6433
  %v6566 = vunpack.c.l.b16 %v6434
  %v6567 = vunpack.c.l.b16 %v6435
  %v6568 = vunpack.c.l.b16 %v6436
  %v6569 = vunpack.c.l.b16 %v6437
  %v6570 = vunpack.c.l.b16 %v6438
  %v6571 = vunpack.c.l.b16 %v6439
  %v6572 = vunpack.c.l.b16 %v6440
  %v6573 = vunpack.c.l.b16 %v6441
  %v6574 = vunpack.c.l.b16 %v6442
  %v6575 = vunpack.c.l.b16 %v6443
  %v6576 = vunpack.c.l.b16 %v6444
  %v6577 = vunpack.c.l.b16 %v6445
  %v6578 = vunpack.c.l.b16 %v6446
  %v6579 = vpack.c.b16 %v6516, %v6515
  %v6580 = vpack.c.b16 %v6518, %v6517
  %v6581 = vpack.c.b16 %v6520, %v6519
  %v6582 = vpack.c.b16 %v6522, %v6521
  %v6583 = vpack.c.b16 %v6524, %v6523
  %v6584 = vpack.c.b16 %v6526, %v6525
  %v6585 = vpack.c.b16 %v6528, %v6527
  %v6586 = vpack.c.b16 %v6530, %v6529
  %v6587 = vpack.c.b16 %v6532, %v6531
  %v6588 = vpack.c.b16 %v6534, %v6533
  %v6589 = vpack.c.b16 %v6536, %v6535
  %v6590 = vpack.c.b16 %v6538, %v6537
  %v6591 = vpack.c.b16 %v6540, %v6539
  %v6592 = vpack.c.b16 %v6542, %v6541
  %v6593 = vpack.c.b16 %v6544, %v6543
  %v6594 = vpack.c.b16 %v6546, %v6545
  %v6595 = vpack.c.b16 %v6548, %v6547
  %v6596 = vpack.c.b16 %v6550, %v6549
  %v6597 = vpack.c.b16 %v6552, %v6551
  %v6598 = vpack.c.b16 %v6554, %v6553
  %v6599 = vpack.c.b16 %v6556, %v6555
  %v6600 = vpack.c.b16 %v6558, %v6557
  %v6601 = vpack.c.b16 %v6560, %v6559
  %v6602 = vpack.c.b16 %v6562, %v6561
  %v6603 = vpack.c.b16 %v6564, %v6563
  %v6604 = vpack.c.b16 %v6566, %v6565
  %v6605 = vpack.c.b16 %v6568, %v6567
  %v6606 = vpack.c.b16 %v6570, %v6569
  %v6607 = vpack.c.b16 %v6572, %v6571
  %v6608 = vpack.c.b16 %v6574, %v6573
  %v6609 = vpack.c.b16 %v6576, %v6575
  %v6610 = vpack.c.b16 %v6578, %v6577
  %6643 = vmatpush.bf16.msra.mxu0 %v6586
  %6644 = vmatpush.bf16.msra.mxu0 %v6585
  %6645 = vmatpush.bf16.msra.mxu0 %v6584
  %6646 = vmatpush.bf16.msra.mxu0 %v6583
  %6647 = vmatpush.bf16.msra.mxu0 %v6582
  %6648 = vmatpush.bf16.msra.mxu0 %v6581
  %6649 = vmatpush.bf16.msra.mxu0 %v6580
  %6650 = vmatpush.bf16.msra.mxu0 %v6579
  %6651 = vmatmul.bf16.gmra.mxu0 %v6447
  %v6652 = vpop.f32.mrf.mxu0
  %v6653 = vadd.f32 0.0, %v6652
  %v6654 = vpop.f32.mrf.mxu0
  %v6655 = vadd.f32 0.0, %v6654
  %6656 = vdwg.mxu0
  %6657 = vmatpush.bf16.msra.mxu0 %v6594
  %6658 = vmatpush.bf16.msra.mxu0 %v6593
  %6659 = vmatpush.bf16.msra.mxu0 %v6592
  %6660 = vmatpush.bf16.msra.mxu0 %v6591
  %6661 = vmatpush.bf16.msra.mxu0 %v6590
  %6662 = vmatpush.bf16.msra.mxu0 %v6589
  %6663 = vmatpush.bf16.msra.mxu0 %v6588
  %6664 = vmatpush.bf16.msra.mxu0 %v6587
  %6665 = vmatmul.bf16.gmra.mxu0 %v6448
  %v6666 = vpop.f32.mrf.mxu0
  %v6667 = vadd.f32 %v6653, %v6666
  %v6668 = vpop.f32.mrf.mxu0
  %v6669 = vadd.f32 %v6655, %v6668
  %6670 = vdwg.mxu0
  %6671 = vmatpush.bf16.msra.mxu0 %v6602
  %6672 = vmatpush.bf16.msra.mxu0 %v6601
  %6673 = vmatpush.bf16.msra.mxu0 %v6600
  %6674 = vmatpush.bf16.msra.mxu0 %v6599
  %6675 = vmatpush.bf16.msra.mxu0 %v6598
  %6676 = vmatpush.bf16.msra.mxu0 %v6597
  %6677 = vmatpush.bf16.msra.mxu0 %v6596
  %6678 = vmatpush.bf16.msra.mxu0 %v6595
  %6679 = vmatmul.bf16.gmra.mxu0 %v6449
  %v6680 = vpop.f32.mrf.mxu0
  %v6681 = vadd.f32 %v6667, %v6680
  %v6682 = vpop.f32.mrf.mxu0
  %v6683 = vadd.f32 %v6669, %v6682
  %6684 = vdwg.mxu0
  %6685 = vmatpush.bf16.msra.mxu0 %v6610
  %6686 = vmatpush.bf16.msra.mxu0 %v6609
  %6687 = vmatpush.bf16.msra.mxu0 %v6608
  %6688 = vmatpush.bf16.msra.mxu0 %v6607
  %6689 = vmatpush.bf16.msra.mxu0 %v6606
  %6690 = vmatpush.bf16.msra.mxu0 %v6605
  %6691 = vmatpush.bf16.msra.mxu0 %v6604
  %6692 = vmatpush.bf16.msra.mxu0 %v6603
  %6693 = vmatmul.bf16.gmra.mxu0 %v6450
  %v6694 = vpop.f32.mrf.mxu0
  %v6695 = vadd.f32 %v6681, %v6694
  %v6696 = vpop.f32.mrf.mxu0
  %v6697 = vadd.f32 %v6683, %v6696
  %6698 = vdwg.mxu0
  %v6763 = vunpack.c.l.b16 %v6192
  %v6764 = vunpack.c.l.b16 %v6193
  %v6765 = vunpack.c.l.b16 %v6194
  %v6766 = vunpack.c.l.b16 %v6195
  %v6767 = vunpack.c.l.b16 %v6196
  %v6768 = vunpack.c.l.b16 %v6197
  %v6769 = vunpack.c.l.b16 %v6198
  %v6770 = vunpack.c.l.b16 %v6199
  %v6771 = vunpack.c.l.b16 %v6200
  %v6772 = vunpack.c.l.b16 %v6201
  %v6773 = vunpack.c.l.b16 %v6202
  %v6774 = vunpack.c.l.b16 %v6203
  %v6775 = vunpack.c.l.b16 %v6204
  %v6776 = vunpack.c.l.b16 %v6205
  %v6777 = vunpack.c.l.b16 %v6206
  %v6778 = vunpack.c.l.b16 %v6207
  %v6779 = vunpack.c.l.b16 %v6208
  %v6780 = vunpack.c.l.b16 %v6209
  %v6781 = vunpack.c.l.b16 %v6210
  %v6782 = vunpack.c.l.b16 %v6211
  %v6783 = vunpack.c.l.b16 %v6212
  %v6784 = vunpack.c.l.b16 %v6213
  %v6785 = vunpack.c.l.b16 %v6214
  %v6786 = vunpack.c.l.b16 %v6215
  %v6787 = vunpack.c.l.b16 %v6216
  %v6788 = vunpack.c.l.b16 %v6217
  %v6789 = vunpack.c.l.b16 %v6218
  %v6790 = vunpack.c.l.b16 %v6219
  %v6791 = vunpack.c.l.b16 %v6220
  %v6792 = vunpack.c.l.b16 %v6221
  %v6793 = vunpack.c.l.b16 %v6222
  %v6794 = vunpack.c.l.b16 %v6223
  %v6795 = vunpack.c.l.b16 %v6224
  %v6796 = vunpack.c.l.b16 %v6225
  %v6797 = vunpack.c.l.b16 %v6226
  %v6798 = vunpack.c.l.b16 %v6227
  %v6799 = vunpack.c.l.b16 %v6228
  %v6800 = vunpack.c.l.b16 %v6229
  %v6801 = vunpack.c.l.b16 %v6230
  %v6802 = vunpack.c.l.b16 %v6231
  %v6803 = vunpack.c.l.b16 %v6232
  %v6804 = vunpack.c.l.b16 %v6233
  %v6805 = vunpack.c.l.b16 %v6234
  %v6806 = vunpack.c.l.b16 %v6235
  %v6807 = vunpack.c.l.b16 %v6236
  %v6808 = vunpack.c.l.b16 %v6237
  %v6809 = vunpack.c.l.b16 %v6238
  %v6810 = vunpack.c.l.b16 %v6239
  %v6811 = vunpack.c.l.b16 %v6240
  %v6812 = vunpack.c.l.b16 %v6241
  %v6813 = vunpack.c.l.b16 %v6242
  %v6814 = vunpack.c.l.b16 %v6243
  %v6815 = vunpack.c.l.b16 %v6244
  %v6816 = vunpack.c.l.b16 %v6245
  %v6817 = vunpack.c.l.b16 %v6246
  %v6818 = vunpack.c.l.b16 %v6247
  %v6819 = vunpack.c.l.b16 %v6248
  %v6820 = vunpack.c.l.b16 %v6249
  %v6821 = vunpack.c.l.b16 %v6250
  %v6822 = vunpack.c.l.b16 %v6251
  %v6823 = vunpack.c.l.b16 %v6252
  %v6824 = vunpack.c.l.b16 %v6253
  %v6825 = vunpack.c.l.b16 %v6254
  %v6826 = vunpack.c.l.b16 %v6255
  %v6827 = vpack.c.b16 %v6764, %v6763
  %v6828 = vpack.c.b16 %v6766, %v6765
  %v6829 = vpack.c.b16 %v6768, %v6767
  %v6830 = vpack.c.b16 %v6770, %v6769
  %v6831 = vpack.c.b16 %v6772, %v6771
  %v6832 = vpack.c.b16 %v6774, %v6773
  %v6833 = vpack.c.b16 %v6776, %v6775
  %v6834 = vpack.c.b16 %v6778, %v6777
  %v6835 = vpack.c.b16 %v6780, %v6779
  %v6836 = vpack.c.b16 %v6782, %v6781
  %v6837 = vpack.c.b16 %v6784, %v6783
  %v6838 = vpack.c.b16 %v6786, %v6785
  %v6839 = vpack.c.b16 %v6788, %v6787
  %v6840 = vpack.c.b16 %v6790, %v6789
  %v6841 = vpack.c.b16 %v6792, %v6791
  %v6842 = vpack.c.b16 %v6794, %v6793
  %v6843 = vpack.c.b16 %v6796, %v6795
  %v6844 = vpack.c.b16 %v6798, %v6797
  %v6845 = vpack.c.b16 %v6800, %v6799
  %v6846 = vpack.c.b16 %v6802, %v6801
  %v6847 = vpack.c.b16 %v6804, %v6803
  %v6848 = vpack.c.b16 %v6806, %v6805
  %v6849 = vpack.c.b16 %v6808, %v6807
  %v6850 = vpack.c.b16 %v6810, %v6809
  %v6851 = vpack.c.b16 %v6812, %v6811
  %v6852 = vpack.c.b16 %v6814, %v6813
  %v6853 = vpack.c.b16 %v6816, %v6815
  %v6854 = vpack.c.b16 %v6818, %v6817
  %v6855 = vpack.c.b16 %v6820, %v6819
  %v6856 = vpack.c.b16 %v6822, %v6821
  %v6857 = vpack.c.b16 %v6824, %v6823
  %v6858 = vpack.c.b16 %v6826, %v6825
  %6891 = vmatpush.bf16.msra.mxu0 %v6834
  %6892 = vmatpush.bf16.msra.mxu0 %v6833
  %6893 = vmatpush.bf16.msra.mxu0 %v6832
  %6894 = vmatpush.bf16.msra.mxu0 %v6831
  %6895 = vmatpush.bf16.msra.mxu0 %v6830
  %6896 = vmatpush.bf16.msra.mxu0 %v6829
  %6897 = vmatpush.bf16.msra.mxu0 %v6828
  %6898 = vmatpush.bf16.msra.mxu0 %v6827
  %6899 = vmatmul.bf16.gmra.mxu0 %v6256
  %v6900 = vpop.f32.mrf.mxu0
  %v6901 = vadd.f32 %v6695, %v6900
  %v6902 = vpop.f32.mrf.mxu0
  %v6903 = vadd.f32 %v6697, %v6902
  %6904 = vdwg.mxu0
  %6905 = vmatpush.bf16.msra.mxu0 %v6842
  %6906 = vmatpush.bf16.msra.mxu0 %v6841
  %6907 = vmatpush.bf16.msra.mxu0 %v6840
  %6908 = vmatpush.bf16.msra.mxu0 %v6839
  %6909 = vmatpush.bf16.msra.mxu0 %v6838
  %6910 = vmatpush.bf16.msra.mxu0 %v6837
  %6911 = vmatpush.bf16.msra.mxu0 %v6836
  %6912 = vmatpush.bf16.msra.mxu0 %v6835
  %6913 = vmatmul.bf16.gmra.mxu0 %v6257
  %v6914 = vpop.f32.mrf.mxu0
  %v6915 = vadd.f32 %v6901, %v6914
  %v6916 = vpop.f32.mrf.mxu0
  %v6917 = vadd.f32 %v6903, %v6916
  %6918 = vdwg.mxu0
  %6919 = vmatpush.bf16.msra.mxu0 %v6850
  %6920 = vmatpush.bf16.msra.mxu0 %v6849
  %6921 = vmatpush.bf16.msra.mxu0 %v6848
  %6922 = vmatpush.bf16.msra.mxu0 %v6847
  %6923 = vmatpush.bf16.msra.mxu0 %v6846
  %6924 = vmatpush.bf16.msra.mxu0 %v6845
  %6925 = vmatpush.bf16.msra.mxu0 %v6844
  %6926 = vmatpush.bf16.msra.mxu0 %v6843
  %6927 = vmatmul.bf16.gmra.mxu0 %v6258
  %v6928 = vpop.f32.mrf.mxu0
  %v6929 = vadd.f32 %v6915, %v6928
  %v6930 = vpop.f32.mrf.mxu0
  %v6931 = vadd.f32 %v6917, %v6930
  %6932 = vdwg.mxu0
  %6933 = vmatpush.bf16.msra.mxu0 %v6858
  %6934 = vmatpush.bf16.msra.mxu0 %v6857
  %6935 = vmatpush.bf16.msra.mxu0 %v6856
  %6936 = vmatpush.bf16.msra.mxu0 %v6855
  %6937 = vmatpush.bf16.msra.mxu0 %v6854
  %6938 = vmatpush.bf16.msra.mxu0 %v6853
  %6939 = vmatpush.bf16.msra.mxu0 %v6852
  %6940 = vmatpush.bf16.msra.mxu0 %v6851
  %6941 = vmatmul.bf16.gmra.mxu0 %v6259
  %v6942 = vpop.f32.mrf.mxu0
  %v6943 = vadd.f32 %v6929, %v6942
  %v6944 = vpop.f32.mrf.mxu0
  %v6945 = vadd.f32 %v6931, %v6944
  %6946 = vdwg.mxu0
  %v6947 = vld [vmem:[%s6064 + $0x20] sm:$0xff]
  %v6948 = vld [vmem:[%s6064 + $0x28] sm:$0xff]
  %v6949 = vld [vmem:[%s6064 + $0x60] sm:$0xff]
  %v6950 = vld [vmem:[%s6064 + $0x68] sm:$0xff]
  %v6951 = vld [vmem:[%s6064 + $0xa0] sm:$0xff]
  %v6952 = vld [vmem:[%s6064 + $0xa8] sm:$0xff]
  %v6953 = vld [vmem:[%s6064 + $0xe0] sm:$0xff]
  %v6954 = vld [vmem:[%s6064 + $0xe8] sm:$0xff]
  %s6955 = scalar_lea.vmem %s6, 35
  %v6956 = vld [vmem:[%s6955] ss:$4 sm:$0xf]
  %v6958 = vperm.slane %v6956, 0
  %v6959 = vperm.slane %v6956, 1
  %v6960 = vperm.slane %v6956, 2
  %v6961 = vperm.slane %v6956, 3
  %v6974 = vunpack.c.l.b16 %v6947
  %v6975 = vunpack.c.h.b16 %v6947
  %v6976 = vunpack.c.l.b16 %v6948
  %v6977 = vunpack.c.h.b16 %v6948
  %v6978 = vunpack.c.l.b16 %v6949
  %v6979 = vunpack.c.h.b16 %v6949
  %v6980 = vunpack.c.l.b16 %v6950
  %v6981 = vunpack.c.h.b16 %v6950
  %v6982 = vunpack.c.l.b16 %v6951
  %v6983 = vunpack.c.h.b16 %v6951
  %v6984 = vunpack.c.l.b16 %v6952
  %v6985 = vunpack.c.h.b16 %v6952
  %v6986 = vunpack.c.l.b16 %v6953
  %v6987 = vunpack.c.h.b16 %v6953
  %v6988 = vunpack.c.l.b16 %v6954
  %v6989 = vunpack.c.h.b16 %v6954
  %v6990 = vpack.c.b16 %v6978, %v6974
  %v6991 = vpack.c.b16 %v6979, %v6975
  %v6992 = vpack.c.b16 %v6980, %v6976
  %v6993 = vpack.c.b16 %v6981, %v6977
  %v6994 = vpack.c.b16 %v6986, %v6982
  %v6995 = vpack.c.b16 %v6987, %v6983
  %v6996 = vpack.c.b16 %v6988, %v6984
  %v6997 = vpack.c.b16 %v6989, %v6985
  %7006 = vmatpush.bf16.msra.mxu0 0
  %7007 = vmatpush.bf16.msra.mxu0 0
  %7008 = vmatpush.bf16.msra.mxu0 0
  %7009 = vmatpush.bf16.msra.mxu0 0
  %7010 = vmatpush.bf16.msra.mxu0 0
  %7011 = vmatpush.bf16.msra.mxu0 0
  %7012 = vmatpush.bf16.msra.mxu0 %v6994
  %7013 = vmatpush.bf16.msra.mxu0 %v6990
  %7014 = vmatmul.bf16.gmra.mxu0 %v6125
  %v7015 = vpop.f32.mrf.mxu0
  %v7016 = vadd.f32 %v6958, %v7015
  %v7017 = vpop.f32.mrf.mxu0
  %v7018 = vadd.f32 %v6958, %v7017
  %7019 = vdwg.mxu0
  %7020 = vmatpush.bf16.msra.mxu0 0
  %7021 = vmatpush.bf16.msra.mxu0 0
  %7022 = vmatpush.bf16.msra.mxu0 0
  %7023 = vmatpush.bf16.msra.mxu0 0
  %7024 = vmatpush.bf16.msra.mxu0 0
  %7025 = vmatpush.bf16.msra.mxu0 0
  %7026 = vmatpush.bf16.msra.mxu0 %v6995
  %7027 = vmatpush.bf16.msra.mxu0 %v6991
  %7028 = vmatmul.bf16.gmra.mxu0 %v6125
  %v7029 = vpop.f32.mrf.mxu0
  %v7030 = vadd.f32 %v6959, %v7029
  %v7031 = vpop.f32.mrf.mxu0
  %v7032 = vadd.f32 %v6959, %v7031
  %7033 = vdwg.mxu0
  %7034 = vmatpush.bf16.msra.mxu0 0
  %7035 = vmatpush.bf16.msra.mxu0 0
  %7036 = vmatpush.bf16.msra.mxu0 0
  %7037 = vmatpush.bf16.msra.mxu0 0
  %7038 = vmatpush.bf16.msra.mxu0 0
  %7039 = vmatpush.bf16.msra.mxu0 0
  %7040 = vmatpush.bf16.msra.mxu0 %v6996
  %7041 = vmatpush.bf16.msra.mxu0 %v6992
  %7042 = vmatmul.bf16.gmra.mxu0 %v6125
  %v7043 = vpop.f32.mrf.mxu0
  %v7044 = vadd.f32 %v6960, %v7043
  %v7045 = vpop.f32.mrf.mxu0
  %v7046 = vadd.f32 %v6960, %v7045
  %7047 = vdwg.mxu0
  %7048 = vmatpush.bf16.msra.mxu0 0
  %7049 = vmatpush.bf16.msra.mxu0 0
  %7050 = vmatpush.bf16.msra.mxu0 0
  %7051 = vmatpush.bf16.msra.mxu0 0
  %7052 = vmatpush.bf16.msra.mxu0 0
  %7053 = vmatpush.bf16.msra.mxu0 0
  %7054 = vmatpush.bf16.msra.mxu0 %v6997
  %7055 = vmatpush.bf16.msra.mxu0 %v6993
  %7056 = vmatmul.bf16.gmra.mxu0 %v6125
  %v7057 = vpop.f32.mrf.mxu0
  %v7058 = vadd.f32 %v6961, %v7057
  %v7059 = vpop.f32.mrf.mxu0
  %v7060 = vadd.f32 %v6961, %v7059
  %7061 = vdwg.mxu0
  %v7062 = vmax.f32 %v7016, 0.0
  %v7063 = vmax.f32 %v7030, 0.0
  %v7064 = vmax.f32 %v7044, 0.0
  %v7065 = vmax.f32 %v7058, 0.0
  %v7066 = vmax.f32 %v7018, 0.0
  %v7067 = vmax.f32 %v7032, 0.0
  %v7068 = vmax.f32 %v7046, 0.0
  %v7069 = vmax.f32 %v7060, 0.0
  %v7070 = vld [vmem:[%s6191 + $0x200] sm:$0xf]
  %v7071 = vld [vmem:[%s6191 + $0x204] sm:$0xf]
  %v7072 = vld [vmem:[%s6191 + $0x208] sm:$0xf]
  %v7073 = vld [vmem:[%s6191 + $0x20c] sm:$0xf]
  %v7074 = vld [vmem:[%s6191 + $0x210] sm:$0xf]
  %v7075 = vld [vmem:[%s6191 + $0x214] sm:$0xf]
  %v7076 = vld [vmem:[%s6191 + $0x218] sm:$0xf]
  %v7077 = vld [vmem:[%s6191 + $0x21c] sm:$0xf]
  %v7078 = vld [vmem:[%s6191 + $0x220] sm:$0xf]
  %v7079 = vld [vmem:[%s6191 + $0x224] sm:$0xf]
  %v7080 = vld [vmem:[%s6191 + $0x228] sm:$0xf]
  %v7081 = vld [vmem:[%s6191 + $0x22c] sm:$0xf]
  %v7082 = vld [vmem:[%s6191 + $0x230] sm:$0xf]
  %v7083 = vld [vmem:[%s6191 + $0x234] sm:$0xf]
  %v7084 = vld [vmem:[%s6191 + $0x238] sm:$0xf]
  %v7085 = vld [vmem:[%s6191 + $0x23c] sm:$0xf]
  %v7086 = vld [vmem:[%s6191 + $0x240] sm:$0xf]
  %v7087 = vld [vmem:[%s6191 + $0x244] sm:$0xf]
  %v7088 = vld [vmem:[%s6191 + $0x248] sm:$0xf]
  %v7089 = vld [vmem:[%s6191 + $0x24c] sm:$0xf]
  %v7090 = vld [vmem:[%s6191 + $0x250] sm:$0xf]
  %v7091 = vld [vmem:[%s6191 + $0x254] sm:$0xf]
  %v7092 = vld [vmem:[%s6191 + $0x258] sm:$0xf]
  %v7093 = vld [vmem:[%s6191 + $0x25c] sm:$0xf]
  %v7094 = vld [vmem:[%s6191 + $0x260] sm:$0xf]
  %v7095 = vld [vmem:[%s6191 + $0x264] sm:$0xf]
  %v7096 = vld [vmem:[%s6191 + $0x268] sm:$0xf]
  %v7097 = vld [vmem:[%s6191 + $0x26c] sm:$0xf]
  %v7098 = vld [vmem:[%s6191 + $0x270] sm:$0xf]
  %v7099 = vld [vmem:[%s6191 + $0x274] sm:$0xf]
  %v7100 = vld [vmem:[%s6191 + $0x278] sm:$0xf]
  %v7101 = vld [vmem:[%s6191 + $0x27c] sm:$0xf]
  %v7102 = vld [vmem:[%s6191 + $0x280] sm:$0xf]
  %v7103 = vld [vmem:[%s6191 + $0x284] sm:$0xf]
  %v7104 = vld [vmem:[%s6191 + $0x288] sm:$0xf]
  %v7105 = vld [vmem:[%s6191 + $0x28c] sm:$0xf]
  %v7106 = vld [vmem:[%s6191 + $0x290] sm:$0xf]
  %v7107 = vld [vmem:[%s6191 + $0x294] sm:$0xf]
  %v7108 = vld [vmem:[%s6191 + $0x298] sm:$0xf]
  %v7109 = vld [vmem:[%s6191 + $0x29c] sm:$0xf]
  %v7110 = vld [vmem:[%s6191 + $0x2a0] sm:$0xf]
  %v7111 = vld [vmem:[%s6191 + $0x2a4] sm:$0xf]
  %v7112 = vld [vmem:[%s6191 + $0x2a8] sm:$0xf]
  %v7113 = vld [vmem:[%s6191 + $0x2ac] sm:$0xf]
  %v7114 = vld [vmem:[%s6191 + $0x2b0] sm:$0xf]
  %v7115 = vld [vmem:[%s6191 + $0x2b4] sm:$0xf]
  %v7116 = vld [vmem:[%s6191 + $0x2b8] sm:$0xf]
  %v7117 = vld [vmem:[%s6191 + $0x2bc] sm:$0xf]
  %v7118 = vld [vmem:[%s6191 + $0x2c0] sm:$0xf]
  %v7119 = vld [vmem:[%s6191 + $0x2c4] sm:$0xf]
  %v7120 = vld [vmem:[%s6191 + $0x2c8] sm:$0xf]
  %v7121 = vld [vmem:[%s6191 + $0x2cc] sm:$0xf]
  %v7122 = vld [vmem:[%s6191 + $0x2d0] sm:$0xf]
  %v7123 = vld [vmem:[%s6191 + $0x2d4] sm:$0xf]
  %v7124 = vld [vmem:[%s6191 + $0x2d8] sm:$0xf]
  %v7125 = vld [vmem:[%s6191 + $0x2dc] sm:$0xf]
  %v7126 = vld [vmem:[%s6191 + $0x2e0] sm:$0xf]
  %v7127 = vld [vmem:[%s6191 + $0x2e4] sm:$0xf]
  %v7128 = vld [vmem:[%s6191 + $0x2e8] sm:$0xf]
  %v7129 = vld [vmem:[%s6191 + $0x2ec] sm:$0xf]
  %v7130 = vld [vmem:[%s6191 + $0x2f0] sm:$0xf]
  %v7131 = vld [vmem:[%s6191 + $0x2f4] sm:$0xf]
  %v7132 = vld [vmem:[%s6191 + $0x2f8] sm:$0xf]
  %v7133 = vld [vmem:[%s6191 + $0x2fc] sm:$0xf]
  %v7134 = vpack.c.bf16 %v7066, %v7062
  %v7135 = vpack.c.bf16 %v7067, %v7063
  %v7136 = vpack.c.bf16 %v7068, %v7064
  %v7137 = vpack.c.bf16 %v7069, %v7065
  %v7202 = vunpack.c.l.b16 %v7070
  %v7203 = vunpack.c.l.b16 %v7071
  %v7204 = vunpack.c.l.b16 %v7072
  %v7205 = vunpack.c.l.b16 %v7073
  %v7206 = vunpack.c.l.b16 %v7074
  %v7207 = vunpack.c.l.b16 %v7075
  %v7208 = vunpack.c.l.b16 %v7076
  %v7209 = vunpack.c.l.b16 %v7077
  %v7210 = vunpack.c.l.b16 %v7078
  %v7211 = vunpack.c.l.b16 %v7079
  %v7212 = vunpack.c.l.b16 %v7080
  %v7213 = vunpack.c.l.b16 %v7081
  %v7214 = vunpack.c.l.b16 %v7082
  %v7215 = vunpack.c.l.b16 %v7083
  %v7216 = vunpack.c.l.b16 %v7084
  %v7217 = vunpack.c.l.b16 %v7085
  %v7218 = vunpack.c.l.b16 %v7086
  %v7219 = vunpack.c.l.b16 %v7087
  %v7220 = vunpack.c.l.b16 %v7088
  %v7221 = vunpack.c.l.b16 %v7089
  %v7222 = vunpack.c.l.b16 %v7090
  %v7223 = vunpack.c.l.b16 %v7091
  %v7224 = vunpack.c.l.b16 %v7092
  %v7225 = vunpack.c.l.b16 %v7093
  %v7226 = vunpack.c.l.b16 %v7094
  %v7227 = vunpack.c.l.b16 %v7095
  %v7228 = vunpack.c.l.b16 %v7096
  %v7229 = vunpack.c.l.b16 %v7097
  %v7230 = vunpack.c.l.b16 %v7098
  %v7231 = vunpack.c.l.b16 %v7099
  %v7232 = vunpack.c.l.b16 %v7100
  %v7233 = vunpack.c.l.b16 %v7101
  %v7234 = vunpack.c.l.b16 %v7102
  %v7235 = vunpack.c.l.b16 %v7103
  %v7236 = vunpack.c.l.b16 %v7104
  %v7237 = vunpack.c.l.b16 %v7105
  %v7238 = vunpack.c.l.b16 %v7106
  %v7239 = vunpack.c.l.b16 %v7107
  %v7240 = vunpack.c.l.b16 %v7108
  %v7241 = vunpack.c.l.b16 %v7109
  %v7242 = vunpack.c.l.b16 %v7110
  %v7243 = vunpack.c.l.b16 %v7111
  %v7244 = vunpack.c.l.b16 %v7112
  %v7245 = vunpack.c.l.b16 %v7113
  %v7246 = vunpack.c.l.b16 %v7114
  %v7247 = vunpack.c.l.b16 %v7115
  %v7248 = vunpack.c.l.b16 %v7116
  %v7249 = vunpack.c.l.b16 %v7117
  %v7250 = vunpack.c.l.b16 %v7118
  %v7251 = vunpack.c.l.b16 %v7119
  %v7252 = vunpack.c.l.b16 %v7120
  %v7253 = vunpack.c.l.b16 %v7121
  %v7254 = vunpack.c.l.b16 %v7122
  %v7255 = vunpack.c.l.b16 %v7123
  %v7256 = vunpack.c.l.b16 %v7124
  %v7257 = vunpack.c.l.b16 %v7125
  %v7258 = vunpack.c.l.b16 %v7126
  %v7259 = vunpack.c.l.b16 %v7127
  %v7260 = vunpack.c.l.b16 %v7128
  %v7261 = vunpack.c.l.b16 %v7129
  %v7262 = vunpack.c.l.b16 %v7130
  %v7263 = vunpack.c.l.b16 %v7131
  %v7264 = vunpack.c.l.b16 %v7132
  %v7265 = vunpack.c.l.b16 %v7133
  %v7266 = vpack.c.b16 %v7203, %v7202
  %v7267 = vpack.c.b16 %v7205, %v7204
  %v7268 = vpack.c.b16 %v7207, %v7206
  %v7269 = vpack.c.b16 %v7209, %v7208
  %v7270 = vpack.c.b16 %v7211, %v7210
  %v7271 = vpack.c.b16 %v7213, %v7212
  %v7272 = vpack.c.b16 %v7215, %v7214
  %v7273 = vpack.c.b16 %v7217, %v7216
  %v7274 = vpack.c.b16 %v7219, %v7218
  %v7275 = vpack.c.b16 %v7221, %v7220
  %v7276 = vpack.c.b16 %v7223, %v7222
  %v7277 = vpack.c.b16 %v7225, %v7224
  %v7278 = vpack.c.b16 %v7227, %v7226
  %v7279 = vpack.c.b16 %v7229, %v7228
  %v7280 = vpack.c.b16 %v7231, %v7230
  %v7281 = vpack.c.b16 %v7233, %v7232
  %v7282 = vpack.c.b16 %v7235, %v7234
  %v7283 = vpack.c.b16 %v7237, %v7236
  %v7284 = vpack.c.b16 %v7239, %v7238
  %v7285 = vpack.c.b16 %v7241, %v7240
  %v7286 = vpack.c.b16 %v7243, %v7242
  %v7287 = vpack.c.b16 %v7245, %v7244
  %v7288 = vpack.c.b16 %v7247, %v7246
  %v7289 = vpack.c.b16 %v7249, %v7248
  %v7290 = vpack.c.b16 %v7251, %v7250
  %v7291 = vpack.c.b16 %v7253, %v7252
  %v7292 = vpack.c.b16 %v7255, %v7254
  %v7293 = vpack.c.b16 %v7257, %v7256
  %v7294 = vpack.c.b16 %v7259, %v7258
  %v7295 = vpack.c.b16 %v7261, %v7260
  %v7296 = vpack.c.b16 %v7263, %v7262
  %v7297 = vpack.c.b16 %v7265, %v7264
  %7330 = vmatpush.bf16.msra.mxu0 %v7273
  %7331 = vmatpush.bf16.msra.mxu0 %v7272
  %7332 = vmatpush.bf16.msra.mxu0 %v7271
  %7333 = vmatpush.bf16.msra.mxu0 %v7270
  %7334 = vmatpush.bf16.msra.mxu0 %v7269
  %7335 = vmatpush.bf16.msra.mxu0 %v7268
  %7336 = vmatpush.bf16.msra.mxu0 %v7267
  %7337 = vmatpush.bf16.msra.mxu0 %v7266
  %7338 = vmatmul.bf16.gmra.mxu0 %v7134
  %v7339 = vpop.f32.mrf.mxu0
  %v7340 = vadd.f32 0.0, %v7339
  %v7341 = vpop.f32.mrf.mxu0
  %v7342 = vadd.f32 0.0, %v7341
  %7343 = vdwg.mxu0
  %7344 = vmatpush.bf16.msra.mxu0 %v7281
  %7345 = vmatpush.bf16.msra.mxu0 %v7280
  %7346 = vmatpush.bf16.msra.mxu0 %v7279
  %7347 = vmatpush.bf16.msra.mxu0 %v7278
  %7348 = vmatpush.bf16.msra.mxu0 %v7277
  %7349 = vmatpush.bf16.msra.mxu0 %v7276
  %7350 = vmatpush.bf16.msra.mxu0 %v7275
  %7351 = vmatpush.bf16.msra.mxu0 %v7274
  %7352 = vmatmul.bf16.gmra.mxu0 %v7135
  %v7353 = vpop.f32.mrf.mxu0
  %v7354 = vadd.f32 %v7340, %v7353
  %v7355 = vpop.f32.mrf.mxu0
  %v7356 = vadd.f32 %v7342, %v7355
  %7357 = vdwg.mxu0
  %7358 = vmatpush.bf16.msra.mxu0 %v7289
  %7359 = vmatpush.bf16.msra.mxu0 %v7288
  %7360 = vmatpush.bf16.msra.mxu0 %v7287
  %7361 = vmatpush.bf16.msra.mxu0 %v7286
  %7362 = vmatpush.bf16.msra.mxu0 %v7285
  %7363 = vmatpush.bf16.msra.mxu0 %v7284
  %7364 = vmatpush.bf16.msra.mxu0 %v7283
  %7365 = vmatpush.bf16.msra.mxu0 %v7282
  %7366 = vmatmul.bf16.gmra.mxu0 %v7136
  %v7367 = vpop.f32.mrf.mxu0
  %v7368 = vadd.f32 %v7354, %v7367
  %v7369 = vpop.f32.mrf.mxu0
  %v7370 = vadd.f32 %v7356, %v7369
  %7371 = vdwg.mxu0
  %7372 = vmatpush.bf16.msra.mxu0 %v7297
  %7373 = vmatpush.bf16.msra.mxu0 %v7296
  %7374 = vmatpush.bf16.msra.mxu0 %v7295
  %7375 = vmatpush.bf16.msra.mxu0 %v7294
  %7376 = vmatpush.bf16.msra.mxu0 %v7293
  %7377 = vmatpush.bf16.msra.mxu0 %v7292
  %7378 = vmatpush.bf16.msra.mxu0 %v7291
  %7379 = vmatpush.bf16.msra.mxu0 %v7290
  %7380 = vmatmul.bf16.gmra.mxu0 %v7137
  %v7381 = vpop.f32.mrf.mxu0
  %v7382 = vadd.f32 %v7368, %v7381
  %v7383 = vpop.f32.mrf.mxu0
  %v7384 = vadd.f32 %v7370, %v7383
  %7385 = vdwg.mxu0
  %v7386 = vadd.f32 %v6943, %v7382
  %v7387 = vadd.f32 %v6945, %v7384
  %v7388 = vld [vmem:[%s6064 + $0x30] sm:$0xff]
  %v7389 = vld [vmem:[%s6064 + $0x38] sm:$0xff]
  %v7390 = vld [vmem:[%s6064 + $0x70] sm:$0xff]
  %v7391 = vld [vmem:[%s6064 + $0x78] sm:$0xff]
  %v7392 = vld [vmem:[%s6064 + $0xb0] sm:$0xff]
  %v7393 = vld [vmem:[%s6064 + $0xb8] sm:$0xff]
  %v7394 = vld [vmem:[%s6064 + $0xf0] sm:$0xff]
  %v7395 = vld [vmem:[%s6064 + $0xf8] sm:$0xff]
  %s7396 = scalar_lea.vmem %s6, 51
  %v7397 = vld [vmem:[%s7396] ss:$4 sm:$0xf]
  %v7399 = vperm.slane %v7397, 0
  %v7400 = vperm.slane %v7397, 1
  %v7401 = vperm.slane %v7397, 2
  %v7402 = vperm.slane %v7397, 3
  %v7415 = vunpack.c.l.b16 %v7388
  %v7416 = vunpack.c.h.b16 %v7388
  %v7417 = vunpack.c.l.b16 %v7389
  %v7418 = vunpack.c.h.b16 %v7389
  %v7419 = vunpack.c.l.b16 %v7390
  %v7420 = vunpack.c.h.b16 %v7390
  %v7421 = vunpack.c.l.b16 %v7391
  %v7422 = vunpack.c.h.b16 %v7391
  %v7423 = vunpack.c.l.b16 %v7392
  %v7424 = vunpack.c.h.b16 %v7392
  %v7425 = vunpack.c.l.b16 %v7393
  %v7426 = vunpack.c.h.b16 %v7393
  %v7427 = vunpack.c.l.b16 %v7394
  %v7428 = vunpack.c.h.b16 %v7394
  %v7429 = vunpack.c.l.b16 %v7395
  %v7430 = vunpack.c.h.b16 %v7395
  %v7431 = vpack.c.b16 %v7419, %v7415
  %v7432 = vpack.c.b16 %v7420, %v7416
  %v7433 = vpack.c.b16 %v7421, %v7417
  %v7434 = vpack.c.b16 %v7422, %v7418
  %v7435 = vpack.c.b16 %v7427, %v7423
  %v7436 = vpack.c.b16 %v7428, %v7424
  %v7437 = vpack.c.b16 %v7429, %v7425
  %v7438 = vpack.c.b16 %v7430, %v7426
  %7447 = vmatpush.bf16.msra.mxu0 0
  %7448 = vmatpush.bf16.msra.mxu0 0
  %7449 = vmatpush.bf16.msra.mxu0 0
  %7450 = vmatpush.bf16.msra.mxu0 0
  %7451 = vmatpush.bf16.msra.mxu0 0
  %7452 = vmatpush.bf16.msra.mxu0 0
  %7453 = vmatpush.bf16.msra.mxu0 %v7435
  %7454 = vmatpush.bf16.msra.mxu0 %v7431
  %7455 = vmatmul.bf16.gmra.mxu0 %v6125
  %v7456 = vpop.f32.mrf.mxu0
  %v7457 = vadd.f32 %v7399, %v7456
  %v7458 = vpop.f32.mrf.mxu0
  %v7459 = vadd.f32 %v7399, %v7458
  %7460 = vdwg.mxu0
  %7461 = vmatpush.bf16.msra.mxu0 0
  %7462 = vmatpush.bf16.msra.mxu0 0
  %7463 = vmatpush.bf16.msra.mxu0 0
  %7464 = vmatpush.bf16.msra.mxu0 0
  %7465 = vmatpush.bf16.msra.mxu0 0
  %7466 = vmatpush.bf16.msra.mxu0 0
  %7467 = vmatpush.bf16.msra.mxu0 %v7436
  %7468 = vmatpush.bf16.msra.mxu0 %v7432
  %7469 = vmatmul.bf16.gmra.mxu0 %v6125
  %v7470 = vpop.f32.mrf.mxu0
  %v7471 = vadd.f32 %v7400, %v7470
  %v7472 = vpop.f32.mrf.mxu0
  %v7473 = vadd.f32 %v7400, %v7472
  %7474 = vdwg.mxu0
  %7475 = vmatpush.bf16.msra.mxu0 0
  %7476 = vmatpush.bf16.msra.mxu0 0
  %7477 = vmatpush.bf16.msra.mxu0 0
  %7478 = vmatpush.bf16.msra.mxu0 0
  %7479 = vmatpush.bf16.msra.mxu0 0
  %7480 = vmatpush.bf16.msra.mxu0 0
  %7481 = vmatpush.bf16.msra.mxu0 %v7437
  %7482 = vmatpush.bf16.msra.mxu0 %v7433
  %7483 = vmatmul.bf16.gmra.mxu0 %v6125
  %v7484 = vpop.f32.mrf.mxu0
  %v7485 = vadd.f32 %v7401, %v7484
  %v7486 = vpop.f32.mrf.mxu0
  %v7487 = vadd.f32 %v7401, %v7486
  %7488 = vdwg.mxu0
  %7489 = vmatpush.bf16.msra.mxu0 0
  %7490 = vmatpush.bf16.msra.mxu0 0
  %7491 = vmatpush.bf16.msra.mxu0 0
  %7492 = vmatpush.bf16.msra.mxu0 0
  %7493 = vmatpush.bf16.msra.mxu0 0
  %7494 = vmatpush.bf16.msra.mxu0 0
  %7495 = vmatpush.bf16.msra.mxu0 %v7438
  %7496 = vmatpush.bf16.msra.mxu0 %v7434
  %7497 = vmatmul.bf16.gmra.mxu0 %v6125
  %v7498 = vpop.f32.mrf.mxu0
  %v7499 = vadd.f32 %v7402, %v7498
  %v7500 = vpop.f32.mrf.mxu0
  %v7501 = vadd.f32 %v7402, %v7500
  %7502 = vdwg.mxu0
  %v7503 = vmax.f32 %v7457, 0.0
  %v7504 = vmax.f32 %v7471, 0.0
  %v7505 = vmax.f32 %v7485, 0.0
  %v7506 = vmax.f32 %v7499, 0.0
  %v7507 = vmax.f32 %v7459, 0.0
  %v7508 = vmax.f32 %v7473, 0.0
  %v7509 = vmax.f32 %v7487, 0.0
  %v7510 = vmax.f32 %v7501, 0.0
  %v7511 = vld [vmem:[%s6191 + $0x300] sm:$0xf]
  %v7512 = vld [vmem:[%s6191 + $0x304] sm:$0xf]
  %v7513 = vld [vmem:[%s6191 + $0x308] sm:$0xf]
  %v7514 = vld [vmem:[%s6191 + $0x30c] sm:$0xf]
  %v7515 = vld [vmem:[%s6191 + $0x310] sm:$0xf]
  %v7516 = vld [vmem:[%s6191 + $0x314] sm:$0xf]
  %v7517 = vld [vmem:[%s6191 + $0x318] sm:$0xf]
  %v7518 = vld [vmem:[%s6191 + $0x31c] sm:$0xf]
  %v7519 = vld [vmem:[%s6191 + $0x320] sm:$0xf]
  %v7520 = vld [vmem:[%s6191 + $0x324] sm:$0xf]
  %v7521 = vld [vmem:[%s6191 + $0x328] sm:$0xf]
  %v7522 = vld [vmem:[%s6191 + $0x32c] sm:$0xf]
  %v7523 = vld [vmem:[%s6191 + $0x330] sm:$0xf]
  %v7524 = vld [vmem:[%s6191 + $0x334] sm:$0xf]
  %v7525 = vld [vmem:[%s6191 + $0x338] sm:$0xf]
  %v7526 = vld [vmem:[%s6191 + $0x33c] sm:$0xf]
  %v7527 = vld [vmem:[%s6191 + $0x340] sm:$0xf]
  %v7528 = vld [vmem:[%s6191 + $0x344] sm:$0xf]
  %v7529 = vld [vmem:[%s6191 + $0x348] sm:$0xf]
  %v7530 = vld [vmem:[%s6191 + $0x34c] sm:$0xf]
  %v7531 = vld [vmem:[%s6191 + $0x350] sm:$0xf]
  %v7532 = vld [vmem:[%s6191 + $0x354] sm:$0xf]
  %v7533 = vld [vmem:[%s6191 + $0x358] sm:$0xf]
  %v7534 = vld [vmem:[%s6191 + $0x35c] sm:$0xf]
  %v7535 = vld [vmem:[%s6191 + $0x360] sm:$0xf]
  %v7536 = vld [vmem:[%s6191 + $0x364] sm:$0xf]
  %v7537 = vld [vmem:[%s6191 + $0x368] sm:$0xf]
  %v7538 = vld [vmem:[%s6191 + $0x36c] sm:$0xf]
  %v7539 = vld [vmem:[%s6191 + $0x370] sm:$0xf]
  %v7540 = vld [vmem:[%s6191 + $0x374] sm:$0xf]
  %v7541 = vld [vmem:[%s6191 + $0x378] sm:$0xf]
  %v7542 = vld [vmem:[%s6191 + $0x37c] sm:$0xf]
  %v7543 = vld [vmem:[%s6191 + $0x380] sm:$0xf]
  %v7544 = vld [vmem:[%s6191 + $0x384] sm:$0xf]
  %v7545 = vld [vmem:[%s6191 + $0x388] sm:$0xf]
  %v7546 = vld [vmem:[%s6191 + $0x38c] sm:$0xf]
  %v7547 = vld [vmem:[%s6191 + $0x390] sm:$0xf]
  %v7548 = vld [vmem:[%s6191 + $0x394] sm:$0xf]
  %v7549 = vld [vmem:[%s6191 + $0x398] sm:$0xf]
  %v7550 = vld [vmem:[%s6191 + $0x39c] sm:$0xf]
  %v7551 = vld [vmem:[%s6191 + $0x3a0] sm:$0xf]
  %v7552 = vld [vmem:[%s6191 + $0x3a4] sm:$0xf]
  %v7553 = vld [vmem:[%s6191 + $0x3a8] sm:$0xf]
  %v7554 = vld [vmem:[%s6191 + $0x3ac] sm:$0xf]
  %v7555 = vld [vmem:[%s6191 + $0x3b0] sm:$0xf]
  %v7556 = vld [vmem:[%s6191 + $0x3b4] sm:$0xf]
  %v7557 = vld [vmem:[%s6191 + $0x3b8] sm:$0xf]
  %v7558 = vld [vmem:[%s6191 + $0x3bc] sm:$0xf]
  %v7559 = vld [vmem:[%s6191 + $0x3c0] sm:$0xf]
  %v7560 = vld [vmem:[%s6191 + $0x3c4] sm:$0xf]
  %v7561 = vld [vmem:[%s6191 + $0x3c8] sm:$0xf]
  %v7562 = vld [vmem:[%s6191 + $0x3cc] sm:$0xf]
  %v7563 = vld [vmem:[%s6191 + $0x3d0] sm:$0xf]
  %v7564 = vld [vmem:[%s6191 + $0x3d4] sm:$0xf]
  %v7565 = vld [vmem:[%s6191 + $0x3d8] sm:$0xf]
  %v7566 = vld [vmem:[%s6191 + $0x3dc] sm:$0xf]
  %v7567 = vld [vmem:[%s6191 + $0x3e0] sm:$0xf]
  %v7568 = vld [vmem:[%s6191 + $0x3e4] sm:$0xf]
  %v7569 = vld [vmem:[%s6191 + $0x3e8] sm:$0xf]
  %v7570 = vld [vmem:[%s6191 + $0x3ec] sm:$0xf]
  %v7571 = vld [vmem:[%s6191 + $0x3f0] sm:$0xf]
  %v7572 = vld [vmem:[%s6191 + $0x3f4] sm:$0xf]
  %v7573 = vld [vmem:[%s6191 + $0x3f8] sm:$0xf]
  %v7574 = vld [vmem:[%s6191 + $0x3fc] sm:$0xf]
  %v7575 = vpack.c.bf16 %v7507, %v7503
  %v7576 = vpack.c.bf16 %v7508, %v7504
  %v7577 = vpack.c.bf16 %v7509, %v7505
  %v7578 = vpack.c.bf16 %v7510, %v7506
  %v7643 = vunpack.c.l.b16 %v7511
  %v7644 = vunpack.c.l.b16 %v7512
  %v7645 = vunpack.c.l.b16 %v7513
  %v7646 = vunpack.c.l.b16 %v7514
  %v7647 = vunpack.c.l.b16 %v7515
  %v7648 = vunpack.c.l.b16 %v7516
  %v7649 = vunpack.c.l.b16 %v7517
  %v7650 = vunpack.c.l.b16 %v7518
  %v7651 = vunpack.c.l.b16 %v7519
  %v7652 = vunpack.c.l.b16 %v7520
  %v7653 = vunpack.c.l.b16 %v7521
  %v7654 = vunpack.c.l.b16 %v7522
  %v7655 = vunpack.c.l.b16 %v7523
  %v7656 = vunpack.c.l.b16 %v7524
  %v7657 = vunpack.c.l.b16 %v7525
  %v7658 = vunpack.c.l.b16 %v7526
  %v7659 = vunpack.c.l.b16 %v7527
  %v7660 = vunpack.c.l.b16 %v7528
  %v7661 = vunpack.c.l.b16 %v7529
  %v7662 = vunpack.c.l.b16 %v7530
  %v7663 = vunpack.c.l.b16 %v7531
  %v7664 = vunpack.c.l.b16 %v7532
  %v7665 = vunpack.c.l.b16 %v7533
  %v7666 = vunpack.c.l.b16 %v7534
  %v7667 = vunpack.c.l.b16 %v7535
  %v7668 = vunpack.c.l.b16 %v7536
  %v7669 = vunpack.c.l.b16 %v7537
  %v7670 = vunpack.c.l.b16 %v7538
  %v7671 = vunpack.c.l.b16 %v7539
  %v7672 = vunpack.c.l.b16 %v7540
  %v7673 = vunpack.c.l.b16 %v7541
  %v7674 = vunpack.c.l.b16 %v7542
  %v7675 = vunpack.c.l.b16 %v7543
  %v7676 = vunpack.c.l.b16 %v7544
  %v7677 = vunpack.c.l.b16 %v7545
  %v7678 = vunpack.c.l.b16 %v7546
  %v7679 = vunpack.c.l.b16 %v7547
  %v7680 = vunpack.c.l.b16 %v7548
  %v7681 = vunpack.c.l.b16 %v7549
  %v7682 = vunpack.c.l.b16 %v7550
  %v7683 = vunpack.c.l.b16 %v7551
  %v7684 = vunpack.c.l.b16 %v7552
  %v7685 = vunpack.c.l.b16 %v7553
  %v7686 = vunpack.c.l.b16 %v7554
  %v7687 = vunpack.c.l.b16 %v7555
  %v7688 = vunpack.c.l.b16 %v7556
  %v7689 = vunpack.c.l.b16 %v7557
  %v7690 = vunpack.c.l.b16 %v7558
  %v7691 = vunpack.c.l.b16 %v7559
  %v7692 = vunpack.c.l.b16 %v7560
  %v7693 = vunpack.c.l.b16 %v7561
  %v7694 = vunpack.c.l.b16 %v7562
  %v7695 = vunpack.c.l.b16 %v7563
  %v7696 = vunpack.c.l.b16 %v7564
  %v7697 = vunpack.c.l.b16 %v7565
  %v7698 = vunpack.c.l.b16 %v7566
  %v7699 = vunpack.c.l.b16 %v7567
  %v7700 = vunpack.c.l.b16 %v7568
  %v7701 = vunpack.c.l.b16 %v7569
  %v7702 = vunpack.c.l.b16 %v7570
  %v7703 = vunpack.c.l.b16 %v7571
  %v7704 = vunpack.c.l.b16 %v7572
  %v7705 = vunpack.c.l.b16 %v7573
  %v7706 = vunpack.c.l.b16 %v7574
  %v7707 = vpack.c.b16 %v7644, %v7643
  %v7708 = vpack.c.b16 %v7646, %v7645
  %v7709 = vpack.c.b16 %v7648, %v7647
  %v7710 = vpack.c.b16 %v7650, %v7649
  %v7711 = vpack.c.b16 %v7652, %v7651
  %v7712 = vpack.c.b16 %v7654, %v7653
  %v7713 = vpack.c.b16 %v7656, %v7655
  %v7714 = vpack.c.b16 %v7658, %v7657
  %v7715 = vpack.c.b16 %v7660, %v7659
  %v7716 = vpack.c.b16 %v7662, %v7661
  %v7717 = vpack.c.b16 %v7664, %v7663
  %v7718 = vpack.c.b16 %v7666, %v7665
  %v7719 = vpack.c.b16 %v7668, %v7667
  %v7720 = vpack.c.b16 %v7670, %v7669
  %v7721 = vpack.c.b16 %v7672, %v7671
  %v7722 = vpack.c.b16 %v7674, %v7673
  %v7723 = vpack.c.b16 %v7676, %v7675
  %v7724 = vpack.c.b16 %v7678, %v7677
  %v7725 = vpack.c.b16 %v7680, %v7679
  %v7726 = vpack.c.b16 %v7682, %v7681
  %v7727 = vpack.c.b16 %v7684, %v7683
  %v7728 = vpack.c.b16 %v7686, %v7685
  %v7729 = vpack.c.b16 %v7688, %v7687
  %v7730 = vpack.c.b16 %v7690, %v7689
  %v7731 = vpack.c.b16 %v7692, %v7691
  %v7732 = vpack.c.b16 %v7694, %v7693
  %v7733 = vpack.c.b16 %v7696, %v7695
  %v7734 = vpack.c.b16 %v7698, %v7697
  %v7735 = vpack.c.b16 %v7700, %v7699
  %v7736 = vpack.c.b16 %v7702, %v7701
  %v7737 = vpack.c.b16 %v7704, %v7703
  %v7738 = vpack.c.b16 %v7706, %v7705
  %7771 = vmatpush.bf16.msra.mxu0 %v7714
  %7772 = vmatpush.bf16.msra.mxu0 %v7713
  %7773 = vmatpush.bf16.msra.mxu0 %v7712
  %7774 = vmatpush.bf16.msra.mxu0 %v7711
  %7775 = vmatpush.bf16.msra.mxu0 %v7710
  %7776 = vmatpush.bf16.msra.mxu0 %v7709
  %7777 = vmatpush.bf16.msra.mxu0 %v7708
  %7778 = vmatpush.bf16.msra.mxu0 %v7707
  %7779 = vmatmul.bf16.gmra.mxu0 %v7575
  %v7780 = vpop.f32.mrf.mxu0
  %v7781 = vadd.f32 0.0, %v7780
  %v7782 = vpop.f32.mrf.mxu0
  %v7783 = vadd.f32 0.0, %v7782
  %7784 = vdwg.mxu0
  %7785 = vmatpush.bf16.msra.mxu0 %v7722
  %7786 = vmatpush.bf16.msra.mxu0 %v7721
  %7787 = vmatpush.bf16.msra.mxu0 %v7720
  %7788 = vmatpush.bf16.msra.mxu0 %v7719
  %7789 = vmatpush.bf16.msra.mxu0 %v7718
  %7790 = vmatpush.bf16.msra.mxu0 %v7717
  %7791 = vmatpush.bf16.msra.mxu0 %v7716
  %7792 = vmatpush.bf16.msra.mxu0 %v7715
  %7793 = vmatmul.bf16.gmra.mxu0 %v7576
  %v7794 = vpop.f32.mrf.mxu0
  %v7795 = vadd.f32 %v7781, %v7794
  %v7796 = vpop.f32.mrf.mxu0
  %v7797 = vadd.f32 %v7783, %v7796
  %7798 = vdwg.mxu0
  %7799 = vmatpush.bf16.msra.mxu0 %v7730
  %7800 = vmatpush.bf16.msra.mxu0 %v7729
  %7801 = vmatpush.bf16.msra.mxu0 %v7728
  %7802 = vmatpush.bf16.msra.mxu0 %v7727
  %7803 = vmatpush.bf16.msra.mxu0 %v7726
  %7804 = vmatpush.bf16.msra.mxu0 %v7725
  %7805 = vmatpush.bf16.msra.mxu0 %v7724
  %7806 = vmatpush.bf16.msra.mxu0 %v7723
  %7807 = vmatmul.bf16.gmra.mxu0 %v7577
  %v7808 = vpop.f32.mrf.mxu0
  %v7809 = vadd.f32 %v7795, %v7808
  %v7810 = vpop.f32.mrf.mxu0
  %v7811 = vadd.f32 %v7797, %v7810
  %7812 = vdwg.mxu0
  %7813 = vmatpush.bf16.msra.mxu0 %v7738
  %7814 = vmatpush.bf16.msra.mxu0 %v7737
  %7815 = vmatpush.bf16.msra.mxu0 %v7736
  %7816 = vmatpush.bf16.msra.mxu0 %v7735
  %7817 = vmatpush.bf16.msra.mxu0 %v7734
  %7818 = vmatpush.bf16.msra.mxu0 %v7733
  %7819 = vmatpush.bf16.msra.mxu0 %v7732
  %7820 = vmatpush.bf16.msra.mxu0 %v7731
  %7821 = vmatmul.bf16.gmra.mxu0 %v7578
  %v7822 = vpop.f32.mrf.mxu0
  %v7823 = vadd.f32 %v7809, %v7822
  %v7824 = vpop.f32.mrf.mxu0
  %v7825 = vadd.f32 %v7811, %v7824
  %7826 = vdwg.mxu0
  %v7827 = vadd.f32 %v7386, %v7823
  %v7828 = vadd.f32 %v7387, %v7825
  %v7829 = vperm.slane %v6062, 0
  %v7830 = vadd.f32 %v7827, %v7829
  %v7831 = vadd.f32 %v7828, %v7829
  %v7832 = vadd.f32 %v6060, %v7830
  %v7833 = vadd.f32 %v6061, %v7831
  %v7834 = vld [vmem:[%s5 + $0x1d] sm:$0x1]
  %v7835 = vld [vmem:[%s5 + $0x1e] sm:$0x1]
  %v7836 = vsel %vm54, %v7832, 0.0
  %7837 = vadd.xlane.f32.xlu0 %v7836
  %v7838 = vpop.xlane.xlu0 %7837
  %v7839 = vsel %vm54, %v7833, 0.0
  %7840 = vadd.xlane.f32.xlu0 %v7839
  %v7841 = vpop.xlane.xlu0 %7840
  %v7842 = vmul.f32 %v7838, %v123
  %v7843 = vmul.f32 %v7841, %v123
  %v7844 = vsub.f32 %v7832, %v7842
  %v7845 = vsub.f32 %v7833, %v7843
  %v7846 = vmul.f32 %v7844, %v7844
  %v7847 = vmul.f32 %v7845, %v7845
  %v7848 = vsel %vm54, %v7846, 0.0
  %7849 = vadd.xlane.f32.xlu0 %v7848
  %v7850 = vpop.xlane.xlu0 %7849
  %v7851 = vsel %vm54, %v7847, 0.0
  %7852 = vadd.xlane.f32.xlu0 %v7851
  %v7853 = vpop.xlane.xlu0 %7852
  %v7854 = vmul.f32 %v7850, %v123
  %v7855 = vmul.f32 %v7853, %v123
  %v7856 = vadd.f32 %v7854, 1e-05
  %v7857 = vadd.f32 %v7855, 1e-05
  %v7858 = vrsqrt.pop %v7856
  %v7859 = vmul.f32 %v7858, %v7856
  %v7860 = vmul.f32 %v7859, %v7858
  %v7861 = vmul.f32 0.5, %v7860
  %v7862 = vsub.f32 1.5, %v7861
  %v7863 = vmul.f32 %v7858, %v7862
  %vm7864 = vweird.f32 %v7856
  %vm7865 = vweird.f32 %v7858
  %vm7866 = vmor %vm7864, %vm7865
  %v7867 = vsel %vm7866, %v7858, %v7863
  %v7868 = vrsqrt.pop %v7857
  %v7869 = vmul.f32 %v7868, %v7857
  %v7870 = vmul.f32 %v7869, %v7868
  %v7871 = vmul.f32 0.5, %v7870
  %v7872 = vsub.f32 1.5, %v7871
  %v7873 = vmul.f32 %v7868, %v7872
  %vm7874 = vweird.f32 %v7857
  %vm7875 = vweird.f32 %v7868
  %vm7876 = vmor %vm7874, %vm7875
  %v7877 = vsel %vm7876, %v7868, %v7873
  %v7878 = vmul.f32 %v7844, %v7867
  %v7879 = vmul.f32 %v7845, %v7877
  %v7880 = vperm.slane %v7834, 0
  %v7881 = vmul.f32 %v7878, %v7880
  %v7882 = vmul.f32 %v7879, %v7880
  %v7883 = vperm.slane %v7835, 0
  %v7884 = vadd.f32 %v7881, %v7883
  %v7885 = vadd.f32 %v7882, %v7883
  %v7886 = vpack.c.bf16 %v7885, %v7884
  %v7887 = vld [vmem:[%s7] sm:$0xf]
  %v7888 = vld [vmem:[%s7 + $0x4] sm:$0xf]
  %v7889 = vld [vmem:[%s7 + $0x8] sm:$0xf]
  %v7890 = vld [vmem:[%s7 + $0xc] sm:$0xf]
  %v7891 = vld [vmem:[%s8] sm:$0x1]
  %v7893 = vperm.slane %v7891, 0
  %v7899 = vunpack.c.l.b16 %v7887
  %v7900 = vunpack.c.l.b16 %v7888
  %v7901 = vunpack.c.l.b16 %v7889
  %v7902 = vunpack.c.l.b16 %v7890
  %v7903 = vpack.c.b16 %v7900, %v7899
  %v7904 = vpack.c.b16 %v7902, %v7901
  %v7908 = vsel %vm54, %v7886, 0
  %7910 = vmatpush.bf16.msra.mxu0 0
  %7911 = vmatpush.bf16.msra.mxu0 0
  %7912 = vmatpush.bf16.msra.mxu0 0
  %7913 = vmatpush.bf16.msra.mxu0 0
  %7914 = vmatpush.bf16.msra.mxu0 0
  %7915 = vmatpush.bf16.msra.mxu0 0
  %7916 = vmatpush.bf16.msra.mxu0 %v7904
  %7917 = vmatpush.bf16.msra.mxu0 %v7903
  %7918 = vmatmul.bf16.gmra.mxu0 %v7908
  %v7919 = vpop.f32.mrf.mxu0
  %v7920 = vadd.f32 %v7893, %v7919
  %v7921 = vpop.f32.mrf.mxu0
  %v7922 = vadd.f32 %v7893, %v7921
  %7923 = vdwg.mxu0
  %7924 = vst [vmem:[%s9] sm:$0xff] %v7920
  %7925 = vst [vmem:[%s9 + $0x8] sm:$0xff] %v7922
  // Predicated region
  $region38: #{tft_forward.1} parent=0 // pred_check
    _
  $region39: #{tft_forward.1} parent=0 // pred_check_branch
    %7927 = sbr.rel (0) target = $region41
  $region40: #{tft_forward.1} parent=0 // pred_region
    _
  $region41: #{tft_forward.1} parent=0 // pred_fallthru
    _
  // Predicated region
  $region42: #{tft_forward.1} parent=0 // pred_check
    _
  $region43: #{tft_forward.1} parent=0 // pred_check_branch
    %7929 = sbr.rel (0) target = $region45
  $region44: #{tft_forward.1} parent=0 // pred_region
    _
  $region45: #{tft_forward.1} parent=0 // pred_fallthru
    _

</llo_original>
